<compile_context>
chip_gen: v7x
topology: tpu7x:2x2x1
jax: 0.10.0
libtpu: 0.0.40
codegen_flags: <defaults>
</compile_context>

<pallas_src>
import functools

import jax
import jax.numpy as jnp
from jax.experimental import pallas as pl
from jax.experimental.pallas import tpu as pltpu

# Make the JAX reference matmuls exact f32 so the f32 kernel check is meaningful.
jax.config.update("jax_default_matmul_precision", "highest")

# Memory-space constant for "whole array resident in VMEM" BlockSpecs.
_VMEM_SPACE = getattr(pltpu, "MemorySpace", pltpu).VMEM


# ------------------------------ small helpers -------------------------------

def _round_up(x, m):
    return ((x + m - 1) // m) * m


def _vmem_capacity_bytes():
    try:
        return int(pltpu.get_tpu_info().vmem_capacity_bytes)
    except Exception:
        return 64 << 20          # conservative default (v7x per-TensorCore VMEM)


def _fused_vmem_estimate(n, f_in, d, c_pad, op_bytes):
    """Rough VMEM footprint of the whole-graph fused kernel."""
    io = (n * n + n * f_in) * op_bytes + n * c_pad * 4          # A_hat, X in; out
    weights = (f_in * d + d * d + d * c_pad) * op_bytes + (2 * d + c_pad) * 4
    interm = (n * f_in + 3 * n * d + n * c_pad) * 4             # f32 temporaries
    return io + weights + interm


# --------------------------- fused whole-graph path --------------------------
# Used when the dense A_hat (+ intermediates) comfortably fits VMEM: everything
# stays resident, only the padded classifier slab is written back.

def _fused_masked_gcn_kernel(a_ref, x_ref, w1_ref, b1_ref, w2_ref, b2_ref,
                             w3_ref, b3_ref, o_ref):
    a = a_ref[...]                     # already in compute dtype (pre-cast outside)
    cdt = a.dtype

    # layer 1: (A @ X) @ W1_eff   (F_in < n_dims -> aggregate first; same result up
    # to f32 accumulation order)
    ax = jnp.dot(a, x_ref[...], preferred_element_type=jnp.float32)
    h = jnp.dot(ax.astype(cdt), w1_ref[...],
                preferred_element_type=jnp.float32) + b1_ref[...]
    h = jnp.maximum(h, 0.0)                                   # ReLU (dropout = id)

    # layer 2: A @ (H @ W2_eff)
    hw = jnp.dot(h.astype(cdt), w2_ref[...], preferred_element_type=jnp.float32)
    h2 = jnp.dot(a, hw.astype(cdt),
                 preferred_element_type=jnp.float32) + b2_ref[...]
    h2 = jnp.maximum(h2, 0.0)                                 # ReLU (dropout = id)

    # classifier (lane-dense, 128-padded out-dim)
    out = jnp.dot(h2.astype(cdt), w3_ref[...],
                  preferred_element_type=jnp.float32) + b3_ref[...]
    o_ref[...] = out.astype(o_ref.dtype)


@jax.jit
def _forward_fused(eff, x, a_hat):
    n, f_in = x.shape
    d = eff["w1"].shape[1]
    c_pad = eff["w3"].shape[1]
    op_bytes = jnp.dtype(x.dtype).itemsize

    flops = 2 * (n * n * f_in + n * f_in * d + n * d * d + n * n * d + n * d * c_pad)
    bytes_accessed = ((n * n + n * f_in + f_in * d + d * d + d * c_pad) * op_bytes
                      + (2 * d + c_pad) * 4 + n * c_pad * 4)

    est = _fused_vmem_estimate(n, f_in, d, c_pad, op_bytes)
    cap = _vmem_capacity_bytes()
    vmem_limit = int(min(int(0.9 * cap), max(2 * est, 32 << 20)))

    vspec = pl.BlockSpec(memory_space=_VMEM_SPACE)
    return pl.pallas_call(
        _fused_masked_gcn_kernel,
        out_shape=jax.ShapeDtypeStruct((n, c_pad), jnp.float32),
        in_specs=[vspec] * 8,
        out_specs=vspec,
        compiler_params=pltpu.CompilerParams(vmem_limit_bytes=vmem_limit),
        cost_estimate=pl.CostEstimate(flops=flops, transcendentals=0,
                                      bytes_accessed=bytes_accessed),
    )(a_hat, x, eff["w1"], eff["b1"], eff["w2"], eff["b2"], eff["w3"], eff["b3"])


# ------------------------------ row-tiled path -------------------------------
# For graphs whose dense A_hat does not fit VMEM (and to use both v7x TensorCores):
# grid (row tiles = "parallel", A-column tiles = "arbitrary"); A_hat blocks are
# double-buffered by the BlockSpec pipeline. Each aggregation call's epilogue also
# applies the next layer's weight so the hidden state round-trips HBM only once per
# layer and in the compute dtype.

def _linear_kernel(x_ref, w_ref, b_ref, o_ref, acc_ref):
    kk = pl.program_id(1)

    @pl.when(kk == 0)
    def _():
        acc_ref[...] = jnp.zeros_like(acc_ref)

    acc_ref[...] += jnp.dot(x_ref[...], w_ref[...], preferred_element_type=jnp.float32)

    @pl.when(kk == pl.num_programs(1) - 1)
    def _():
        o_ref[...] = (acc_ref[...] + b_ref[...]).astype(o_ref.dtype)


def _linear_tiled(x, w, b, *, tile_m, tile_k, out_dtype):
    m, k = x.shape
    dout = w.shape[1]
    grid = (m // tile_m, k // tile_k)
    flops = 2 * m * k * dout
    bytes_accessed = (x.size * x.dtype.itemsize + w.size * w.dtype.itemsize
                      + b.size * 4 + m * dout * jnp.dtype(out_dtype).itemsize)
    return pl.pallas_call(
        _linear_kernel,
        out_shape=jax.ShapeDtypeStruct((m, dout), out_dtype),
        grid_spec=pltpu.PrefetchScalarGridSpec(
            num_scalar_prefetch=0, grid=grid,
            in_specs=[pl.BlockSpec((tile_m, tile_k), lambda i, kk: (i, kk)),
                      pl.BlockSpec((tile_k, dout), lambda i, kk: (kk, 0)),
                      pl.BlockSpec((1, dout), lambda i, kk: (0, 0))],
            out_specs=pl.BlockSpec((tile_m, dout), lambda i, kk: (i, 0)),
            scratch_shapes=[pltpu.VMEM((tile_m, dout), jnp.float32)]),
        compiler_params=pltpu.CompilerParams(
            dimension_semantics=("parallel", "arbitrary")),
        cost_estimate=pl.CostEstimate(flops=flops, transcendentals=0,
                                      bytes_accessed=bytes_accessed),
    )(x, w, b)


def _gcn_agg_kernel(a_ref, z_ref, b_ref, w_ref, b2_ref, o_ref, acc_ref):
    """out_tile = relu(sum_k A[i,k] @ Z[k] + b) @ W + b2, accumulated over k."""
    kk = pl.program_id(1)

    @pl.when(kk == 0)
    def _():
        acc_ref[...] = jnp.zeros_like(acc_ref)

    acc_ref[...] += jnp.dot(a_ref[...], z_ref[...], preferred_element_type=jnp.float32)

    @pl.when(kk == pl.num_programs(1) - 1)
    def _():
        h = jnp.maximum(acc_ref[...] + b_ref[...], 0.0)
        out = jnp.dot(h.astype(w_ref.dtype), w_ref[...],
                      preferred_element_type=jnp.float32) + b2_ref[...]
        o_ref[...] = out.astype(o_ref.dtype)


def _gcn_layer_tiled(a, z, b_pre, w_post, b_post, *, tile, out_dtype):
    n_p = a.shape[0]
    d = z.shape[1]
    dout = w_post.shape[1]
    grid = (n_p // tile, n_p // tile)
    flops = 2 * (n_p * n_p * d + n_p * d * dout)
    bytes_accessed = (a.size * a.dtype.itemsize + z.size * z.dtype.itemsize
                      + w_post.size * w_post.dtype.itemsize
                      + n_p * dout * jnp.dtype(out_dtype).itemsize)
    return pl.pallas_call(
        _gcn_agg_kernel,
        out_shape=jax.ShapeDtypeStruct((n_p, dout), out_dtype),
        grid_spec=pltpu.PrefetchScalarGridSpec(
            num_scalar_prefetch=0, grid=grid,
            in_specs=[pl.BlockSpec((tile, tile), lambda i, k: (i, k)),   # A block
                      pl.BlockSpec((tile, d), lambda i, k: (k, 0)),      # Z block
                      pl.BlockSpec((1, d), lambda i, k: (0, 0)),         # pre-bias
                      pl.BlockSpec((d, dout), lambda i, k: (0, 0)),      # next-layer W
                      pl.BlockSpec((1, dout), lambda i, k: (0, 0))],     # next bias
            out_specs=pl.BlockSpec((tile, dout), lambda i, k: (i, 0)),
            scratch_shapes=[pltpu.VMEM((tile, d), jnp.float32)]),
        compiler_params=pltpu.CompilerParams(
            dimension_semantics=("parallel", "arbitrary")),
        cost_estimate=pl.CostEstimate(flops=flops, transcendentals=0,
                                      bytes_accessed=bytes_accessed),
    )(a, z, b_pre, w_post, b_post)


@jax.jit
def _forward_tiled(eff, x, a_hat):
    n, f_in = x.shape
    d = eff["w1"].shape[1]
    cdt = eff["w1"].dtype

    # >=256-row tiles keep the v6e/v7x 2x256x256 MXU full; 128 for small graphs.
    tile = 256 if n >= 512 else 128
    n_p = _round_up(n, tile)
    if n_p != n:
        a_hat = jnp.pad(a_hat, ((0, n_p - n), (0, n_p - n)))
        x = jnp.pad(x, ((0, n_p - n), (0, 0)))

    # Contraction tiling for X @ W1_eff (feature dim can be large, e.g. Cora 1433).
    tk = f_in if f_in <= 512 else 256
    f_p = _round_up(f_in, tk)
    w1 = eff["w1"]
    if f_p != f_in:
        x = jnp.pad(x, ((0, 0), (0, f_p - f_in)))
        w1 = jnp.pad(w1, ((0, f_p - f_in), (0, 0)))

    zb = jnp.zeros((1, d), jnp.float32)
    hw1 = _linear_tiled(x, w1, zb, tile_m=tile, tile_k=tk, out_dtype=cdt)
    hw2 = _gcn_layer_tiled(a_hat, hw1, eff["b1"], eff["w2"], zb,
                           tile=tile, out_dtype=cdt)              # relu(A@hw1+b1)@W2
    out = _gcn_layer_tiled(a_hat, hw2, eff["b2"], eff["w3"], eff["b3"],
                           tile=tile, out_dtype=jnp.float32)      # relu(A@hw2+b2)@W3+b3
    return out


# ------------------------------- public API ---------------------------------

def prepare_params(raw, *, compute_dtype=jnp.bfloat16):
    """Eval-time parameter prep, done ONCE outside the per-call path: fold W*M,
    cast MXU operands to the compute dtype, pad the classifier out-dim to a
    lane-dense multiple of 128 (biases stay f32; they are added to f32 accums)."""
    n_clss = raw["clsif_w"].shape[1]
    pad = (-n_clss) % 128
    w3 = raw["clsif_w"] * raw["clsif_mask"]
    eff = {
        "w1": (raw["conv1_w"] * raw["conv1_mask"]).astype(compute_dtype),
        "b1": raw["conv1_b"].astype(jnp.float32),
        "w2": (raw["conv2_w"] * raw["conv2_mask"]).astype(compute_dtype),
        "b2": raw["conv2_b"].astype(jnp.float32),
        "w3": jnp.pad(w3, ((0, 0), (0, pad))).astype(compute_dtype),
        "b3": jnp.pad(raw["clsif_b"], ((0, 0), (0, pad))).astype(jnp.float32),
    }
    return eff, n_clss


def masked_gcn_forward(eff, x, a_hat, n_clss, *, path="auto"):
    """Full MaskedGCN forward. A_hat/X are cast to the prepared compute dtype here
    (in real serving, cache A_hat in that dtype per graph so this cast is one-time).
    Path "auto" uses the whole-graph fused kernel when it fits VMEM, else row-tiled."""
    cdt = eff["w1"].dtype
    x_c = x.astype(cdt)
    a_c = a_hat.astype(cdt)
    if path == "auto":
        est = _fused_vmem_estimate(x.shape[0], x.shape[1], eff["w1"].shape[1],
                                   eff["w3"].shape[1], jnp.dtype(cdt).itemsize)
        path = "fused" if est <= 0.7 * _vmem_capacity_bytes() else "tiled"
    out = _forward_fused(eff, x_c, a_c) if path == "fused" else _forward_tiled(eff, x_c, a_c)
    return out[: x.shape[0], :n_clss]


# ------------------------------- glue (JAX) ----------------------------------

def gcn_norm_dense(edge_index, edge_weight, num_nodes):
    """Dense D^{-1/2}(A + I_remaining)D^{-1/2} from COO edges (PyG gcn_norm:
    duplicate edges sum; unit self-loops added only where none exist)."""
    src, dst = edge_index[0], edge_index[1]
    a = jnp.zeros((num_nodes, num_nodes), jnp.float32)
    a = a.at[dst, src].add(edge_weight.astype(jnp.float32))
    diag = jnp.diagonal(a)
    a = a + jnp.diag(jnp.where(diag == 0.0, 1.0, 0.0))
    deg = a.sum(axis=1)
    d_inv_sqrt = jnp.where(deg > 0, 1.0 / jnp.sqrt(deg), 0.0)
    return d_inv_sqrt[:, None] * a * d_inv_sqrt[None, :]


def init_params(key, n_feat, n_dims, n_clss):
    ks = jax.random.split(key, 9)

    def glorot(k, shape):
        fan_in, fan_out = shape
        lim = jnp.sqrt(6.0 / (fan_in + fan_out))
        return jax.random.uniform(k, shape, jnp.float32, -lim, lim)

    return {
        "conv1_w": glorot(ks[0], (n_feat, n_dims)),
        "conv1_mask": 1.0 + 0.1 * jax.random.normal(ks[1], (n_feat, n_dims)),
        "conv1_b": 0.01 * jax.random.normal(ks[2], (1, n_dims)),
        "conv2_w": glorot(ks[3], (n_dims, n_dims)),
        "conv2_mask": 1.0 + 0.1 * jax.random.normal(ks[4], (n_dims, n_dims)),
        "conv2_b": 0.01 * jax.random.normal(ks[5], (1, n_dims)),
        "clsif_w": glorot(ks[6], (n_dims, n_clss)),
        "clsif_mask": 1.0 + 0.1 * jax.random.normal(ks[7], (n_dims, n_clss)),
        "clsif_b": 0.01 * jax.random.normal(ks[8], (1, n_clss)),
    }


def reference_forward(params, x, a_hat):
    h = jnp.maximum(a_hat @ (x @ (params["conv1_w"] * params["conv1_mask"]))
                    + params["conv1_b"], 0.0)
    h = jnp.maximum(a_hat @ (h @ (params["conv2_w"] * params["conv2_mask"]))
                    + params["conv2_b"], 0.0)
    return h @ (params["clsif_w"] * params["clsif_mask"]) + params["clsif_b"]


# ---------------------------------- main -------------------------------------

if __name__ == "__main__":
    n_nodes, n_edges = 256, 1024                   # >=128 rows: MXU not starved
    n_feat, n_dims, n_clss = 16, 128, 8            # n_dims=128 -> lane-dense hidden

    key = jax.random.PRNGKey(0)
    k_x, k_src, k_dst, k_ew, k_p = jax.random.split(key, 5)

    x = jax.random.normal(k_x, (n_nodes, n_feat), jnp.float32)
    edge_index = jnp.stack([
        jax.random.randint(k_src, (n_edges,), 0, n_nodes),
        jax.random.randint(k_dst, (n_edges,), 0, n_nodes),
    ])
    edge_weight = jax.random.uniform(k_ew, (n_edges,), jnp.float32, 0.1, 1.0)

    a_hat = gcn_norm_dense(edge_index, edge_weight, n_nodes)
    raw = init_params(k_p, n_feat, n_dims, n_clss)
    ref = reference_forward(raw, x, a_hat)

    # f32 compute dtype: tight check of both the fused and the row-tiled path.
    eff32, nc = prepare_params(raw, compute_dtype=jnp.float32)
    out_f = jax.block_until_ready(masked_gcn_forward(eff32, x, a_hat, nc, path="fused"))
    out_t = jax.block_until_ready(masked_gcn_forward(eff32, x, a_hat, nc, path="tiled"))
    assert out_f.shape == (n_nodes, n_clss), out_f.shape
    assert out_t.shape == (n_nodes, n_clss), out_t.shape
    assert jnp.allclose(out_f, ref, atol=2e-3, rtol=2e-3), "fused f32 mismatch vs reference"
    assert jnp.allclose(out_t, ref, atol=2e-3, rtol=2e-3), "tiled f32 mismatch vs reference"

    # bf16 MXU operands (recommended default at scale on v5e/v6e/v7x): loose tolerance.
    eff16, _ = prepare_params(raw, compute_dtype=jnp.bfloat16)
    out_f16 = jax.block_until_ready(masked_gcn_forward(eff16, x, a_hat, nc, path="fused"))
    out_t16 = jax.block_until_ready(masked_gcn_forward(eff16, x, a_hat, nc, path="tiled"))
    out_auto = jax.block_until_ready(masked_gcn_forward(eff16, x, a_hat, nc))   # VMEM-gated
    assert out_f16.shape == (n_nodes, n_clss)
    assert out_t16.shape == (n_nodes, n_clss)
    assert out_auto.shape == (n_nodes, n_clss)
    assert jnp.allclose(out_f16, ref, atol=0.2, rtol=0.2), "fused bf16 mismatch vs reference"
    assert jnp.allclose(out_t16, ref, atol=0.2, rtol=0.2), "tiled bf16 mismatch vs reference"

    print("KERNEL_OK")
</pallas_src>

<mosaic_0001>
module attributes {stable_mosaic.version = 11 : i64} {
  func.func @_fused_masked_gcn_kernel(%arg0: memref<256x256xf32, #tpu.memory_space<vmem>>, %arg1: memref<256x16xf32, #tpu.memory_space<vmem>>, %arg2: memref<16x128xf32, #tpu.memory_space<vmem>>, %arg3: memref<1x128xf32, #tpu.memory_space<vmem>>, %arg4: memref<128x128xf32, #tpu.memory_space<vmem>>, %arg5: memref<1x128xf32, #tpu.memory_space<vmem>>, %arg6: memref<128x128xf32, #tpu.memory_space<vmem>>, %arg7: memref<1x128xf32, #tpu.memory_space<vmem>>, %arg8: memref<256x128xf32, #tpu.memory_space<vmem>>) attributes {dimension_semantics = [], scalar_prefetch = 0 : i64, scratch_operands = 0 : i64, tpu.core_type = #tpu.core_type<tc>} {
    %c0 = arith.constant 0 : index
    %c0_0 = arith.constant 0 : index
    %0 = vector.load %arg0[%c0, %c0_0] : memref<256x256xf32, #tpu.memory_space<vmem>>, vector<256x256xf32>
    %c0_1 = arith.constant 0 : index
    %c0_2 = arith.constant 0 : index
    %1 = vector.load %arg1[%c0_1, %c0_2] : memref<256x16xf32, #tpu.memory_space<vmem>>, vector<256x16xf32>
    %cst = arith.constant dense<0.000000e+00> : vector<256x16xf32>
    %2 = tpu.matmul %0, %1, %cst {dimension_numbers = #tpu.dot_dimension_numbers<[1], [0], [0], [1], [0, 0, 1, 1], [], []>, precision = #tpu.contract_precision<fp32>} : vector<256x256xf32>, vector<256x16xf32>, vector<256x16xf32> -> vector<256x16xf32>
    %c0_3 = arith.constant 0 : index
    %c0_4 = arith.constant 0 : index
    %3 = vector.load %arg2[%c0_3, %c0_4] : memref<16x128xf32, #tpu.memory_space<vmem>>, vector<16x128xf32>
    %cst_5 = arith.constant dense<0.000000e+00> : vector<256x128xf32>
    %4 = tpu.matmul %2, %3, %cst_5 {dimension_numbers = #tpu.dot_dimension_numbers<[1], [0], [0], [1], [0, 0, 1, 1], [], []>, precision = #tpu.contract_precision<fp32>} : vector<256x16xf32>, vector<16x128xf32>, vector<256x128xf32> -> vector<256x128xf32>
    %c0_6 = arith.constant 0 : index
    %c0_7 = arith.constant 0 : index
    %5 = vector.load %arg3[%c0_6, %c0_7] : memref<1x128xf32, #tpu.memory_space<vmem>>, vector<1x128xf32>
    %6 = vector.broadcast %5 : vector<1x128xf32> to vector<256x128xf32>
    %7 = arith.addf %4, %6 : vector<256x128xf32>
    %cst_8 = arith.constant 0.000000e+00 : f32
    %8 = vector.broadcast %cst_8 : f32 to vector<256x128xf32>
    %9 = arith.maximumf %7, %8 : vector<256x128xf32>
    %c0_9 = arith.constant 0 : index
    %c0_10 = arith.constant 0 : index
    %10 = vector.load %arg4[%c0_9, %c0_10] : memref<128x128xf32, #tpu.memory_space<vmem>>, vector<128x128xf32>
    %cst_11 = arith.constant dense<0.000000e+00> : vector<256x128xf32>
    %11 = tpu.matmul %9, %10, %cst_11 {dimension_numbers = #tpu.dot_dimension_numbers<[1], [0], [0], [1], [0, 0, 1, 1], [], []>, precision = #tpu.contract_precision<fp32>} : vector<256x128xf32>, vector<128x128xf32>, vector<256x128xf32> -> vector<256x128xf32>
    %cst_12 = arith.constant dense<0.000000e+00> : vector<256x128xf32>
    %12 = tpu.matmul %0, %11, %cst_12 {dimension_numbers = #tpu.dot_dimension_numbers<[1], [0], [0], [1], [0, 0, 1, 1], [], []>, precision = #tpu.contract_precision<fp32>} : vector<256x256xf32>, vector<256x128xf32>, vector<256x128xf32> -> vector<256x128xf32>
    %c0_13 = arith.constant 0 : index
    %c0_14 = arith.constant 0 : index
    %13 = vector.load %arg5[%c0_13, %c0_14] : memref<1x128xf32, #tpu.memory_space<vmem>>, vector<1x128xf32>
    %14 = vector.broadcast %13 : vector<1x128xf32> to vector<256x128xf32>
    %15 = arith.addf %12, %14 : vector<256x128xf32>
    %cst_15 = arith.constant 0.000000e+00 : f32
    %16 = vector.broadcast %cst_15 : f32 to vector<256x128xf32>
    %17 = arith.maximumf %15, %16 : vector<256x128xf32>
    %c0_16 = arith.constant 0 : index
    %c0_17 = arith.constant 0 : index
    %18 = vector.load %arg6[%c0_16, %c0_17] : memref<128x128xf32, #tpu.memory_space<vmem>>, vector<128x128xf32>
    %cst_18 = arith.constant dense<0.000000e+00> : vector<256x128xf32>
    %19 = tpu.matmul %17, %18, %cst_18 {dimension_numbers = #tpu.dot_dimension_numbers<[1], [0], [0], [1], [0, 0, 1, 1], [], []>, precision = #tpu.contract_precision<fp32>} : vector<256x128xf32>, vector<128x128xf32>, vector<256x128xf32> -> vector<256x128xf32>
    %c0_19 = arith.constant 0 : index
    %c0_20 = arith.constant 0 : index
    %20 = vector.load %arg7[%c0_19, %c0_20] : memref<1x128xf32, #tpu.memory_space<vmem>>, vector<1x128xf32>
    %21 = vector.broadcast %20 : vector<1x128xf32> to vector<256x128xf32>
    %22 = arith.addf %19, %21 : vector<256x128xf32>
    %c0_21 = arith.constant 0 : index
    %c0_22 = arith.constant 0 : index
    %23 = vector.load %arg8[%c0_21, %c0_22] : memref<256x128xf32, #tpu.memory_space<vmem>>, vector<256x128xf32>
    tpu.vector_store %arg8[%c0_21, %c0_22], %22 {strides = array<i32>} : memref<256x128xf32, #tpu.memory_space<vmem>>, vector<256x128xf32>,
    return
  }
}

</mosaic_0001>

<llo_original>
// kernel: _forward_fused.1
$region0: #{_forward_fused.1}
  #allocation0 [shape = 'u32[]', space=smem, size = 0x4, offset = 0x4, fixed_abs, tag = 'smem constant byte address 0x4 - core index']
  #allocation1 [shape = 'u32[144,128]{1,0:T(1,128)}', space=vmem, size = 0x12000, scoped, tag = 'internal scratch']
  %s0 = inlined_call_operand.hbm [shape: f32[256,256], index: 0, kind: input, shape index: {}]
  %s1 = inlined_call_operand.vmem [shape: f32[256,16], index: 1, kind: input, shape index: {}]
  %s2 = inlined_call_operand.vmem [shape: f32[16,128], index: 2, kind: input, shape index: {}]
  %s3 = inlined_call_operand.vmem [shape: f32[1,128], index: 3, kind: input, shape index: {}]
  %s4 = inlined_call_operand.vmem [shape: f32[128,128], index: 4, kind: input, shape index: {}]
  %s5 = inlined_call_operand.vmem [shape: f32[1,128], index: 5, kind: input, shape index: {}]
  %s6 = inlined_call_operand.vmem [shape: f32[128,128], index: 6, kind: input, shape index: {}]
  %s7 = inlined_call_operand.vmem [shape: f32[1,128], index: 7, kind: input, shape index: {}]
  %s8 = inlined_call_operand.hbm [shape: f32[256,128], index: 8, kind: output, shape index: {}]
  %s9 = sld [smem:[#allocation0]]
  $region46: #{_forward_fused.1} parent=0
    _
  %s11 = ssub.s32 1, %s9
  %s12 = scalar_select 0, %s11, %s9
  $region1: #{_forward_fused.1} parent=0
    #allocation2 [shape = 'u8[262144]{0}', space=vmem, size = 0x40000, scoped, tag = 'input window, operand 0, single buffered']
    #allocation3 [shape = 's32[1]{0}', space=sflag, size = 0x4, scoped, tag = 'scoped memory for _forward_fused.1']
    #allocation4 [shape = 's32[1]{0}', space=sflag, size = 0x4, scoped, tag = 'scoped memory for _forward_fused.1']
    #allocation5 [shape = 'u8[131072]{0}', space=vmem, size = 0x20000, scoped, tag = 'output window, operand 0, single buffered']
    %13 = vsyncpa [#allocation3], 0
    %14 = vsyncpa [#allocation4], 0
    // Predicated region
    $region2: #{_forward_fused.1} parent=1 // pred_check
      _
    $region3: #{_forward_fused.1} parent=1 // pred_check_branch
      %16 = sbr.rel (0) target = $region5
    $region4: #{_forward_fused.1} parent=1 // pred_region
      %s18 = ssub.s32 8192, 8192
      %19 = vsyncadd [#allocation3], %s18
      %s20 = sshll.u32 [#allocation2], 4
      %s21 = int_to_ptr.vmem [resolvable:$true] %s20
      %26 = dma.hbm_to_vmem [thread:$0]  %s0, 8192, %s21, [#allocation3], 256, 256, 16
    $region5: #{_forward_fused.1} parent=1 // pred_fallthru
      _
    // Predicated region
    $region6: #{_forward_fused.1} parent=1 // pred_check
      _
    $region7: #{_forward_fused.1} parent=1 // pred_check_branch
      %28 = sbr.rel (0) target = $region9
    $region8: #{_forward_fused.1} parent=1 // pred_region
      _
    $region9: #{_forward_fused.1} parent=1 // pred_fallthru
      _
    // Predicated region
    $region10: #{_forward_fused.1} parent=1 // pred_check
      _
    $region11: #{_forward_fused.1} parent=1 // pred_check_branch
      %30 = sbr.rel (0) target = $region13
    $region12: #{_forward_fused.1} parent=1 // pred_region
      _
    $region13: #{_forward_fused.1} parent=1 // pred_fallthru
      _
    // Predicated region
    $region14: #{_forward_fused.1} parent=1 // pred_check
      _
    $region15: #{_forward_fused.1} parent=1 // pred_check_branch
      %32 = sbr.rel (0) target = $region17
    $region16: #{_forward_fused.1} parent=1 // pred_region
      _
    $region17: #{_forward_fused.1} parent=1 // pred_fallthru
      _
    // Predicated region
    $region18: #{_forward_fused.1} parent=1 // pred_check
      _
    $region19: #{_forward_fused.1} parent=1 // pred_check_branch
      %34 = sbr.rel (0) target = $region21
    $region20: #{_forward_fused.1} parent=1 // pred_region
      _
    $region21: #{_forward_fused.1} parent=1 // pred_fallthru
      _
    // Predicated region
    $region22: #{_forward_fused.1} parent=1 // pred_check
      _
    $region23: #{_forward_fused.1} parent=1 // pred_check_branch
      %36 = sbr.rel (0) target = $region25
    $region24: #{_forward_fused.1} parent=1 // pred_region
      _
    $region25: #{_forward_fused.1} parent=1 // pred_fallthru
      _
    // Predicated region
    $region26: #{_forward_fused.1} parent=1 // pred_check
      _
    $region27: #{_forward_fused.1} parent=1 // pred_check_branch
      %38 = sbr.rel (0) target = $region29
    $region28: #{_forward_fused.1} parent=1 // pred_region
      _
    $region29: #{_forward_fused.1} parent=1 // pred_fallthru
      _
    // Predicated region
    $region30: #{_forward_fused.1} parent=1 // pred_check
      _
    $region31: #{_forward_fused.1} parent=1 // pred_check_branch
      %40 = sbr.rel (0) target = $region33
    $region32: #{_forward_fused.1} parent=1 // pred_region
      _
    $region33: #{_forward_fused.1} parent=1 // pred_fallthru
      _
    // Predicated region
    $region34: #{_forward_fused.1} parent=1 // pred_check
      _
    $region35: #{_forward_fused.1} parent=1 // pred_check_branch
      %42 = sbr.rel (0) target = $region37
    $region36: #{_forward_fused.1} parent=1 // pred_region
      %43 = dma.done [#allocation3], 8192
    $region37: #{_forward_fused.1} parent=1 // pred_fallthru
      _
    %v44 = vld [vmem:[#allocation2] sm:$0xff]
    %v45 = vld [vmem:[#allocation2 + $0x8] sm:$0xff]
    %v46 = vld [vmem:[#allocation2 + $0x10] sm:$0xff]
    %v47 = vld [vmem:[#allocation2 + $0x18] sm:$0xff]
    %v48 = vld [vmem:[#allocation2 + $0x20] sm:$0xff]
    %v49 = vld [vmem:[#allocation2 + $0x28] sm:$0xff]
    %v50 = vld [vmem:[#allocation2 + $0x30] sm:$0xff]
    %v51 = vld [vmem:[#allocation2 + $0x38] sm:$0xff]
    %v52 = vld [vmem:[#allocation2 + $0x40] sm:$0xff]
    %v53 = vld [vmem:[#allocation2 + $0x48] sm:$0xff]
    %v54 = vld [vmem:[#allocation2 + $0x50] sm:$0xff]
    %v55 = vld [vmem:[#allocation2 + $0x58] sm:$0xff]
    %v56 = vld [vmem:[#allocation2 + $0x60] sm:$0xff]
    %v57 = vld [vmem:[#allocation2 + $0x68] sm:$0xff]
    %v58 = vld [vmem:[#allocation2 + $0x70] sm:$0xff]
    %v59 = vld [vmem:[#allocation2 + $0x78] sm:$0xff]
    %v60 = vld [vmem:[#allocation2 + $0x80] sm:$0xff]
    %v61 = vld [vmem:[#allocation2 + $0x88] sm:$0xff]
    %v62 = vld [vmem:[#allocation2 + $0x90] sm:$0xff]
    %v63 = vld [vmem:[#allocation2 + $0x98] sm:$0xff]
    %v64 = vld [vmem:[#allocation2 + $0xa0] sm:$0xff]
    %v65 = vld [vmem:[#allocation2 + $0xa8] sm:$0xff]
    %v66 = vld [vmem:[#allocation2 + $0xb0] sm:$0xff]
    %v67 = vld [vmem:[#allocation2 + $0xb8] sm:$0xff]
    %v68 = vld [vmem:[#allocation2 + $0xc0] sm:$0xff]
    %v69 = vld [vmem:[#allocation2 + $0xc8] sm:$0xff]
    %v70 = vld [vmem:[#allocation2 + $0xd0] sm:$0xff]
    %v71 = vld [vmem:[#allocation2 + $0xd8] sm:$0xff]
    %v72 = vld [vmem:[#allocation2 + $0xe0] sm:$0xff]
    %v73 = vld [vmem:[#allocation2 + $0xe8] sm:$0xff]
    %v74 = vld [vmem:[#allocation2 + $0xf0] sm:$0xff]
    %v75 = vld [vmem:[#allocation2 + $0xf8] sm:$0xff]
    %v76 = vld [vmem:[#allocation2 + $0x100] sm:$0xff]
    %v77 = vld [vmem:[#allocation2 + $0x108] sm:$0xff]
    %v78 = vld [vmem:[#allocation2 + $0x110] sm:$0xff]
    %v79 = vld [vmem:[#allocation2 + $0x118] sm:$0xff]
    %v80 = vld [vmem:[#allocation2 + $0x120] sm:$0xff]
    %v81 = vld [vmem:[#allocation2 + $0x128] sm:$0xff]
    %v82 = vld [vmem:[#allocation2 + $0x130] sm:$0xff]
    %v83 = vld [vmem:[#allocation2 + $0x138] sm:$0xff]
    %v84 = vld [vmem:[#allocation2 + $0x140] sm:$0xff]
    %v85 = vld [vmem:[#allocation2 + $0x148] sm:$0xff]
    %v86 = vld [vmem:[#allocation2 + $0x150] sm:$0xff]
    %v87 = vld [vmem:[#allocation2 + $0x158] sm:$0xff]
    %v88 = vld [vmem:[#allocation2 + $0x160] sm:$0xff]
    %v89 = vld [vmem:[#allocation2 + $0x168] sm:$0xff]
    %v90 = vld [vmem:[#allocation2 + $0x170] sm:$0xff]
    %v91 = vld [vmem:[#allocation2 + $0x178] sm:$0xff]
    %v92 = vld [vmem:[#allocation2 + $0x180] sm:$0xff]
    %v93 = vld [vmem:[#allocation2 + $0x188] sm:$0xff]
    %v94 = vld [vmem:[#allocation2 + $0x190] sm:$0xff]
    %v95 = vld [vmem:[#allocation2 + $0x198] sm:$0xff]
    %v96 = vld [vmem:[#allocation2 + $0x1a0] sm:$0xff]
    %v97 = vld [vmem:[#allocation2 + $0x1a8] sm:$0xff]
    %v98 = vld [vmem:[#allocation2 + $0x1b0] sm:$0xff]
    %v99 = vld [vmem:[#allocation2 + $0x1b8] sm:$0xff]
    %v100 = vld [vmem:[#allocation2 + $0x1c0] sm:$0xff]
    %v101 = vld [vmem:[#allocation2 + $0x1c8] sm:$0xff]
    %v102 = vld [vmem:[#allocation2 + $0x1d0] sm:$0xff]
    %v103 = vld [vmem:[#allocation2 + $0x1d8] sm:$0xff]
    %v104 = vld [vmem:[#allocation2 + $0x1e0] sm:$0xff]
    %v105 = vld [vmem:[#allocation2 + $0x1e8] sm:$0xff]
    %v106 = vld [vmem:[#allocation2 + $0x1f0] sm:$0xff]
    %v107 = vld [vmem:[#allocation2 + $0x1f8] sm:$0xff]
    %v108 = vld [vmem:[%s1] sm:$0xff]
    %v109 = vld [vmem:[%s1 + $0x8] sm:$0xff]
    %v110 = vld [vmem:[%s1 + $0x10] sm:$0xff]
    %v111 = vld [vmem:[%s1 + $0x18] sm:$0xff]
    %v112 = vld [vmem:[%s1 + $0x20] sm:$0xff]
    %v113 = vld [vmem:[%s1 + $0x28] sm:$0xff]
    %v114 = vld [vmem:[%s1 + $0x30] sm:$0xff]
    %v115 = vld [vmem:[%s1 + $0x38] sm:$0xff]
    %v116 = vld [vmem:[%s1 + $0x40] sm:$0xff]
    %v117 = vld [vmem:[%s1 + $0x48] sm:$0xff]
    %v118 = vld [vmem:[%s1 + $0x50] sm:$0xff]
    %v119 = vld [vmem:[%s1 + $0x58] sm:$0xff]
    %v120 = vld [vmem:[%s1 + $0x60] sm:$0xff]
    %v121 = vld [vmem:[%s1 + $0x68] sm:$0xff]
    %v122 = vld [vmem:[%s1 + $0x70] sm:$0xff]
    %v123 = vld [vmem:[%s1 + $0x78] sm:$0xff]
    %v124 = vld [vmem:[%s1 + $0x80] sm:$0xff]
    %v125 = vld [vmem:[%s1 + $0x88] sm:$0xff]
    %v126 = vld [vmem:[%s1 + $0x90] sm:$0xff]
    %v127 = vld [vmem:[%s1 + $0x98] sm:$0xff]
    %v128 = vld [vmem:[%s1 + $0xa0] sm:$0xff]
    %v129 = vld [vmem:[%s1 + $0xa8] sm:$0xff]
    %v130 = vld [vmem:[%s1 + $0xb0] sm:$0xff]
    %v131 = vld [vmem:[%s1 + $0xb8] sm:$0xff]
    %v132 = vld [vmem:[%s1 + $0xc0] sm:$0xff]
    %v133 = vld [vmem:[%s1 + $0xc8] sm:$0xff]
    %v134 = vld [vmem:[%s1 + $0xd0] sm:$0xff]
    %v135 = vld [vmem:[%s1 + $0xd8] sm:$0xff]
    %v136 = vld [vmem:[%s1 + $0xe0] sm:$0xff]
    %v137 = vld [vmem:[%s1 + $0xe8] sm:$0xff]
    %v138 = vld [vmem:[%s1 + $0xf0] sm:$0xff]
    %v139 = vld [vmem:[%s1 + $0xf8] sm:$0xff]
    %140 = vmatprep.subr.mxu0 0.0
    %v141 = vand.u32 %v108, 4294901760
    %142 = vmatpush1.msra.mxu0 %v141
    %143 = vmatprep.subr.mxu0 0.0
    %v144 = vand.u32 %v109, 4294901760
    %145 = vmatpush1.msra.mxu0 %v144
    %146 = vmatprep.subr.mxu0 0.0
    %v147 = vand.u32 %v110, 4294901760
    %148 = vmatpush1.msra.mxu0 %v147
    %149 = vmatprep.subr.mxu0 0.0
    %v150 = vand.u32 %v111, 4294901760
    %151 = vmatpush1.msra.mxu0 %v150
    %152 = vmatprep.subr.mxu0 0.0
    %v153 = vand.u32 %v112, 4294901760
    %154 = vmatpush1.msra.mxu0 %v153
    %155 = vmatprep.subr.mxu0 0.0
    %v156 = vand.u32 %v113, 4294901760
    %157 = vmatpush1.msra.mxu0 %v156
    %158 = vmatprep.subr.mxu0 0.0
    %v159 = vand.u32 %v114, 4294901760
    %160 = vmatpush1.msra.mxu0 %v159
    %161 = vmatprep.subr.mxu0 0.0
    %v162 = vand.u32 %v115, 4294901760
    %163 = vmatpush1.msra.mxu0 %v162
    %164 = vmatprep.subr.mxu0 0.0
    %v165 = vand.u32 %v116, 4294901760
    %166 = vmatpush1.msra.mxu0 %v165
    %167 = vmatprep.subr.mxu0 0.0
    %v168 = vand.u32 %v117, 4294901760
    %169 = vmatpush1.msra.mxu0 %v168
    %170 = vmatprep.subr.mxu0 0.0
    %v171 = vand.u32 %v118, 4294901760
    %172 = vmatpush1.msra.mxu0 %v171
    %173 = vmatprep.subr.mxu0 0.0
    %v174 = vand.u32 %v119, 4294901760
    %175 = vmatpush1.msra.mxu0 %v174
    %176 = vmatprep.subr.mxu0 0.0
    %v177 = vand.u32 %v120, 4294901760
    %178 = vmatpush1.msra.mxu0 %v177
    %179 = vmatprep.subr.mxu0 0.0
    %v180 = vand.u32 %v121, 4294901760
    %181 = vmatpush1.msra.mxu0 %v180
    %182 = vmatprep.subr.mxu0 0.0
    %v183 = vand.u32 %v122, 4294901760
    %184 = vmatpush1.msra.mxu0 %v183
    %185 = vmatprep.subr.mxu0 0.0
    %v186 = vand.u32 %v123, 4294901760
    %187 = vmatpush1.msra.mxu0 %v186
    %188 = vmatprep.subr.mxu0 0.0
    %v189 = vand.u32 %v124, 4294901760
    %190 = vmatpush1.msra.mxu0 %v189
    %191 = vmatprep.subr.mxu0 0.0
    %v192 = vand.u32 %v125, 4294901760
    %193 = vmatpush1.msra.mxu0 %v192
    %194 = vmatprep.subr.mxu0 0.0
    %v195 = vand.u32 %v126, 4294901760
    %196 = vmatpush1.msra.mxu0 %v195
    %197 = vmatprep.subr.mxu0 0.0
    %v198 = vand.u32 %v127, 4294901760
    %199 = vmatpush1.msra.mxu0 %v198
    %200 = vmatprep.subr.mxu0 0.0
    %v201 = vand.u32 %v128, 4294901760
    %202 = vmatpush1.msra.mxu0 %v201
    %203 = vmatprep.subr.mxu0 0.0
    %v204 = vand.u32 %v129, 4294901760
    %205 = vmatpush1.msra.mxu0 %v204
    %206 = vmatprep.subr.mxu0 0.0
    %v207 = vand.u32 %v130, 4294901760
    %208 = vmatpush1.msra.mxu0 %v207
    %209 = vmatprep.subr.mxu0 0.0
    %v210 = vand.u32 %v131, 4294901760
    %211 = vmatpush1.msra.mxu0 %v210
    %212 = vmatprep.subr.mxu0 0.0
    %v213 = vand.u32 %v132, 4294901760
    %214 = vmatpush1.msra.mxu0 %v213
    %215 = vmatprep.subr.mxu0 0.0
    %v216 = vand.u32 %v133, 4294901760
    %217 = vmatpush1.msra.mxu0 %v216
    %218 = vmatprep.subr.mxu0 0.0
    %v219 = vand.u32 %v134, 4294901760
    %220 = vmatpush1.msra.mxu0 %v219
    %221 = vmatprep.subr.mxu0 0.0
    %v222 = vand.u32 %v135, 4294901760
    %223 = vmatpush1.msra.mxu0 %v222
    %224 = vmatprep.subr.mxu0 0.0
    %v225 = vand.u32 %v136, 4294901760
    %226 = vmatpush1.msra.mxu0 %v225
    %227 = vmatprep.subr.mxu0 0.0
    %v228 = vand.u32 %v137, 4294901760
    %229 = vmatpush1.msra.mxu0 %v228
    %230 = vmatprep.subr.mxu0 0.0
    %v231 = vand.u32 %v138, 4294901760
    %232 = vmatpush1.msra.mxu0 %v231
    %233 = vmatprep.subr.mxu0 0.0
    %v234 = vand.u32 %v139, 4294901760
    %235 = vmatpush1.msra.mxu0 %v234
    %v236 = vand.u32 %v45, 4294901760
    %v237 = vsub.f32 %v45, %v236
    %v238 = vand.u32 %v237, 4294901760
    %v239 = vsub.f32 %v237, %v238
    %v240 = vand.u32 %v239, 4294901760
    %241 = vmatprep.mubr.f32.mxu0 %v240
    %v242 = vand.u32 %v44, 4294901760
    %v243 = vsub.f32 %v44, %v242
    %v244 = vand.u32 %v243, 4294901760
    %v245 = vsub.f32 %v243, %v244
    %v246 = vand.u32 %v245, 4294901760
    %247 = vmatmul.mubr.f32.gmra.mrb[0].mxu0 %v246
    %v248 = vpop.f32.mrb[0].mxu0
    %v249 = vadd.f32 0.0, %v248
    %v250 = vpop.f32.mrb[0].mxu0
    %v251 = vand.u32 %v47, 4294901760
    %v252 = vsub.f32 %v47, %v251
    %v253 = vand.u32 %v252, 4294901760
    %v254 = vsub.f32 %v252, %v253
    %v255 = vand.u32 %v254, 4294901760
    %256 = vmatprep.mubr.f32.mxu0 %v255
    %v257 = vand.u32 %v46, 4294901760
    %v258 = vsub.f32 %v46, %v257
    %v259 = vand.u32 %v258, 4294901760
    %v260 = vsub.f32 %v258, %v259
    %v261 = vand.u32 %v260, 4294901760
    %262 = vmatmul.mubr.f32.gmra.mrb[0].mxu0 %v261
    %v263 = vpop.f32.mrb[0].mxu0
    %v264 = vadd.f32 0.0, %v263
    %v265 = vpop.f32.mrb[0].mxu0
    %v266 = vand.u32 %v49, 4294901760
    %v267 = vsub.f32 %v49, %v266
    %v268 = vand.u32 %v267, 4294901760
    %v269 = vsub.f32 %v267, %v268
    %v270 = vand.u32 %v269, 4294901760
    %271 = vmatprep.mubr.f32.mxu0 %v270
    %v272 = vand.u32 %v48, 4294901760
    %v273 = vsub.f32 %v48, %v272
    %v274 = vand.u32 %v273, 4294901760
    %v275 = vsub.f32 %v273, %v274
    %v276 = vand.u32 %v275, 4294901760
    %277 = vmatmul.mubr.f32.gmra.mrb[0].mxu0 %v276
    %v278 = vpop.f32.mrb[0].mxu0
    %v279 = vadd.f32 0.0, %v278
    %v280 = vpop.f32.mrb[0].mxu0
    %v281 = vand.u32 %v51, 4294901760
    %v282 = vsub.f32 %v51, %v281
    %v283 = vand.u32 %v282, 4294901760
    %v284 = vsub.f32 %v282, %v283
    %v285 = vand.u32 %v284, 4294901760
    %286 = vmatprep.mubr.f32.mxu0 %v285
    %v287 = vand.u32 %v50, 4294901760
    %v288 = vsub.f32 %v50, %v287
    %v289 = vand.u32 %v288, 4294901760
    %v290 = vsub.f32 %v288, %v289
    %v291 = vand.u32 %v290, 4294901760
    %292 = vmatmul.mubr.f32.gmra.mrb[0].mxu0 %v291
    %v293 = vpop.f32.mrb[0].mxu0
    %v294 = vadd.f32 0.0, %v293
    %v295 = vpop.f32.mrb[0].mxu0
    %v296 = vand.u32 %v53, 4294901760
    %v297 = vsub.f32 %v53, %v296
    %v298 = vand.u32 %v297, 4294901760
    %v299 = vsub.f32 %v297, %v298
    %v300 = vand.u32 %v299, 4294901760
    %301 = vmatprep.mubr.f32.mxu0 %v300
    %v302 = vand.u32 %v52, 4294901760
    %v303 = vsub.f32 %v52, %v302
    %v304 = vand.u32 %v303, 4294901760
    %v305 = vsub.f32 %v303, %v304
    %v306 = vand.u32 %v305, 4294901760
    %307 = vmatmul.mubr.f32.gmra.mrb[0].mxu0 %v306
    %v308 = vpop.f32.mrb[0].mxu0
    %v309 = vadd.f32 0.0, %v308
    %v310 = vpop.f32.mrb[0].mxu0
    %v311 = vand.u32 %v55, 4294901760
    %v312 = vsub.f32 %v55, %v311
    %v313 = vand.u32 %v312, 4294901760
    %v314 = vsub.f32 %v312, %v313
    %v315 = vand.u32 %v314, 4294901760
    %316 = vmatprep.mubr.f32.mxu0 %v315
    %v317 = vand.u32 %v54, 4294901760
    %v318 = vsub.f32 %v54, %v317
    %v319 = vand.u32 %v318, 4294901760
    %v320 = vsub.f32 %v318, %v319
    %v321 = vand.u32 %v320, 4294901760
    %322 = vmatmul.mubr.f32.gmra.mrb[0].mxu0 %v321
    %v323 = vpop.f32.mrb[0].mxu0
    %v324 = vadd.f32 0.0, %v323
    %v325 = vpop.f32.mrb[0].mxu0
    %v326 = vand.u32 %v57, 4294901760
    %v327 = vsub.f32 %v57, %v326
    %v328 = vand.u32 %v327, 4294901760
    %v329 = vsub.f32 %v327, %v328
    %v330 = vand.u32 %v329, 4294901760
    %331 = vmatprep.mubr.f32.mxu0 %v330
    %v332 = vand.u32 %v56, 4294901760
    %v333 = vsub.f32 %v56, %v332
    %v334 = vand.u32 %v333, 4294901760
    %v335 = vsub.f32 %v333, %v334
    %v336 = vand.u32 %v335, 4294901760
    %337 = vmatmul.mubr.f32.gmra.mrb[0].mxu0 %v336
    %v338 = vpop.f32.mrb[0].mxu0
    %v339 = vadd.f32 0.0, %v338
    %v340 = vpop.f32.mrb[0].mxu0
    %v341 = vand.u32 %v59, 4294901760
    %v342 = vsub.f32 %v59, %v341
    %v343 = vand.u32 %v342, 4294901760
    %v344 = vsub.f32 %v342, %v343
    %v345 = vand.u32 %v344, 4294901760
    %346 = vmatprep.mubr.f32.mxu0 %v345
    %v347 = vand.u32 %v58, 4294901760
    %v348 = vsub.f32 %v58, %v347
    %v349 = vand.u32 %v348, 4294901760
    %v350 = vsub.f32 %v348, %v349
    %v351 = vand.u32 %v350, 4294901760
    %352 = vmatmul.mubr.f32.gmra.mrb[0].mxu0 %v351
    %v353 = vpop.f32.mrb[0].mxu0
    %v354 = vadd.f32 0.0, %v353
    %v355 = vpop.f32.mrb[0].mxu0
    %v356 = vand.u32 %v61, 4294901760
    %v357 = vsub.f32 %v61, %v356
    %v358 = vand.u32 %v357, 4294901760
    %v359 = vsub.f32 %v357, %v358
    %v360 = vand.u32 %v359, 4294901760
    %361 = vmatprep.mubr.f32.mxu0 %v360
    %v362 = vand.u32 %v60, 4294901760
    %v363 = vsub.f32 %v60, %v362
    %v364 = vand.u32 %v363, 4294901760
    %v365 = vsub.f32 %v363, %v364
    %v366 = vand.u32 %v365, 4294901760
    %367 = vmatmul.mubr.f32.gmra.mrb[0].mxu0 %v366
    %v368 = vpop.f32.mrb[0].mxu0
    %v369 = vadd.f32 0.0, %v368
    %v370 = vpop.f32.mrb[0].mxu0
    %v371 = vand.u32 %v63, 4294901760
    %v372 = vsub.f32 %v63, %v371
    %v373 = vand.u32 %v372, 4294901760
    %v374 = vsub.f32 %v372, %v373
    %v375 = vand.u32 %v374, 4294901760
    %376 = vmatprep.mubr.f32.mxu0 %v375
    %v377 = vand.u32 %v62, 4294901760
    %v378 = vsub.f32 %v62, %v377
    %v379 = vand.u32 %v378, 4294901760
    %v380 = vsub.f32 %v378, %v379
    %v381 = vand.u32 %v380, 4294901760
    %382 = vmatmul.mubr.f32.gmra.mrb[0].mxu0 %v381
    %v383 = vpop.f32.mrb[0].mxu0
    %v384 = vadd.f32 0.0, %v383
    %v385 = vpop.f32.mrb[0].mxu0
    %v386 = vand.u32 %v65, 4294901760
    %v387 = vsub.f32 %v65, %v386
    %v388 = vand.u32 %v387, 4294901760
    %v389 = vsub.f32 %v387, %v388
    %v390 = vand.u32 %v389, 4294901760
    %391 = vmatprep.mubr.f32.mxu0 %v390
    %v392 = vand.u32 %v64, 4294901760
    %v393 = vsub.f32 %v64, %v392
    %v394 = vand.u32 %v393, 4294901760
    %v395 = vsub.f32 %v393, %v394
    %v396 = vand.u32 %v395, 4294901760
    %397 = vmatmul.mubr.f32.gmra.mrb[0].mxu0 %v396
    %v398 = vpop.f32.mrb[0].mxu0
    %v399 = vadd.f32 0.0, %v398
    %v400 = vpop.f32.mrb[0].mxu0
    %v401 = vand.u32 %v67, 4294901760
    %v402 = vsub.f32 %v67, %v401
    %v403 = vand.u32 %v402, 4294901760
    %v404 = vsub.f32 %v402, %v403
    %v405 = vand.u32 %v404, 4294901760
    %406 = vmatprep.mubr.f32.mxu0 %v405
    %v407 = vand.u32 %v66, 4294901760
    %v408 = vsub.f32 %v66, %v407
    %v409 = vand.u32 %v408, 4294901760
    %v410 = vsub.f32 %v408, %v409
    %v411 = vand.u32 %v410, 4294901760
    %412 = vmatmul.mubr.f32.gmra.mrb[0].mxu0 %v411
    %v413 = vpop.f32.mrb[0].mxu0
    %v414 = vadd.f32 0.0, %v413
    %v415 = vpop.f32.mrb[0].mxu0
    %v416 = vand.u32 %v69, 4294901760
    %v417 = vsub.f32 %v69, %v416
    %v418 = vand.u32 %v417, 4294901760
    %v419 = vsub.f32 %v417, %v418
    %v420 = vand.u32 %v419, 4294901760
    %421 = vmatprep.mubr.f32.mxu0 %v420
    %v422 = vand.u32 %v68, 4294901760
    %v423 = vsub.f32 %v68, %v422
    %v424 = vand.u32 %v423, 4294901760
    %v425 = vsub.f32 %v423, %v424
    %v426 = vand.u32 %v425, 4294901760
    %427 = vmatmul.mubr.f32.gmra.mrb[0].mxu0 %v426
    %v428 = vpop.f32.mrb[0].mxu0
    %v429 = vadd.f32 0.0, %v428
    %v430 = vpop.f32.mrb[0].mxu0
    %v431 = vand.u32 %v71, 4294901760
    %v432 = vsub.f32 %v71, %v431
    %v433 = vand.u32 %v432, 4294901760
    %v434 = vsub.f32 %v432, %v433
    %v435 = vand.u32 %v434, 4294901760
    %436 = vmatprep.mubr.f32.mxu0 %v435
    %v437 = vand.u32 %v70, 4294901760
    %v438 = vsub.f32 %v70, %v437
    %v439 = vand.u32 %v438, 4294901760
    %v440 = vsub.f32 %v438, %v439
    %v441 = vand.u32 %v440, 4294901760
    %442 = vmatmul.mubr.f32.gmra.mrb[0].mxu0 %v441
    %v443 = vpop.f32.mrb[0].mxu0
    %v444 = vadd.f32 0.0, %v443
    %v445 = vpop.f32.mrb[0].mxu0
    %v446 = vand.u32 %v73, 4294901760
    %v447 = vsub.f32 %v73, %v446
    %v448 = vand.u32 %v447, 4294901760
    %v449 = vsub.f32 %v447, %v448
    %v450 = vand.u32 %v449, 4294901760
    %451 = vmatprep.mubr.f32.mxu0 %v450
    %v452 = vand.u32 %v72, 4294901760
    %v453 = vsub.f32 %v72, %v452
    %v454 = vand.u32 %v453, 4294901760
    %v455 = vsub.f32 %v453, %v454
    %v456 = vand.u32 %v455, 4294901760
    %457 = vmatmul.mubr.f32.gmra.mrb[0].mxu0 %v456
    %v458 = vpop.f32.mrb[0].mxu0
    %v459 = vadd.f32 0.0, %v458
    %v460 = vpop.f32.mrb[0].mxu0
    %v461 = vand.u32 %v75, 4294901760
    %v462 = vsub.f32 %v75, %v461
    %v463 = vand.u32 %v462, 4294901760
    %v464 = vsub.f32 %v462, %v463
    %v465 = vand.u32 %v464, 4294901760
    %466 = vmatprep.mubr.f32.mxu0 %v465
    %v467 = vand.u32 %v74, 4294901760
    %v468 = vsub.f32 %v74, %v467
    %v469 = vand.u32 %v468, 4294901760
    %v470 = vsub.f32 %v468, %v469
    %v471 = vand.u32 %v470, 4294901760
    %472 = vmatmul.mubr.f32.gmra.mrb[0].mxu0 %v471
    %v473 = vpop.f32.mrb[0].mxu0
    %v474 = vadd.f32 0.0, %v473
    %v475 = vpop.f32.mrb[0].mxu0
    %v476 = vand.u32 %v77, 4294901760
    %v477 = vsub.f32 %v77, %v476
    %v478 = vand.u32 %v477, 4294901760
    %v479 = vsub.f32 %v477, %v478
    %v480 = vand.u32 %v479, 4294901760
    %481 = vmatprep.mubr.f32.mxu0 %v480
    %v482 = vand.u32 %v76, 4294901760
    %v483 = vsub.f32 %v76, %v482
    %v484 = vand.u32 %v483, 4294901760
    %v485 = vsub.f32 %v483, %v484
    %v486 = vand.u32 %v485, 4294901760
    %487 = vmatmul.mubr.f32.gmra.mrb[0].mxu0 %v486
    %v488 = vpop.f32.mrb[0].mxu0
    %v489 = vadd.f32 0.0, %v488
    %v490 = vpop.f32.mrb[0].mxu0
    %v491 = vand.u32 %v79, 4294901760
    %v492 = vsub.f32 %v79, %v491
    %v493 = vand.u32 %v492, 4294901760
    %v494 = vsub.f32 %v492, %v493
    %v495 = vand.u32 %v494, 4294901760
    %496 = vmatprep.mubr.f32.mxu0 %v495
    %v497 = vand.u32 %v78, 4294901760
    %v498 = vsub.f32 %v78, %v497
    %v499 = vand.u32 %v498, 4294901760
    %v500 = vsub.f32 %v498, %v499
    %v501 = vand.u32 %v500, 4294901760
    %502 = vmatmul.mubr.f32.gmra.mrb[0].mxu0 %v501
    %v503 = vpop.f32.mrb[0].mxu0
    %v504 = vadd.f32 0.0, %v503
    %v505 = vpop.f32.mrb[0].mxu0
    %v506 = vand.u32 %v81, 4294901760
    %v507 = vsub.f32 %v81, %v506
    %v508 = vand.u32 %v507, 4294901760
    %v509 = vsub.f32 %v507, %v508
    %v510 = vand.u32 %v509, 4294901760
    %511 = vmatprep.mubr.f32.mxu0 %v510
    %v512 = vand.u32 %v80, 4294901760
    %v513 = vsub.f32 %v80, %v512
    %v514 = vand.u32 %v513, 4294901760
    %v515 = vsub.f32 %v513, %v514
    %v516 = vand.u32 %v515, 4294901760
    %517 = vmatmul.mubr.f32.gmra.mrb[0].mxu0 %v516
    %v518 = vpop.f32.mrb[0].mxu0
    %v519 = vadd.f32 0.0, %v518
    %v520 = vpop.f32.mrb[0].mxu0
    %v521 = vand.u32 %v83, 4294901760
    %v522 = vsub.f32 %v83, %v521
    %v523 = vand.u32 %v522, 4294901760
    %v524 = vsub.f32 %v522, %v523
    %v525 = vand.u32 %v524, 4294901760
    %526 = vmatprep.mubr.f32.mxu0 %v525
    %v527 = vand.u32 %v82, 4294901760
    %v528 = vsub.f32 %v82, %v527
    %v529 = vand.u32 %v528, 4294901760
    %v530 = vsub.f32 %v528, %v529
    %v531 = vand.u32 %v530, 4294901760
    %532 = vmatmul.mubr.f32.gmra.mrb[0].mxu0 %v531
    %v533 = vpop.f32.mrb[0].mxu0
    %v534 = vadd.f32 0.0, %v533
    %v535 = vpop.f32.mrb[0].mxu0
    %v536 = vand.u32 %v85, 4294901760
    %v537 = vsub.f32 %v85, %v536
    %v538 = vand.u32 %v537, 4294901760
    %v539 = vsub.f32 %v537, %v538
    %v540 = vand.u32 %v539, 4294901760
    %541 = vmatprep.mubr.f32.mxu0 %v540
    %v542 = vand.u32 %v84, 4294901760
    %v543 = vsub.f32 %v84, %v542
    %v544 = vand.u32 %v543, 4294901760
    %v545 = vsub.f32 %v543, %v544
    %v546 = vand.u32 %v545, 4294901760
    %547 = vmatmul.mubr.f32.gmra.mrb[0].mxu0 %v546
    %v548 = vpop.f32.mrb[0].mxu0
    %v549 = vadd.f32 0.0, %v548
    %v550 = vpop.f32.mrb[0].mxu0
    %v551 = vand.u32 %v87, 4294901760
    %v552 = vsub.f32 %v87, %v551
    %v553 = vand.u32 %v552, 4294901760
    %v554 = vsub.f32 %v552, %v553
    %v555 = vand.u32 %v554, 4294901760
    %556 = vmatprep.mubr.f32.mxu0 %v555
    %v557 = vand.u32 %v86, 4294901760
    %v558 = vsub.f32 %v86, %v557
    %v559 = vand.u32 %v558, 4294901760
    %v560 = vsub.f32 %v558, %v559
    %v561 = vand.u32 %v560, 4294901760
    %562 = vmatmul.mubr.f32.gmra.mrb[0].mxu0 %v561
    %v563 = vpop.f32.mrb[0].mxu0
    %v564 = vadd.f32 0.0, %v563
    %v565 = vpop.f32.mrb[0].mxu0
    %v566 = vand.u32 %v89, 4294901760
    %v567 = vsub.f32 %v89, %v566
    %v568 = vand.u32 %v567, 4294901760
    %v569 = vsub.f32 %v567, %v568
    %v570 = vand.u32 %v569, 4294901760
    %571 = vmatprep.mubr.f32.mxu0 %v570
    %v572 = vand.u32 %v88, 4294901760
    %v573 = vsub.f32 %v88, %v572
    %v574 = vand.u32 %v573, 4294901760
    %v575 = vsub.f32 %v573, %v574
    %v576 = vand.u32 %v575, 4294901760
    %577 = vmatmul.mubr.f32.gmra.mrb[0].mxu0 %v576
    %v578 = vpop.f32.mrb[0].mxu0
    %v579 = vadd.f32 0.0, %v578
    %v580 = vpop.f32.mrb[0].mxu0
    %v581 = vand.u32 %v91, 4294901760
    %v582 = vsub.f32 %v91, %v581
    %v583 = vand.u32 %v582, 4294901760
    %v584 = vsub.f32 %v582, %v583
    %v585 = vand.u32 %v584, 4294901760
    %586 = vmatprep.mubr.f32.mxu0 %v585
    %v587 = vand.u32 %v90, 4294901760
    %v588 = vsub.f32 %v90, %v587
    %v589 = vand.u32 %v588, 4294901760
    %v590 = vsub.f32 %v588, %v589
    %v591 = vand.u32 %v590, 4294901760
    %592 = vmatmul.mubr.f32.gmra.mrb[0].mxu0 %v591
    %v593 = vpop.f32.mrb[0].mxu0
    %v594 = vadd.f32 0.0, %v593
    %v595 = vpop.f32.mrb[0].mxu0
    %v596 = vand.u32 %v93, 4294901760
    %v597 = vsub.f32 %v93, %v596
    %v598 = vand.u32 %v597, 4294901760
    %v599 = vsub.f32 %v597, %v598
    %v600 = vand.u32 %v599, 4294901760
    %601 = vmatprep.mubr.f32.mxu0 %v600
    %v602 = vand.u32 %v92, 4294901760
    %v603 = vsub.f32 %v92, %v602
    %v604 = vand.u32 %v603, 4294901760
    %v605 = vsub.f32 %v603, %v604
    %v606 = vand.u32 %v605, 4294901760
    %607 = vmatmul.mubr.f32.gmra.mrb[0].mxu0 %v606
    %v608 = vpop.f32.mrb[0].mxu0
    %v609 = vadd.f32 0.0, %v608
    %v610 = vpop.f32.mrb[0].mxu0
    %v611 = vand.u32 %v95, 4294901760
    %v612 = vsub.f32 %v95, %v611
    %v613 = vand.u32 %v612, 4294901760
    %v614 = vsub.f32 %v612, %v613
    %v615 = vand.u32 %v614, 4294901760
    %616 = vmatprep.mubr.f32.mxu0 %v615
    %v617 = vand.u32 %v94, 4294901760
    %v618 = vsub.f32 %v94, %v617
    %v619 = vand.u32 %v618, 4294901760
    %v620 = vsub.f32 %v618, %v619
    %v621 = vand.u32 %v620, 4294901760
    %622 = vmatmul.mubr.f32.gmra.mrb[0].mxu0 %v621
    %v623 = vpop.f32.mrb[0].mxu0
    %v624 = vadd.f32 0.0, %v623
    %v625 = vpop.f32.mrb[0].mxu0
    %v626 = vand.u32 %v97, 4294901760
    %v627 = vsub.f32 %v97, %v626
    %v628 = vand.u32 %v627, 4294901760
    %v629 = vsub.f32 %v627, %v628
    %v630 = vand.u32 %v629, 4294901760
    %631 = vmatprep.mubr.f32.mxu0 %v630
    %v632 = vand.u32 %v96, 4294901760
    %v633 = vsub.f32 %v96, %v632
    %v634 = vand.u32 %v633, 4294901760
    %v635 = vsub.f32 %v633, %v634
    %v636 = vand.u32 %v635, 4294901760
    %637 = vmatmul.mubr.f32.gmra.mrb[0].mxu0 %v636
    %v638 = vpop.f32.mrb[0].mxu0
    %v639 = vadd.f32 0.0, %v638
    %v640 = vpop.f32.mrb[0].mxu0
    %v641 = vand.u32 %v99, 4294901760
    %v642 = vsub.f32 %v99, %v641
    %v643 = vand.u32 %v642, 4294901760
    %v644 = vsub.f32 %v642, %v643
    %v645 = vand.u32 %v644, 4294901760
    %646 = vmatprep.mubr.f32.mxu0 %v645
    %v647 = vand.u32 %v98, 4294901760
    %v648 = vsub.f32 %v98, %v647
    %v649 = vand.u32 %v648, 4294901760
    %v650 = vsub.f32 %v648, %v649
    %v651 = vand.u32 %v650, 4294901760
    %652 = vmatmul.mubr.f32.gmra.mrb[0].mxu0 %v651
    %v653 = vpop.f32.mrb[0].mxu0
    %v654 = vadd.f32 0.0, %v653
    %v655 = vpop.f32.mrb[0].mxu0
    %v656 = vand.u32 %v101, 4294901760
    %v657 = vsub.f32 %v101, %v656
    %v658 = vand.u32 %v657, 4294901760
    %v659 = vsub.f32 %v657, %v658
    %v660 = vand.u32 %v659, 4294901760
    %661 = vmatprep.mubr.f32.mxu0 %v660
    %v662 = vand.u32 %v100, 4294901760
    %v663 = vsub.f32 %v100, %v662
    %v664 = vand.u32 %v663, 4294901760
    %v665 = vsub.f32 %v663, %v664
    %v666 = vand.u32 %v665, 4294901760
    %667 = vmatmul.mubr.f32.gmra.mrb[0].mxu0 %v666
    %v668 = vpop.f32.mrb[0].mxu0
    %v669 = vadd.f32 0.0, %v668
    %v670 = vpop.f32.mrb[0].mxu0
    %v671 = vand.u32 %v103, 4294901760
    %v672 = vsub.f32 %v103, %v671
    %v673 = vand.u32 %v672, 4294901760
    %v674 = vsub.f32 %v672, %v673
    %v675 = vand.u32 %v674, 4294901760
    %676 = vmatprep.mubr.f32.mxu0 %v675
    %v677 = vand.u32 %v102, 4294901760
    %v678 = vsub.f32 %v102, %v677
    %v679 = vand.u32 %v678, 4294901760
    %v680 = vsub.f32 %v678, %v679
    %v681 = vand.u32 %v680, 4294901760
    %682 = vmatmul.mubr.f32.gmra.mrb[0].mxu0 %v681
    %v683 = vpop.f32.mrb[0].mxu0
    %v684 = vadd.f32 0.0, %v683
    %v685 = vpop.f32.mrb[0].mxu0
    %v686 = vand.u32 %v105, 4294901760
    %v687 = vsub.f32 %v105, %v686
    %v688 = vand.u32 %v687, 4294901760
    %v689 = vsub.f32 %v687, %v688
    %v690 = vand.u32 %v689, 4294901760
    %691 = vmatprep.mubr.f32.mxu0 %v690
    %v692 = vand.u32 %v104, 4294901760
    %v693 = vsub.f32 %v104, %v692
    %v694 = vand.u32 %v693, 4294901760
    %v695 = vsub.f32 %v693, %v694
    %v696 = vand.u32 %v695, 4294901760
    %697 = vmatmul.mubr.f32.gmra.mrb[0].mxu0 %v696
    %v698 = vpop.f32.mrb[0].mxu0
    %v699 = vadd.f32 0.0, %v698
    %v700 = vpop.f32.mrb[0].mxu0
    %v701 = vand.u32 %v107, 4294901760
    %v702 = vsub.f32 %v107, %v701
    %v703 = vand.u32 %v702, 4294901760
    %v704 = vsub.f32 %v702, %v703
    %v705 = vand.u32 %v704, 4294901760
    %706 = vmatprep.mubr.f32.mxu0 %v705
    %v707 = vand.u32 %v106, 4294901760
    %v708 = vsub.f32 %v106, %v707
    %v709 = vand.u32 %v708, 4294901760
    %v710 = vsub.f32 %v708, %v709
    %v711 = vand.u32 %v710, 4294901760
    %712 = vmatmul.mubr.f32.gmra.mrb[0].mxu0 %v711
    %v713 = vpop.f32.mrb[0].mxu0
    %v714 = vadd.f32 0.0, %v713
    %v715 = vpop.f32.mrb[0].mxu0
    %716 = vdwg.mxu0
    %717 = vmatprep.subr.mxu0 0.0
    %v718 = vand.u32 %v108, 4294901760
    %v719 = vsub.f32 %v108, %v718
    %v720 = vand.u32 %v719, 4294901760
    %v721 = vsub.f32 %v719, %v720
    %v722 = vand.u32 %v721, 4294901760
    %723 = vmatpush1.msra.mxu0 %v722
    %724 = vmatprep.subr.mxu0 0.0
    %v725 = vand.u32 %v109, 4294901760
    %v726 = vsub.f32 %v109, %v725
    %v727 = vand.u32 %v726, 4294901760
    %v728 = vsub.f32 %v726, %v727
    %v729 = vand.u32 %v728, 4294901760
    %730 = vmatpush1.msra.mxu0 %v729
    %731 = vmatprep.subr.mxu0 0.0
    %v732 = vand.u32 %v110, 4294901760
    %v733 = vsub.f32 %v110, %v732
    %v734 = vand.u32 %v733, 4294901760
    %v735 = vsub.f32 %v733, %v734
    %v736 = vand.u32 %v735, 4294901760
    %737 = vmatpush1.msra.mxu0 %v736
    %738 = vmatprep.subr.mxu0 0.0
    %v739 = vand.u32 %v111, 4294901760
    %v740 = vsub.f32 %v111, %v739
    %v741 = vand.u32 %v740, 4294901760
    %v742 = vsub.f32 %v740, %v741
    %v743 = vand.u32 %v742, 4294901760
    %744 = vmatpush1.msra.mxu0 %v743
    %745 = vmatprep.subr.mxu0 0.0
    %v746 = vand.u32 %v112, 4294901760
    %v747 = vsub.f32 %v112, %v746
    %v748 = vand.u32 %v747, 4294901760
    %v749 = vsub.f32 %v747, %v748
    %v750 = vand.u32 %v749, 4294901760
    %751 = vmatpush1.msra.mxu0 %v750
    %752 = vmatprep.subr.mxu0 0.0
    %v753 = vand.u32 %v113, 4294901760
    %v754 = vsub.f32 %v113, %v753
    %v755 = vand.u32 %v754, 4294901760
    %v756 = vsub.f32 %v754, %v755
    %v757 = vand.u32 %v756, 4294901760
    %758 = vmatpush1.msra.mxu0 %v757
    %759 = vmatprep.subr.mxu0 0.0
    %v760 = vand.u32 %v114, 4294901760
    %v761 = vsub.f32 %v114, %v760
    %v762 = vand.u32 %v761, 4294901760
    %v763 = vsub.f32 %v761, %v762
    %v764 = vand.u32 %v763, 4294901760
    %765 = vmatpush1.msra.mxu0 %v764
    %766 = vmatprep.subr.mxu0 0.0
    %v767 = vand.u32 %v115, 4294901760
    %v768 = vsub.f32 %v115, %v767
    %v769 = vand.u32 %v768, 4294901760
    %v770 = vsub.f32 %v768, %v769
    %v771 = vand.u32 %v770, 4294901760
    %772 = vmatpush1.msra.mxu0 %v771
    %773 = vmatprep.subr.mxu0 0.0
    %v774 = vand.u32 %v116, 4294901760
    %v775 = vsub.f32 %v116, %v774
    %v776 = vand.u32 %v775, 4294901760
    %v777 = vsub.f32 %v775, %v776
    %v778 = vand.u32 %v777, 4294901760
    %779 = vmatpush1.msra.mxu0 %v778
    %780 = vmatprep.subr.mxu0 0.0
    %v781 = vand.u32 %v117, 4294901760
    %v782 = vsub.f32 %v117, %v781
    %v783 = vand.u32 %v782, 4294901760
    %v784 = vsub.f32 %v782, %v783
    %v785 = vand.u32 %v784, 4294901760
    %786 = vmatpush1.msra.mxu0 %v785
    %787 = vmatprep.subr.mxu0 0.0
    %v788 = vand.u32 %v118, 4294901760
    %v789 = vsub.f32 %v118, %v788
    %v790 = vand.u32 %v789, 4294901760
    %v791 = vsub.f32 %v789, %v790
    %v792 = vand.u32 %v791, 4294901760
    %793 = vmatpush1.msra.mxu0 %v792
    %794 = vmatprep.subr.mxu0 0.0
    %v795 = vand.u32 %v119, 4294901760
    %v796 = vsub.f32 %v119, %v795
    %v797 = vand.u32 %v796, 4294901760
    %v798 = vsub.f32 %v796, %v797
    %v799 = vand.u32 %v798, 4294901760
    %800 = vmatpush1.msra.mxu0 %v799
    %801 = vmatprep.subr.mxu0 0.0
    %v802 = vand.u32 %v120, 4294901760
    %v803 = vsub.f32 %v120, %v802
    %v804 = vand.u32 %v803, 4294901760
    %v805 = vsub.f32 %v803, %v804
    %v806 = vand.u32 %v805, 4294901760
    %807 = vmatpush1.msra.mxu0 %v806
    %808 = vmatprep.subr.mxu0 0.0
    %v809 = vand.u32 %v121, 4294901760
    %v810 = vsub.f32 %v121, %v809
    %v811 = vand.u32 %v810, 4294901760
    %v812 = vsub.f32 %v810, %v811
    %v813 = vand.u32 %v812, 4294901760
    %814 = vmatpush1.msra.mxu0 %v813
    %815 = vmatprep.subr.mxu0 0.0
    %v816 = vand.u32 %v122, 4294901760
    %v817 = vsub.f32 %v122, %v816
    %v818 = vand.u32 %v817, 4294901760
    %v819 = vsub.f32 %v817, %v818
    %v820 = vand.u32 %v819, 4294901760
    %821 = vmatpush1.msra.mxu0 %v820
    %822 = vmatprep.subr.mxu0 0.0
    %v823 = vand.u32 %v123, 4294901760
    %v824 = vsub.f32 %v123, %v823
    %v825 = vand.u32 %v824, 4294901760
    %v826 = vsub.f32 %v824, %v825
    %v827 = vand.u32 %v826, 4294901760
    %828 = vmatpush1.msra.mxu0 %v827
    %829 = vmatprep.subr.mxu0 0.0
    %v830 = vand.u32 %v124, 4294901760
    %v831 = vsub.f32 %v124, %v830
    %v832 = vand.u32 %v831, 4294901760
    %v833 = vsub.f32 %v831, %v832
    %v834 = vand.u32 %v833, 4294901760
    %835 = vmatpush1.msra.mxu0 %v834
    %836 = vmatprep.subr.mxu0 0.0
    %v837 = vand.u32 %v125, 4294901760
    %v838 = vsub.f32 %v125, %v837
    %v839 = vand.u32 %v838, 4294901760
    %v840 = vsub.f32 %v838, %v839
    %v841 = vand.u32 %v840, 4294901760
    %842 = vmatpush1.msra.mxu0 %v841
    %843 = vmatprep.subr.mxu0 0.0
    %v844 = vand.u32 %v126, 4294901760
    %v845 = vsub.f32 %v126, %v844
    %v846 = vand.u32 %v845, 4294901760
    %v847 = vsub.f32 %v845, %v846
    %v848 = vand.u32 %v847, 4294901760
    %849 = vmatpush1.msra.mxu0 %v848
    %850 = vmatprep.subr.mxu0 0.0
    %v851 = vand.u32 %v127, 4294901760
    %v852 = vsub.f32 %v127, %v851
    %v853 = vand.u32 %v852, 4294901760
    %v854 = vsub.f32 %v852, %v853
    %v855 = vand.u32 %v854, 4294901760
    %856 = vmatpush1.msra.mxu0 %v855
    %857 = vmatprep.subr.mxu0 0.0
    %v858 = vand.u32 %v128, 4294901760
    %v859 = vsub.f32 %v128, %v858
    %v860 = vand.u32 %v859, 4294901760
    %v861 = vsub.f32 %v859, %v860
    %v862 = vand.u32 %v861, 4294901760
    %863 = vmatpush1.msra.mxu0 %v862
    %864 = vmatprep.subr.mxu0 0.0
    %v865 = vand.u32 %v129, 4294901760
    %v866 = vsub.f32 %v129, %v865
    %v867 = vand.u32 %v866, 4294901760
    %v868 = vsub.f32 %v866, %v867
    %v869 = vand.u32 %v868, 4294901760
    %870 = vmatpush1.msra.mxu0 %v869
    %871 = vmatprep.subr.mxu0 0.0
    %v872 = vand.u32 %v130, 4294901760
    %v873 = vsub.f32 %v130, %v872
    %v874 = vand.u32 %v873, 4294901760
    %v875 = vsub.f32 %v873, %v874
    %v876 = vand.u32 %v875, 4294901760
    %877 = vmatpush1.msra.mxu0 %v876
    %878 = vmatprep.subr.mxu0 0.0
    %v879 = vand.u32 %v131, 4294901760
    %v880 = vsub.f32 %v131, %v879
    %v881 = vand.u32 %v880, 4294901760
    %v882 = vsub.f32 %v880, %v881
    %v883 = vand.u32 %v882, 4294901760
    %884 = vmatpush1.msra.mxu0 %v883
    %885 = vmatprep.subr.mxu0 0.0
    %v886 = vand.u32 %v132, 4294901760
    %v887 = vsub.f32 %v132, %v886
    %v888 = vand.u32 %v887, 4294901760
    %v889 = vsub.f32 %v887, %v888
    %v890 = vand.u32 %v889, 4294901760
    %891 = vmatpush1.msra.mxu0 %v890
    %892 = vmatprep.subr.mxu0 0.0
    %v893 = vand.u32 %v133, 4294901760
    %v894 = vsub.f32 %v133, %v893
    %v895 = vand.u32 %v894, 4294901760
    %v896 = vsub.f32 %v894, %v895
    %v897 = vand.u32 %v896, 4294901760
    %898 = vmatpush1.msra.mxu0 %v897
    %899 = vmatprep.subr.mxu0 0.0
    %v900 = vand.u32 %v134, 4294901760
    %v901 = vsub.f32 %v134, %v900
    %v902 = vand.u32 %v901, 4294901760
    %v903 = vsub.f32 %v901, %v902
    %v904 = vand.u32 %v903, 4294901760
    %905 = vmatpush1.msra.mxu0 %v904
    %906 = vmatprep.subr.mxu0 0.0
    %v907 = vand.u32 %v135, 4294901760
    %v908 = vsub.f32 %v135, %v907
    %v909 = vand.u32 %v908, 4294901760
    %v910 = vsub.f32 %v908, %v909
    %v911 = vand.u32 %v910, 4294901760
    %912 = vmatpush1.msra.mxu0 %v911
    %913 = vmatprep.subr.mxu0 0.0
    %v914 = vand.u32 %v136, 4294901760
    %v915 = vsub.f32 %v136, %v914
    %v916 = vand.u32 %v915, 4294901760
    %v917 = vsub.f32 %v915, %v916
    %v918 = vand.u32 %v917, 4294901760
    %919 = vmatpush1.msra.mxu0 %v918
    %920 = vmatprep.subr.mxu0 0.0
    %v921 = vand.u32 %v137, 4294901760
    %v922 = vsub.f32 %v137, %v921
    %v923 = vand.u32 %v922, 4294901760
    %v924 = vsub.f32 %v922, %v923
    %v925 = vand.u32 %v924, 4294901760
    %926 = vmatpush1.msra.mxu0 %v925
    %927 = vmatprep.subr.mxu0 0.0
    %v928 = vand.u32 %v138, 4294901760
    %v929 = vsub.f32 %v138, %v928
    %v930 = vand.u32 %v929, 4294901760
    %v931 = vsub.f32 %v929, %v930
    %v932 = vand.u32 %v931, 4294901760
    %933 = vmatpush1.msra.mxu0 %v932
    %934 = vmatprep.subr.mxu0 0.0
    %v935 = vand.u32 %v139, 4294901760
    %v936 = vsub.f32 %v139, %v935
    %v937 = vand.u32 %v936, 4294901760
    %v938 = vsub.f32 %v936, %v937
    %v939 = vand.u32 %v938, 4294901760
    %940 = vmatpush1.msra.mxu0 %v939
    %v941 = vand.u32 %v45, 4294901760
    %942 = vmatprep.mubr.f32.mxu0 %v941
    %v943 = vand.u32 %v44, 4294901760
    %944 = vmatmul.mubr.f32.gmra.mrb[0].mxu0 %v943
    %v945 = vpop.f32.mrb[0].mxu0
    %v946 = vadd.f32 %v249, %v945
    %v947 = vpop.f32.mrb[0].mxu0
    %v948 = vand.u32 %v47, 4294901760
    %949 = vmatprep.mubr.f32.mxu0 %v948
    %v950 = vand.u32 %v46, 4294901760
    %951 = vmatmul.mubr.f32.gmra.mrb[0].mxu0 %v950
    %v952 = vpop.f32.mrb[0].mxu0
    %v953 = vadd.f32 %v264, %v952
    %v954 = vpop.f32.mrb[0].mxu0
    %v955 = vand.u32 %v49, 4294901760
    %956 = vmatprep.mubr.f32.mxu0 %v955
    %v957 = vand.u32 %v48, 4294901760
    %958 = vmatmul.mubr.f32.gmra.mrb[0].mxu0 %v957
    %v959 = vpop.f32.mrb[0].mxu0
    %v960 = vadd.f32 %v279, %v959
    %v961 = vpop.f32.mrb[0].mxu0
    %v962 = vand.u32 %v51, 4294901760
    %963 = vmatprep.mubr.f32.mxu0 %v962
    %v964 = vand.u32 %v50, 4294901760
    %965 = vmatmul.mubr.f32.gmra.mrb[0].mxu0 %v964
    %v966 = vpop.f32.mrb[0].mxu0
    %v967 = vadd.f32 %v294, %v966
    %v968 = vpop.f32.mrb[0].mxu0
    %v969 = vand.u32 %v53, 4294901760
    %970 = vmatprep.mubr.f32.mxu0 %v969
    %v971 = vand.u32 %v52, 4294901760
    %972 = vmatmul.mubr.f32.gmra.mrb[0].mxu0 %v971
    %v973 = vpop.f32.mrb[0].mxu0
    %v974 = vadd.f32 %v309, %v973
    %v975 = vpop.f32.mrb[0].mxu0
    %v976 = vand.u32 %v55, 4294901760
    %977 = vmatprep.mubr.f32.mxu0 %v976
    %v978 = vand.u32 %v54, 4294901760
    %979 = vmatmul.mubr.f32.gmra.mrb[0].mxu0 %v978
    %v980 = vpop.f32.mrb[0].mxu0
    %v981 = vadd.f32 %v324, %v980
    %v982 = vpop.f32.mrb[0].mxu0
    %v983 = vand.u32 %v57, 4294901760
    %984 = vmatprep.mubr.f32.mxu0 %v983
    %v985 = vand.u32 %v56, 4294901760
    %986 = vmatmul.mubr.f32.gmra.mrb[0].mxu0 %v985
    %v987 = vpop.f32.mrb[0].mxu0
    %v988 = vadd.f32 %v339, %v987
    %v989 = vpop.f32.mrb[0].mxu0
    %v990 = vand.u32 %v59, 4294901760
    %991 = vmatprep.mubr.f32.mxu0 %v990
    %v992 = vand.u32 %v58, 4294901760
    %993 = vmatmul.mubr.f32.gmra.mrb[0].mxu0 %v992
    %v994 = vpop.f32.mrb[0].mxu0
    %v995 = vadd.f32 %v354, %v994
    %v996 = vpop.f32.mrb[0].mxu0
    %v997 = vand.u32 %v61, 4294901760
    %998 = vmatprep.mubr.f32.mxu0 %v997
    %v999 = vand.u32 %v60, 4294901760
    %1000 = vmatmul.mubr.f32.gmra.mrb[0].mxu0 %v999
    %v1001 = vpop.f32.mrb[0].mxu0
    %v1002 = vadd.f32 %v369, %v1001
    %v1003 = vpop.f32.mrb[0].mxu0
    %v1004 = vand.u32 %v63, 4294901760
    %1005 = vmatprep.mubr.f32.mxu0 %v1004
    %v1006 = vand.u32 %v62, 4294901760
    %1007 = vmatmul.mubr.f32.gmra.mrb[0].mxu0 %v1006
    %v1008 = vpop.f32.mrb[0].mxu0
    %v1009 = vadd.f32 %v384, %v1008
    %v1010 = vpop.f32.mrb[0].mxu0
    %v1011 = vand.u32 %v65, 4294901760
    %1012 = vmatprep.mubr.f32.mxu0 %v1011
    %v1013 = vand.u32 %v64, 4294901760
    %1014 = vmatmul.mubr.f32.gmra.mrb[0].mxu0 %v1013
    %v1015 = vpop.f32.mrb[0].mxu0
    %v1016 = vadd.f32 %v399, %v1015
    %v1017 = vpop.f32.mrb[0].mxu0
    %v1018 = vand.u32 %v67, 4294901760
    %1019 = vmatprep.mubr.f32.mxu0 %v1018
    %v1020 = vand.u32 %v66, 4294901760
    %1021 = vmatmul.mubr.f32.gmra.mrb[0].mxu0 %v1020
    %v1022 = vpop.f32.mrb[0].mxu0
    %v1023 = vadd.f32 %v414, %v1022
    %v1024 = vpop.f32.mrb[0].mxu0
    %v1025 = vand.u32 %v69, 4294901760
    %1026 = vmatprep.mubr.f32.mxu0 %v1025
    %v1027 = vand.u32 %v68, 4294901760
    %1028 = vmatmul.mubr.f32.gmra.mrb[0].mxu0 %v1027
    %v1029 = vpop.f32.mrb[0].mxu0
    %v1030 = vadd.f32 %v429, %v1029
    %v1031 = vpop.f32.mrb[0].mxu0
    %v1032 = vand.u32 %v71, 4294901760
    %1033 = vmatprep.mubr.f32.mxu0 %v1032
    %v1034 = vand.u32 %v70, 4294901760
    %1035 = vmatmul.mubr.f32.gmra.mrb[0].mxu0 %v1034
    %v1036 = vpop.f32.mrb[0].mxu0
    %v1037 = vadd.f32 %v444, %v1036
    %v1038 = vpop.f32.mrb[0].mxu0
    %v1039 = vand.u32 %v73, 4294901760
    %1040 = vmatprep.mubr.f32.mxu0 %v1039
    %v1041 = vand.u32 %v72, 4294901760
    %1042 = vmatmul.mubr.f32.gmra.mrb[0].mxu0 %v1041
    %v1043 = vpop.f32.mrb[0].mxu0
    %v1044 = vadd.f32 %v459, %v1043
    %v1045 = vpop.f32.mrb[0].mxu0
    %v1046 = vand.u32 %v75, 4294901760
    %1047 = vmatprep.mubr.f32.mxu0 %v1046
    %v1048 = vand.u32 %v74, 4294901760
    %1049 = vmatmul.mubr.f32.gmra.mrb[0].mxu0 %v1048
    %v1050 = vpop.f32.mrb[0].mxu0
    %v1051 = vadd.f32 %v474, %v1050
    %v1052 = vpop.f32.mrb[0].mxu0
    %v1053 = vand.u32 %v77, 4294901760
    %1054 = vmatprep.mubr.f32.mxu0 %v1053
    %v1055 = vand.u32 %v76, 4294901760
    %1056 = vmatmul.mubr.f32.gmra.mrb[0].mxu0 %v1055
    %v1057 = vpop.f32.mrb[0].mxu0
    %v1058 = vadd.f32 %v489, %v1057
    %v1059 = vpop.f32.mrb[0].mxu0
    %v1060 = vand.u32 %v79, 4294901760
    %1061 = vmatprep.mubr.f32.mxu0 %v1060
    %v1062 = vand.u32 %v78, 4294901760
    %1063 = vmatmul.mubr.f32.gmra.mrb[0].mxu0 %v1062
    %v1064 = vpop.f32.mrb[0].mxu0
    %v1065 = vadd.f32 %v504, %v1064
    %v1066 = vpop.f32.mrb[0].mxu0
    %v1067 = vand.u32 %v81, 4294901760
    %1068 = vmatprep.mubr.f32.mxu0 %v1067
    %v1069 = vand.u32 %v80, 4294901760
    %1070 = vmatmul.mubr.f32.gmra.mrb[0].mxu0 %v1069
    %v1071 = vpop.f32.mrb[0].mxu0
    %v1072 = vadd.f32 %v519, %v1071
    %v1073 = vpop.f32.mrb[0].mxu0
    %v1074 = vand.u32 %v83, 4294901760
    %1075 = vmatprep.mubr.f32.mxu0 %v1074
    %v1076 = vand.u32 %v82, 4294901760
    %1077 = vmatmul.mubr.f32.gmra.mrb[0].mxu0 %v1076
    %v1078 = vpop.f32.mrb[0].mxu0
    %v1079 = vadd.f32 %v534, %v1078
    %v1080 = vpop.f32.mrb[0].mxu0
    %v1081 = vand.u32 %v85, 4294901760
    %1082 = vmatprep.mubr.f32.mxu0 %v1081
    %v1083 = vand.u32 %v84, 4294901760
    %1084 = vmatmul.mubr.f32.gmra.mrb[0].mxu0 %v1083
    %v1085 = vpop.f32.mrb[0].mxu0
    %v1086 = vadd.f32 %v549, %v1085
    %v1087 = vpop.f32.mrb[0].mxu0
    %v1088 = vand.u32 %v87, 4294901760
    %1089 = vmatprep.mubr.f32.mxu0 %v1088
    %v1090 = vand.u32 %v86, 4294901760
    %1091 = vmatmul.mubr.f32.gmra.mrb[0].mxu0 %v1090
    %v1092 = vpop.f32.mrb[0].mxu0
    %v1093 = vadd.f32 %v564, %v1092
    %v1094 = vpop.f32.mrb[0].mxu0
    %v1095 = vand.u32 %v89, 4294901760
    %1096 = vmatprep.mubr.f32.mxu0 %v1095
    %v1097 = vand.u32 %v88, 4294901760
    %1098 = vmatmul.mubr.f32.gmra.mrb[0].mxu0 %v1097
    %v1099 = vpop.f32.mrb[0].mxu0
    %v1100 = vadd.f32 %v579, %v1099
    %v1101 = vpop.f32.mrb[0].mxu0
    %v1102 = vand.u32 %v91, 4294901760
    %1103 = vmatprep.mubr.f32.mxu0 %v1102
    %v1104 = vand.u32 %v90, 4294901760
    %1105 = vmatmul.mubr.f32.gmra.mrb[0].mxu0 %v1104
    %v1106 = vpop.f32.mrb[0].mxu0
    %v1107 = vadd.f32 %v594, %v1106
    %v1108 = vpop.f32.mrb[0].mxu0
    %v1109 = vand.u32 %v93, 4294901760
    %1110 = vmatprep.mubr.f32.mxu0 %v1109
    %v1111 = vand.u32 %v92, 4294901760
    %1112 = vmatmul.mubr.f32.gmra.mrb[0].mxu0 %v1111
    %v1113 = vpop.f32.mrb[0].mxu0
    %v1114 = vadd.f32 %v609, %v1113
    %v1115 = vpop.f32.mrb[0].mxu0
    %v1116 = vand.u32 %v95, 4294901760
    %1117 = vmatprep.mubr.f32.mxu0 %v1116
    %v1118 = vand.u32 %v94, 4294901760
    %1119 = vmatmul.mubr.f32.gmra.mrb[0].mxu0 %v1118
    %v1120 = vpop.f32.mrb[0].mxu0
    %v1121 = vadd.f32 %v624, %v1120
    %v1122 = vpop.f32.mrb[0].mxu0
    %v1123 = vand.u32 %v97, 4294901760
    %1124 = vmatprep.mubr.f32.mxu0 %v1123
    %v1125 = vand.u32 %v96, 4294901760
    %1126 = vmatmul.mubr.f32.gmra.mrb[0].mxu0 %v1125
    %v1127 = vpop.f32.mrb[0].mxu0
    %v1128 = vadd.f32 %v639, %v1127
    %v1129 = vpop.f32.mrb[0].mxu0
    %v1130 = vand.u32 %v99, 4294901760
    %1131 = vmatprep.mubr.f32.mxu0 %v1130
    %v1132 = vand.u32 %v98, 4294901760
    %1133 = vmatmul.mubr.f32.gmra.mrb[0].mxu0 %v1132
    %v1134 = vpop.f32.mrb[0].mxu0
    %v1135 = vadd.f32 %v654, %v1134
    %v1136 = vpop.f32.mrb[0].mxu0
    %v1137 = vand.u32 %v101, 4294901760
    %1138 = vmatprep.mubr.f32.mxu0 %v1137
    %v1139 = vand.u32 %v100, 4294901760
    %1140 = vmatmul.mubr.f32.gmra.mrb[0].mxu0 %v1139
    %v1141 = vpop.f32.mrb[0].mxu0
    %v1142 = vadd.f32 %v669, %v1141
    %v1143 = vpop.f32.mrb[0].mxu0
    %v1144 = vand.u32 %v103, 4294901760
    %1145 = vmatprep.mubr.f32.mxu0 %v1144
    %v1146 = vand.u32 %v102, 4294901760
    %1147 = vmatmul.mubr.f32.gmra.mrb[0].mxu0 %v1146
    %v1148 = vpop.f32.mrb[0].mxu0
    %v1149 = vadd.f32 %v684, %v1148
    %v1150 = vpop.f32.mrb[0].mxu0
    %v1151 = vand.u32 %v105, 4294901760
    %1152 = vmatprep.mubr.f32.mxu0 %v1151
    %v1153 = vand.u32 %v104, 4294901760
    %1154 = vmatmul.mubr.f32.gmra.mrb[0].mxu0 %v1153
    %v1155 = vpop.f32.mrb[0].mxu0
    %v1156 = vadd.f32 %v699, %v1155
    %v1157 = vpop.f32.mrb[0].mxu0
    %v1158 = vand.u32 %v107, 4294901760
    %1159 = vmatprep.mubr.f32.mxu0 %v1158
    %v1160 = vand.u32 %v106, 4294901760
    %1161 = vmatmul.mubr.f32.gmra.mrb[0].mxu0 %v1160
    %v1162 = vpop.f32.mrb[0].mxu0
    %v1163 = vadd.f32 %v714, %v1162
    %v1164 = vpop.f32.mrb[0].mxu0
    %1165 = vdwg.mxu0
    %1166 = vmatprep.subr.mxu0 0.0
    %v1167 = vand.u32 %v108, 4294901760
    %v1168 = vsub.f32 %v108, %v1167
    %1169 = vmatpush1.msra.mxu0 %v1168
    %1170 = vmatprep.subr.mxu0 0.0
    %v1171 = vand.u32 %v109, 4294901760
    %v1172 = vsub.f32 %v109, %v1171
    %1173 = vmatpush1.msra.mxu0 %v1172
    %1174 = vmatprep.subr.mxu0 0.0
    %v1175 = vand.u32 %v110, 4294901760
    %v1176 = vsub.f32 %v110, %v1175
    %1177 = vmatpush1.msra.mxu0 %v1176
    %1178 = vmatprep.subr.mxu0 0.0
    %v1179 = vand.u32 %v111, 4294901760
    %v1180 = vsub.f32 %v111, %v1179
    %1181 = vmatpush1.msra.mxu0 %v1180
    %1182 = vmatprep.subr.mxu0 0.0
    %v1183 = vand.u32 %v112, 4294901760
    %v1184 = vsub.f32 %v112, %v1183
    %1185 = vmatpush1.msra.mxu0 %v1184
    %1186 = vmatprep.subr.mxu0 0.0
    %v1187 = vand.u32 %v113, 4294901760
    %v1188 = vsub.f32 %v113, %v1187
    %1189 = vmatpush1.msra.mxu0 %v1188
    %1190 = vmatprep.subr.mxu0 0.0
    %v1191 = vand.u32 %v114, 4294901760
    %v1192 = vsub.f32 %v114, %v1191
    %1193 = vmatpush1.msra.mxu0 %v1192
    %1194 = vmatprep.subr.mxu0 0.0
    %v1195 = vand.u32 %v115, 4294901760
    %v1196 = vsub.f32 %v115, %v1195
    %1197 = vmatpush1.msra.mxu0 %v1196
    %1198 = vmatprep.subr.mxu0 0.0
    %v1199 = vand.u32 %v116, 4294901760
    %v1200 = vsub.f32 %v116, %v1199
    %1201 = vmatpush1.msra.mxu0 %v1200
    %1202 = vmatprep.subr.mxu0 0.0
    %v1203 = vand.u32 %v117, 4294901760
    %v1204 = vsub.f32 %v117, %v1203
    %1205 = vmatpush1.msra.mxu0 %v1204
    %1206 = vmatprep.subr.mxu0 0.0
    %v1207 = vand.u32 %v118, 4294901760
    %v1208 = vsub.f32 %v118, %v1207
    %1209 = vmatpush1.msra.mxu0 %v1208
    %1210 = vmatprep.subr.mxu0 0.0
    %v1211 = vand.u32 %v119, 4294901760
    %v1212 = vsub.f32 %v119, %v1211
    %1213 = vmatpush1.msra.mxu0 %v1212
    %1214 = vmatprep.subr.mxu0 0.0
    %v1215 = vand.u32 %v120, 4294901760
    %v1216 = vsub.f32 %v120, %v1215
    %1217 = vmatpush1.msra.mxu0 %v1216
    %1218 = vmatprep.subr.mxu0 0.0
    %v1219 = vand.u32 %v121, 4294901760
    %v1220 = vsub.f32 %v121, %v1219
    %1221 = vmatpush1.msra.mxu0 %v1220
    %1222 = vmatprep.subr.mxu0 0.0
    %v1223 = vand.u32 %v122, 4294901760
    %v1224 = vsub.f32 %v122, %v1223
    %1225 = vmatpush1.msra.mxu0 %v1224
    %1226 = vmatprep.subr.mxu0 0.0
    %v1227 = vand.u32 %v123, 4294901760
    %v1228 = vsub.f32 %v123, %v1227
    %1229 = vmatpush1.msra.mxu0 %v1228
    %1230 = vmatprep.subr.mxu0 0.0
    %v1231 = vand.u32 %v124, 4294901760
    %v1232 = vsub.f32 %v124, %v1231
    %1233 = vmatpush1.msra.mxu0 %v1232
    %1234 = vmatprep.subr.mxu0 0.0
    %v1235 = vand.u32 %v125, 4294901760
    %v1236 = vsub.f32 %v125, %v1235
    %1237 = vmatpush1.msra.mxu0 %v1236
    %1238 = vmatprep.subr.mxu0 0.0
    %v1239 = vand.u32 %v126, 4294901760
    %v1240 = vsub.f32 %v126, %v1239
    %1241 = vmatpush1.msra.mxu0 %v1240
    %1242 = vmatprep.subr.mxu0 0.0
    %v1243 = vand.u32 %v127, 4294901760
    %v1244 = vsub.f32 %v127, %v1243
    %1245 = vmatpush1.msra.mxu0 %v1244
    %1246 = vmatprep.subr.mxu0 0.0
    %v1247 = vand.u32 %v128, 4294901760
    %v1248 = vsub.f32 %v128, %v1247
    %1249 = vmatpush1.msra.mxu0 %v1248
    %1250 = vmatprep.subr.mxu0 0.0
    %v1251 = vand.u32 %v129, 4294901760
    %v1252 = vsub.f32 %v129, %v1251
    %1253 = vmatpush1.msra.mxu0 %v1252
    %1254 = vmatprep.subr.mxu0 0.0
    %v1255 = vand.u32 %v130, 4294901760
    %v1256 = vsub.f32 %v130, %v1255
    %1257 = vmatpush1.msra.mxu0 %v1256
    %1258 = vmatprep.subr.mxu0 0.0
    %v1259 = vand.u32 %v131, 4294901760
    %v1260 = vsub.f32 %v131, %v1259
    %1261 = vmatpush1.msra.mxu0 %v1260
    %1262 = vmatprep.subr.mxu0 0.0
    %v1263 = vand.u32 %v132, 4294901760
    %v1264 = vsub.f32 %v132, %v1263
    %1265 = vmatpush1.msra.mxu0 %v1264
    %1266 = vmatprep.subr.mxu0 0.0
    %v1267 = vand.u32 %v133, 4294901760
    %v1268 = vsub.f32 %v133, %v1267
    %1269 = vmatpush1.msra.mxu0 %v1268
    %1270 = vmatprep.subr.mxu0 0.0
    %v1271 = vand.u32 %v134, 4294901760
    %v1272 = vsub.f32 %v134, %v1271
    %1273 = vmatpush1.msra.mxu0 %v1272
    %1274 = vmatprep.subr.mxu0 0.0
    %v1275 = vand.u32 %v135, 4294901760
    %v1276 = vsub.f32 %v135, %v1275
    %1277 = vmatpush1.msra.mxu0 %v1276
    %1278 = vmatprep.subr.mxu0 0.0
    %v1279 = vand.u32 %v136, 4294901760
    %v1280 = vsub.f32 %v136, %v1279
    %1281 = vmatpush1.msra.mxu0 %v1280
    %1282 = vmatprep.subr.mxu0 0.0
    %v1283 = vand.u32 %v137, 4294901760
    %v1284 = vsub.f32 %v137, %v1283
    %1285 = vmatpush1.msra.mxu0 %v1284
    %1286 = vmatprep.subr.mxu0 0.0
    %v1287 = vand.u32 %v138, 4294901760
    %v1288 = vsub.f32 %v138, %v1287
    %1289 = vmatpush1.msra.mxu0 %v1288
    %1290 = vmatprep.subr.mxu0 0.0
    %v1291 = vand.u32 %v139, 4294901760
    %v1292 = vsub.f32 %v139, %v1291
    %1293 = vmatpush1.msra.mxu0 %v1292
    %v1294 = vand.u32 %v45, 4294901760
    %v1295 = vsub.f32 %v45, %v1294
    %1296 = vmatprep.mubr.f32.mxu0 %v1295
    %v1297 = vand.u32 %v44, 4294901760
    %v1298 = vsub.f32 %v44, %v1297
    %1299 = vmatmul.mubr.f32.gmra.mrb[0].mxu0 %v1298
    %v1300 = vpop.f32.mrb[0].mxu0
    %v1301 = vadd.f32 %v946, %v1300
    %v1302 = vpop.f32.mrb[0].mxu0
    %v1303 = vand.u32 %v47, 4294901760
    %v1304 = vsub.f32 %v47, %v1303
    %1305 = vmatprep.mubr.f32.mxu0 %v1304
    %v1306 = vand.u32 %v46, 4294901760
    %v1307 = vsub.f32 %v46, %v1306
    %1308 = vmatmul.mubr.f32.gmra.mrb[0].mxu0 %v1307
    %v1309 = vpop.f32.mrb[0].mxu0
    %v1310 = vadd.f32 %v953, %v1309
    %v1311 = vpop.f32.mrb[0].mxu0
    %v1312 = vand.u32 %v49, 4294901760
    %v1313 = vsub.f32 %v49, %v1312
    %1314 = vmatprep.mubr.f32.mxu0 %v1313
    %v1315 = vand.u32 %v48, 4294901760
    %v1316 = vsub.f32 %v48, %v1315
    %1317 = vmatmul.mubr.f32.gmra.mrb[0].mxu0 %v1316
    %v1318 = vpop.f32.mrb[0].mxu0
    %v1319 = vadd.f32 %v960, %v1318
    %v1320 = vpop.f32.mrb[0].mxu0
    %v1321 = vand.u32 %v51, 4294901760
    %v1322 = vsub.f32 %v51, %v1321
    %1323 = vmatprep.mubr.f32.mxu0 %v1322
    %v1324 = vand.u32 %v50, 4294901760
    %v1325 = vsub.f32 %v50, %v1324
    %1326 = vmatmul.mubr.f32.gmra.mrb[0].mxu0 %v1325
    %v1327 = vpop.f32.mrb[0].mxu0
    %v1328 = vadd.f32 %v967, %v1327
    %v1329 = vpop.f32.mrb[0].mxu0
    %v1330 = vand.u32 %v53, 4294901760
    %v1331 = vsub.f32 %v53, %v1330
    %1332 = vmatprep.mubr.f32.mxu0 %v1331
    %v1333 = vand.u32 %v52, 4294901760
    %v1334 = vsub.f32 %v52, %v1333
    %1335 = vmatmul.mubr.f32.gmra.mrb[0].mxu0 %v1334
    %v1336 = vpop.f32.mrb[0].mxu0
    %v1337 = vadd.f32 %v974, %v1336
    %v1338 = vpop.f32.mrb[0].mxu0
    %v1339 = vand.u32 %v55, 4294901760
    %v1340 = vsub.f32 %v55, %v1339
    %1341 = vmatprep.mubr.f32.mxu0 %v1340
    %v1342 = vand.u32 %v54, 4294901760
    %v1343 = vsub.f32 %v54, %v1342
    %1344 = vmatmul.mubr.f32.gmra.mrb[0].mxu0 %v1343
    %v1345 = vpop.f32.mrb[0].mxu0
    %v1346 = vadd.f32 %v981, %v1345
    %v1347 = vpop.f32.mrb[0].mxu0
    %v1348 = vand.u32 %v57, 4294901760
    %v1349 = vsub.f32 %v57, %v1348
    %1350 = vmatprep.mubr.f32.mxu0 %v1349
    %v1351 = vand.u32 %v56, 4294901760
    %v1352 = vsub.f32 %v56, %v1351
    %1353 = vmatmul.mubr.f32.gmra.mrb[0].mxu0 %v1352
    %v1354 = vpop.f32.mrb[0].mxu0
    %v1355 = vadd.f32 %v988, %v1354
    %v1356 = vpop.f32.mrb[0].mxu0
    %v1357 = vand.u32 %v59, 4294901760
    %v1358 = vsub.f32 %v59, %v1357
    %1359 = vmatprep.mubr.f32.mxu0 %v1358
    %v1360 = vand.u32 %v58, 4294901760
    %v1361 = vsub.f32 %v58, %v1360
    %1362 = vmatmul.mubr.f32.gmra.mrb[0].mxu0 %v1361
    %v1363 = vpop.f32.mrb[0].mxu0
    %v1364 = vadd.f32 %v995, %v1363
    %v1365 = vpop.f32.mrb[0].mxu0
    %v1366 = vand.u32 %v61, 4294901760
    %v1367 = vsub.f32 %v61, %v1366
    %1368 = vmatprep.mubr.f32.mxu0 %v1367
    %v1369 = vand.u32 %v60, 4294901760
    %v1370 = vsub.f32 %v60, %v1369
    %1371 = vmatmul.mubr.f32.gmra.mrb[0].mxu0 %v1370
    %v1372 = vpop.f32.mrb[0].mxu0
    %v1373 = vadd.f32 %v1002, %v1372
    %v1374 = vpop.f32.mrb[0].mxu0
    %v1375 = vand.u32 %v63, 4294901760
    %v1376 = vsub.f32 %v63, %v1375
    %1377 = vmatprep.mubr.f32.mxu0 %v1376
    %v1378 = vand.u32 %v62, 4294901760
    %v1379 = vsub.f32 %v62, %v1378
    %1380 = vmatmul.mubr.f32.gmra.mrb[0].mxu0 %v1379
    %v1381 = vpop.f32.mrb[0].mxu0
    %v1382 = vadd.f32 %v1009, %v1381
    %v1383 = vpop.f32.mrb[0].mxu0
    %v1384 = vand.u32 %v65, 4294901760
    %v1385 = vsub.f32 %v65, %v1384
    %1386 = vmatprep.mubr.f32.mxu0 %v1385
    %v1387 = vand.u32 %v64, 4294901760
    %v1388 = vsub.f32 %v64, %v1387
    %1389 = vmatmul.mubr.f32.gmra.mrb[0].mxu0 %v1388
    %v1390 = vpop.f32.mrb[0].mxu0
    %v1391 = vadd.f32 %v1016, %v1390
    %v1392 = vpop.f32.mrb[0].mxu0
    %v1393 = vand.u32 %v67, 4294901760
    %v1394 = vsub.f32 %v67, %v1393
    %1395 = vmatprep.mubr.f32.mxu0 %v1394
    %v1396 = vand.u32 %v66, 4294901760
    %v1397 = vsub.f32 %v66, %v1396
    %1398 = vmatmul.mubr.f32.gmra.mrb[0].mxu0 %v1397
    %v1399 = vpop.f32.mrb[0].mxu0
    %v1400 = vadd.f32 %v1023, %v1399
    %v1401 = vpop.f32.mrb[0].mxu0
    %v1402 = vand.u32 %v69, 4294901760
    %v1403 = vsub.f32 %v69, %v1402
    %1404 = vmatprep.mubr.f32.mxu0 %v1403
    %v1405 = vand.u32 %v68, 4294901760
    %v1406 = vsub.f32 %v68, %v1405
    %1407 = vmatmul.mubr.f32.gmra.mrb[0].mxu0 %v1406
    %v1408 = vpop.f32.mrb[0].mxu0
    %v1409 = vadd.f32 %v1030, %v1408
    %v1410 = vpop.f32.mrb[0].mxu0
    %v1411 = vand.u32 %v71, 4294901760
    %v1412 = vsub.f32 %v71, %v1411
    %1413 = vmatprep.mubr.f32.mxu0 %v1412
    %v1414 = vand.u32 %v70, 4294901760
    %v1415 = vsub.f32 %v70, %v1414
    %1416 = vmatmul.mubr.f32.gmra.mrb[0].mxu0 %v1415
    %v1417 = vpop.f32.mrb[0].mxu0
    %v1418 = vadd.f32 %v1037, %v1417
    %v1419 = vpop.f32.mrb[0].mxu0
    %v1420 = vand.u32 %v73, 4294901760
    %v1421 = vsub.f32 %v73, %v1420
    %1422 = vmatprep.mubr.f32.mxu0 %v1421
    %v1423 = vand.u32 %v72, 4294901760
    %v1424 = vsub.f32 %v72, %v1423
    %1425 = vmatmul.mubr.f32.gmra.mrb[0].mxu0 %v1424
    %v1426 = vpop.f32.mrb[0].mxu0
    %v1427 = vadd.f32 %v1044, %v1426
    %v1428 = vpop.f32.mrb[0].mxu0
    %v1429 = vand.u32 %v75, 4294901760
    %v1430 = vsub.f32 %v75, %v1429
    %1431 = vmatprep.mubr.f32.mxu0 %v1430
    %v1432 = vand.u32 %v74, 4294901760
    %v1433 = vsub.f32 %v74, %v1432
    %1434 = vmatmul.mubr.f32.gmra.mrb[0].mxu0 %v1433
    %v1435 = vpop.f32.mrb[0].mxu0
    %v1436 = vadd.f32 %v1051, %v1435
    %v1437 = vpop.f32.mrb[0].mxu0
    %v1438 = vand.u32 %v77, 4294901760
    %v1439 = vsub.f32 %v77, %v1438
    %1440 = vmatprep.mubr.f32.mxu0 %v1439
    %v1441 = vand.u32 %v76, 4294901760
    %v1442 = vsub.f32 %v76, %v1441
    %1443 = vmatmul.mubr.f32.gmra.mrb[0].mxu0 %v1442
    %v1444 = vpop.f32.mrb[0].mxu0
    %v1445 = vadd.f32 %v1058, %v1444
    %v1446 = vpop.f32.mrb[0].mxu0
    %v1447 = vand.u32 %v79, 4294901760
    %v1448 = vsub.f32 %v79, %v1447
    %1449 = vmatprep.mubr.f32.mxu0 %v1448
    %v1450 = vand.u32 %v78, 4294901760
    %v1451 = vsub.f32 %v78, %v1450
    %1452 = vmatmul.mubr.f32.gmra.mrb[0].mxu0 %v1451
    %v1453 = vpop.f32.mrb[0].mxu0
    %v1454 = vadd.f32 %v1065, %v1453
    %v1455 = vpop.f32.mrb[0].mxu0
    %v1456 = vand.u32 %v81, 4294901760
    %v1457 = vsub.f32 %v81, %v1456
    %1458 = vmatprep.mubr.f32.mxu0 %v1457
    %v1459 = vand.u32 %v80, 4294901760
    %v1460 = vsub.f32 %v80, %v1459
    %1461 = vmatmul.mubr.f32.gmra.mrb[0].mxu0 %v1460
    %v1462 = vpop.f32.mrb[0].mxu0
    %v1463 = vadd.f32 %v1072, %v1462
    %v1464 = vpop.f32.mrb[0].mxu0
    %v1465 = vand.u32 %v83, 4294901760
    %v1466 = vsub.f32 %v83, %v1465
    %1467 = vmatprep.mubr.f32.mxu0 %v1466
    %v1468 = vand.u32 %v82, 4294901760
    %v1469 = vsub.f32 %v82, %v1468
    %1470 = vmatmul.mubr.f32.gmra.mrb[0].mxu0 %v1469
    %v1471 = vpop.f32.mrb[0].mxu0
    %v1472 = vadd.f32 %v1079, %v1471
    %v1473 = vpop.f32.mrb[0].mxu0
    %v1474 = vand.u32 %v85, 4294901760
    %v1475 = vsub.f32 %v85, %v1474
    %1476 = vmatprep.mubr.f32.mxu0 %v1475
    %v1477 = vand.u32 %v84, 4294901760
    %v1478 = vsub.f32 %v84, %v1477
    %1479 = vmatmul.mubr.f32.gmra.mrb[0].mxu0 %v1478
    %v1480 = vpop.f32.mrb[0].mxu0
    %v1481 = vadd.f32 %v1086, %v1480
    %v1482 = vpop.f32.mrb[0].mxu0
    %v1483 = vand.u32 %v87, 4294901760
    %v1484 = vsub.f32 %v87, %v1483
    %1485 = vmatprep.mubr.f32.mxu0 %v1484
    %v1486 = vand.u32 %v86, 4294901760
    %v1487 = vsub.f32 %v86, %v1486
    %1488 = vmatmul.mubr.f32.gmra.mrb[0].mxu0 %v1487
    %v1489 = vpop.f32.mrb[0].mxu0
    %v1490 = vadd.f32 %v1093, %v1489
    %v1491 = vpop.f32.mrb[0].mxu0
    %v1492 = vand.u32 %v89, 4294901760
    %v1493 = vsub.f32 %v89, %v1492
    %1494 = vmatprep.mubr.f32.mxu0 %v1493
    %v1495 = vand.u32 %v88, 4294901760
    %v1496 = vsub.f32 %v88, %v1495
    %1497 = vmatmul.mubr.f32.gmra.mrb[0].mxu0 %v1496
    %v1498 = vpop.f32.mrb[0].mxu0
    %v1499 = vadd.f32 %v1100, %v1498
    %v1500 = vpop.f32.mrb[0].mxu0
    %v1501 = vand.u32 %v91, 4294901760
    %v1502 = vsub.f32 %v91, %v1501
    %1503 = vmatprep.mubr.f32.mxu0 %v1502
    %v1504 = vand.u32 %v90, 4294901760
    %v1505 = vsub.f32 %v90, %v1504
    %1506 = vmatmul.mubr.f32.gmra.mrb[0].mxu0 %v1505
    %v1507 = vpop.f32.mrb[0].mxu0
    %v1508 = vadd.f32 %v1107, %v1507
    %v1509 = vpop.f32.mrb[0].mxu0
    %v1510 = vand.u32 %v93, 4294901760
    %v1511 = vsub.f32 %v93, %v1510
    %1512 = vmatprep.mubr.f32.mxu0 %v1511
    %v1513 = vand.u32 %v92, 4294901760
    %v1514 = vsub.f32 %v92, %v1513
    %1515 = vmatmul.mubr.f32.gmra.mrb[0].mxu0 %v1514
    %v1516 = vpop.f32.mrb[0].mxu0
    %v1517 = vadd.f32 %v1114, %v1516
    %v1518 = vpop.f32.mrb[0].mxu0
    %v1519 = vand.u32 %v95, 4294901760
    %v1520 = vsub.f32 %v95, %v1519
    %1521 = vmatprep.mubr.f32.mxu0 %v1520
    %v1522 = vand.u32 %v94, 4294901760
    %v1523 = vsub.f32 %v94, %v1522
    %1524 = vmatmul.mubr.f32.gmra.mrb[0].mxu0 %v1523
    %v1525 = vpop.f32.mrb[0].mxu0
    %v1526 = vadd.f32 %v1121, %v1525
    %v1527 = vpop.f32.mrb[0].mxu0
    %v1528 = vand.u32 %v97, 4294901760
    %v1529 = vsub.f32 %v97, %v1528
    %1530 = vmatprep.mubr.f32.mxu0 %v1529
    %v1531 = vand.u32 %v96, 4294901760
    %v1532 = vsub.f32 %v96, %v1531
    %1533 = vmatmul.mubr.f32.gmra.mrb[0].mxu0 %v1532
    %v1534 = vpop.f32.mrb[0].mxu0
    %v1535 = vadd.f32 %v1128, %v1534
    %v1536 = vpop.f32.mrb[0].mxu0
    %v1537 = vand.u32 %v99, 4294901760
    %v1538 = vsub.f32 %v99, %v1537
    %1539 = vmatprep.mubr.f32.mxu0 %v1538
    %v1540 = vand.u32 %v98, 4294901760
    %v1541 = vsub.f32 %v98, %v1540
    %1542 = vmatmul.mubr.f32.gmra.mrb[0].mxu0 %v1541
    %v1543 = vpop.f32.mrb[0].mxu0
    %v1544 = vadd.f32 %v1135, %v1543
    %v1545 = vpop.f32.mrb[0].mxu0
    %v1546 = vand.u32 %v101, 4294901760
    %v1547 = vsub.f32 %v101, %v1546
    %1548 = vmatprep.mubr.f32.mxu0 %v1547
    %v1549 = vand.u32 %v100, 4294901760
    %v1550 = vsub.f32 %v100, %v1549
    %1551 = vmatmul.mubr.f32.gmra.mrb[0].mxu0 %v1550
    %v1552 = vpop.f32.mrb[0].mxu0
    %v1553 = vadd.f32 %v1142, %v1552
    %v1554 = vpop.f32.mrb[0].mxu0
    %v1555 = vand.u32 %v103, 4294901760
    %v1556 = vsub.f32 %v103, %v1555
    %1557 = vmatprep.mubr.f32.mxu0 %v1556
    %v1558 = vand.u32 %v102, 4294901760
    %v1559 = vsub.f32 %v102, %v1558
    %1560 = vmatmul.mubr.f32.gmra.mrb[0].mxu0 %v1559
    %v1561 = vpop.f32.mrb[0].mxu0
    %v1562 = vadd.f32 %v1149, %v1561
    %v1563 = vpop.f32.mrb[0].mxu0
    %v1564 = vand.u32 %v105, 4294901760
    %v1565 = vsub.f32 %v105, %v1564
    %1566 = vmatprep.mubr.f32.mxu0 %v1565
    %v1567 = vand.u32 %v104, 4294901760
    %v1568 = vsub.f32 %v104, %v1567
    %1569 = vmatmul.mubr.f32.gmra.mrb[0].mxu0 %v1568
    %v1570 = vpop.f32.mrb[0].mxu0
    %v1571 = vadd.f32 %v1156, %v1570
    %v1572 = vpop.f32.mrb[0].mxu0
    %v1573 = vand.u32 %v107, 4294901760
    %v1574 = vsub.f32 %v107, %v1573
    %1575 = vmatprep.mubr.f32.mxu0 %v1574
    %v1576 = vand.u32 %v106, 4294901760
    %v1577 = vsub.f32 %v106, %v1576
    %1578 = vmatmul.mubr.f32.gmra.mrb[0].mxu0 %v1577
    %v1579 = vpop.f32.mrb[0].mxu0
    %v1580 = vadd.f32 %v1163, %v1579
    %v1581 = vpop.f32.mrb[0].mxu0
    %1582 = vdwg.mxu0
    %1583 = vmatprep.subr.mxu0 0.0
    %v1584 = vand.u32 %v108, 4294901760
    %1585 = vmatpush1.msra.mxu0 %v1584
    %1586 = vmatprep.subr.mxu0 0.0
    %v1587 = vand.u32 %v109, 4294901760
    %1588 = vmatpush1.msra.mxu0 %v1587
    %1589 = vmatprep.subr.mxu0 0.0
    %v1590 = vand.u32 %v110, 4294901760
    %1591 = vmatpush1.msra.mxu0 %v1590
    %1592 = vmatprep.subr.mxu0 0.0
    %v1593 = vand.u32 %v111, 4294901760
    %1594 = vmatpush1.msra.mxu0 %v1593
    %1595 = vmatprep.subr.mxu0 0.0
    %v1596 = vand.u32 %v112, 4294901760
    %1597 = vmatpush1.msra.mxu0 %v1596
    %1598 = vmatprep.subr.mxu0 0.0
    %v1599 = vand.u32 %v113, 4294901760
    %1600 = vmatpush1.msra.mxu0 %v1599
    %1601 = vmatprep.subr.mxu0 0.0
    %v1602 = vand.u32 %v114, 4294901760
    %1603 = vmatpush1.msra.mxu0 %v1602
    %1604 = vmatprep.subr.mxu0 0.0
    %v1605 = vand.u32 %v115, 4294901760
    %1606 = vmatpush1.msra.mxu0 %v1605
    %1607 = vmatprep.subr.mxu0 0.0
    %v1608 = vand.u32 %v116, 4294901760
    %1609 = vmatpush1.msra.mxu0 %v1608
    %1610 = vmatprep.subr.mxu0 0.0
    %v1611 = vand.u32 %v117, 4294901760
    %1612 = vmatpush1.msra.mxu0 %v1611
    %1613 = vmatprep.subr.mxu0 0.0
    %v1614 = vand.u32 %v118, 4294901760
    %1615 = vmatpush1.msra.mxu0 %v1614
    %1616 = vmatprep.subr.mxu0 0.0
    %v1617 = vand.u32 %v119, 4294901760
    %1618 = vmatpush1.msra.mxu0 %v1617
    %1619 = vmatprep.subr.mxu0 0.0
    %v1620 = vand.u32 %v120, 4294901760
    %1621 = vmatpush1.msra.mxu0 %v1620
    %1622 = vmatprep.subr.mxu0 0.0
    %v1623 = vand.u32 %v121, 4294901760
    %1624 = vmatpush1.msra.mxu0 %v1623
    %1625 = vmatprep.subr.mxu0 0.0
    %v1626 = vand.u32 %v122, 4294901760
    %1627 = vmatpush1.msra.mxu0 %v1626
    %1628 = vmatprep.subr.mxu0 0.0
    %v1629 = vand.u32 %v123, 4294901760
    %1630 = vmatpush1.msra.mxu0 %v1629
    %1631 = vmatprep.subr.mxu0 0.0
    %v1632 = vand.u32 %v124, 4294901760
    %1633 = vmatpush1.msra.mxu0 %v1632
    %1634 = vmatprep.subr.mxu0 0.0
    %v1635 = vand.u32 %v125, 4294901760
    %1636 = vmatpush1.msra.mxu0 %v1635
    %1637 = vmatprep.subr.mxu0 0.0
    %v1638 = vand.u32 %v126, 4294901760
    %1639 = vmatpush1.msra.mxu0 %v1638
    %1640 = vmatprep.subr.mxu0 0.0
    %v1641 = vand.u32 %v127, 4294901760
    %1642 = vmatpush1.msra.mxu0 %v1641
    %1643 = vmatprep.subr.mxu0 0.0
    %v1644 = vand.u32 %v128, 4294901760
    %1645 = vmatpush1.msra.mxu0 %v1644
    %1646 = vmatprep.subr.mxu0 0.0
    %v1647 = vand.u32 %v129, 4294901760
    %1648 = vmatpush1.msra.mxu0 %v1647
    %1649 = vmatprep.subr.mxu0 0.0
    %v1650 = vand.u32 %v130, 4294901760
    %1651 = vmatpush1.msra.mxu0 %v1650
    %1652 = vmatprep.subr.mxu0 0.0
    %v1653 = vand.u32 %v131, 4294901760
    %1654 = vmatpush1.msra.mxu0 %v1653
    %1655 = vmatprep.subr.mxu0 0.0
    %v1656 = vand.u32 %v132, 4294901760
    %1657 = vmatpush1.msra.mxu0 %v1656
    %1658 = vmatprep.subr.mxu0 0.0
    %v1659 = vand.u32 %v133, 4294901760
    %1660 = vmatpush1.msra.mxu0 %v1659
    %1661 = vmatprep.subr.mxu0 0.0
    %v1662 = vand.u32 %v134, 4294901760
    %1663 = vmatpush1.msra.mxu0 %v1662
    %1664 = vmatprep.subr.mxu0 0.0
    %v1665 = vand.u32 %v135, 4294901760
    %1666 = vmatpush1.msra.mxu0 %v1665
    %1667 = vmatprep.subr.mxu0 0.0
    %v1668 = vand.u32 %v136, 4294901760
    %1669 = vmatpush1.msra.mxu0 %v1668
    %1670 = vmatprep.subr.mxu0 0.0
    %v1671 = vand.u32 %v137, 4294901760
    %1672 = vmatpush1.msra.mxu0 %v1671
    %1673 = vmatprep.subr.mxu0 0.0
    %v1674 = vand.u32 %v138, 4294901760
    %1675 = vmatpush1.msra.mxu0 %v1674
    %1676 = vmatprep.subr.mxu0 0.0
    %v1677 = vand.u32 %v139, 4294901760
    %1678 = vmatpush1.msra.mxu0 %v1677
    %v1679 = vand.u32 %v45, 4294901760
    %v1680 = vsub.f32 %v45, %v1679
    %v1681 = vand.u32 %v1680, 4294901760
    %1682 = vmatprep.mubr.f32.mxu0 %v1681
    %v1683 = vand.u32 %v44, 4294901760
    %v1684 = vsub.f32 %v44, %v1683
    %v1685 = vand.u32 %v1684, 4294901760
    %1686 = vmatmul.mubr.f32.gmra.mrb[0].mxu0 %v1685
    %v1687 = vpop.f32.mrb[0].mxu0
    %v1688 = vadd.f32 %v1301, %v1687
    %v1689 = vpop.f32.mrb[0].mxu0
    %v1690 = vand.u32 %v47, 4294901760
    %v1691 = vsub.f32 %v47, %v1690
    %v1692 = vand.u32 %v1691, 4294901760
    %1693 = vmatprep.mubr.f32.mxu0 %v1692
    %v1694 = vand.u32 %v46, 4294901760
    %v1695 = vsub.f32 %v46, %v1694
    %v1696 = vand.u32 %v1695, 4294901760
    %1697 = vmatmul.mubr.f32.gmra.mrb[0].mxu0 %v1696
    %v1698 = vpop.f32.mrb[0].mxu0
    %v1699 = vadd.f32 %v1310, %v1698
    %v1700 = vpop.f32.mrb[0].mxu0
    %v1701 = vand.u32 %v49, 4294901760
    %v1702 = vsub.f32 %v49, %v1701
    %v1703 = vand.u32 %v1702, 4294901760
    %1704 = vmatprep.mubr.f32.mxu0 %v1703
    %v1705 = vand.u32 %v48, 4294901760
    %v1706 = vsub.f32 %v48, %v1705
    %v1707 = vand.u32 %v1706, 4294901760
    %1708 = vmatmul.mubr.f32.gmra.mrb[0].mxu0 %v1707
    %v1709 = vpop.f32.mrb[0].mxu0
    %v1710 = vadd.f32 %v1319, %v1709
    %v1711 = vpop.f32.mrb[0].mxu0
    %v1712 = vand.u32 %v51, 4294901760
    %v1713 = vsub.f32 %v51, %v1712
    %v1714 = vand.u32 %v1713, 4294901760
    %1715 = vmatprep.mubr.f32.mxu0 %v1714
    %v1716 = vand.u32 %v50, 4294901760
    %v1717 = vsub.f32 %v50, %v1716
    %v1718 = vand.u32 %v1717, 4294901760
    %1719 = vmatmul.mubr.f32.gmra.mrb[0].mxu0 %v1718
    %v1720 = vpop.f32.mrb[0].mxu0
    %v1721 = vadd.f32 %v1328, %v1720
    %v1722 = vpop.f32.mrb[0].mxu0
    %v1723 = vand.u32 %v53, 4294901760
    %v1724 = vsub.f32 %v53, %v1723
    %v1725 = vand.u32 %v1724, 4294901760
    %1726 = vmatprep.mubr.f32.mxu0 %v1725
    %v1727 = vand.u32 %v52, 4294901760
    %v1728 = vsub.f32 %v52, %v1727
    %v1729 = vand.u32 %v1728, 4294901760
    %1730 = vmatmul.mubr.f32.gmra.mrb[0].mxu0 %v1729
    %v1731 = vpop.f32.mrb[0].mxu0
    %v1732 = vadd.f32 %v1337, %v1731
    %v1733 = vpop.f32.mrb[0].mxu0
    %v1734 = vand.u32 %v55, 4294901760
    %v1735 = vsub.f32 %v55, %v1734
    %v1736 = vand.u32 %v1735, 4294901760
    %1737 = vmatprep.mubr.f32.mxu0 %v1736
    %v1738 = vand.u32 %v54, 4294901760
    %v1739 = vsub.f32 %v54, %v1738
    %v1740 = vand.u32 %v1739, 4294901760
    %1741 = vmatmul.mubr.f32.gmra.mrb[0].mxu0 %v1740
    %v1742 = vpop.f32.mrb[0].mxu0
    %v1743 = vadd.f32 %v1346, %v1742
    %v1744 = vpop.f32.mrb[0].mxu0
    %v1745 = vand.u32 %v57, 4294901760
    %v1746 = vsub.f32 %v57, %v1745
    %v1747 = vand.u32 %v1746, 4294901760
    %1748 = vmatprep.mubr.f32.mxu0 %v1747
    %v1749 = vand.u32 %v56, 4294901760
    %v1750 = vsub.f32 %v56, %v1749
    %v1751 = vand.u32 %v1750, 4294901760
    %1752 = vmatmul.mubr.f32.gmra.mrb[0].mxu0 %v1751
    %v1753 = vpop.f32.mrb[0].mxu0
    %v1754 = vadd.f32 %v1355, %v1753
    %v1755 = vpop.f32.mrb[0].mxu0
    %v1756 = vand.u32 %v59, 4294901760
    %v1757 = vsub.f32 %v59, %v1756
    %v1758 = vand.u32 %v1757, 4294901760
    %1759 = vmatprep.mubr.f32.mxu0 %v1758
    %v1760 = vand.u32 %v58, 4294901760
    %v1761 = vsub.f32 %v58, %v1760
    %v1762 = vand.u32 %v1761, 4294901760
    %1763 = vmatmul.mubr.f32.gmra.mrb[0].mxu0 %v1762
    %v1764 = vpop.f32.mrb[0].mxu0
    %v1765 = vadd.f32 %v1364, %v1764
    %v1766 = vpop.f32.mrb[0].mxu0
    %v1767 = vand.u32 %v61, 4294901760
    %v1768 = vsub.f32 %v61, %v1767
    %v1769 = vand.u32 %v1768, 4294901760
    %1770 = vmatprep.mubr.f32.mxu0 %v1769
    %v1771 = vand.u32 %v60, 4294901760
    %v1772 = vsub.f32 %v60, %v1771
    %v1773 = vand.u32 %v1772, 4294901760
    %1774 = vmatmul.mubr.f32.gmra.mrb[0].mxu0 %v1773
    %v1775 = vpop.f32.mrb[0].mxu0
    %v1776 = vadd.f32 %v1373, %v1775
    %v1777 = vpop.f32.mrb[0].mxu0
    %v1778 = vand.u32 %v63, 4294901760
    %v1779 = vsub.f32 %v63, %v1778
    %v1780 = vand.u32 %v1779, 4294901760
    %1781 = vmatprep.mubr.f32.mxu0 %v1780
    %v1782 = vand.u32 %v62, 4294901760
    %v1783 = vsub.f32 %v62, %v1782
    %v1784 = vand.u32 %v1783, 4294901760
    %1785 = vmatmul.mubr.f32.gmra.mrb[0].mxu0 %v1784
    %v1786 = vpop.f32.mrb[0].mxu0
    %v1787 = vadd.f32 %v1382, %v1786
    %v1788 = vpop.f32.mrb[0].mxu0
    %v1789 = vand.u32 %v65, 4294901760
    %v1790 = vsub.f32 %v65, %v1789
    %v1791 = vand.u32 %v1790, 4294901760
    %1792 = vmatprep.mubr.f32.mxu0 %v1791
    %v1793 = vand.u32 %v64, 4294901760
    %v1794 = vsub.f32 %v64, %v1793
    %v1795 = vand.u32 %v1794, 4294901760
    %1796 = vmatmul.mubr.f32.gmra.mrb[0].mxu0 %v1795
    %v1797 = vpop.f32.mrb[0].mxu0
    %v1798 = vadd.f32 %v1391, %v1797
    %v1799 = vpop.f32.mrb[0].mxu0
    %v1800 = vand.u32 %v67, 4294901760
    %v1801 = vsub.f32 %v67, %v1800
    %v1802 = vand.u32 %v1801, 4294901760
    %1803 = vmatprep.mubr.f32.mxu0 %v1802
    %v1804 = vand.u32 %v66, 4294901760
    %v1805 = vsub.f32 %v66, %v1804
    %v1806 = vand.u32 %v1805, 4294901760
    %1807 = vmatmul.mubr.f32.gmra.mrb[0].mxu0 %v1806
    %v1808 = vpop.f32.mrb[0].mxu0
    %v1809 = vadd.f32 %v1400, %v1808
    %v1810 = vpop.f32.mrb[0].mxu0
    %v1811 = vand.u32 %v69, 4294901760
    %v1812 = vsub.f32 %v69, %v1811
    %v1813 = vand.u32 %v1812, 4294901760
    %1814 = vmatprep.mubr.f32.mxu0 %v1813
    %v1815 = vand.u32 %v68, 4294901760
    %v1816 = vsub.f32 %v68, %v1815
    %v1817 = vand.u32 %v1816, 4294901760
    %1818 = vmatmul.mubr.f32.gmra.mrb[0].mxu0 %v1817
    %v1819 = vpop.f32.mrb[0].mxu0
    %v1820 = vadd.f32 %v1409, %v1819
    %v1821 = vpop.f32.mrb[0].mxu0
    %v1822 = vand.u32 %v71, 4294901760
    %v1823 = vsub.f32 %v71, %v1822
    %v1824 = vand.u32 %v1823, 4294901760
    %1825 = vmatprep.mubr.f32.mxu0 %v1824
    %v1826 = vand.u32 %v70, 4294901760
    %v1827 = vsub.f32 %v70, %v1826
    %v1828 = vand.u32 %v1827, 4294901760
    %1829 = vmatmul.mubr.f32.gmra.mrb[0].mxu0 %v1828
    %v1830 = vpop.f32.mrb[0].mxu0
    %v1831 = vadd.f32 %v1418, %v1830
    %v1832 = vpop.f32.mrb[0].mxu0
    %v1833 = vand.u32 %v73, 4294901760
    %v1834 = vsub.f32 %v73, %v1833
    %v1835 = vand.u32 %v1834, 4294901760
    %1836 = vmatprep.mubr.f32.mxu0 %v1835
    %v1837 = vand.u32 %v72, 4294901760
    %v1838 = vsub.f32 %v72, %v1837
    %v1839 = vand.u32 %v1838, 4294901760
    %1840 = vmatmul.mubr.f32.gmra.mrb[0].mxu0 %v1839
    %v1841 = vpop.f32.mrb[0].mxu0
    %v1842 = vadd.f32 %v1427, %v1841
    %v1843 = vpop.f32.mrb[0].mxu0
    %v1844 = vand.u32 %v75, 4294901760
    %v1845 = vsub.f32 %v75, %v1844
    %v1846 = vand.u32 %v1845, 4294901760
    %1847 = vmatprep.mubr.f32.mxu0 %v1846
    %v1848 = vand.u32 %v74, 4294901760
    %v1849 = vsub.f32 %v74, %v1848
    %v1850 = vand.u32 %v1849, 4294901760
    %1851 = vmatmul.mubr.f32.gmra.mrb[0].mxu0 %v1850
    %v1852 = vpop.f32.mrb[0].mxu0
    %v1853 = vadd.f32 %v1436, %v1852
    %v1854 = vpop.f32.mrb[0].mxu0
    %v1855 = vand.u32 %v77, 4294901760
    %v1856 = vsub.f32 %v77, %v1855
    %v1857 = vand.u32 %v1856, 4294901760
    %1858 = vmatprep.mubr.f32.mxu0 %v1857
    %v1859 = vand.u32 %v76, 4294901760
    %v1860 = vsub.f32 %v76, %v1859
    %v1861 = vand.u32 %v1860, 4294901760
    %1862 = vmatmul.mubr.f32.gmra.mrb[0].mxu0 %v1861
    %v1863 = vpop.f32.mrb[0].mxu0
    %v1864 = vadd.f32 %v1445, %v1863
    %v1865 = vpop.f32.mrb[0].mxu0
    %v1866 = vand.u32 %v79, 4294901760
    %v1867 = vsub.f32 %v79, %v1866
    %v1868 = vand.u32 %v1867, 4294901760
    %1869 = vmatprep.mubr.f32.mxu0 %v1868
    %v1870 = vand.u32 %v78, 4294901760
    %v1871 = vsub.f32 %v78, %v1870
    %v1872 = vand.u32 %v1871, 4294901760
    %1873 = vmatmul.mubr.f32.gmra.mrb[0].mxu0 %v1872
    %v1874 = vpop.f32.mrb[0].mxu0
    %v1875 = vadd.f32 %v1454, %v1874
    %v1876 = vpop.f32.mrb[0].mxu0
    %v1877 = vand.u32 %v81, 4294901760
    %v1878 = vsub.f32 %v81, %v1877
    %v1879 = vand.u32 %v1878, 4294901760
    %1880 = vmatprep.mubr.f32.mxu0 %v1879
    %v1881 = vand.u32 %v80, 4294901760
    %v1882 = vsub.f32 %v80, %v1881
    %v1883 = vand.u32 %v1882, 4294901760
    %1884 = vmatmul.mubr.f32.gmra.mrb[0].mxu0 %v1883
    %v1885 = vpop.f32.mrb[0].mxu0
    %v1886 = vadd.f32 %v1463, %v1885
    %v1887 = vpop.f32.mrb[0].mxu0
    %v1888 = vand.u32 %v83, 4294901760
    %v1889 = vsub.f32 %v83, %v1888
    %v1890 = vand.u32 %v1889, 4294901760
    %1891 = vmatprep.mubr.f32.mxu0 %v1890
    %v1892 = vand.u32 %v82, 4294901760
    %v1893 = vsub.f32 %v82, %v1892
    %v1894 = vand.u32 %v1893, 4294901760
    %1895 = vmatmul.mubr.f32.gmra.mrb[0].mxu0 %v1894
    %v1896 = vpop.f32.mrb[0].mxu0
    %v1897 = vadd.f32 %v1472, %v1896
    %v1898 = vpop.f32.mrb[0].mxu0
    %v1899 = vand.u32 %v85, 4294901760
    %v1900 = vsub.f32 %v85, %v1899
    %v1901 = vand.u32 %v1900, 4294901760
    %1902 = vmatprep.mubr.f32.mxu0 %v1901
    %v1903 = vand.u32 %v84, 4294901760
    %v1904 = vsub.f32 %v84, %v1903
    %v1905 = vand.u32 %v1904, 4294901760
    %1906 = vmatmul.mubr.f32.gmra.mrb[0].mxu0 %v1905
    %v1907 = vpop.f32.mrb[0].mxu0
    %v1908 = vadd.f32 %v1481, %v1907
    %v1909 = vpop.f32.mrb[0].mxu0
    %v1910 = vand.u32 %v87, 4294901760
    %v1911 = vsub.f32 %v87, %v1910
    %v1912 = vand.u32 %v1911, 4294901760
    %1913 = vmatprep.mubr.f32.mxu0 %v1912
    %v1914 = vand.u32 %v86, 4294901760
    %v1915 = vsub.f32 %v86, %v1914
    %v1916 = vand.u32 %v1915, 4294901760
    %1917 = vmatmul.mubr.f32.gmra.mrb[0].mxu0 %v1916
    %v1918 = vpop.f32.mrb[0].mxu0
    %v1919 = vadd.f32 %v1490, %v1918
    %v1920 = vpop.f32.mrb[0].mxu0
    %v1921 = vand.u32 %v89, 4294901760
    %v1922 = vsub.f32 %v89, %v1921
    %v1923 = vand.u32 %v1922, 4294901760
    %1924 = vmatprep.mubr.f32.mxu0 %v1923
    %v1925 = vand.u32 %v88, 4294901760
    %v1926 = vsub.f32 %v88, %v1925
    %v1927 = vand.u32 %v1926, 4294901760
    %1928 = vmatmul.mubr.f32.gmra.mrb[0].mxu0 %v1927
    %v1929 = vpop.f32.mrb[0].mxu0
    %v1930 = vadd.f32 %v1499, %v1929
    %v1931 = vpop.f32.mrb[0].mxu0
    %v1932 = vand.u32 %v91, 4294901760
    %v1933 = vsub.f32 %v91, %v1932
    %v1934 = vand.u32 %v1933, 4294901760
    %1935 = vmatprep.mubr.f32.mxu0 %v1934
    %v1936 = vand.u32 %v90, 4294901760
    %v1937 = vsub.f32 %v90, %v1936
    %v1938 = vand.u32 %v1937, 4294901760
    %1939 = vmatmul.mubr.f32.gmra.mrb[0].mxu0 %v1938
    %v1940 = vpop.f32.mrb[0].mxu0
    %v1941 = vadd.f32 %v1508, %v1940
    %v1942 = vpop.f32.mrb[0].mxu0
    %v1943 = vand.u32 %v93, 4294901760
    %v1944 = vsub.f32 %v93, %v1943
    %v1945 = vand.u32 %v1944, 4294901760
    %1946 = vmatprep.mubr.f32.mxu0 %v1945
    %v1947 = vand.u32 %v92, 4294901760
    %v1948 = vsub.f32 %v92, %v1947
    %v1949 = vand.u32 %v1948, 4294901760
    %1950 = vmatmul.mubr.f32.gmra.mrb[0].mxu0 %v1949
    %v1951 = vpop.f32.mrb[0].mxu0
    %v1952 = vadd.f32 %v1517, %v1951
    %v1953 = vpop.f32.mrb[0].mxu0
    %v1954 = vand.u32 %v95, 4294901760
    %v1955 = vsub.f32 %v95, %v1954
    %v1956 = vand.u32 %v1955, 4294901760
    %1957 = vmatprep.mubr.f32.mxu0 %v1956
    %v1958 = vand.u32 %v94, 4294901760
    %v1959 = vsub.f32 %v94, %v1958
    %v1960 = vand.u32 %v1959, 4294901760
    %1961 = vmatmul.mubr.f32.gmra.mrb[0].mxu0 %v1960
    %v1962 = vpop.f32.mrb[0].mxu0
    %v1963 = vadd.f32 %v1526, %v1962
    %v1964 = vpop.f32.mrb[0].mxu0
    %v1965 = vand.u32 %v97, 4294901760
    %v1966 = vsub.f32 %v97, %v1965
    %v1967 = vand.u32 %v1966, 4294901760
    %1968 = vmatprep.mubr.f32.mxu0 %v1967
    %v1969 = vand.u32 %v96, 4294901760
    %v1970 = vsub.f32 %v96, %v1969
    %v1971 = vand.u32 %v1970, 4294901760
    %1972 = vmatmul.mubr.f32.gmra.mrb[0].mxu0 %v1971
    %v1973 = vpop.f32.mrb[0].mxu0
    %v1974 = vadd.f32 %v1535, %v1973
    %v1975 = vpop.f32.mrb[0].mxu0
    %v1976 = vand.u32 %v99, 4294901760
    %v1977 = vsub.f32 %v99, %v1976
    %v1978 = vand.u32 %v1977, 4294901760
    %1979 = vmatprep.mubr.f32.mxu0 %v1978
    %v1980 = vand.u32 %v98, 4294901760
    %v1981 = vsub.f32 %v98, %v1980
    %v1982 = vand.u32 %v1981, 4294901760
    %1983 = vmatmul.mubr.f32.gmra.mrb[0].mxu0 %v1982
    %v1984 = vpop.f32.mrb[0].mxu0
    %v1985 = vadd.f32 %v1544, %v1984
    %v1986 = vpop.f32.mrb[0].mxu0
    %v1987 = vand.u32 %v101, 4294901760
    %v1988 = vsub.f32 %v101, %v1987
    %v1989 = vand.u32 %v1988, 4294901760
    %1990 = vmatprep.mubr.f32.mxu0 %v1989
    %v1991 = vand.u32 %v100, 4294901760
    %v1992 = vsub.f32 %v100, %v1991
    %v1993 = vand.u32 %v1992, 4294901760
    %1994 = vmatmul.mubr.f32.gmra.mrb[0].mxu0 %v1993
    %v1995 = vpop.f32.mrb[0].mxu0
    %v1996 = vadd.f32 %v1553, %v1995
    %v1997 = vpop.f32.mrb[0].mxu0
    %v1998 = vand.u32 %v103, 4294901760
    %v1999 = vsub.f32 %v103, %v1998
    %v2000 = vand.u32 %v1999, 4294901760
    %2001 = vmatprep.mubr.f32.mxu0 %v2000
    %v2002 = vand.u32 %v102, 4294901760
    %v2003 = vsub.f32 %v102, %v2002
    %v2004 = vand.u32 %v2003, 4294901760
    %2005 = vmatmul.mubr.f32.gmra.mrb[0].mxu0 %v2004
    %v2006 = vpop.f32.mrb[0].mxu0
    %v2007 = vadd.f32 %v1562, %v2006
    %v2008 = vpop.f32.mrb[0].mxu0
    %v2009 = vand.u32 %v105, 4294901760
    %v2010 = vsub.f32 %v105, %v2009
    %v2011 = vand.u32 %v2010, 4294901760
    %2012 = vmatprep.mubr.f32.mxu0 %v2011
    %v2013 = vand.u32 %v104, 4294901760
    %v2014 = vsub.f32 %v104, %v2013
    %v2015 = vand.u32 %v2014, 4294901760
    %2016 = vmatmul.mubr.f32.gmra.mrb[0].mxu0 %v2015
    %v2017 = vpop.f32.mrb[0].mxu0
    %v2018 = vadd.f32 %v1571, %v2017
    %v2019 = vpop.f32.mrb[0].mxu0
    %v2020 = vand.u32 %v107, 4294901760
    %v2021 = vsub.f32 %v107, %v2020
    %v2022 = vand.u32 %v2021, 4294901760
    %2023 = vmatprep.mubr.f32.mxu0 %v2022
    %v2024 = vand.u32 %v106, 4294901760
    %v2025 = vsub.f32 %v106, %v2024
    %v2026 = vand.u32 %v2025, 4294901760
    %2027 = vmatmul.mubr.f32.gmra.mrb[0].mxu0 %v2026
    %v2028 = vpop.f32.mrb[0].mxu0
    %v2029 = vadd.f32 %v1580, %v2028
    %v2030 = vpop.f32.mrb[0].mxu0
    %2031 = vdwg.mxu0
    %2032 = vmatprep.subr.mxu0 0.0
    %v2033 = vand.u32 %v108, 4294901760
    %v2034 = vsub.f32 %v108, %v2033
    %v2035 = vand.u32 %v2034, 4294901760
    %2036 = vmatpush1.msra.mxu0 %v2035
    %2037 = vmatprep.subr.mxu0 0.0
    %v2038 = vand.u32 %v109, 4294901760
    %v2039 = vsub.f32 %v109, %v2038
    %v2040 = vand.u32 %v2039, 4294901760
    %2041 = vmatpush1.msra.mxu0 %v2040
    %2042 = vmatprep.subr.mxu0 0.0
    %v2043 = vand.u32 %v110, 4294901760
    %v2044 = vsub.f32 %v110, %v2043
    %v2045 = vand.u32 %v2044, 4294901760
    %2046 = vmatpush1.msra.mxu0 %v2045
    %2047 = vmatprep.subr.mxu0 0.0
    %v2048 = vand.u32 %v111, 4294901760
    %v2049 = vsub.f32 %v111, %v2048
    %v2050 = vand.u32 %v2049, 4294901760
    %2051 = vmatpush1.msra.mxu0 %v2050
    %2052 = vmatprep.subr.mxu0 0.0
    %v2053 = vand.u32 %v112, 4294901760
    %v2054 = vsub.f32 %v112, %v2053
    %v2055 = vand.u32 %v2054, 4294901760
    %2056 = vmatpush1.msra.mxu0 %v2055
    %2057 = vmatprep.subr.mxu0 0.0
    %v2058 = vand.u32 %v113, 4294901760
    %v2059 = vsub.f32 %v113, %v2058
    %v2060 = vand.u32 %v2059, 4294901760
    %2061 = vmatpush1.msra.mxu0 %v2060
    %2062 = vmatprep.subr.mxu0 0.0
    %v2063 = vand.u32 %v114, 4294901760
    %v2064 = vsub.f32 %v114, %v2063
    %v2065 = vand.u32 %v2064, 4294901760
    %2066 = vmatpush1.msra.mxu0 %v2065
    %2067 = vmatprep.subr.mxu0 0.0
    %v2068 = vand.u32 %v115, 4294901760
    %v2069 = vsub.f32 %v115, %v2068
    %v2070 = vand.u32 %v2069, 4294901760
    %2071 = vmatpush1.msra.mxu0 %v2070
    %2072 = vmatprep.subr.mxu0 0.0
    %v2073 = vand.u32 %v116, 4294901760
    %v2074 = vsub.f32 %v116, %v2073
    %v2075 = vand.u32 %v2074, 4294901760
    %2076 = vmatpush1.msra.mxu0 %v2075
    %2077 = vmatprep.subr.mxu0 0.0
    %v2078 = vand.u32 %v117, 4294901760
    %v2079 = vsub.f32 %v117, %v2078
    %v2080 = vand.u32 %v2079, 4294901760
    %2081 = vmatpush1.msra.mxu0 %v2080
    %2082 = vmatprep.subr.mxu0 0.0
    %v2083 = vand.u32 %v118, 4294901760
    %v2084 = vsub.f32 %v118, %v2083
    %v2085 = vand.u32 %v2084, 4294901760
    %2086 = vmatpush1.msra.mxu0 %v2085
    %2087 = vmatprep.subr.mxu0 0.0
    %v2088 = vand.u32 %v119, 4294901760
    %v2089 = vsub.f32 %v119, %v2088
    %v2090 = vand.u32 %v2089, 4294901760
    %2091 = vmatpush1.msra.mxu0 %v2090
    %2092 = vmatprep.subr.mxu0 0.0
    %v2093 = vand.u32 %v120, 4294901760
    %v2094 = vsub.f32 %v120, %v2093
    %v2095 = vand.u32 %v2094, 4294901760
    %2096 = vmatpush1.msra.mxu0 %v2095
    %2097 = vmatprep.subr.mxu0 0.0
    %v2098 = vand.u32 %v121, 4294901760
    %v2099 = vsub.f32 %v121, %v2098
    %v2100 = vand.u32 %v2099, 4294901760
    %2101 = vmatpush1.msra.mxu0 %v2100
    %2102 = vmatprep.subr.mxu0 0.0
    %v2103 = vand.u32 %v122, 4294901760
    %v2104 = vsub.f32 %v122, %v2103
    %v2105 = vand.u32 %v2104, 4294901760
    %2106 = vmatpush1.msra.mxu0 %v2105
    %2107 = vmatprep.subr.mxu0 0.0
    %v2108 = vand.u32 %v123, 4294901760
    %v2109 = vsub.f32 %v123, %v2108
    %v2110 = vand.u32 %v2109, 4294901760
    %2111 = vmatpush1.msra.mxu0 %v2110
    %2112 = vmatprep.subr.mxu0 0.0
    %v2113 = vand.u32 %v124, 4294901760
    %v2114 = vsub.f32 %v124, %v2113
    %v2115 = vand.u32 %v2114, 4294901760
    %2116 = vmatpush1.msra.mxu0 %v2115
    %2117 = vmatprep.subr.mxu0 0.0
    %v2118 = vand.u32 %v125, 4294901760
    %v2119 = vsub.f32 %v125, %v2118
    %v2120 = vand.u32 %v2119, 4294901760
    %2121 = vmatpush1.msra.mxu0 %v2120
    %2122 = vmatprep.subr.mxu0 0.0
    %v2123 = vand.u32 %v126, 4294901760
    %v2124 = vsub.f32 %v126, %v2123
    %v2125 = vand.u32 %v2124, 4294901760
    %2126 = vmatpush1.msra.mxu0 %v2125
    %2127 = vmatprep.subr.mxu0 0.0
    %v2128 = vand.u32 %v127, 4294901760
    %v2129 = vsub.f32 %v127, %v2128
    %v2130 = vand.u32 %v2129, 4294901760
    %2131 = vmatpush1.msra.mxu0 %v2130
    %2132 = vmatprep.subr.mxu0 0.0
    %v2133 = vand.u32 %v128, 4294901760
    %v2134 = vsub.f32 %v128, %v2133
    %v2135 = vand.u32 %v2134, 4294901760
    %2136 = vmatpush1.msra.mxu0 %v2135
    %2137 = vmatprep.subr.mxu0 0.0
    %v2138 = vand.u32 %v129, 4294901760
    %v2139 = vsub.f32 %v129, %v2138
    %v2140 = vand.u32 %v2139, 4294901760
    %2141 = vmatpush1.msra.mxu0 %v2140
    %2142 = vmatprep.subr.mxu0 0.0
    %v2143 = vand.u32 %v130, 4294901760
    %v2144 = vsub.f32 %v130, %v2143
    %v2145 = vand.u32 %v2144, 4294901760
    %2146 = vmatpush1.msra.mxu0 %v2145
    %2147 = vmatprep.subr.mxu0 0.0
    %v2148 = vand.u32 %v131, 4294901760
    %v2149 = vsub.f32 %v131, %v2148
    %v2150 = vand.u32 %v2149, 4294901760
    %2151 = vmatpush1.msra.mxu0 %v2150
    %2152 = vmatprep.subr.mxu0 0.0
    %v2153 = vand.u32 %v132, 4294901760
    %v2154 = vsub.f32 %v132, %v2153
    %v2155 = vand.u32 %v2154, 4294901760
    %2156 = vmatpush1.msra.mxu0 %v2155
    %2157 = vmatprep.subr.mxu0 0.0
    %v2158 = vand.u32 %v133, 4294901760
    %v2159 = vsub.f32 %v133, %v2158
    %v2160 = vand.u32 %v2159, 4294901760
    %2161 = vmatpush1.msra.mxu0 %v2160
    %2162 = vmatprep.subr.mxu0 0.0
    %v2163 = vand.u32 %v134, 4294901760
    %v2164 = vsub.f32 %v134, %v2163
    %v2165 = vand.u32 %v2164, 4294901760
    %2166 = vmatpush1.msra.mxu0 %v2165
    %2167 = vmatprep.subr.mxu0 0.0
    %v2168 = vand.u32 %v135, 4294901760
    %v2169 = vsub.f32 %v135, %v2168
    %v2170 = vand.u32 %v2169, 4294901760
    %2171 = vmatpush1.msra.mxu0 %v2170
    %2172 = vmatprep.subr.mxu0 0.0
    %v2173 = vand.u32 %v136, 4294901760
    %v2174 = vsub.f32 %v136, %v2173
    %v2175 = vand.u32 %v2174, 4294901760
    %2176 = vmatpush1.msra.mxu0 %v2175
    %2177 = vmatprep.subr.mxu0 0.0
    %v2178 = vand.u32 %v137, 4294901760
    %v2179 = vsub.f32 %v137, %v2178
    %v2180 = vand.u32 %v2179, 4294901760
    %2181 = vmatpush1.msra.mxu0 %v2180
    %2182 = vmatprep.subr.mxu0 0.0
    %v2183 = vand.u32 %v138, 4294901760
    %v2184 = vsub.f32 %v138, %v2183
    %v2185 = vand.u32 %v2184, 4294901760
    %2186 = vmatpush1.msra.mxu0 %v2185
    %2187 = vmatprep.subr.mxu0 0.0
    %v2188 = vand.u32 %v139, 4294901760
    %v2189 = vsub.f32 %v139, %v2188
    %v2190 = vand.u32 %v2189, 4294901760
    %2191 = vmatpush1.msra.mxu0 %v2190
    %v2192 = vand.u32 %v45, 4294901760
    %2193 = vmatprep.mubr.f32.mxu0 %v2192
    %v2194 = vand.u32 %v44, 4294901760
    %2195 = vmatmul.mubr.f32.gmra.mrb[0].mxu0 %v2194
    %v2196 = vpop.f32.mrb[0].mxu0
    %v2197 = vadd.f32 %v1688, %v2196
    %v2198 = vpop.f32.mrb[0].mxu0
    %v2199 = vand.u32 %v47, 4294901760
    %2200 = vmatprep.mubr.f32.mxu0 %v2199
    %v2201 = vand.u32 %v46, 4294901760
    %2202 = vmatmul.mubr.f32.gmra.mrb[0].mxu0 %v2201
    %v2203 = vpop.f32.mrb[0].mxu0
    %v2204 = vadd.f32 %v1699, %v2203
    %v2205 = vpop.f32.mrb[0].mxu0
    %v2206 = vand.u32 %v49, 4294901760
    %2207 = vmatprep.mubr.f32.mxu0 %v2206
    %v2208 = vand.u32 %v48, 4294901760
    %2209 = vmatmul.mubr.f32.gmra.mrb[0].mxu0 %v2208
    %v2210 = vpop.f32.mrb[0].mxu0
    %v2211 = vadd.f32 %v1710, %v2210
    %v2212 = vpop.f32.mrb[0].mxu0
    %v2213 = vand.u32 %v51, 4294901760
    %2214 = vmatprep.mubr.f32.mxu0 %v2213
    %v2215 = vand.u32 %v50, 4294901760
    %2216 = vmatmul.mubr.f32.gmra.mrb[0].mxu0 %v2215
    %v2217 = vpop.f32.mrb[0].mxu0
    %v2218 = vadd.f32 %v1721, %v2217
    %v2219 = vpop.f32.mrb[0].mxu0
    %v2220 = vand.u32 %v53, 4294901760
    %2221 = vmatprep.mubr.f32.mxu0 %v2220
    %v2222 = vand.u32 %v52, 4294901760
    %2223 = vmatmul.mubr.f32.gmra.mrb[0].mxu0 %v2222
    %v2224 = vpop.f32.mrb[0].mxu0
    %v2225 = vadd.f32 %v1732, %v2224
    %v2226 = vpop.f32.mrb[0].mxu0
    %v2227 = vand.u32 %v55, 4294901760
    %2228 = vmatprep.mubr.f32.mxu0 %v2227
    %v2229 = vand.u32 %v54, 4294901760
    %2230 = vmatmul.mubr.f32.gmra.mrb[0].mxu0 %v2229
    %v2231 = vpop.f32.mrb[0].mxu0
    %v2232 = vadd.f32 %v1743, %v2231
    %v2233 = vpop.f32.mrb[0].mxu0
    %v2234 = vand.u32 %v57, 4294901760
    %2235 = vmatprep.mubr.f32.mxu0 %v2234
    %v2236 = vand.u32 %v56, 4294901760
    %2237 = vmatmul.mubr.f32.gmra.mrb[0].mxu0 %v2236
    %v2238 = vpop.f32.mrb[0].mxu0
    %v2239 = vadd.f32 %v1754, %v2238
    %v2240 = vpop.f32.mrb[0].mxu0
    %v2241 = vand.u32 %v59, 4294901760
    %2242 = vmatprep.mubr.f32.mxu0 %v2241
    %v2243 = vand.u32 %v58, 4294901760
    %2244 = vmatmul.mubr.f32.gmra.mrb[0].mxu0 %v2243
    %v2245 = vpop.f32.mrb[0].mxu0
    %v2246 = vadd.f32 %v1765, %v2245
    %v2247 = vpop.f32.mrb[0].mxu0
    %v2248 = vand.u32 %v61, 4294901760
    %2249 = vmatprep.mubr.f32.mxu0 %v2248
    %v2250 = vand.u32 %v60, 4294901760
    %2251 = vmatmul.mubr.f32.gmra.mrb[0].mxu0 %v2250
    %v2252 = vpop.f32.mrb[0].mxu0
    %v2253 = vadd.f32 %v1776, %v2252
    %v2254 = vpop.f32.mrb[0].mxu0
    %v2255 = vand.u32 %v63, 4294901760
    %2256 = vmatprep.mubr.f32.mxu0 %v2255
    %v2257 = vand.u32 %v62, 4294901760
    %2258 = vmatmul.mubr.f32.gmra.mrb[0].mxu0 %v2257
    %v2259 = vpop.f32.mrb[0].mxu0
    %v2260 = vadd.f32 %v1787, %v2259
    %v2261 = vpop.f32.mrb[0].mxu0
    %v2262 = vand.u32 %v65, 4294901760
    %2263 = vmatprep.mubr.f32.mxu0 %v2262
    %v2264 = vand.u32 %v64, 4294901760
    %2265 = vmatmul.mubr.f32.gmra.mrb[0].mxu0 %v2264
    %v2266 = vpop.f32.mrb[0].mxu0
    %v2267 = vadd.f32 %v1798, %v2266
    %v2268 = vpop.f32.mrb[0].mxu0
    %v2269 = vand.u32 %v67, 4294901760
    %2270 = vmatprep.mubr.f32.mxu0 %v2269
    %v2271 = vand.u32 %v66, 4294901760
    %2272 = vmatmul.mubr.f32.gmra.mrb[0].mxu0 %v2271
    %v2273 = vpop.f32.mrb[0].mxu0
    %v2274 = vadd.f32 %v1809, %v2273
    %v2275 = vpop.f32.mrb[0].mxu0
    %v2276 = vand.u32 %v69, 4294901760
    %2277 = vmatprep.mubr.f32.mxu0 %v2276
    %v2278 = vand.u32 %v68, 4294901760
    %2279 = vmatmul.mubr.f32.gmra.mrb[0].mxu0 %v2278
    %v2280 = vpop.f32.mrb[0].mxu0
    %v2281 = vadd.f32 %v1820, %v2280
    %v2282 = vpop.f32.mrb[0].mxu0
    %v2283 = vand.u32 %v71, 4294901760
    %2284 = vmatprep.mubr.f32.mxu0 %v2283
    %v2285 = vand.u32 %v70, 4294901760
    %2286 = vmatmul.mubr.f32.gmra.mrb[0].mxu0 %v2285
    %v2287 = vpop.f32.mrb[0].mxu0
    %v2288 = vadd.f32 %v1831, %v2287
    %v2289 = vpop.f32.mrb[0].mxu0
    %v2290 = vand.u32 %v73, 4294901760
    %2291 = vmatprep.mubr.f32.mxu0 %v2290
    %v2292 = vand.u32 %v72, 4294901760
    %2293 = vmatmul.mubr.f32.gmra.mrb[0].mxu0 %v2292
    %v2294 = vpop.f32.mrb[0].mxu0
    %v2295 = vadd.f32 %v1842, %v2294
    %v2296 = vpop.f32.mrb[0].mxu0
    %v2297 = vand.u32 %v75, 4294901760
    %2298 = vmatprep.mubr.f32.mxu0 %v2297
    %v2299 = vand.u32 %v74, 4294901760
    %2300 = vmatmul.mubr.f32.gmra.mrb[0].mxu0 %v2299
    %v2301 = vpop.f32.mrb[0].mxu0
    %v2302 = vadd.f32 %v1853, %v2301
    %v2303 = vpop.f32.mrb[0].mxu0
    %v2304 = vand.u32 %v77, 4294901760
    %2305 = vmatprep.mubr.f32.mxu0 %v2304
    %v2306 = vand.u32 %v76, 4294901760
    %2307 = vmatmul.mubr.f32.gmra.mrb[0].mxu0 %v2306
    %v2308 = vpop.f32.mrb[0].mxu0
    %v2309 = vadd.f32 %v1864, %v2308
    %v2310 = vpop.f32.mrb[0].mxu0
    %v2311 = vand.u32 %v79, 4294901760
    %2312 = vmatprep.mubr.f32.mxu0 %v2311
    %v2313 = vand.u32 %v78, 4294901760
    %2314 = vmatmul.mubr.f32.gmra.mrb[0].mxu0 %v2313
    %v2315 = vpop.f32.mrb[0].mxu0
    %v2316 = vadd.f32 %v1875, %v2315
    %v2317 = vpop.f32.mrb[0].mxu0
    %v2318 = vand.u32 %v81, 4294901760
    %2319 = vmatprep.mubr.f32.mxu0 %v2318
    %v2320 = vand.u32 %v80, 4294901760
    %2321 = vmatmul.mubr.f32.gmra.mrb[0].mxu0 %v2320
    %v2322 = vpop.f32.mrb[0].mxu0
    %v2323 = vadd.f32 %v1886, %v2322
    %v2324 = vpop.f32.mrb[0].mxu0
    %v2325 = vand.u32 %v83, 4294901760
    %2326 = vmatprep.mubr.f32.mxu0 %v2325
    %v2327 = vand.u32 %v82, 4294901760
    %2328 = vmatmul.mubr.f32.gmra.mrb[0].mxu0 %v2327
    %v2329 = vpop.f32.mrb[0].mxu0
    %v2330 = vadd.f32 %v1897, %v2329
    %v2331 = vpop.f32.mrb[0].mxu0
    %v2332 = vand.u32 %v85, 4294901760
    %2333 = vmatprep.mubr.f32.mxu0 %v2332
    %v2334 = vand.u32 %v84, 4294901760
    %2335 = vmatmul.mubr.f32.gmra.mrb[0].mxu0 %v2334
    %v2336 = vpop.f32.mrb[0].mxu0
    %v2337 = vadd.f32 %v1908, %v2336
    %v2338 = vpop.f32.mrb[0].mxu0
    %v2339 = vand.u32 %v87, 4294901760
    %2340 = vmatprep.mubr.f32.mxu0 %v2339
    %v2341 = vand.u32 %v86, 4294901760
    %2342 = vmatmul.mubr.f32.gmra.mrb[0].mxu0 %v2341
    %v2343 = vpop.f32.mrb[0].mxu0
    %v2344 = vadd.f32 %v1919, %v2343
    %v2345 = vpop.f32.mrb[0].mxu0
    %v2346 = vand.u32 %v89, 4294901760
    %2347 = vmatprep.mubr.f32.mxu0 %v2346
    %v2348 = vand.u32 %v88, 4294901760
    %2349 = vmatmul.mubr.f32.gmra.mrb[0].mxu0 %v2348
    %v2350 = vpop.f32.mrb[0].mxu0
    %v2351 = vadd.f32 %v1930, %v2350
    %v2352 = vpop.f32.mrb[0].mxu0
    %v2353 = vand.u32 %v91, 4294901760
    %2354 = vmatprep.mubr.f32.mxu0 %v2353
    %v2355 = vand.u32 %v90, 4294901760
    %2356 = vmatmul.mubr.f32.gmra.mrb[0].mxu0 %v2355
    %v2357 = vpop.f32.mrb[0].mxu0
    %v2358 = vadd.f32 %v1941, %v2357
    %v2359 = vpop.f32.mrb[0].mxu0
    %v2360 = vand.u32 %v93, 4294901760
    %2361 = vmatprep.mubr.f32.mxu0 %v2360
    %v2362 = vand.u32 %v92, 4294901760
    %2363 = vmatmul.mubr.f32.gmra.mrb[0].mxu0 %v2362
    %v2364 = vpop.f32.mrb[0].mxu0
    %v2365 = vadd.f32 %v1952, %v2364
    %v2366 = vpop.f32.mrb[0].mxu0
    %v2367 = vand.u32 %v95, 4294901760
    %2368 = vmatprep.mubr.f32.mxu0 %v2367
    %v2369 = vand.u32 %v94, 4294901760
    %2370 = vmatmul.mubr.f32.gmra.mrb[0].mxu0 %v2369
    %v2371 = vpop.f32.mrb[0].mxu0
    %v2372 = vadd.f32 %v1963, %v2371
    %v2373 = vpop.f32.mrb[0].mxu0
    %v2374 = vand.u32 %v97, 4294901760
    %2375 = vmatprep.mubr.f32.mxu0 %v2374
    %v2376 = vand.u32 %v96, 4294901760
    %2377 = vmatmul.mubr.f32.gmra.mrb[0].mxu0 %v2376
    %v2378 = vpop.f32.mrb[0].mxu0
    %v2379 = vadd.f32 %v1974, %v2378
    %v2380 = vpop.f32.mrb[0].mxu0
    %v2381 = vand.u32 %v99, 4294901760
    %2382 = vmatprep.mubr.f32.mxu0 %v2381
    %v2383 = vand.u32 %v98, 4294901760
    %2384 = vmatmul.mubr.f32.gmra.mrb[0].mxu0 %v2383
    %v2385 = vpop.f32.mrb[0].mxu0
    %v2386 = vadd.f32 %v1985, %v2385
    %v2387 = vpop.f32.mrb[0].mxu0
    %v2388 = vand.u32 %v101, 4294901760
    %2389 = vmatprep.mubr.f32.mxu0 %v2388
    %v2390 = vand.u32 %v100, 4294901760
    %2391 = vmatmul.mubr.f32.gmra.mrb[0].mxu0 %v2390
    %v2392 = vpop.f32.mrb[0].mxu0
    %v2393 = vadd.f32 %v1996, %v2392
    %v2394 = vpop.f32.mrb[0].mxu0
    %v2395 = vand.u32 %v103, 4294901760
    %2396 = vmatprep.mubr.f32.mxu0 %v2395
    %v2397 = vand.u32 %v102, 4294901760
    %2398 = vmatmul.mubr.f32.gmra.mrb[0].mxu0 %v2397
    %v2399 = vpop.f32.mrb[0].mxu0
    %v2400 = vadd.f32 %v2007, %v2399
    %v2401 = vpop.f32.mrb[0].mxu0
    %v2402 = vand.u32 %v105, 4294901760
    %2403 = vmatprep.mubr.f32.mxu0 %v2402
    %v2404 = vand.u32 %v104, 4294901760
    %2405 = vmatmul.mubr.f32.gmra.mrb[0].mxu0 %v2404
    %v2406 = vpop.f32.mrb[0].mxu0
    %v2407 = vadd.f32 %v2018, %v2406
    %v2408 = vpop.f32.mrb[0].mxu0
    %v2409 = vand.u32 %v107, 4294901760
    %2410 = vmatprep.mubr.f32.mxu0 %v2409
    %v2411 = vand.u32 %v106, 4294901760
    %2412 = vmatmul.mubr.f32.gmra.mrb[0].mxu0 %v2411
    %v2413 = vpop.f32.mrb[0].mxu0
    %v2414 = vadd.f32 %v2029, %v2413
    %v2415 = vpop.f32.mrb[0].mxu0
    %2416 = vdwg.mxu0
    %2417 = vmatprep.subr.mxu0 0.0
    %v2418 = vand.u32 %v108, 4294901760
    %2419 = vmatpush1.msra.mxu0 %v2418
    %2420 = vmatprep.subr.mxu0 0.0
    %v2421 = vand.u32 %v109, 4294901760
    %2422 = vmatpush1.msra.mxu0 %v2421
    %2423 = vmatprep.subr.mxu0 0.0
    %v2424 = vand.u32 %v110, 4294901760
    %2425 = vmatpush1.msra.mxu0 %v2424
    %2426 = vmatprep.subr.mxu0 0.0
    %v2427 = vand.u32 %v111, 4294901760
    %2428 = vmatpush1.msra.mxu0 %v2427
    %2429 = vmatprep.subr.mxu0 0.0
    %v2430 = vand.u32 %v112, 4294901760
    %2431 = vmatpush1.msra.mxu0 %v2430
    %2432 = vmatprep.subr.mxu0 0.0
    %v2433 = vand.u32 %v113, 4294901760
    %2434 = vmatpush1.msra.mxu0 %v2433
    %2435 = vmatprep.subr.mxu0 0.0
    %v2436 = vand.u32 %v114, 4294901760
    %2437 = vmatpush1.msra.mxu0 %v2436
    %2438 = vmatprep.subr.mxu0 0.0
    %v2439 = vand.u32 %v115, 4294901760
    %2440 = vmatpush1.msra.mxu0 %v2439
    %2441 = vmatprep.subr.mxu0 0.0
    %v2442 = vand.u32 %v116, 4294901760
    %2443 = vmatpush1.msra.mxu0 %v2442
    %2444 = vmatprep.subr.mxu0 0.0
    %v2445 = vand.u32 %v117, 4294901760
    %2446 = vmatpush1.msra.mxu0 %v2445
    %2447 = vmatprep.subr.mxu0 0.0
    %v2448 = vand.u32 %v118, 4294901760
    %2449 = vmatpush1.msra.mxu0 %v2448
    %2450 = vmatprep.subr.mxu0 0.0
    %v2451 = vand.u32 %v119, 4294901760
    %2452 = vmatpush1.msra.mxu0 %v2451
    %2453 = vmatprep.subr.mxu0 0.0
    %v2454 = vand.u32 %v120, 4294901760
    %2455 = vmatpush1.msra.mxu0 %v2454
    %2456 = vmatprep.subr.mxu0 0.0
    %v2457 = vand.u32 %v121, 4294901760
    %2458 = vmatpush1.msra.mxu0 %v2457
    %2459 = vmatprep.subr.mxu0 0.0
    %v2460 = vand.u32 %v122, 4294901760
    %2461 = vmatpush1.msra.mxu0 %v2460
    %2462 = vmatprep.subr.mxu0 0.0
    %v2463 = vand.u32 %v123, 4294901760
    %2464 = vmatpush1.msra.mxu0 %v2463
    %2465 = vmatprep.subr.mxu0 0.0
    %v2466 = vand.u32 %v124, 4294901760
    %2467 = vmatpush1.msra.mxu0 %v2466
    %2468 = vmatprep.subr.mxu0 0.0
    %v2469 = vand.u32 %v125, 4294901760
    %2470 = vmatpush1.msra.mxu0 %v2469
    %2471 = vmatprep.subr.mxu0 0.0
    %v2472 = vand.u32 %v126, 4294901760
    %2473 = vmatpush1.msra.mxu0 %v2472
    %2474 = vmatprep.subr.mxu0 0.0
    %v2475 = vand.u32 %v127, 4294901760
    %2476 = vmatpush1.msra.mxu0 %v2475
    %2477 = vmatprep.subr.mxu0 0.0
    %v2478 = vand.u32 %v128, 4294901760
    %2479 = vmatpush1.msra.mxu0 %v2478
    %2480 = vmatprep.subr.mxu0 0.0
    %v2481 = vand.u32 %v129, 4294901760
    %2482 = vmatpush1.msra.mxu0 %v2481
    %2483 = vmatprep.subr.mxu0 0.0
    %v2484 = vand.u32 %v130, 4294901760
    %2485 = vmatpush1.msra.mxu0 %v2484
    %2486 = vmatprep.subr.mxu0 0.0
    %v2487 = vand.u32 %v131, 4294901760
    %2488 = vmatpush1.msra.mxu0 %v2487
    %2489 = vmatprep.subr.mxu0 0.0
    %v2490 = vand.u32 %v132, 4294901760
    %2491 = vmatpush1.msra.mxu0 %v2490
    %2492 = vmatprep.subr.mxu0 0.0
    %v2493 = vand.u32 %v133, 4294901760
    %2494 = vmatpush1.msra.mxu0 %v2493
    %2495 = vmatprep.subr.mxu0 0.0
    %v2496 = vand.u32 %v134, 4294901760
    %2497 = vmatpush1.msra.mxu0 %v2496
    %2498 = vmatprep.subr.mxu0 0.0
    %v2499 = vand.u32 %v135, 4294901760
    %2500 = vmatpush1.msra.mxu0 %v2499
    %2501 = vmatprep.subr.mxu0 0.0
    %v2502 = vand.u32 %v136, 4294901760
    %2503 = vmatpush1.msra.mxu0 %v2502
    %2504 = vmatprep.subr.mxu0 0.0
    %v2505 = vand.u32 %v137, 4294901760
    %2506 = vmatpush1.msra.mxu0 %v2505
    %2507 = vmatprep.subr.mxu0 0.0
    %v2508 = vand.u32 %v138, 4294901760
    %2509 = vmatpush1.msra.mxu0 %v2508
    %2510 = vmatprep.subr.mxu0 0.0
    %v2511 = vand.u32 %v139, 4294901760
    %2512 = vmatpush1.msra.mxu0 %v2511
    %v2513 = vand.u32 %v45, 4294901760
    %2514 = vmatprep.mubr.f32.mxu0 %v2513
    %v2515 = vand.u32 %v44, 4294901760
    %2516 = vmatmul.mubr.f32.gmra.mrb[0].mxu0 %v2515
    %v2517 = vpop.f32.mrb[0].mxu0
    %v2518 = vadd.f32 %v2197, %v2517
    %v2519 = vpop.f32.mrb[0].mxu0
    %v2520 = vand.u32 %v47, 4294901760
    %2521 = vmatprep.mubr.f32.mxu0 %v2520
    %v2522 = vand.u32 %v46, 4294901760
    %2523 = vmatmul.mubr.f32.gmra.mrb[0].mxu0 %v2522
    %v2524 = vpop.f32.mrb[0].mxu0
    %v2525 = vadd.f32 %v2204, %v2524
    %v2526 = vpop.f32.mrb[0].mxu0
    %v2527 = vand.u32 %v49, 4294901760
    %2528 = vmatprep.mubr.f32.mxu0 %v2527
    %v2529 = vand.u32 %v48, 4294901760
    %2530 = vmatmul.mubr.f32.gmra.mrb[0].mxu0 %v2529
    %v2531 = vpop.f32.mrb[0].mxu0
    %v2532 = vadd.f32 %v2211, %v2531
    %v2533 = vpop.f32.mrb[0].mxu0
    %v2534 = vand.u32 %v51, 4294901760
    %2535 = vmatprep.mubr.f32.mxu0 %v2534
    %v2536 = vand.u32 %v50, 4294901760
    %2537 = vmatmul.mubr.f32.gmra.mrb[0].mxu0 %v2536
    %v2538 = vpop.f32.mrb[0].mxu0
    %v2539 = vadd.f32 %v2218, %v2538
    %v2540 = vpop.f32.mrb[0].mxu0
    %v2541 = vand.u32 %v53, 4294901760
    %2542 = vmatprep.mubr.f32.mxu0 %v2541
    %v2543 = vand.u32 %v52, 4294901760
    %2544 = vmatmul.mubr.f32.gmra.mrb[0].mxu0 %v2543
    %v2545 = vpop.f32.mrb[0].mxu0
    %v2546 = vadd.f32 %v2225, %v2545
    %v2547 = vpop.f32.mrb[0].mxu0
    %v2548 = vand.u32 %v55, 4294901760
    %2549 = vmatprep.mubr.f32.mxu0 %v2548
    %v2550 = vand.u32 %v54, 4294901760
    %2551 = vmatmul.mubr.f32.gmra.mrb[0].mxu0 %v2550
    %v2552 = vpop.f32.mrb[0].mxu0
    %v2553 = vadd.f32 %v2232, %v2552
    %v2554 = vpop.f32.mrb[0].mxu0
    %v2555 = vand.u32 %v57, 4294901760
    %2556 = vmatprep.mubr.f32.mxu0 %v2555
    %v2557 = vand.u32 %v56, 4294901760
    %2558 = vmatmul.mubr.f32.gmra.mrb[0].mxu0 %v2557
    %v2559 = vpop.f32.mrb[0].mxu0
    %v2560 = vadd.f32 %v2239, %v2559
    %v2561 = vpop.f32.mrb[0].mxu0
    %v2562 = vand.u32 %v59, 4294901760
    %2563 = vmatprep.mubr.f32.mxu0 %v2562
    %v2564 = vand.u32 %v58, 4294901760
    %2565 = vmatmul.mubr.f32.gmra.mrb[0].mxu0 %v2564
    %v2566 = vpop.f32.mrb[0].mxu0
    %v2567 = vadd.f32 %v2246, %v2566
    %v2568 = vpop.f32.mrb[0].mxu0
    %v2569 = vand.u32 %v61, 4294901760
    %2570 = vmatprep.mubr.f32.mxu0 %v2569
    %v2571 = vand.u32 %v60, 4294901760
    %2572 = vmatmul.mubr.f32.gmra.mrb[0].mxu0 %v2571
    %v2573 = vpop.f32.mrb[0].mxu0
    %v2574 = vadd.f32 %v2253, %v2573
    %v2575 = vpop.f32.mrb[0].mxu0
    %v2576 = vand.u32 %v63, 4294901760
    %2577 = vmatprep.mubr.f32.mxu0 %v2576
    %v2578 = vand.u32 %v62, 4294901760
    %2579 = vmatmul.mubr.f32.gmra.mrb[0].mxu0 %v2578
    %v2580 = vpop.f32.mrb[0].mxu0
    %v2581 = vadd.f32 %v2260, %v2580
    %v2582 = vpop.f32.mrb[0].mxu0
    %v2583 = vand.u32 %v65, 4294901760
    %2584 = vmatprep.mubr.f32.mxu0 %v2583
    %v2585 = vand.u32 %v64, 4294901760
    %2586 = vmatmul.mubr.f32.gmra.mrb[0].mxu0 %v2585
    %v2587 = vpop.f32.mrb[0].mxu0
    %v2588 = vadd.f32 %v2267, %v2587
    %v2589 = vpop.f32.mrb[0].mxu0
    %v2590 = vand.u32 %v67, 4294901760
    %2591 = vmatprep.mubr.f32.mxu0 %v2590
    %v2592 = vand.u32 %v66, 4294901760
    %2593 = vmatmul.mubr.f32.gmra.mrb[0].mxu0 %v2592
    %v2594 = vpop.f32.mrb[0].mxu0
    %v2595 = vadd.f32 %v2274, %v2594
    %v2596 = vpop.f32.mrb[0].mxu0
    %v2597 = vand.u32 %v69, 4294901760
    %2598 = vmatprep.mubr.f32.mxu0 %v2597
    %v2599 = vand.u32 %v68, 4294901760
    %2600 = vmatmul.mubr.f32.gmra.mrb[0].mxu0 %v2599
    %v2601 = vpop.f32.mrb[0].mxu0
    %v2602 = vadd.f32 %v2281, %v2601
    %v2603 = vpop.f32.mrb[0].mxu0
    %v2604 = vand.u32 %v71, 4294901760
    %2605 = vmatprep.mubr.f32.mxu0 %v2604
    %v2606 = vand.u32 %v70, 4294901760
    %2607 = vmatmul.mubr.f32.gmra.mrb[0].mxu0 %v2606
    %v2608 = vpop.f32.mrb[0].mxu0
    %v2609 = vadd.f32 %v2288, %v2608
    %v2610 = vpop.f32.mrb[0].mxu0
    %v2611 = vand.u32 %v73, 4294901760
    %2612 = vmatprep.mubr.f32.mxu0 %v2611
    %v2613 = vand.u32 %v72, 4294901760
    %2614 = vmatmul.mubr.f32.gmra.mrb[0].mxu0 %v2613
    %v2615 = vpop.f32.mrb[0].mxu0
    %v2616 = vadd.f32 %v2295, %v2615
    %v2617 = vpop.f32.mrb[0].mxu0
    %v2618 = vand.u32 %v75, 4294901760
    %2619 = vmatprep.mubr.f32.mxu0 %v2618
    %v2620 = vand.u32 %v74, 4294901760
    %2621 = vmatmul.mubr.f32.gmra.mrb[0].mxu0 %v2620
    %v2622 = vpop.f32.mrb[0].mxu0
    %v2623 = vadd.f32 %v2302, %v2622
    %v2624 = vpop.f32.mrb[0].mxu0
    %v2625 = vand.u32 %v77, 4294901760
    %2626 = vmatprep.mubr.f32.mxu0 %v2625
    %v2627 = vand.u32 %v76, 4294901760
    %2628 = vmatmul.mubr.f32.gmra.mrb[0].mxu0 %v2627
    %v2629 = vpop.f32.mrb[0].mxu0
    %v2630 = vadd.f32 %v2309, %v2629
    %v2631 = vpop.f32.mrb[0].mxu0
    %v2632 = vand.u32 %v79, 4294901760
    %2633 = vmatprep.mubr.f32.mxu0 %v2632
    %v2634 = vand.u32 %v78, 4294901760
    %2635 = vmatmul.mubr.f32.gmra.mrb[0].mxu0 %v2634
    %v2636 = vpop.f32.mrb[0].mxu0
    %v2637 = vadd.f32 %v2316, %v2636
    %v2638 = vpop.f32.mrb[0].mxu0
    %v2639 = vand.u32 %v81, 4294901760
    %2640 = vmatprep.mubr.f32.mxu0 %v2639
    %v2641 = vand.u32 %v80, 4294901760
    %2642 = vmatmul.mubr.f32.gmra.mrb[0].mxu0 %v2641
    %v2643 = vpop.f32.mrb[0].mxu0
    %v2644 = vadd.f32 %v2323, %v2643
    %v2645 = vpop.f32.mrb[0].mxu0
    %v2646 = vand.u32 %v83, 4294901760
    %2647 = vmatprep.mubr.f32.mxu0 %v2646
    %v2648 = vand.u32 %v82, 4294901760
    %2649 = vmatmul.mubr.f32.gmra.mrb[0].mxu0 %v2648
    %v2650 = vpop.f32.mrb[0].mxu0
    %v2651 = vadd.f32 %v2330, %v2650
    %v2652 = vpop.f32.mrb[0].mxu0
    %v2653 = vand.u32 %v85, 4294901760
    %2654 = vmatprep.mubr.f32.mxu0 %v2653
    %v2655 = vand.u32 %v84, 4294901760
    %2656 = vmatmul.mubr.f32.gmra.mrb[0].mxu0 %v2655
    %v2657 = vpop.f32.mrb[0].mxu0
    %v2658 = vadd.f32 %v2337, %v2657
    %v2659 = vpop.f32.mrb[0].mxu0
    %v2660 = vand.u32 %v87, 4294901760
    %2661 = vmatprep.mubr.f32.mxu0 %v2660
    %v2662 = vand.u32 %v86, 4294901760
    %2663 = vmatmul.mubr.f32.gmra.mrb[0].mxu0 %v2662
    %v2664 = vpop.f32.mrb[0].mxu0
    %v2665 = vadd.f32 %v2344, %v2664
    %v2666 = vpop.f32.mrb[0].mxu0
    %v2667 = vand.u32 %v89, 4294901760
    %2668 = vmatprep.mubr.f32.mxu0 %v2667
    %v2669 = vand.u32 %v88, 4294901760
    %2670 = vmatmul.mubr.f32.gmra.mrb[0].mxu0 %v2669
    %v2671 = vpop.f32.mrb[0].mxu0
    %v2672 = vadd.f32 %v2351, %v2671
    %v2673 = vpop.f32.mrb[0].mxu0
    %v2674 = vand.u32 %v91, 4294901760
    %2675 = vmatprep.mubr.f32.mxu0 %v2674
    %v2676 = vand.u32 %v90, 4294901760
    %2677 = vmatmul.mubr.f32.gmra.mrb[0].mxu0 %v2676
    %v2678 = vpop.f32.mrb[0].mxu0
    %v2679 = vadd.f32 %v2358, %v2678
    %v2680 = vpop.f32.mrb[0].mxu0
    %v2681 = vand.u32 %v93, 4294901760
    %2682 = vmatprep.mubr.f32.mxu0 %v2681
    %v2683 = vand.u32 %v92, 4294901760
    %2684 = vmatmul.mubr.f32.gmra.mrb[0].mxu0 %v2683
    %v2685 = vpop.f32.mrb[0].mxu0
    %v2686 = vadd.f32 %v2365, %v2685
    %v2687 = vpop.f32.mrb[0].mxu0
    %v2688 = vand.u32 %v95, 4294901760
    %2689 = vmatprep.mubr.f32.mxu0 %v2688
    %v2690 = vand.u32 %v94, 4294901760
    %2691 = vmatmul.mubr.f32.gmra.mrb[0].mxu0 %v2690
    %v2692 = vpop.f32.mrb[0].mxu0
    %v2693 = vadd.f32 %v2372, %v2692
    %v2694 = vpop.f32.mrb[0].mxu0
    %v2695 = vand.u32 %v97, 4294901760
    %2696 = vmatprep.mubr.f32.mxu0 %v2695
    %v2697 = vand.u32 %v96, 4294901760
    %2698 = vmatmul.mubr.f32.gmra.mrb[0].mxu0 %v2697
    %v2699 = vpop.f32.mrb[0].mxu0
    %v2700 = vadd.f32 %v2379, %v2699
    %v2701 = vpop.f32.mrb[0].mxu0
    %v2702 = vand.u32 %v99, 4294901760
    %2703 = vmatprep.mubr.f32.mxu0 %v2702
    %v2704 = vand.u32 %v98, 4294901760
    %2705 = vmatmul.mubr.f32.gmra.mrb[0].mxu0 %v2704
    %v2706 = vpop.f32.mrb[0].mxu0
    %v2707 = vadd.f32 %v2386, %v2706
    %v2708 = vpop.f32.mrb[0].mxu0
    %v2709 = vand.u32 %v101, 4294901760
    %2710 = vmatprep.mubr.f32.mxu0 %v2709
    %v2711 = vand.u32 %v100, 4294901760
    %2712 = vmatmul.mubr.f32.gmra.mrb[0].mxu0 %v2711
    %v2713 = vpop.f32.mrb[0].mxu0
    %v2714 = vadd.f32 %v2393, %v2713
    %v2715 = vpop.f32.mrb[0].mxu0
    %v2716 = vand.u32 %v103, 4294901760
    %2717 = vmatprep.mubr.f32.mxu0 %v2716
    %v2718 = vand.u32 %v102, 4294901760
    %2719 = vmatmul.mubr.f32.gmra.mrb[0].mxu0 %v2718
    %v2720 = vpop.f32.mrb[0].mxu0
    %v2721 = vadd.f32 %v2400, %v2720
    %v2722 = vpop.f32.mrb[0].mxu0
    %v2723 = vand.u32 %v105, 4294901760
    %2724 = vmatprep.mubr.f32.mxu0 %v2723
    %v2725 = vand.u32 %v104, 4294901760
    %2726 = vmatmul.mubr.f32.gmra.mrb[0].mxu0 %v2725
    %v2727 = vpop.f32.mrb[0].mxu0
    %v2728 = vadd.f32 %v2407, %v2727
    %v2729 = vpop.f32.mrb[0].mxu0
    %v2730 = vand.u32 %v107, 4294901760
    %2731 = vmatprep.mubr.f32.mxu0 %v2730
    %v2732 = vand.u32 %v106, 4294901760
    %2733 = vmatmul.mubr.f32.gmra.mrb[0].mxu0 %v2732
    %v2734 = vpop.f32.mrb[0].mxu0
    %v2735 = vadd.f32 %v2414, %v2734
    %v2736 = vpop.f32.mrb[0].mxu0
    %2737 = vdwg.mxu0
    %v2738 = vld [vmem:[%s2] sm:$0xff]
    %v2739 = vld [vmem:[%s2 + $0x8] sm:$0xff]
    %v2740 = vld [vmem:[%s3] sm:$0x1]
    %v2742 = vlaneseq
    %v2743 = vshrl.u32 %v2742, 7
    %v2744 = vsub.s32 0, %v2743
    %v2745 = vrot.slane %v2740, %v2744
    %vm2747 = vcmask 130048
    %v2749 = vsel %vm2747, %v2518, 0
    %v2752 = vsel %vm2747, %v2525, 0
    %v2755 = vsel %vm2747, %v2532, 0
    %v2758 = vsel %vm2747, %v2539, 0
    %v2761 = vsel %vm2747, %v2546, 0
    %v2764 = vsel %vm2747, %v2553, 0
    %v2767 = vsel %vm2747, %v2560, 0
    %v2770 = vsel %vm2747, %v2567, 0
    %v2773 = vsel %vm2747, %v2574, 0
    %v2776 = vsel %vm2747, %v2581, 0
    %v2779 = vsel %vm2747, %v2588, 0
    %v2782 = vsel %vm2747, %v2595, 0
    %v2785 = vsel %vm2747, %v2602, 0
    %v2788 = vsel %vm2747, %v2609, 0
    %v2791 = vsel %vm2747, %v2616, 0
    %v2794 = vsel %vm2747, %v2623, 0
    %v2797 = vsel %vm2747, %v2630, 0
    %v2800 = vsel %vm2747, %v2637, 0
    %v2803 = vsel %vm2747, %v2644, 0
    %v2806 = vsel %vm2747, %v2651, 0
    %v2809 = vsel %vm2747, %v2658, 0
    %v2812 = vsel %vm2747, %v2665, 0
    %v2815 = vsel %vm2747, %v2672, 0
    %v2818 = vsel %vm2747, %v2679, 0
    %v2821 = vsel %vm2747, %v2686, 0
    %v2824 = vsel %vm2747, %v2693, 0
    %v2827 = vsel %vm2747, %v2700, 0
    %v2830 = vsel %vm2747, %v2707, 0
    %v2833 = vsel %vm2747, %v2714, 0
    %v2836 = vsel %vm2747, %v2721, 0
    %v2839 = vsel %vm2747, %v2728, 0
    %v2842 = vsel %vm2747, %v2735, 0
    %2844 = vmatprep.subr.mxu0 0.0
    %v2845 = vand.u32 %v2738, 4294901760
    %2846 = vmatpush1.msra.mxu0 %v2845
    %2847 = vmatprep.subr.mxu0 0.0
    %v2848 = vand.u32 %v2739, 4294901760
    %2849 = vmatpush1.msra.mxu0 %v2848
    %2850 = vmatprep.subr.mxu0 0.0
    %2851 = vmatpush1.msra.mxu0 0.0
    %2852 = vmatprep.subr.mxu0 0.0
    %2853 = vmatpush1.msra.mxu0 0.0
    %2854 = vmatprep.subr.mxu0 0.0
    %2855 = vmatpush1.msra.mxu0 0.0
    %2856 = vmatprep.subr.mxu0 0.0
    %2857 = vmatpush1.msra.mxu0 0.0
    %2858 = vmatprep.subr.mxu0 0.0
    %2859 = vmatpush1.msra.mxu0 0.0
    %2860 = vmatprep.subr.mxu0 0.0
    %2861 = vmatpush1.msra.mxu0 0.0
    %2862 = vmatprep.subr.mxu0 0.0
    %2863 = vmatpush1.msra.mxu0 0.0
    %2864 = vmatprep.subr.mxu0 0.0
    %2865 = vmatpush1.msra.mxu0 0.0
    %2866 = vmatprep.subr.mxu0 0.0
    %2867 = vmatpush1.msra.mxu0 0.0
    %2868 = vmatprep.subr.mxu0 0.0
    %2869 = vmatpush1.msra.mxu0 0.0
    %2870 = vmatprep.subr.mxu0 0.0
    %2871 = vmatpush1.msra.mxu0 0.0
    %2872 = vmatprep.subr.mxu0 0.0
    %2873 = vmatpush1.msra.mxu0 0.0
    %2874 = vmatprep.subr.mxu0 0.0
    %2875 = vmatpush1.msra.mxu0 0.0
    %2876 = vmatprep.subr.mxu0 0.0
    %2877 = vmatpush1.msra.mxu0 0.0
    %2878 = vmatprep.subr.mxu0 0.0
    %2879 = vmatpush1.msra.mxu0 0.0
    %2880 = vmatprep.subr.mxu0 0.0
    %2881 = vmatpush1.msra.mxu0 0.0
    %2882 = vmatprep.subr.mxu0 0.0
    %2883 = vmatpush1.msra.mxu0 0.0
    %2884 = vmatprep.subr.mxu0 0.0
    %2885 = vmatpush1.msra.mxu0 0.0
    %2886 = vmatprep.subr.mxu0 0.0
    %2887 = vmatpush1.msra.mxu0 0.0
    %2888 = vmatprep.subr.mxu0 0.0
    %2889 = vmatpush1.msra.mxu0 0.0
    %2890 = vmatprep.subr.mxu0 0.0
    %2891 = vmatpush1.msra.mxu0 0.0
    %2892 = vmatprep.subr.mxu0 0.0
    %2893 = vmatpush1.msra.mxu0 0.0
    %2894 = vmatprep.subr.mxu0 0.0
    %2895 = vmatpush1.msra.mxu0 0.0
    %2896 = vmatprep.subr.mxu0 0.0
    %2897 = vmatpush1.msra.mxu0 0.0
    %2898 = vmatprep.subr.mxu0 0.0
    %2899 = vmatpush1.msra.mxu0 0.0
    %2900 = vmatprep.subr.mxu0 0.0
    %2901 = vmatpush1.msra.mxu0 0.0
    %2902 = vmatprep.subr.mxu0 0.0
    %2903 = vmatpush1.msra.mxu0 0.0
    %2904 = vmatprep.subr.mxu0 0.0
    %2905 = vmatpush1.msra.mxu0 0.0
    %2906 = vmatprep.subr.mxu0 0.0
    %2907 = vmatpush1.msra.mxu0 0.0
    %2908 = vmatprep.subr.mxu0 0.0
    %2909 = vmatpush1.msra.mxu0 0.0
    %2910 = vmatprep.mubr.f32.mxu0 0.0
    %v2911 = vand.u32 %v2749, 4294901760
    %v2912 = vsub.f32 %v2749, %v2911
    %v2913 = vand.u32 %v2912, 4294901760
    %v2914 = vsub.f32 %v2912, %v2913
    %v2915 = vand.u32 %v2914, 4294901760
    %2916 = vmatmul.mubr.f32.gmra.mrb[0].mxu0 %v2915
    %v2917 = vpop.f32.mrb[0].mxu0
    %v2918 = vadd.f32 %v2745, %v2917
    %v2919 = vpop.f32.mrb[0].mxu0
    %2920 = vmatprep.mubr.f32.mxu0 0.0
    %v2921 = vand.u32 %v2752, 4294901760
    %v2922 = vsub.f32 %v2752, %v2921
    %v2923 = vand.u32 %v2922, 4294901760
    %v2924 = vsub.f32 %v2922, %v2923
    %v2925 = vand.u32 %v2924, 4294901760
    %2926 = vmatmul.mubr.f32.gmra.mrb[0].mxu0 %v2925
    %v2927 = vpop.f32.mrb[0].mxu0
    %v2928 = vadd.f32 %v2745, %v2927
    %v2929 = vpop.f32.mrb[0].mxu0
    %2930 = vmatprep.mubr.f32.mxu0 0.0
    %v2931 = vand.u32 %v2755, 4294901760
    %v2932 = vsub.f32 %v2755, %v2931
    %v2933 = vand.u32 %v2932, 4294901760
    %v2934 = vsub.f32 %v2932, %v2933
    %v2935 = vand.u32 %v2934, 4294901760
    %2936 = vmatmul.mubr.f32.gmra.mrb[0].mxu0 %v2935
    %v2937 = vpop.f32.mrb[0].mxu0
    %v2938 = vadd.f32 %v2745, %v2937
    %v2939 = vpop.f32.mrb[0].mxu0
    %2940 = vmatprep.mubr.f32.mxu0 0.0
    %v2941 = vand.u32 %v2758, 4294901760
    %v2942 = vsub.f32 %v2758, %v2941
    %v2943 = vand.u32 %v2942, 4294901760
    %v2944 = vsub.f32 %v2942, %v2943
    %v2945 = vand.u32 %v2944, 4294901760
    %2946 = vmatmul.mubr.f32.gmra.mrb[0].mxu0 %v2945
    %v2947 = vpop.f32.mrb[0].mxu0
    %v2948 = vadd.f32 %v2745, %v2947
    %v2949 = vpop.f32.mrb[0].mxu0
    %2950 = vmatprep.mubr.f32.mxu0 0.0
    %v2951 = vand.u32 %v2761, 4294901760
    %v2952 = vsub.f32 %v2761, %v2951
    %v2953 = vand.u32 %v2952, 4294901760
    %v2954 = vsub.f32 %v2952, %v2953
    %v2955 = vand.u32 %v2954, 4294901760
    %2956 = vmatmul.mubr.f32.gmra.mrb[0].mxu0 %v2955
    %v2957 = vpop.f32.mrb[0].mxu0
    %v2958 = vadd.f32 %v2745, %v2957
    %v2959 = vpop.f32.mrb[0].mxu0
    %2960 = vmatprep.mubr.f32.mxu0 0.0
    %v2961 = vand.u32 %v2764, 4294901760
    %v2962 = vsub.f32 %v2764, %v2961
    %v2963 = vand.u32 %v2962, 4294901760
    %v2964 = vsub.f32 %v2962, %v2963
    %v2965 = vand.u32 %v2964, 4294901760
    %2966 = vmatmul.mubr.f32.gmra.mrb[0].mxu0 %v2965
    %v2967 = vpop.f32.mrb[0].mxu0
    %v2968 = vadd.f32 %v2745, %v2967
    %v2969 = vpop.f32.mrb[0].mxu0
    %2970 = vmatprep.mubr.f32.mxu0 0.0
    %v2971 = vand.u32 %v2767, 4294901760
    %v2972 = vsub.f32 %v2767, %v2971
    %v2973 = vand.u32 %v2972, 4294901760
    %v2974 = vsub.f32 %v2972, %v2973
    %v2975 = vand.u32 %v2974, 4294901760
    %2976 = vmatmul.mubr.f32.gmra.mrb[0].mxu0 %v2975
    %v2977 = vpop.f32.mrb[0].mxu0
    %v2978 = vadd.f32 %v2745, %v2977
    %v2979 = vpop.f32.mrb[0].mxu0
    %2980 = vmatprep.mubr.f32.mxu0 0.0
    %v2981 = vand.u32 %v2770, 4294901760
    %v2982 = vsub.f32 %v2770, %v2981
    %v2983 = vand.u32 %v2982, 4294901760
    %v2984 = vsub.f32 %v2982, %v2983
    %v2985 = vand.u32 %v2984, 4294901760
    %2986 = vmatmul.mubr.f32.gmra.mrb[0].mxu0 %v2985
    %v2987 = vpop.f32.mrb[0].mxu0
    %v2988 = vadd.f32 %v2745, %v2987
    %v2989 = vpop.f32.mrb[0].mxu0
    %2990 = vmatprep.mubr.f32.mxu0 0.0
    %v2991 = vand.u32 %v2773, 4294901760
    %v2992 = vsub.f32 %v2773, %v2991
    %v2993 = vand.u32 %v2992, 4294901760
    %v2994 = vsub.f32 %v2992, %v2993
    %v2995 = vand.u32 %v2994, 4294901760
    %2996 = vmatmul.mubr.f32.gmra.mrb[0].mxu0 %v2995
    %v2997 = vpop.f32.mrb[0].mxu0
    %v2998 = vadd.f32 %v2745, %v2997
    %v2999 = vpop.f32.mrb[0].mxu0
    %3000 = vmatprep.mubr.f32.mxu0 0.0
    %v3001 = vand.u32 %v2776, 4294901760
    %v3002 = vsub.f32 %v2776, %v3001
    %v3003 = vand.u32 %v3002, 4294901760
    %v3004 = vsub.f32 %v3002, %v3003
    %v3005 = vand.u32 %v3004, 4294901760
    %3006 = vmatmul.mubr.f32.gmra.mrb[0].mxu0 %v3005
    %v3007 = vpop.f32.mrb[0].mxu0
    %v3008 = vadd.f32 %v2745, %v3007
    %v3009 = vpop.f32.mrb[0].mxu0
    %3010 = vmatprep.mubr.f32.mxu0 0.0
    %v3011 = vand.u32 %v2779, 4294901760
    %v3012 = vsub.f32 %v2779, %v3011
    %v3013 = vand.u32 %v3012, 4294901760
    %v3014 = vsub.f32 %v3012, %v3013
    %v3015 = vand.u32 %v3014, 4294901760
    %3016 = vmatmul.mubr.f32.gmra.mrb[0].mxu0 %v3015
    %v3017 = vpop.f32.mrb[0].mxu0
    %v3018 = vadd.f32 %v2745, %v3017
    %v3019 = vpop.f32.mrb[0].mxu0
    %3020 = vmatprep.mubr.f32.mxu0 0.0
    %v3021 = vand.u32 %v2782, 4294901760
    %v3022 = vsub.f32 %v2782, %v3021
    %v3023 = vand.u32 %v3022, 4294901760
    %v3024 = vsub.f32 %v3022, %v3023
    %v3025 = vand.u32 %v3024, 4294901760
    %3026 = vmatmul.mubr.f32.gmra.mrb[0].mxu0 %v3025
    %v3027 = vpop.f32.mrb[0].mxu0
    %v3028 = vadd.f32 %v2745, %v3027
    %v3029 = vpop.f32.mrb[0].mxu0
    %3030 = vmatprep.mubr.f32.mxu0 0.0
    %v3031 = vand.u32 %v2785, 4294901760
    %v3032 = vsub.f32 %v2785, %v3031
    %v3033 = vand.u32 %v3032, 4294901760
    %v3034 = vsub.f32 %v3032, %v3033
    %v3035 = vand.u32 %v3034, 4294901760
    %3036 = vmatmul.mubr.f32.gmra.mrb[0].mxu0 %v3035
    %v3037 = vpop.f32.mrb[0].mxu0
    %v3038 = vadd.f32 %v2745, %v3037
    %v3039 = vpop.f32.mrb[0].mxu0
    %3040 = vmatprep.mubr.f32.mxu0 0.0
    %v3041 = vand.u32 %v2788, 4294901760
    %v3042 = vsub.f32 %v2788, %v3041
    %v3043 = vand.u32 %v3042, 4294901760
    %v3044 = vsub.f32 %v3042, %v3043
    %v3045 = vand.u32 %v3044, 4294901760
    %3046 = vmatmul.mubr.f32.gmra.mrb[0].mxu0 %v3045
    %v3047 = vpop.f32.mrb[0].mxu0
    %v3048 = vadd.f32 %v2745, %v3047
    %v3049 = vpop.f32.mrb[0].mxu0
    %3050 = vmatprep.mubr.f32.mxu0 0.0
    %v3051 = vand.u32 %v2791, 4294901760
    %v3052 = vsub.f32 %v2791, %v3051
    %v3053 = vand.u32 %v3052, 4294901760
    %v3054 = vsub.f32 %v3052, %v3053
    %v3055 = vand.u32 %v3054, 4294901760
    %3056 = vmatmul.mubr.f32.gmra.mrb[0].mxu0 %v3055
    %v3057 = vpop.f32.mrb[0].mxu0
    %v3058 = vadd.f32 %v2745, %v3057
    %v3059 = vpop.f32.mrb[0].mxu0
    %3060 = vmatprep.mubr.f32.mxu0 0.0
    %v3061 = vand.u32 %v2794, 4294901760
    %v3062 = vsub.f32 %v2794, %v3061
    %v3063 = vand.u32 %v3062, 4294901760
    %v3064 = vsub.f32 %v3062, %v3063
    %v3065 = vand.u32 %v3064, 4294901760
    %3066 = vmatmul.mubr.f32.gmra.mrb[0].mxu0 %v3065
    %v3067 = vpop.f32.mrb[0].mxu0
    %v3068 = vadd.f32 %v2745, %v3067
    %v3069 = vpop.f32.mrb[0].mxu0
    %3070 = vmatprep.mubr.f32.mxu0 0.0
    %v3071 = vand.u32 %v2797, 4294901760
    %v3072 = vsub.f32 %v2797, %v3071
    %v3073 = vand.u32 %v3072, 4294901760
    %v3074 = vsub.f32 %v3072, %v3073
    %v3075 = vand.u32 %v3074, 4294901760
    %3076 = vmatmul.mubr.f32.gmra.mrb[0].mxu0 %v3075
    %v3077 = vpop.f32.mrb[0].mxu0
    %v3078 = vadd.f32 %v2745, %v3077
    %v3079 = vpop.f32.mrb[0].mxu0
    %3080 = vmatprep.mubr.f32.mxu0 0.0
    %v3081 = vand.u32 %v2800, 4294901760
    %v3082 = vsub.f32 %v2800, %v3081
    %v3083 = vand.u32 %v3082, 4294901760
    %v3084 = vsub.f32 %v3082, %v3083
    %v3085 = vand.u32 %v3084, 4294901760
    %3086 = vmatmul.mubr.f32.gmra.mrb[0].mxu0 %v3085
    %v3087 = vpop.f32.mrb[0].mxu0
    %v3088 = vadd.f32 %v2745, %v3087
    %v3089 = vpop.f32.mrb[0].mxu0
    %3090 = vmatprep.mubr.f32.mxu0 0.0
    %v3091 = vand.u32 %v2803, 4294901760
    %v3092 = vsub.f32 %v2803, %v3091
    %v3093 = vand.u32 %v3092, 4294901760
    %v3094 = vsub.f32 %v3092, %v3093
    %v3095 = vand.u32 %v3094, 4294901760
    %3096 = vmatmul.mubr.f32.gmra.mrb[0].mxu0 %v3095
    %v3097 = vpop.f32.mrb[0].mxu0
    %v3098 = vadd.f32 %v2745, %v3097
    %v3099 = vpop.f32.mrb[0].mxu0
    %3100 = vmatprep.mubr.f32.mxu0 0.0
    %v3101 = vand.u32 %v2806, 4294901760
    %v3102 = vsub.f32 %v2806, %v3101
    %v3103 = vand.u32 %v3102, 4294901760
    %v3104 = vsub.f32 %v3102, %v3103
    %v3105 = vand.u32 %v3104, 4294901760
    %3106 = vmatmul.mubr.f32.gmra.mrb[0].mxu0 %v3105
    %v3107 = vpop.f32.mrb[0].mxu0
    %v3108 = vadd.f32 %v2745, %v3107
    %v3109 = vpop.f32.mrb[0].mxu0
    %3110 = vmatprep.mubr.f32.mxu0 0.0
    %v3111 = vand.u32 %v2809, 4294901760
    %v3112 = vsub.f32 %v2809, %v3111
    %v3113 = vand.u32 %v3112, 4294901760
    %v3114 = vsub.f32 %v3112, %v3113
    %v3115 = vand.u32 %v3114, 4294901760
    %3116 = vmatmul.mubr.f32.gmra.mrb[0].mxu0 %v3115
    %v3117 = vpop.f32.mrb[0].mxu0
    %v3118 = vadd.f32 %v2745, %v3117
    %v3119 = vpop.f32.mrb[0].mxu0
    %3120 = vmatprep.mubr.f32.mxu0 0.0
    %v3121 = vand.u32 %v2812, 4294901760
    %v3122 = vsub.f32 %v2812, %v3121
    %v3123 = vand.u32 %v3122, 4294901760
    %v3124 = vsub.f32 %v3122, %v3123
    %v3125 = vand.u32 %v3124, 4294901760
    %3126 = vmatmul.mubr.f32.gmra.mrb[0].mxu0 %v3125
    %v3127 = vpop.f32.mrb[0].mxu0
    %v3128 = vadd.f32 %v2745, %v3127
    %v3129 = vpop.f32.mrb[0].mxu0
    %3130 = vmatprep.mubr.f32.mxu0 0.0
    %v3131 = vand.u32 %v2815, 4294901760
    %v3132 = vsub.f32 %v2815, %v3131
    %v3133 = vand.u32 %v3132, 4294901760
    %v3134 = vsub.f32 %v3132, %v3133
    %v3135 = vand.u32 %v3134, 4294901760
    %3136 = vmatmul.mubr.f32.gmra.mrb[0].mxu0 %v3135
    %v3137 = vpop.f32.mrb[0].mxu0
    %v3138 = vadd.f32 %v2745, %v3137
    %v3139 = vpop.f32.mrb[0].mxu0
    %3140 = vmatprep.mubr.f32.mxu0 0.0
    %v3141 = vand.u32 %v2818, 4294901760
    %v3142 = vsub.f32 %v2818, %v3141
    %v3143 = vand.u32 %v3142, 4294901760
    %v3144 = vsub.f32 %v3142, %v3143
    %v3145 = vand.u32 %v3144, 4294901760
    %3146 = vmatmul.mubr.f32.gmra.mrb[0].mxu0 %v3145
    %v3147 = vpop.f32.mrb[0].mxu0
    %v3148 = vadd.f32 %v2745, %v3147
    %v3149 = vpop.f32.mrb[0].mxu0
    %3150 = vmatprep.mubr.f32.mxu0 0.0
    %v3151 = vand.u32 %v2821, 4294901760
    %v3152 = vsub.f32 %v2821, %v3151
    %v3153 = vand.u32 %v3152, 4294901760
    %v3154 = vsub.f32 %v3152, %v3153
    %v3155 = vand.u32 %v3154, 4294901760
    %3156 = vmatmul.mubr.f32.gmra.mrb[0].mxu0 %v3155
    %v3157 = vpop.f32.mrb[0].mxu0
    %v3158 = vadd.f32 %v2745, %v3157
    %v3159 = vpop.f32.mrb[0].mxu0
    %3160 = vmatprep.mubr.f32.mxu0 0.0
    %v3161 = vand.u32 %v2824, 4294901760
    %v3162 = vsub.f32 %v2824, %v3161
    %v3163 = vand.u32 %v3162, 4294901760
    %v3164 = vsub.f32 %v3162, %v3163
    %v3165 = vand.u32 %v3164, 4294901760
    %3166 = vmatmul.mubr.f32.gmra.mrb[0].mxu0 %v3165
    %v3167 = vpop.f32.mrb[0].mxu0
    %v3168 = vadd.f32 %v2745, %v3167
    %v3169 = vpop.f32.mrb[0].mxu0
    %3170 = vmatprep.mubr.f32.mxu0 0.0
    %v3171 = vand.u32 %v2827, 4294901760
    %v3172 = vsub.f32 %v2827, %v3171
    %v3173 = vand.u32 %v3172, 4294901760
    %v3174 = vsub.f32 %v3172, %v3173
    %v3175 = vand.u32 %v3174, 4294901760
    %3176 = vmatmul.mubr.f32.gmra.mrb[0].mxu0 %v3175
    %v3177 = vpop.f32.mrb[0].mxu0
    %v3178 = vadd.f32 %v2745, %v3177
    %v3179 = vpop.f32.mrb[0].mxu0
    %3180 = vmatprep.mubr.f32.mxu0 0.0
    %v3181 = vand.u32 %v2830, 4294901760
    %v3182 = vsub.f32 %v2830, %v3181
    %v3183 = vand.u32 %v3182, 4294901760
    %v3184 = vsub.f32 %v3182, %v3183
    %v3185 = vand.u32 %v3184, 4294901760
    %3186 = vmatmul.mubr.f32.gmra.mrb[0].mxu0 %v3185
    %v3187 = vpop.f32.mrb[0].mxu0
    %v3188 = vadd.f32 %v2745, %v3187
    %v3189 = vpop.f32.mrb[0].mxu0
    %3190 = vmatprep.mubr.f32.mxu0 0.0
    %v3191 = vand.u32 %v2833, 4294901760
    %v3192 = vsub.f32 %v2833, %v3191
    %v3193 = vand.u32 %v3192, 4294901760
    %v3194 = vsub.f32 %v3192, %v3193
    %v3195 = vand.u32 %v3194, 4294901760
    %3196 = vmatmul.mubr.f32.gmra.mrb[0].mxu0 %v3195
    %v3197 = vpop.f32.mrb[0].mxu0
    %v3198 = vadd.f32 %v2745, %v3197
    %v3199 = vpop.f32.mrb[0].mxu0
    %3200 = vmatprep.mubr.f32.mxu0 0.0
    %v3201 = vand.u32 %v2836, 4294901760
    %v3202 = vsub.f32 %v2836, %v3201
    %v3203 = vand.u32 %v3202, 4294901760
    %v3204 = vsub.f32 %v3202, %v3203
    %v3205 = vand.u32 %v3204, 4294901760
    %3206 = vmatmul.mubr.f32.gmra.mrb[0].mxu0 %v3205
    %v3207 = vpop.f32.mrb[0].mxu0
    %v3208 = vadd.f32 %v2745, %v3207
    %v3209 = vpop.f32.mrb[0].mxu0
    %3210 = vmatprep.mubr.f32.mxu0 0.0
    %v3211 = vand.u32 %v2839, 4294901760
    %v3212 = vsub.f32 %v2839, %v3211
    %v3213 = vand.u32 %v3212, 4294901760
    %v3214 = vsub.f32 %v3212, %v3213
    %v3215 = vand.u32 %v3214, 4294901760
    %3216 = vmatmul.mubr.f32.gmra.mrb[0].mxu0 %v3215
    %v3217 = vpop.f32.mrb[0].mxu0
    %v3218 = vadd.f32 %v2745, %v3217
    %v3219 = vpop.f32.mrb[0].mxu0
    %3220 = vmatprep.mubr.f32.mxu0 0.0
    %v3221 = vand.u32 %v2842, 4294901760
    %v3222 = vsub.f32 %v2842, %v3221
    %v3223 = vand.u32 %v3222, 4294901760
    %v3224 = vsub.f32 %v3222, %v3223
    %v3225 = vand.u32 %v3224, 4294901760
    %3226 = vmatmul.mubr.f32.gmra.mrb[0].mxu0 %v3225
    %v3227 = vpop.f32.mrb[0].mxu0
    %v3228 = vadd.f32 %v2745, %v3227
    %v3229 = vpop.f32.mrb[0].mxu0
    %3230 = vdwg.mxu0
    %3231 = vmatprep.subr.mxu0 0.0
    %v3232 = vand.u32 %v2738, 4294901760
    %v3233 = vsub.f32 %v2738, %v3232
    %v3234 = vand.u32 %v3233, 4294901760
    %v3235 = vsub.f32 %v3233, %v3234
    %v3236 = vand.u32 %v3235, 4294901760
    %3237 = vmatpush1.msra.mxu0 %v3236
    %3238 = vmatprep.subr.mxu0 0.0
    %v3239 = vand.u32 %v2739, 4294901760
    %v3240 = vsub.f32 %v2739, %v3239
    %v3241 = vand.u32 %v3240, 4294901760
    %v3242 = vsub.f32 %v3240, %v3241
    %v3243 = vand.u32 %v3242, 4294901760
    %3244 = vmatpush1.msra.mxu0 %v3243
    %3245 = vmatprep.subr.mxu0 0.0
    %3246 = vmatpush1.msra.mxu0 0.0
    %3247 = vmatprep.subr.mxu0 0.0
    %3248 = vmatpush1.msra.mxu0 0.0
    %3249 = vmatprep.subr.mxu0 0.0
    %3250 = vmatpush1.msra.mxu0 0.0
    %3251 = vmatprep.subr.mxu0 0.0
    %3252 = vmatpush1.msra.mxu0 0.0
    %3253 = vmatprep.subr.mxu0 0.0
    %3254 = vmatpush1.msra.mxu0 0.0
    %3255 = vmatprep.subr.mxu0 0.0
    %3256 = vmatpush1.msra.mxu0 0.0
    %3257 = vmatprep.subr.mxu0 0.0
    %3258 = vmatpush1.msra.mxu0 0.0
    %3259 = vmatprep.subr.mxu0 0.0
    %3260 = vmatpush1.msra.mxu0 0.0
    %3261 = vmatprep.subr.mxu0 0.0
    %3262 = vmatpush1.msra.mxu0 0.0
    %3263 = vmatprep.subr.mxu0 0.0
    %3264 = vmatpush1.msra.mxu0 0.0
    %3265 = vmatprep.subr.mxu0 0.0
    %3266 = vmatpush1.msra.mxu0 0.0
    %3267 = vmatprep.subr.mxu0 0.0
    %3268 = vmatpush1.msra.mxu0 0.0
    %3269 = vmatprep.subr.mxu0 0.0
    %3270 = vmatpush1.msra.mxu0 0.0
    %3271 = vmatprep.subr.mxu0 0.0
    %3272 = vmatpush1.msra.mxu0 0.0
    %3273 = vmatprep.subr.mxu0 0.0
    %3274 = vmatpush1.msra.mxu0 0.0
    %3275 = vmatprep.subr.mxu0 0.0
    %3276 = vmatpush1.msra.mxu0 0.0
    %3277 = vmatprep.subr.mxu0 0.0
    %3278 = vmatpush1.msra.mxu0 0.0
    %3279 = vmatprep.subr.mxu0 0.0
    %3280 = vmatpush1.msra.mxu0 0.0
    %3281 = vmatprep.subr.mxu0 0.0
    %3282 = vmatpush1.msra.mxu0 0.0
    %3283 = vmatprep.subr.mxu0 0.0
    %3284 = vmatpush1.msra.mxu0 0.0
    %3285 = vmatprep.subr.mxu0 0.0
    %3286 = vmatpush1.msra.mxu0 0.0
    %3287 = vmatprep.subr.mxu0 0.0
    %3288 = vmatpush1.msra.mxu0 0.0
    %3289 = vmatprep.subr.mxu0 0.0
    %3290 = vmatpush1.msra.mxu0 0.0
    %3291 = vmatprep.subr.mxu0 0.0
    %3292 = vmatpush1.msra.mxu0 0.0
    %3293 = vmatprep.subr.mxu0 0.0
    %3294 = vmatpush1.msra.mxu0 0.0
    %3295 = vmatprep.subr.mxu0 0.0
    %3296 = vmatpush1.msra.mxu0 0.0
    %3297 = vmatprep.subr.mxu0 0.0
    %3298 = vmatpush1.msra.mxu0 0.0
    %3299 = vmatprep.subr.mxu0 0.0
    %3300 = vmatpush1.msra.mxu0 0.0
    %3301 = vmatprep.subr.mxu0 0.0
    %3302 = vmatpush1.msra.mxu0 0.0
    %3303 = vmatprep.subr.mxu0 0.0
    %3304 = vmatpush1.msra.mxu0 0.0
    %3305 = vmatprep.mubr.f32.mxu0 0.0
    %v3306 = vand.u32 %v2749, 4294901760
    %3307 = vmatmul.mubr.f32.gmra.mrb[0].mxu0 %v3306
    %v3308 = vpop.f32.mrb[0].mxu0
    %v3309 = vadd.f32 %v2918, %v3308
    %v3310 = vpop.f32.mrb[0].mxu0
    %3311 = vmatprep.mubr.f32.mxu0 0.0
    %v3312 = vand.u32 %v2752, 4294901760
    %3313 = vmatmul.mubr.f32.gmra.mrb[0].mxu0 %v3312
    %v3314 = vpop.f32.mrb[0].mxu0
    %v3315 = vadd.f32 %v2928, %v3314
    %v3316 = vpop.f32.mrb[0].mxu0
    %3317 = vmatprep.mubr.f32.mxu0 0.0
    %v3318 = vand.u32 %v2755, 4294901760
    %3319 = vmatmul.mubr.f32.gmra.mrb[0].mxu0 %v3318
    %v3320 = vpop.f32.mrb[0].mxu0
    %v3321 = vadd.f32 %v2938, %v3320
    %v3322 = vpop.f32.mrb[0].mxu0
    %3323 = vmatprep.mubr.f32.mxu0 0.0
    %v3324 = vand.u32 %v2758, 4294901760
    %3325 = vmatmul.mubr.f32.gmra.mrb[0].mxu0 %v3324
    %v3326 = vpop.f32.mrb[0].mxu0
    %v3327 = vadd.f32 %v2948, %v3326
    %v3328 = vpop.f32.mrb[0].mxu0
    %3329 = vmatprep.mubr.f32.mxu0 0.0
    %v3330 = vand.u32 %v2761, 4294901760
    %3331 = vmatmul.mubr.f32.gmra.mrb[0].mxu0 %v3330
    %v3332 = vpop.f32.mrb[0].mxu0
    %v3333 = vadd.f32 %v2958, %v3332
    %v3334 = vpop.f32.mrb[0].mxu0
    %3335 = vmatprep.mubr.f32.mxu0 0.0
    %v3336 = vand.u32 %v2764, 4294901760
    %3337 = vmatmul.mubr.f32.gmra.mrb[0].mxu0 %v3336
    %v3338 = vpop.f32.mrb[0].mxu0
    %v3339 = vadd.f32 %v2968, %v3338
    %v3340 = vpop.f32.mrb[0].mxu0
    %3341 = vmatprep.mubr.f32.mxu0 0.0
    %v3342 = vand.u32 %v2767, 4294901760
    %3343 = vmatmul.mubr.f32.gmra.mrb[0].mxu0 %v3342
    %v3344 = vpop.f32.mrb[0].mxu0
    %v3345 = vadd.f32 %v2978, %v3344
    %v3346 = vpop.f32.mrb[0].mxu0
    %3347 = vmatprep.mubr.f32.mxu0 0.0
    %v3348 = vand.u32 %v2770, 4294901760
    %3349 = vmatmul.mubr.f32.gmra.mrb[0].mxu0 %v3348
    %v3350 = vpop.f32.mrb[0].mxu0
    %v3351 = vadd.f32 %v2988, %v3350
    %v3352 = vpop.f32.mrb[0].mxu0
    %3353 = vmatprep.mubr.f32.mxu0 0.0
    %v3354 = vand.u32 %v2773, 4294901760
    %3355 = vmatmul.mubr.f32.gmra.mrb[0].mxu0 %v3354
    %v3356 = vpop.f32.mrb[0].mxu0
    %v3357 = vadd.f32 %v2998, %v3356
    %v3358 = vpop.f32.mrb[0].mxu0
    %3359 = vmatprep.mubr.f32.mxu0 0.0
    %v3360 = vand.u32 %v2776, 4294901760
    %3361 = vmatmul.mubr.f32.gmra.mrb[0].mxu0 %v3360
    %v3362 = vpop.f32.mrb[0].mxu0
    %v3363 = vadd.f32 %v3008, %v3362
    %v3364 = vpop.f32.mrb[0].mxu0
    %3365 = vmatprep.mubr.f32.mxu0 0.0
    %v3366 = vand.u32 %v2779, 4294901760
    %3367 = vmatmul.mubr.f32.gmra.mrb[0].mxu0 %v3366
    %v3368 = vpop.f32.mrb[0].mxu0
    %v3369 = vadd.f32 %v3018, %v3368
    %v3370 = vpop.f32.mrb[0].mxu0
    %3371 = vmatprep.mubr.f32.mxu0 0.0
    %v3372 = vand.u32 %v2782, 4294901760
    %3373 = vmatmul.mubr.f32.gmra.mrb[0].mxu0 %v3372
    %v3374 = vpop.f32.mrb[0].mxu0
    %v3375 = vadd.f32 %v3028, %v3374
    %v3376 = vpop.f32.mrb[0].mxu0
    %3377 = vmatprep.mubr.f32.mxu0 0.0
    %v3378 = vand.u32 %v2785, 4294901760
    %3379 = vmatmul.mubr.f32.gmra.mrb[0].mxu0 %v3378
    %v3380 = vpop.f32.mrb[0].mxu0
    %v3381 = vadd.f32 %v3038, %v3380
    %v3382 = vpop.f32.mrb[0].mxu0
    %3383 = vmatprep.mubr.f32.mxu0 0.0
    %v3384 = vand.u32 %v2788, 4294901760
    %3385 = vmatmul.mubr.f32.gmra.mrb[0].mxu0 %v3384
    %v3386 = vpop.f32.mrb[0].mxu0
    %v3387 = vadd.f32 %v3048, %v3386
    %v3388 = vpop.f32.mrb[0].mxu0
    %3389 = vmatprep.mubr.f32.mxu0 0.0
    %v3390 = vand.u32 %v2791, 4294901760
    %3391 = vmatmul.mubr.f32.gmra.mrb[0].mxu0 %v3390
    %v3392 = vpop.f32.mrb[0].mxu0
    %v3393 = vadd.f32 %v3058, %v3392
    %v3394 = vpop.f32.mrb[0].mxu0
    %3395 = vmatprep.mubr.f32.mxu0 0.0
    %v3396 = vand.u32 %v2794, 4294901760
    %3397 = vmatmul.mubr.f32.gmra.mrb[0].mxu0 %v3396
    %v3398 = vpop.f32.mrb[0].mxu0
    %v3399 = vadd.f32 %v3068, %v3398
    %v3400 = vpop.f32.mrb[0].mxu0
    %3401 = vmatprep.mubr.f32.mxu0 0.0
    %v3402 = vand.u32 %v2797, 4294901760
    %3403 = vmatmul.mubr.f32.gmra.mrb[0].mxu0 %v3402
    %v3404 = vpop.f32.mrb[0].mxu0
    %v3405 = vadd.f32 %v3078, %v3404
    %v3406 = vpop.f32.mrb[0].mxu0
    %3407 = vmatprep.mubr.f32.mxu0 0.0
    %v3408 = vand.u32 %v2800, 4294901760
    %3409 = vmatmul.mubr.f32.gmra.mrb[0].mxu0 %v3408
    %v3410 = vpop.f32.mrb[0].mxu0
    %v3411 = vadd.f32 %v3088, %v3410
    %v3412 = vpop.f32.mrb[0].mxu0
    %3413 = vmatprep.mubr.f32.mxu0 0.0
    %v3414 = vand.u32 %v2803, 4294901760
    %3415 = vmatmul.mubr.f32.gmra.mrb[0].mxu0 %v3414
    %v3416 = vpop.f32.mrb[0].mxu0
    %v3417 = vadd.f32 %v3098, %v3416
    %v3418 = vpop.f32.mrb[0].mxu0
    %3419 = vmatprep.mubr.f32.mxu0 0.0
    %v3420 = vand.u32 %v2806, 4294901760
    %3421 = vmatmul.mubr.f32.gmra.mrb[0].mxu0 %v3420
    %v3422 = vpop.f32.mrb[0].mxu0
    %v3423 = vadd.f32 %v3108, %v3422
    %v3424 = vpop.f32.mrb[0].mxu0
    %3425 = vmatprep.mubr.f32.mxu0 0.0
    %v3426 = vand.u32 %v2809, 4294901760
    %3427 = vmatmul.mubr.f32.gmra.mrb[0].mxu0 %v3426
    %v3428 = vpop.f32.mrb[0].mxu0
    %v3429 = vadd.f32 %v3118, %v3428
    %v3430 = vpop.f32.mrb[0].mxu0
    %3431 = vmatprep.mubr.f32.mxu0 0.0
    %v3432 = vand.u32 %v2812, 4294901760
    %3433 = vmatmul.mubr.f32.gmra.mrb[0].mxu0 %v3432
    %v3434 = vpop.f32.mrb[0].mxu0
    %v3435 = vadd.f32 %v3128, %v3434
    %v3436 = vpop.f32.mrb[0].mxu0
    %3437 = vmatprep.mubr.f32.mxu0 0.0
    %v3438 = vand.u32 %v2815, 4294901760
    %3439 = vmatmul.mubr.f32.gmra.mrb[0].mxu0 %v3438
    %v3440 = vpop.f32.mrb[0].mxu0
    %v3441 = vadd.f32 %v3138, %v3440
    %v3442 = vpop.f32.mrb[0].mxu0
    %3443 = vmatprep.mubr.f32.mxu0 0.0
    %v3444 = vand.u32 %v2818, 4294901760
    %3445 = vmatmul.mubr.f32.gmra.mrb[0].mxu0 %v3444
    %v3446 = vpop.f32.mrb[0].mxu0
    %v3447 = vadd.f32 %v3148, %v3446
    %v3448 = vpop.f32.mrb[0].mxu0
    %3449 = vmatprep.mubr.f32.mxu0 0.0
    %v3450 = vand.u32 %v2821, 4294901760
    %3451 = vmatmul.mubr.f32.gmra.mrb[0].mxu0 %v3450
    %v3452 = vpop.f32.mrb[0].mxu0
    %v3453 = vadd.f32 %v3158, %v3452
    %v3454 = vpop.f32.mrb[0].mxu0
    %3455 = vmatprep.mubr.f32.mxu0 0.0
    %v3456 = vand.u32 %v2824, 4294901760
    %3457 = vmatmul.mubr.f32.gmra.mrb[0].mxu0 %v3456
    %v3458 = vpop.f32.mrb[0].mxu0
    %v3459 = vadd.f32 %v3168, %v3458
    %v3460 = vpop.f32.mrb[0].mxu0
    %3461 = vmatprep.mubr.f32.mxu0 0.0
    %v3462 = vand.u32 %v2827, 4294901760
    %3463 = vmatmul.mubr.f32.gmra.mrb[0].mxu0 %v3462
    %v3464 = vpop.f32.mrb[0].mxu0
    %v3465 = vadd.f32 %v3178, %v3464
    %v3466 = vpop.f32.mrb[0].mxu0
    %3467 = vmatprep.mubr.f32.mxu0 0.0
    %v3468 = vand.u32 %v2830, 4294901760
    %3469 = vmatmul.mubr.f32.gmra.mrb[0].mxu0 %v3468
    %v3470 = vpop.f32.mrb[0].mxu0
    %v3471 = vadd.f32 %v3188, %v3470
    %v3472 = vpop.f32.mrb[0].mxu0
    %3473 = vmatprep.mubr.f32.mxu0 0.0
    %v3474 = vand.u32 %v2833, 4294901760
    %3475 = vmatmul.mubr.f32.gmra.mrb[0].mxu0 %v3474
    %v3476 = vpop.f32.mrb[0].mxu0
    %v3477 = vadd.f32 %v3198, %v3476
    %v3478 = vpop.f32.mrb[0].mxu0
    %3479 = vmatprep.mubr.f32.mxu0 0.0
    %v3480 = vand.u32 %v2836, 4294901760
    %3481 = vmatmul.mubr.f32.gmra.mrb[0].mxu0 %v3480
    %v3482 = vpop.f32.mrb[0].mxu0
    %v3483 = vadd.f32 %v3208, %v3482
    %v3484 = vpop.f32.mrb[0].mxu0
    %3485 = vmatprep.mubr.f32.mxu0 0.0
    %v3486 = vand.u32 %v2839, 4294901760
    %3487 = vmatmul.mubr.f32.gmra.mrb[0].mxu0 %v3486
    %v3488 = vpop.f32.mrb[0].mxu0
    %v3489 = vadd.f32 %v3218, %v3488
    %v3490 = vpop.f32.mrb[0].mxu0
    %3491 = vmatprep.mubr.f32.mxu0 0.0
    %v3492 = vand.u32 %v2842, 4294901760
    %3493 = vmatmul.mubr.f32.gmra.mrb[0].mxu0 %v3492
    %v3494 = vpop.f32.mrb[0].mxu0
    %v3495 = vadd.f32 %v3228, %v3494
    %v3496 = vpop.f32.mrb[0].mxu0
    %3497 = vdwg.mxu0
    %3498 = vmatprep.subr.mxu0 0.0
    %v3499 = vand.u32 %v2738, 4294901760
    %v3500 = vsub.f32 %v2738, %v3499
    %3501 = vmatpush1.msra.mxu0 %v3500
    %3502 = vmatprep.subr.mxu0 0.0
    %v3503 = vand.u32 %v2739, 4294901760
    %v3504 = vsub.f32 %v2739, %v3503
    %3505 = vmatpush1.msra.mxu0 %v3504
    %3506 = vmatprep.subr.mxu0 0.0
    %3507 = vmatpush1.msra.mxu0 0.0
    %3508 = vmatprep.subr.mxu0 0.0
    %3509 = vmatpush1.msra.mxu0 0.0
    %3510 = vmatprep.subr.mxu0 0.0
    %3511 = vmatpush1.msra.mxu0 0.0
    %3512 = vmatprep.subr.mxu0 0.0
    %3513 = vmatpush1.msra.mxu0 0.0
    %3514 = vmatprep.subr.mxu0 0.0
    %3515 = vmatpush1.msra.mxu0 0.0
    %3516 = vmatprep.subr.mxu0 0.0
    %3517 = vmatpush1.msra.mxu0 0.0
    %3518 = vmatprep.subr.mxu0 0.0
    %3519 = vmatpush1.msra.mxu0 0.0
    %3520 = vmatprep.subr.mxu0 0.0
    %3521 = vmatpush1.msra.mxu0 0.0
    %3522 = vmatprep.subr.mxu0 0.0
    %3523 = vmatpush1.msra.mxu0 0.0
    %3524 = vmatprep.subr.mxu0 0.0
    %3525 = vmatpush1.msra.mxu0 0.0
    %3526 = vmatprep.subr.mxu0 0.0
    %3527 = vmatpush1.msra.mxu0 0.0
    %3528 = vmatprep.subr.mxu0 0.0
    %3529 = vmatpush1.msra.mxu0 0.0
    %3530 = vmatprep.subr.mxu0 0.0
    %3531 = vmatpush1.msra.mxu0 0.0
    %3532 = vmatprep.subr.mxu0 0.0
    %3533 = vmatpush1.msra.mxu0 0.0
    %3534 = vmatprep.subr.mxu0 0.0
    %3535 = vmatpush1.msra.mxu0 0.0
    %3536 = vmatprep.subr.mxu0 0.0
    %3537 = vmatpush1.msra.mxu0 0.0
    %3538 = vmatprep.subr.mxu0 0.0
    %3539 = vmatpush1.msra.mxu0 0.0
    %3540 = vmatprep.subr.mxu0 0.0
    %3541 = vmatpush1.msra.mxu0 0.0
    %3542 = vmatprep.subr.mxu0 0.0
    %3543 = vmatpush1.msra.mxu0 0.0
    %3544 = vmatprep.subr.mxu0 0.0
    %3545 = vmatpush1.msra.mxu0 0.0
    %3546 = vmatprep.subr.mxu0 0.0
    %3547 = vmatpush1.msra.mxu0 0.0
    %3548 = vmatprep.subr.mxu0 0.0
    %3549 = vmatpush1.msra.mxu0 0.0
    %3550 = vmatprep.subr.mxu0 0.0
    %3551 = vmatpush1.msra.mxu0 0.0
    %3552 = vmatprep.subr.mxu0 0.0
    %3553 = vmatpush1.msra.mxu0 0.0
    %3554 = vmatprep.subr.mxu0 0.0
    %3555 = vmatpush1.msra.mxu0 0.0
    %3556 = vmatprep.subr.mxu0 0.0
    %3557 = vmatpush1.msra.mxu0 0.0
    %3558 = vmatprep.subr.mxu0 0.0
    %3559 = vmatpush1.msra.mxu0 0.0
    %3560 = vmatprep.subr.mxu0 0.0
    %3561 = vmatpush1.msra.mxu0 0.0
    %3562 = vmatprep.subr.mxu0 0.0
    %3563 = vmatpush1.msra.mxu0 0.0
    %3564 = vmatprep.subr.mxu0 0.0
    %3565 = vmatpush1.msra.mxu0 0.0
    %3566 = vmatprep.mubr.f32.mxu0 0.0
    %v3567 = vand.u32 %v2749, 4294901760
    %v3568 = vsub.f32 %v2749, %v3567
    %3569 = vmatmul.mubr.f32.gmra.mrb[0].mxu0 %v3568
    %v3570 = vpop.f32.mrb[0].mxu0
    %v3571 = vadd.f32 %v3309, %v3570
    %v3572 = vpop.f32.mrb[0].mxu0
    %3573 = vmatprep.mubr.f32.mxu0 0.0
    %v3574 = vand.u32 %v2752, 4294901760
    %v3575 = vsub.f32 %v2752, %v3574
    %3576 = vmatmul.mubr.f32.gmra.mrb[0].mxu0 %v3575
    %v3577 = vpop.f32.mrb[0].mxu0
    %v3578 = vadd.f32 %v3315, %v3577
    %v3579 = vpop.f32.mrb[0].mxu0
    %3580 = vmatprep.mubr.f32.mxu0 0.0
    %v3581 = vand.u32 %v2755, 4294901760
    %v3582 = vsub.f32 %v2755, %v3581
    %3583 = vmatmul.mubr.f32.gmra.mrb[0].mxu0 %v3582
    %v3584 = vpop.f32.mrb[0].mxu0
    %v3585 = vadd.f32 %v3321, %v3584
    %v3586 = vpop.f32.mrb[0].mxu0
    %3587 = vmatprep.mubr.f32.mxu0 0.0
    %v3588 = vand.u32 %v2758, 4294901760
    %v3589 = vsub.f32 %v2758, %v3588
    %3590 = vmatmul.mubr.f32.gmra.mrb[0].mxu0 %v3589
    %v3591 = vpop.f32.mrb[0].mxu0
    %v3592 = vadd.f32 %v3327, %v3591
    %v3593 = vpop.f32.mrb[0].mxu0
    %3594 = vmatprep.mubr.f32.mxu0 0.0
    %v3595 = vand.u32 %v2761, 4294901760
    %v3596 = vsub.f32 %v2761, %v3595
    %3597 = vmatmul.mubr.f32.gmra.mrb[0].mxu0 %v3596
    %v3598 = vpop.f32.mrb[0].mxu0
    %v3599 = vadd.f32 %v3333, %v3598
    %v3600 = vpop.f32.mrb[0].mxu0
    %3601 = vmatprep.mubr.f32.mxu0 0.0
    %v3602 = vand.u32 %v2764, 4294901760
    %v3603 = vsub.f32 %v2764, %v3602
    %3604 = vmatmul.mubr.f32.gmra.mrb[0].mxu0 %v3603
    %v3605 = vpop.f32.mrb[0].mxu0
    %v3606 = vadd.f32 %v3339, %v3605
    %v3607 = vpop.f32.mrb[0].mxu0
    %3608 = vmatprep.mubr.f32.mxu0 0.0
    %v3609 = vand.u32 %v2767, 4294901760
    %v3610 = vsub.f32 %v2767, %v3609
    %3611 = vmatmul.mubr.f32.gmra.mrb[0].mxu0 %v3610
    %v3612 = vpop.f32.mrb[0].mxu0
    %v3613 = vadd.f32 %v3345, %v3612
    %v3614 = vpop.f32.mrb[0].mxu0
    %3615 = vmatprep.mubr.f32.mxu0 0.0
    %v3616 = vand.u32 %v2770, 4294901760
    %v3617 = vsub.f32 %v2770, %v3616
    %3618 = vmatmul.mubr.f32.gmra.mrb[0].mxu0 %v3617
    %v3619 = vpop.f32.mrb[0].mxu0
    %v3620 = vadd.f32 %v3351, %v3619
    %v3621 = vpop.f32.mrb[0].mxu0
    %3622 = vmatprep.mubr.f32.mxu0 0.0
    %v3623 = vand.u32 %v2773, 4294901760
    %v3624 = vsub.f32 %v2773, %v3623
    %3625 = vmatmul.mubr.f32.gmra.mrb[0].mxu0 %v3624
    %v3626 = vpop.f32.mrb[0].mxu0
    %v3627 = vadd.f32 %v3357, %v3626
    %v3628 = vpop.f32.mrb[0].mxu0
    %3629 = vmatprep.mubr.f32.mxu0 0.0
    %v3630 = vand.u32 %v2776, 4294901760
    %v3631 = vsub.f32 %v2776, %v3630
    %3632 = vmatmul.mubr.f32.gmra.mrb[0].mxu0 %v3631
    %v3633 = vpop.f32.mrb[0].mxu0
    %v3634 = vadd.f32 %v3363, %v3633
    %v3635 = vpop.f32.mrb[0].mxu0
    %3636 = vmatprep.mubr.f32.mxu0 0.0
    %v3637 = vand.u32 %v2779, 4294901760
    %v3638 = vsub.f32 %v2779, %v3637
    %3639 = vmatmul.mubr.f32.gmra.mrb[0].mxu0 %v3638
    %v3640 = vpop.f32.mrb[0].mxu0
    %v3641 = vadd.f32 %v3369, %v3640
    %v3642 = vpop.f32.mrb[0].mxu0
    %3643 = vmatprep.mubr.f32.mxu0 0.0
    %v3644 = vand.u32 %v2782, 4294901760
    %v3645 = vsub.f32 %v2782, %v3644
    %3646 = vmatmul.mubr.f32.gmra.mrb[0].mxu0 %v3645
    %v3647 = vpop.f32.mrb[0].mxu0
    %v3648 = vadd.f32 %v3375, %v3647
    %v3649 = vpop.f32.mrb[0].mxu0
    %3650 = vmatprep.mubr.f32.mxu0 0.0
    %v3651 = vand.u32 %v2785, 4294901760
    %v3652 = vsub.f32 %v2785, %v3651
    %3653 = vmatmul.mubr.f32.gmra.mrb[0].mxu0 %v3652
    %v3654 = vpop.f32.mrb[0].mxu0
    %v3655 = vadd.f32 %v3381, %v3654
    %v3656 = vpop.f32.mrb[0].mxu0
    %3657 = vmatprep.mubr.f32.mxu0 0.0
    %v3658 = vand.u32 %v2788, 4294901760
    %v3659 = vsub.f32 %v2788, %v3658
    %3660 = vmatmul.mubr.f32.gmra.mrb[0].mxu0 %v3659
    %v3661 = vpop.f32.mrb[0].mxu0
    %v3662 = vadd.f32 %v3387, %v3661
    %v3663 = vpop.f32.mrb[0].mxu0
    %3664 = vmatprep.mubr.f32.mxu0 0.0
    %v3665 = vand.u32 %v2791, 4294901760
    %v3666 = vsub.f32 %v2791, %v3665
    %3667 = vmatmul.mubr.f32.gmra.mrb[0].mxu0 %v3666
    %v3668 = vpop.f32.mrb[0].mxu0
    %v3669 = vadd.f32 %v3393, %v3668
    %v3670 = vpop.f32.mrb[0].mxu0
    %3671 = vmatprep.mubr.f32.mxu0 0.0
    %v3672 = vand.u32 %v2794, 4294901760
    %v3673 = vsub.f32 %v2794, %v3672
    %3674 = vmatmul.mubr.f32.gmra.mrb[0].mxu0 %v3673
    %v3675 = vpop.f32.mrb[0].mxu0
    %v3676 = vadd.f32 %v3399, %v3675
    %v3677 = vpop.f32.mrb[0].mxu0
    %3678 = vmatprep.mubr.f32.mxu0 0.0
    %v3679 = vand.u32 %v2797, 4294901760
    %v3680 = vsub.f32 %v2797, %v3679
    %3681 = vmatmul.mubr.f32.gmra.mrb[0].mxu0 %v3680
    %v3682 = vpop.f32.mrb[0].mxu0
    %v3683 = vadd.f32 %v3405, %v3682
    %v3684 = vpop.f32.mrb[0].mxu0
    %3685 = vmatprep.mubr.f32.mxu0 0.0
    %v3686 = vand.u32 %v2800, 4294901760
    %v3687 = vsub.f32 %v2800, %v3686
    %3688 = vmatmul.mubr.f32.gmra.mrb[0].mxu0 %v3687
    %v3689 = vpop.f32.mrb[0].mxu0
    %v3690 = vadd.f32 %v3411, %v3689
    %v3691 = vpop.f32.mrb[0].mxu0
    %3692 = vmatprep.mubr.f32.mxu0 0.0
    %v3693 = vand.u32 %v2803, 4294901760
    %v3694 = vsub.f32 %v2803, %v3693
    %3695 = vmatmul.mubr.f32.gmra.mrb[0].mxu0 %v3694
    %v3696 = vpop.f32.mrb[0].mxu0
    %v3697 = vadd.f32 %v3417, %v3696
    %v3698 = vpop.f32.mrb[0].mxu0
    %3699 = vmatprep.mubr.f32.mxu0 0.0
    %v3700 = vand.u32 %v2806, 4294901760
    %v3701 = vsub.f32 %v2806, %v3700
    %3702 = vmatmul.mubr.f32.gmra.mrb[0].mxu0 %v3701
    %v3703 = vpop.f32.mrb[0].mxu0
    %v3704 = vadd.f32 %v3423, %v3703
    %v3705 = vpop.f32.mrb[0].mxu0
    %3706 = vmatprep.mubr.f32.mxu0 0.0
    %v3707 = vand.u32 %v2809, 4294901760
    %v3708 = vsub.f32 %v2809, %v3707
    %3709 = vmatmul.mubr.f32.gmra.mrb[0].mxu0 %v3708
    %v3710 = vpop.f32.mrb[0].mxu0
    %v3711 = vadd.f32 %v3429, %v3710
    %v3712 = vpop.f32.mrb[0].mxu0
    %3713 = vmatprep.mubr.f32.mxu0 0.0
    %v3714 = vand.u32 %v2812, 4294901760
    %v3715 = vsub.f32 %v2812, %v3714
    %3716 = vmatmul.mubr.f32.gmra.mrb[0].mxu0 %v3715
    %v3717 = vpop.f32.mrb[0].mxu0
    %v3718 = vadd.f32 %v3435, %v3717
    %v3719 = vpop.f32.mrb[0].mxu0
    %3720 = vmatprep.mubr.f32.mxu0 0.0
    %v3721 = vand.u32 %v2815, 4294901760
    %v3722 = vsub.f32 %v2815, %v3721
    %3723 = vmatmul.mubr.f32.gmra.mrb[0].mxu0 %v3722
    %v3724 = vpop.f32.mrb[0].mxu0
    %v3725 = vadd.f32 %v3441, %v3724
    %v3726 = vpop.f32.mrb[0].mxu0
    %3727 = vmatprep.mubr.f32.mxu0 0.0
    %v3728 = vand.u32 %v2818, 4294901760
    %v3729 = vsub.f32 %v2818, %v3728
    %3730 = vmatmul.mubr.f32.gmra.mrb[0].mxu0 %v3729
    %v3731 = vpop.f32.mrb[0].mxu0
    %v3732 = vadd.f32 %v3447, %v3731
    %v3733 = vpop.f32.mrb[0].mxu0
    %3734 = vmatprep.mubr.f32.mxu0 0.0
    %v3735 = vand.u32 %v2821, 4294901760
    %v3736 = vsub.f32 %v2821, %v3735
    %3737 = vmatmul.mubr.f32.gmra.mrb[0].mxu0 %v3736
    %v3738 = vpop.f32.mrb[0].mxu0
    %v3739 = vadd.f32 %v3453, %v3738
    %v3740 = vpop.f32.mrb[0].mxu0
    %3741 = vmatprep.mubr.f32.mxu0 0.0
    %v3742 = vand.u32 %v2824, 4294901760
    %v3743 = vsub.f32 %v2824, %v3742
    %3744 = vmatmul.mubr.f32.gmra.mrb[0].mxu0 %v3743
    %v3745 = vpop.f32.mrb[0].mxu0
    %v3746 = vadd.f32 %v3459, %v3745
    %v3747 = vpop.f32.mrb[0].mxu0
    %3748 = vmatprep.mubr.f32.mxu0 0.0
    %v3749 = vand.u32 %v2827, 4294901760
    %v3750 = vsub.f32 %v2827, %v3749
    %3751 = vmatmul.mubr.f32.gmra.mrb[0].mxu0 %v3750
    %v3752 = vpop.f32.mrb[0].mxu0
    %v3753 = vadd.f32 %v3465, %v3752
    %v3754 = vpop.f32.mrb[0].mxu0
    %3755 = vmatprep.mubr.f32.mxu0 0.0
    %v3756 = vand.u32 %v2830, 4294901760
    %v3757 = vsub.f32 %v2830, %v3756
    %3758 = vmatmul.mubr.f32.gmra.mrb[0].mxu0 %v3757
    %v3759 = vpop.f32.mrb[0].mxu0
    %v3760 = vadd.f32 %v3471, %v3759
    %v3761 = vpop.f32.mrb[0].mxu0
    %3762 = vmatprep.mubr.f32.mxu0 0.0
    %v3763 = vand.u32 %v2833, 4294901760
    %v3764 = vsub.f32 %v2833, %v3763
    %3765 = vmatmul.mubr.f32.gmra.mrb[0].mxu0 %v3764
    %v3766 = vpop.f32.mrb[0].mxu0
    %v3767 = vadd.f32 %v3477, %v3766
    %v3768 = vpop.f32.mrb[0].mxu0
    %3769 = vmatprep.mubr.f32.mxu0 0.0
    %v3770 = vand.u32 %v2836, 4294901760
    %v3771 = vsub.f32 %v2836, %v3770
    %3772 = vmatmul.mubr.f32.gmra.mrb[0].mxu0 %v3771
    %v3773 = vpop.f32.mrb[0].mxu0
    %v3774 = vadd.f32 %v3483, %v3773
    %v3775 = vpop.f32.mrb[0].mxu0
    %3776 = vmatprep.mubr.f32.mxu0 0.0
    %v3777 = vand.u32 %v2839, 4294901760
    %v3778 = vsub.f32 %v2839, %v3777
    %3779 = vmatmul.mubr.f32.gmra.mrb[0].mxu0 %v3778
    %v3780 = vpop.f32.mrb[0].mxu0
    %v3781 = vadd.f32 %v3489, %v3780
    %v3782 = vpop.f32.mrb[0].mxu0
    %3783 = vmatprep.mubr.f32.mxu0 0.0
    %v3784 = vand.u32 %v2842, 4294901760
    %v3785 = vsub.f32 %v2842, %v3784
    %3786 = vmatmul.mubr.f32.gmra.mrb[0].mxu0 %v3785
    %v3787 = vpop.f32.mrb[0].mxu0
    %v3788 = vadd.f32 %v3495, %v3787
    %v3789 = vpop.f32.mrb[0].mxu0
    %3790 = vdwg.mxu0
    %3791 = vmatprep.subr.mxu0 0.0
    %v3792 = vand.u32 %v2738, 4294901760
    %3793 = vmatpush1.msra.mxu0 %v3792
    %3794 = vmatprep.subr.mxu0 0.0
    %v3795 = vand.u32 %v2739, 4294901760
    %3796 = vmatpush1.msra.mxu0 %v3795
    %3797 = vmatprep.subr.mxu0 0.0
    %3798 = vmatpush1.msra.mxu0 0.0
    %3799 = vmatprep.subr.mxu0 0.0
    %3800 = vmatpush1.msra.mxu0 0.0
    %3801 = vmatprep.subr.mxu0 0.0
    %3802 = vmatpush1.msra.mxu0 0.0
    %3803 = vmatprep.subr.mxu0 0.0
    %3804 = vmatpush1.msra.mxu0 0.0
    %3805 = vmatprep.subr.mxu0 0.0
    %3806 = vmatpush1.msra.mxu0 0.0
    %3807 = vmatprep.subr.mxu0 0.0
    %3808 = vmatpush1.msra.mxu0 0.0
    %3809 = vmatprep.subr.mxu0 0.0
    %3810 = vmatpush1.msra.mxu0 0.0
    %3811 = vmatprep.subr.mxu0 0.0
    %3812 = vmatpush1.msra.mxu0 0.0
    %3813 = vmatprep.subr.mxu0 0.0
    %3814 = vmatpush1.msra.mxu0 0.0
    %3815 = vmatprep.subr.mxu0 0.0
    %3816 = vmatpush1.msra.mxu0 0.0
    %3817 = vmatprep.subr.mxu0 0.0
    %3818 = vmatpush1.msra.mxu0 0.0
    %3819 = vmatprep.subr.mxu0 0.0
    %3820 = vmatpush1.msra.mxu0 0.0
    %3821 = vmatprep.subr.mxu0 0.0
    %3822 = vmatpush1.msra.mxu0 0.0
    %3823 = vmatprep.subr.mxu0 0.0
    %3824 = vmatpush1.msra.mxu0 0.0
    %3825 = vmatprep.subr.mxu0 0.0
    %3826 = vmatpush1.msra.mxu0 0.0
    %3827 = vmatprep.subr.mxu0 0.0
    %3828 = vmatpush1.msra.mxu0 0.0
    %3829 = vmatprep.subr.mxu0 0.0
    %3830 = vmatpush1.msra.mxu0 0.0
    %3831 = vmatprep.subr.mxu0 0.0
    %3832 = vmatpush1.msra.mxu0 0.0
    %3833 = vmatprep.subr.mxu0 0.0
    %3834 = vmatpush1.msra.mxu0 0.0
    %3835 = vmatprep.subr.mxu0 0.0
    %3836 = vmatpush1.msra.mxu0 0.0
    %3837 = vmatprep.subr.mxu0 0.0
    %3838 = vmatpush1.msra.mxu0 0.0
    %3839 = vmatprep.subr.mxu0 0.0
    %3840 = vmatpush1.msra.mxu0 0.0
    %3841 = vmatprep.subr.mxu0 0.0
    %3842 = vmatpush1.msra.mxu0 0.0
    %3843 = vmatprep.subr.mxu0 0.0
    %3844 = vmatpush1.msra.mxu0 0.0
    %3845 = vmatprep.subr.mxu0 0.0
    %3846 = vmatpush1.msra.mxu0 0.0
    %3847 = vmatprep.subr.mxu0 0.0
    %3848 = vmatpush1.msra.mxu0 0.0
    %3849 = vmatprep.subr.mxu0 0.0
    %3850 = vmatpush1.msra.mxu0 0.0
    %3851 = vmatprep.subr.mxu0 0.0
    %3852 = vmatpush1.msra.mxu0 0.0
    %3853 = vmatprep.subr.mxu0 0.0
    %3854 = vmatpush1.msra.mxu0 0.0
    %3855 = vmatprep.subr.mxu0 0.0
    %3856 = vmatpush1.msra.mxu0 0.0
    %3857 = vmatprep.mubr.f32.mxu0 0.0
    %v3858 = vand.u32 %v2749, 4294901760
    %v3859 = vsub.f32 %v2749, %v3858
    %v3860 = vand.u32 %v3859, 4294901760
    %3861 = vmatmul.mubr.f32.gmra.mrb[0].mxu0 %v3860
    %v3862 = vpop.f32.mrb[0].mxu0
    %v3863 = vadd.f32 %v3571, %v3862
    %v3864 = vpop.f32.mrb[0].mxu0
    %3865 = vmatprep.mubr.f32.mxu0 0.0
    %v3866 = vand.u32 %v2752, 4294901760
    %v3867 = vsub.f32 %v2752, %v3866
    %v3868 = vand.u32 %v3867, 4294901760
    %3869 = vmatmul.mubr.f32.gmra.mrb[0].mxu0 %v3868
    %v3870 = vpop.f32.mrb[0].mxu0
    %v3871 = vadd.f32 %v3578, %v3870
    %v3872 = vpop.f32.mrb[0].mxu0
    %3873 = vmatprep.mubr.f32.mxu0 0.0
    %v3874 = vand.u32 %v2755, 4294901760
    %v3875 = vsub.f32 %v2755, %v3874
    %v3876 = vand.u32 %v3875, 4294901760
    %3877 = vmatmul.mubr.f32.gmra.mrb[0].mxu0 %v3876
    %v3878 = vpop.f32.mrb[0].mxu0
    %v3879 = vadd.f32 %v3585, %v3878
    %v3880 = vpop.f32.mrb[0].mxu0
    %3881 = vmatprep.mubr.f32.mxu0 0.0
    %v3882 = vand.u32 %v2758, 4294901760
    %v3883 = vsub.f32 %v2758, %v3882
    %v3884 = vand.u32 %v3883, 4294901760
    %3885 = vmatmul.mubr.f32.gmra.mrb[0].mxu0 %v3884
    %v3886 = vpop.f32.mrb[0].mxu0
    %v3887 = vadd.f32 %v3592, %v3886
    %v3888 = vpop.f32.mrb[0].mxu0
    %3889 = vmatprep.mubr.f32.mxu0 0.0
    %v3890 = vand.u32 %v2761, 4294901760
    %v3891 = vsub.f32 %v2761, %v3890
    %v3892 = vand.u32 %v3891, 4294901760
    %3893 = vmatmul.mubr.f32.gmra.mrb[0].mxu0 %v3892
    %v3894 = vpop.f32.mrb[0].mxu0
    %v3895 = vadd.f32 %v3599, %v3894
    %v3896 = vpop.f32.mrb[0].mxu0
    %3897 = vmatprep.mubr.f32.mxu0 0.0
    %v3898 = vand.u32 %v2764, 4294901760
    %v3899 = vsub.f32 %v2764, %v3898
    %v3900 = vand.u32 %v3899, 4294901760
    %3901 = vmatmul.mubr.f32.gmra.mrb[0].mxu0 %v3900
    %v3902 = vpop.f32.mrb[0].mxu0
    %v3903 = vadd.f32 %v3606, %v3902
    %v3904 = vpop.f32.mrb[0].mxu0
    %3905 = vmatprep.mubr.f32.mxu0 0.0
    %v3906 = vand.u32 %v2767, 4294901760
    %v3907 = vsub.f32 %v2767, %v3906
    %v3908 = vand.u32 %v3907, 4294901760
    %3909 = vmatmul.mubr.f32.gmra.mrb[0].mxu0 %v3908
    %v3910 = vpop.f32.mrb[0].mxu0
    %v3911 = vadd.f32 %v3613, %v3910
    %v3912 = vpop.f32.mrb[0].mxu0
    %3913 = vmatprep.mubr.f32.mxu0 0.0
    %v3914 = vand.u32 %v2770, 4294901760
    %v3915 = vsub.f32 %v2770, %v3914
    %v3916 = vand.u32 %v3915, 4294901760
    %3917 = vmatmul.mubr.f32.gmra.mrb[0].mxu0 %v3916
    %v3918 = vpop.f32.mrb[0].mxu0
    %v3919 = vadd.f32 %v3620, %v3918
    %v3920 = vpop.f32.mrb[0].mxu0
    %3921 = vmatprep.mubr.f32.mxu0 0.0
    %v3922 = vand.u32 %v2773, 4294901760
    %v3923 = vsub.f32 %v2773, %v3922
    %v3924 = vand.u32 %v3923, 4294901760
    %3925 = vmatmul.mubr.f32.gmra.mrb[0].mxu0 %v3924
    %v3926 = vpop.f32.mrb[0].mxu0
    %v3927 = vadd.f32 %v3627, %v3926
    %v3928 = vpop.f32.mrb[0].mxu0
    %3929 = vmatprep.mubr.f32.mxu0 0.0
    %v3930 = vand.u32 %v2776, 4294901760
    %v3931 = vsub.f32 %v2776, %v3930
    %v3932 = vand.u32 %v3931, 4294901760
    %3933 = vmatmul.mubr.f32.gmra.mrb[0].mxu0 %v3932
    %v3934 = vpop.f32.mrb[0].mxu0
    %v3935 = vadd.f32 %v3634, %v3934
    %v3936 = vpop.f32.mrb[0].mxu0
    %3937 = vmatprep.mubr.f32.mxu0 0.0
    %v3938 = vand.u32 %v2779, 4294901760
    %v3939 = vsub.f32 %v2779, %v3938
    %v3940 = vand.u32 %v3939, 4294901760
    %3941 = vmatmul.mubr.f32.gmra.mrb[0].mxu0 %v3940
    %v3942 = vpop.f32.mrb[0].mxu0
    %v3943 = vadd.f32 %v3641, %v3942
    %v3944 = vpop.f32.mrb[0].mxu0
    %3945 = vmatprep.mubr.f32.mxu0 0.0
    %v3946 = vand.u32 %v2782, 4294901760
    %v3947 = vsub.f32 %v2782, %v3946
    %v3948 = vand.u32 %v3947, 4294901760
    %3949 = vmatmul.mubr.f32.gmra.mrb[0].mxu0 %v3948
    %v3950 = vpop.f32.mrb[0].mxu0
    %v3951 = vadd.f32 %v3648, %v3950
    %v3952 = vpop.f32.mrb[0].mxu0
    %3953 = vmatprep.mubr.f32.mxu0 0.0
    %v3954 = vand.u32 %v2785, 4294901760
    %v3955 = vsub.f32 %v2785, %v3954
    %v3956 = vand.u32 %v3955, 4294901760
    %3957 = vmatmul.mubr.f32.gmra.mrb[0].mxu0 %v3956
    %v3958 = vpop.f32.mrb[0].mxu0
    %v3959 = vadd.f32 %v3655, %v3958
    %v3960 = vpop.f32.mrb[0].mxu0
    %3961 = vmatprep.mubr.f32.mxu0 0.0
    %v3962 = vand.u32 %v2788, 4294901760
    %v3963 = vsub.f32 %v2788, %v3962
    %v3964 = vand.u32 %v3963, 4294901760
    %3965 = vmatmul.mubr.f32.gmra.mrb[0].mxu0 %v3964
    %v3966 = vpop.f32.mrb[0].mxu0
    %v3967 = vadd.f32 %v3662, %v3966
    %v3968 = vpop.f32.mrb[0].mxu0
    %3969 = vmatprep.mubr.f32.mxu0 0.0
    %v3970 = vand.u32 %v2791, 4294901760
    %v3971 = vsub.f32 %v2791, %v3970
    %v3972 = vand.u32 %v3971, 4294901760
    %3973 = vmatmul.mubr.f32.gmra.mrb[0].mxu0 %v3972
    %v3974 = vpop.f32.mrb[0].mxu0
    %v3975 = vadd.f32 %v3669, %v3974
    %v3976 = vpop.f32.mrb[0].mxu0
    %3977 = vmatprep.mubr.f32.mxu0 0.0
    %v3978 = vand.u32 %v2794, 4294901760
    %v3979 = vsub.f32 %v2794, %v3978
    %v3980 = vand.u32 %v3979, 4294901760
    %3981 = vmatmul.mubr.f32.gmra.mrb[0].mxu0 %v3980
    %v3982 = vpop.f32.mrb[0].mxu0
    %v3983 = vadd.f32 %v3676, %v3982
    %v3984 = vpop.f32.mrb[0].mxu0
    %3985 = vmatprep.mubr.f32.mxu0 0.0
    %v3986 = vand.u32 %v2797, 4294901760
    %v3987 = vsub.f32 %v2797, %v3986
    %v3988 = vand.u32 %v3987, 4294901760
    %3989 = vmatmul.mubr.f32.gmra.mrb[0].mxu0 %v3988
    %v3990 = vpop.f32.mrb[0].mxu0
    %v3991 = vadd.f32 %v3683, %v3990
    %v3992 = vpop.f32.mrb[0].mxu0
    %3993 = vmatprep.mubr.f32.mxu0 0.0
    %v3994 = vand.u32 %v2800, 4294901760
    %v3995 = vsub.f32 %v2800, %v3994
    %v3996 = vand.u32 %v3995, 4294901760
    %3997 = vmatmul.mubr.f32.gmra.mrb[0].mxu0 %v3996
    %v3998 = vpop.f32.mrb[0].mxu0
    %v3999 = vadd.f32 %v3690, %v3998
    %v4000 = vpop.f32.mrb[0].mxu0
    %4001 = vmatprep.mubr.f32.mxu0 0.0
    %v4002 = vand.u32 %v2803, 4294901760
    %v4003 = vsub.f32 %v2803, %v4002
    %v4004 = vand.u32 %v4003, 4294901760
    %4005 = vmatmul.mubr.f32.gmra.mrb[0].mxu0 %v4004
    %v4006 = vpop.f32.mrb[0].mxu0
    %v4007 = vadd.f32 %v3697, %v4006
    %v4008 = vpop.f32.mrb[0].mxu0
    %4009 = vmatprep.mubr.f32.mxu0 0.0
    %v4010 = vand.u32 %v2806, 4294901760
    %v4011 = vsub.f32 %v2806, %v4010
    %v4012 = vand.u32 %v4011, 4294901760
    %4013 = vmatmul.mubr.f32.gmra.mrb[0].mxu0 %v4012
    %v4014 = vpop.f32.mrb[0].mxu0
    %v4015 = vadd.f32 %v3704, %v4014
    %v4016 = vpop.f32.mrb[0].mxu0
    %4017 = vmatprep.mubr.f32.mxu0 0.0
    %v4018 = vand.u32 %v2809, 4294901760
    %v4019 = vsub.f32 %v2809, %v4018
    %v4020 = vand.u32 %v4019, 4294901760
    %4021 = vmatmul.mubr.f32.gmra.mrb[0].mxu0 %v4020
    %v4022 = vpop.f32.mrb[0].mxu0
    %v4023 = vadd.f32 %v3711, %v4022
    %v4024 = vpop.f32.mrb[0].mxu0
    %4025 = vmatprep.mubr.f32.mxu0 0.0
    %v4026 = vand.u32 %v2812, 4294901760
    %v4027 = vsub.f32 %v2812, %v4026
    %v4028 = vand.u32 %v4027, 4294901760
    %4029 = vmatmul.mubr.f32.gmra.mrb[0].mxu0 %v4028
    %v4030 = vpop.f32.mrb[0].mxu0
    %v4031 = vadd.f32 %v3718, %v4030
    %v4032 = vpop.f32.mrb[0].mxu0
    %4033 = vmatprep.mubr.f32.mxu0 0.0
    %v4034 = vand.u32 %v2815, 4294901760
    %v4035 = vsub.f32 %v2815, %v4034
    %v4036 = vand.u32 %v4035, 4294901760
    %4037 = vmatmul.mubr.f32.gmra.mrb[0].mxu0 %v4036
    %v4038 = vpop.f32.mrb[0].mxu0
    %v4039 = vadd.f32 %v3725, %v4038
    %v4040 = vpop.f32.mrb[0].mxu0
    %4041 = vmatprep.mubr.f32.mxu0 0.0
    %v4042 = vand.u32 %v2818, 4294901760
    %v4043 = vsub.f32 %v2818, %v4042
    %v4044 = vand.u32 %v4043, 4294901760
    %4045 = vmatmul.mubr.f32.gmra.mrb[0].mxu0 %v4044
    %v4046 = vpop.f32.mrb[0].mxu0
    %v4047 = vadd.f32 %v3732, %v4046
    %v4048 = vpop.f32.mrb[0].mxu0
    %4049 = vmatprep.mubr.f32.mxu0 0.0
    %v4050 = vand.u32 %v2821, 4294901760
    %v4051 = vsub.f32 %v2821, %v4050
    %v4052 = vand.u32 %v4051, 4294901760
    %4053 = vmatmul.mubr.f32.gmra.mrb[0].mxu0 %v4052
    %v4054 = vpop.f32.mrb[0].mxu0
    %v4055 = vadd.f32 %v3739, %v4054
    %v4056 = vpop.f32.mrb[0].mxu0
    %4057 = vmatprep.mubr.f32.mxu0 0.0
    %v4058 = vand.u32 %v2824, 4294901760
    %v4059 = vsub.f32 %v2824, %v4058
    %v4060 = vand.u32 %v4059, 4294901760
    %4061 = vmatmul.mubr.f32.gmra.mrb[0].mxu0 %v4060
    %v4062 = vpop.f32.mrb[0].mxu0
    %v4063 = vadd.f32 %v3746, %v4062
    %v4064 = vpop.f32.mrb[0].mxu0
    %4065 = vmatprep.mubr.f32.mxu0 0.0
    %v4066 = vand.u32 %v2827, 4294901760
    %v4067 = vsub.f32 %v2827, %v4066
    %v4068 = vand.u32 %v4067, 4294901760
    %4069 = vmatmul.mubr.f32.gmra.mrb[0].mxu0 %v4068
    %v4070 = vpop.f32.mrb[0].mxu0
    %v4071 = vadd.f32 %v3753, %v4070
    %v4072 = vpop.f32.mrb[0].mxu0
    %4073 = vmatprep.mubr.f32.mxu0 0.0
    %v4074 = vand.u32 %v2830, 4294901760
    %v4075 = vsub.f32 %v2830, %v4074
    %v4076 = vand.u32 %v4075, 4294901760
    %4077 = vmatmul.mubr.f32.gmra.mrb[0].mxu0 %v4076
    %v4078 = vpop.f32.mrb[0].mxu0
    %v4079 = vadd.f32 %v3760, %v4078
    %v4080 = vpop.f32.mrb[0].mxu0
    %4081 = vmatprep.mubr.f32.mxu0 0.0
    %v4082 = vand.u32 %v2833, 4294901760
    %v4083 = vsub.f32 %v2833, %v4082
    %v4084 = vand.u32 %v4083, 4294901760
    %4085 = vmatmul.mubr.f32.gmra.mrb[0].mxu0 %v4084
    %v4086 = vpop.f32.mrb[0].mxu0
    %v4087 = vadd.f32 %v3767, %v4086
    %v4088 = vpop.f32.mrb[0].mxu0
    %4089 = vmatprep.mubr.f32.mxu0 0.0
    %v4090 = vand.u32 %v2836, 4294901760
    %v4091 = vsub.f32 %v2836, %v4090
    %v4092 = vand.u32 %v4091, 4294901760
    %4093 = vmatmul.mubr.f32.gmra.mrb[0].mxu0 %v4092
    %v4094 = vpop.f32.mrb[0].mxu0
    %v4095 = vadd.f32 %v3774, %v4094
    %v4096 = vpop.f32.mrb[0].mxu0
    %4097 = vmatprep.mubr.f32.mxu0 0.0
    %v4098 = vand.u32 %v2839, 4294901760
    %v4099 = vsub.f32 %v2839, %v4098
    %v4100 = vand.u32 %v4099, 4294901760
    %4101 = vmatmul.mubr.f32.gmra.mrb[0].mxu0 %v4100
    %v4102 = vpop.f32.mrb[0].mxu0
    %v4103 = vadd.f32 %v3781, %v4102
    %v4104 = vpop.f32.mrb[0].mxu0
    %4105 = vmatprep.mubr.f32.mxu0 0.0
    %v4106 = vand.u32 %v2842, 4294901760
    %v4107 = vsub.f32 %v2842, %v4106
    %v4108 = vand.u32 %v4107, 4294901760
    %4109 = vmatmul.mubr.f32.gmra.mrb[0].mxu0 %v4108
    %v4110 = vpop.f32.mrb[0].mxu0
    %v4111 = vadd.f32 %v3788, %v4110
    %v4112 = vpop.f32.mrb[0].mxu0
    %4113 = vdwg.mxu0
    %4114 = vmatprep.subr.mxu0 0.0
    %v4115 = vand.u32 %v2738, 4294901760
    %v4116 = vsub.f32 %v2738, %v4115
    %v4117 = vand.u32 %v4116, 4294901760
    %4118 = vmatpush1.msra.mxu0 %v4117
    %4119 = vmatprep.subr.mxu0 0.0
    %v4120 = vand.u32 %v2739, 4294901760
    %v4121 = vsub.f32 %v2739, %v4120
    %v4122 = vand.u32 %v4121, 4294901760
    %4123 = vmatpush1.msra.mxu0 %v4122
    %4124 = vmatprep.subr.mxu0 0.0
    %4125 = vmatpush1.msra.mxu0 0.0
    %4126 = vmatprep.subr.mxu0 0.0
    %4127 = vmatpush1.msra.mxu0 0.0
    %4128 = vmatprep.subr.mxu0 0.0
    %4129 = vmatpush1.msra.mxu0 0.0
    %4130 = vmatprep.subr.mxu0 0.0
    %4131 = vmatpush1.msra.mxu0 0.0
    %4132 = vmatprep.subr.mxu0 0.0
    %4133 = vmatpush1.msra.mxu0 0.0
    %4134 = vmatprep.subr.mxu0 0.0
    %4135 = vmatpush1.msra.mxu0 0.0
    %4136 = vmatprep.subr.mxu0 0.0
    %4137 = vmatpush1.msra.mxu0 0.0
    %4138 = vmatprep.subr.mxu0 0.0
    %4139 = vmatpush1.msra.mxu0 0.0
    %4140 = vmatprep.subr.mxu0 0.0
    %4141 = vmatpush1.msra.mxu0 0.0
    %4142 = vmatprep.subr.mxu0 0.0
    %4143 = vmatpush1.msra.mxu0 0.0
    %4144 = vmatprep.subr.mxu0 0.0
    %4145 = vmatpush1.msra.mxu0 0.0
    %4146 = vmatprep.subr.mxu0 0.0
    %4147 = vmatpush1.msra.mxu0 0.0
    %4148 = vmatprep.subr.mxu0 0.0
    %4149 = vmatpush1.msra.mxu0 0.0
    %4150 = vmatprep.subr.mxu0 0.0
    %4151 = vmatpush1.msra.mxu0 0.0
    %4152 = vmatprep.subr.mxu0 0.0
    %4153 = vmatpush1.msra.mxu0 0.0
    %4154 = vmatprep.subr.mxu0 0.0
    %4155 = vmatpush1.msra.mxu0 0.0
    %4156 = vmatprep.subr.mxu0 0.0
    %4157 = vmatpush1.msra.mxu0 0.0
    %4158 = vmatprep.subr.mxu0 0.0
    %4159 = vmatpush1.msra.mxu0 0.0
    %4160 = vmatprep.subr.mxu0 0.0
    %4161 = vmatpush1.msra.mxu0 0.0
    %4162 = vmatprep.subr.mxu0 0.0
    %4163 = vmatpush1.msra.mxu0 0.0
    %4164 = vmatprep.subr.mxu0 0.0
    %4165 = vmatpush1.msra.mxu0 0.0
    %4166 = vmatprep.subr.mxu0 0.0
    %4167 = vmatpush1.msra.mxu0 0.0
    %4168 = vmatprep.subr.mxu0 0.0
    %4169 = vmatpush1.msra.mxu0 0.0
    %4170 = vmatprep.subr.mxu0 0.0
    %4171 = vmatpush1.msra.mxu0 0.0
    %4172 = vmatprep.subr.mxu0 0.0
    %4173 = vmatpush1.msra.mxu0 0.0
    %4174 = vmatprep.subr.mxu0 0.0
    %4175 = vmatpush1.msra.mxu0 0.0
    %4176 = vmatprep.subr.mxu0 0.0
    %4177 = vmatpush1.msra.mxu0 0.0
    %4178 = vmatprep.subr.mxu0 0.0
    %4179 = vmatpush1.msra.mxu0 0.0
    %4180 = vmatprep.subr.mxu0 0.0
    %4181 = vmatpush1.msra.mxu0 0.0
    %4182 = vmatprep.subr.mxu0 0.0
    %4183 = vmatpush1.msra.mxu0 0.0
    %4184 = vmatprep.mubr.f32.mxu0 0.0
    %v4185 = vand.u32 %v2749, 4294901760
    %4186 = vmatmul.mubr.f32.gmra.mrb[0].mxu0 %v4185
    %v4187 = vpop.f32.mrb[0].mxu0
    %v4188 = vadd.f32 %v3863, %v4187
    %v4189 = vpop.f32.mrb[0].mxu0
    %4190 = vmatprep.mubr.f32.mxu0 0.0
    %v4191 = vand.u32 %v2752, 4294901760
    %4192 = vmatmul.mubr.f32.gmra.mrb[0].mxu0 %v4191
    %v4193 = vpop.f32.mrb[0].mxu0
    %v4194 = vadd.f32 %v3871, %v4193
    %v4195 = vpop.f32.mrb[0].mxu0
    %4196 = vmatprep.mubr.f32.mxu0 0.0
    %v4197 = vand.u32 %v2755, 4294901760
    %4198 = vmatmul.mubr.f32.gmra.mrb[0].mxu0 %v4197
    %v4199 = vpop.f32.mrb[0].mxu0
    %v4200 = vadd.f32 %v3879, %v4199
    %v4201 = vpop.f32.mrb[0].mxu0
    %4202 = vmatprep.mubr.f32.mxu0 0.0
    %v4203 = vand.u32 %v2758, 4294901760
    %4204 = vmatmul.mubr.f32.gmra.mrb[0].mxu0 %v4203
    %v4205 = vpop.f32.mrb[0].mxu0
    %v4206 = vadd.f32 %v3887, %v4205
    %v4207 = vpop.f32.mrb[0].mxu0
    %4208 = vmatprep.mubr.f32.mxu0 0.0
    %v4209 = vand.u32 %v2761, 4294901760
    %4210 = vmatmul.mubr.f32.gmra.mrb[0].mxu0 %v4209
    %v4211 = vpop.f32.mrb[0].mxu0
    %v4212 = vadd.f32 %v3895, %v4211
    %v4213 = vpop.f32.mrb[0].mxu0
    %4214 = vmatprep.mubr.f32.mxu0 0.0
    %v4215 = vand.u32 %v2764, 4294901760
    %4216 = vmatmul.mubr.f32.gmra.mrb[0].mxu0 %v4215
    %v4217 = vpop.f32.mrb[0].mxu0
    %v4218 = vadd.f32 %v3903, %v4217
    %v4219 = vpop.f32.mrb[0].mxu0
    %4220 = vmatprep.mubr.f32.mxu0 0.0
    %v4221 = vand.u32 %v2767, 4294901760
    %4222 = vmatmul.mubr.f32.gmra.mrb[0].mxu0 %v4221
    %v4223 = vpop.f32.mrb[0].mxu0
    %v4224 = vadd.f32 %v3911, %v4223
    %v4225 = vpop.f32.mrb[0].mxu0
    %4226 = vmatprep.mubr.f32.mxu0 0.0
    %v4227 = vand.u32 %v2770, 4294901760
    %4228 = vmatmul.mubr.f32.gmra.mrb[0].mxu0 %v4227
    %v4229 = vpop.f32.mrb[0].mxu0
    %v4230 = vadd.f32 %v3919, %v4229
    %v4231 = vpop.f32.mrb[0].mxu0
    %4232 = vmatprep.mubr.f32.mxu0 0.0
    %v4233 = vand.u32 %v2773, 4294901760
    %4234 = vmatmul.mubr.f32.gmra.mrb[0].mxu0 %v4233
    %v4235 = vpop.f32.mrb[0].mxu0
    %v4236 = vadd.f32 %v3927, %v4235
    %v4237 = vpop.f32.mrb[0].mxu0
    %4238 = vmatprep.mubr.f32.mxu0 0.0
    %v4239 = vand.u32 %v2776, 4294901760
    %4240 = vmatmul.mubr.f32.gmra.mrb[0].mxu0 %v4239
    %v4241 = vpop.f32.mrb[0].mxu0
    %v4242 = vadd.f32 %v3935, %v4241
    %v4243 = vpop.f32.mrb[0].mxu0
    %4244 = vmatprep.mubr.f32.mxu0 0.0
    %v4245 = vand.u32 %v2779, 4294901760
    %4246 = vmatmul.mubr.f32.gmra.mrb[0].mxu0 %v4245
    %v4247 = vpop.f32.mrb[0].mxu0
    %v4248 = vadd.f32 %v3943, %v4247
    %v4249 = vpop.f32.mrb[0].mxu0
    %4250 = vmatprep.mubr.f32.mxu0 0.0
    %v4251 = vand.u32 %v2782, 4294901760
    %4252 = vmatmul.mubr.f32.gmra.mrb[0].mxu0 %v4251
    %v4253 = vpop.f32.mrb[0].mxu0
    %v4254 = vadd.f32 %v3951, %v4253
    %v4255 = vpop.f32.mrb[0].mxu0
    %4256 = vmatprep.mubr.f32.mxu0 0.0
    %v4257 = vand.u32 %v2785, 4294901760
    %4258 = vmatmul.mubr.f32.gmra.mrb[0].mxu0 %v4257
    %v4259 = vpop.f32.mrb[0].mxu0
    %v4260 = vadd.f32 %v3959, %v4259
    %v4261 = vpop.f32.mrb[0].mxu0
    %4262 = vmatprep.mubr.f32.mxu0 0.0
    %v4263 = vand.u32 %v2788, 4294901760
    %4264 = vmatmul.mubr.f32.gmra.mrb[0].mxu0 %v4263
    %v4265 = vpop.f32.mrb[0].mxu0
    %v4266 = vadd.f32 %v3967, %v4265
    %v4267 = vpop.f32.mrb[0].mxu0
    %4268 = vmatprep.mubr.f32.mxu0 0.0
    %v4269 = vand.u32 %v2791, 4294901760
    %4270 = vmatmul.mubr.f32.gmra.mrb[0].mxu0 %v4269
    %v4271 = vpop.f32.mrb[0].mxu0
    %v4272 = vadd.f32 %v3975, %v4271
    %v4273 = vpop.f32.mrb[0].mxu0
    %4274 = vmatprep.mubr.f32.mxu0 0.0
    %v4275 = vand.u32 %v2794, 4294901760
    %4276 = vmatmul.mubr.f32.gmra.mrb[0].mxu0 %v4275
    %v4277 = vpop.f32.mrb[0].mxu0
    %v4278 = vadd.f32 %v3983, %v4277
    %v4279 = vpop.f32.mrb[0].mxu0
    %4280 = vmatprep.mubr.f32.mxu0 0.0
    %v4281 = vand.u32 %v2797, 4294901760
    %4282 = vmatmul.mubr.f32.gmra.mrb[0].mxu0 %v4281
    %v4283 = vpop.f32.mrb[0].mxu0
    %v4284 = vadd.f32 %v3991, %v4283
    %v4285 = vpop.f32.mrb[0].mxu0
    %4286 = vmatprep.mubr.f32.mxu0 0.0
    %v4287 = vand.u32 %v2800, 4294901760
    %4288 = vmatmul.mubr.f32.gmra.mrb[0].mxu0 %v4287
    %v4289 = vpop.f32.mrb[0].mxu0
    %v4290 = vadd.f32 %v3999, %v4289
    %v4291 = vpop.f32.mrb[0].mxu0
    %4292 = vmatprep.mubr.f32.mxu0 0.0
    %v4293 = vand.u32 %v2803, 4294901760
    %4294 = vmatmul.mubr.f32.gmra.mrb[0].mxu0 %v4293
    %v4295 = vpop.f32.mrb[0].mxu0
    %v4296 = vadd.f32 %v4007, %v4295
    %v4297 = vpop.f32.mrb[0].mxu0
    %4298 = vmatprep.mubr.f32.mxu0 0.0
    %v4299 = vand.u32 %v2806, 4294901760
    %4300 = vmatmul.mubr.f32.gmra.mrb[0].mxu0 %v4299
    %v4301 = vpop.f32.mrb[0].mxu0
    %v4302 = vadd.f32 %v4015, %v4301
    %v4303 = vpop.f32.mrb[0].mxu0
    %4304 = vmatprep.mubr.f32.mxu0 0.0
    %v4305 = vand.u32 %v2809, 4294901760
    %4306 = vmatmul.mubr.f32.gmra.mrb[0].mxu0 %v4305
    %v4307 = vpop.f32.mrb[0].mxu0
    %v4308 = vadd.f32 %v4023, %v4307
    %v4309 = vpop.f32.mrb[0].mxu0
    %4310 = vmatprep.mubr.f32.mxu0 0.0
    %v4311 = vand.u32 %v2812, 4294901760
    %4312 = vmatmul.mubr.f32.gmra.mrb[0].mxu0 %v4311
    %v4313 = vpop.f32.mrb[0].mxu0
    %v4314 = vadd.f32 %v4031, %v4313
    %v4315 = vpop.f32.mrb[0].mxu0
    %4316 = vmatprep.mubr.f32.mxu0 0.0
    %v4317 = vand.u32 %v2815, 4294901760
    %4318 = vmatmul.mubr.f32.gmra.mrb[0].mxu0 %v4317
    %v4319 = vpop.f32.mrb[0].mxu0
    %v4320 = vadd.f32 %v4039, %v4319
    %v4321 = vpop.f32.mrb[0].mxu0
    %4322 = vmatprep.mubr.f32.mxu0 0.0
    %v4323 = vand.u32 %v2818, 4294901760
    %4324 = vmatmul.mubr.f32.gmra.mrb[0].mxu0 %v4323
    %v4325 = vpop.f32.mrb[0].mxu0
    %v4326 = vadd.f32 %v4047, %v4325
    %v4327 = vpop.f32.mrb[0].mxu0
    %4328 = vmatprep.mubr.f32.mxu0 0.0
    %v4329 = vand.u32 %v2821, 4294901760
    %4330 = vmatmul.mubr.f32.gmra.mrb[0].mxu0 %v4329
    %v4331 = vpop.f32.mrb[0].mxu0
    %v4332 = vadd.f32 %v4055, %v4331
    %v4333 = vpop.f32.mrb[0].mxu0
    %4334 = vmatprep.mubr.f32.mxu0 0.0
    %v4335 = vand.u32 %v2824, 4294901760
    %4336 = vmatmul.mubr.f32.gmra.mrb[0].mxu0 %v4335
    %v4337 = vpop.f32.mrb[0].mxu0
    %v4338 = vadd.f32 %v4063, %v4337
    %v4339 = vpop.f32.mrb[0].mxu0
    %4340 = vmatprep.mubr.f32.mxu0 0.0
    %v4341 = vand.u32 %v2827, 4294901760
    %4342 = vmatmul.mubr.f32.gmra.mrb[0].mxu0 %v4341
    %v4343 = vpop.f32.mrb[0].mxu0
    %v4344 = vadd.f32 %v4071, %v4343
    %v4345 = vpop.f32.mrb[0].mxu0
    %4346 = vmatprep.mubr.f32.mxu0 0.0
    %v4347 = vand.u32 %v2830, 4294901760
    %4348 = vmatmul.mubr.f32.gmra.mrb[0].mxu0 %v4347
    %v4349 = vpop.f32.mrb[0].mxu0
    %v4350 = vadd.f32 %v4079, %v4349
    %v4351 = vpop.f32.mrb[0].mxu0
    %4352 = vmatprep.mubr.f32.mxu0 0.0
    %v4353 = vand.u32 %v2833, 4294901760
    %4354 = vmatmul.mubr.f32.gmra.mrb[0].mxu0 %v4353
    %v4355 = vpop.f32.mrb[0].mxu0
    %v4356 = vadd.f32 %v4087, %v4355
    %v4357 = vpop.f32.mrb[0].mxu0
    %4358 = vmatprep.mubr.f32.mxu0 0.0
    %v4359 = vand.u32 %v2836, 4294901760
    %4360 = vmatmul.mubr.f32.gmra.mrb[0].mxu0 %v4359
    %v4361 = vpop.f32.mrb[0].mxu0
    %v4362 = vadd.f32 %v4095, %v4361
    %v4363 = vpop.f32.mrb[0].mxu0
    %4364 = vmatprep.mubr.f32.mxu0 0.0
    %v4365 = vand.u32 %v2839, 4294901760
    %4366 = vmatmul.mubr.f32.gmra.mrb[0].mxu0 %v4365
    %v4367 = vpop.f32.mrb[0].mxu0
    %v4368 = vadd.f32 %v4103, %v4367
    %v4369 = vpop.f32.mrb[0].mxu0
    %4370 = vmatprep.mubr.f32.mxu0 0.0
    %v4371 = vand.u32 %v2842, 4294901760
    %4372 = vmatmul.mubr.f32.gmra.mrb[0].mxu0 %v4371
    %v4373 = vpop.f32.mrb[0].mxu0
    %v4374 = vadd.f32 %v4111, %v4373
    %v4375 = vpop.f32.mrb[0].mxu0
    %4376 = vdwg.mxu0
    %4377 = vmatprep.subr.mxu0 0.0
    %v4378 = vand.u32 %v2738, 4294901760
    %4379 = vmatpush1.msra.mxu0 %v4378
    %4380 = vmatprep.subr.mxu0 0.0
    %v4381 = vand.u32 %v2739, 4294901760
    %4382 = vmatpush1.msra.mxu0 %v4381
    %4383 = vmatprep.subr.mxu0 0.0
    %4384 = vmatpush1.msra.mxu0 0.0
    %4385 = vmatprep.subr.mxu0 0.0
    %4386 = vmatpush1.msra.mxu0 0.0
    %4387 = vmatprep.subr.mxu0 0.0
    %4388 = vmatpush1.msra.mxu0 0.0
    %4389 = vmatprep.subr.mxu0 0.0
    %4390 = vmatpush1.msra.mxu0 0.0
    %4391 = vmatprep.subr.mxu0 0.0
    %4392 = vmatpush1.msra.mxu0 0.0
    %4393 = vmatprep.subr.mxu0 0.0
    %4394 = vmatpush1.msra.mxu0 0.0
    %4395 = vmatprep.subr.mxu0 0.0
    %4396 = vmatpush1.msra.mxu0 0.0
    %4397 = vmatprep.subr.mxu0 0.0
    %4398 = vmatpush1.msra.mxu0 0.0
    %4399 = vmatprep.subr.mxu0 0.0
    %4400 = vmatpush1.msra.mxu0 0.0
    %4401 = vmatprep.subr.mxu0 0.0
    %4402 = vmatpush1.msra.mxu0 0.0
    %4403 = vmatprep.subr.mxu0 0.0
    %4404 = vmatpush1.msra.mxu0 0.0
    %4405 = vmatprep.subr.mxu0 0.0
    %4406 = vmatpush1.msra.mxu0 0.0
    %4407 = vmatprep.subr.mxu0 0.0
    %4408 = vmatpush1.msra.mxu0 0.0
    %4409 = vmatprep.subr.mxu0 0.0
    %4410 = vmatpush1.msra.mxu0 0.0
    %4411 = vmatprep.subr.mxu0 0.0
    %4412 = vmatpush1.msra.mxu0 0.0
    %4413 = vmatprep.subr.mxu0 0.0
    %4414 = vmatpush1.msra.mxu0 0.0
    %4415 = vmatprep.subr.mxu0 0.0
    %4416 = vmatpush1.msra.mxu0 0.0
    %4417 = vmatprep.subr.mxu0 0.0
    %4418 = vmatpush1.msra.mxu0 0.0
    %4419 = vmatprep.subr.mxu0 0.0
    %4420 = vmatpush1.msra.mxu0 0.0
    %4421 = vmatprep.subr.mxu0 0.0
    %4422 = vmatpush1.msra.mxu0 0.0
    %4423 = vmatprep.subr.mxu0 0.0
    %4424 = vmatpush1.msra.mxu0 0.0
    %4425 = vmatprep.subr.mxu0 0.0
    %4426 = vmatpush1.msra.mxu0 0.0
    %4427 = vmatprep.subr.mxu0 0.0
    %4428 = vmatpush1.msra.mxu0 0.0
    %4429 = vmatprep.subr.mxu0 0.0
    %4430 = vmatpush1.msra.mxu0 0.0
    %4431 = vmatprep.subr.mxu0 0.0
    %4432 = vmatpush1.msra.mxu0 0.0
    %4433 = vmatprep.subr.mxu0 0.0
    %4434 = vmatpush1.msra.mxu0 0.0
    %4435 = vmatprep.subr.mxu0 0.0
    %4436 = vmatpush1.msra.mxu0 0.0
    %4437 = vmatprep.subr.mxu0 0.0
    %4438 = vmatpush1.msra.mxu0 0.0
    %4439 = vmatprep.subr.mxu0 0.0
    %4440 = vmatpush1.msra.mxu0 0.0
    %4441 = vmatprep.subr.mxu0 0.0
    %4442 = vmatpush1.msra.mxu0 0.0
    %4443 = vmatprep.mubr.f32.mxu0 0.0
    %v4444 = vand.u32 %v2749, 4294901760
    %4445 = vmatmul.mubr.f32.gmra.mrb[0].mxu0 %v4444
    %v4446 = vpop.f32.mrb[0].mxu0
    %v4447 = vadd.f32 %v4188, %v4446
    %v4448 = vpop.f32.mrb[0].mxu0
    %4449 = vmatprep.mubr.f32.mxu0 0.0
    %v4450 = vand.u32 %v2752, 4294901760
    %4451 = vmatmul.mubr.f32.gmra.mrb[0].mxu0 %v4450
    %v4452 = vpop.f32.mrb[0].mxu0
    %v4453 = vadd.f32 %v4194, %v4452
    %v4454 = vpop.f32.mrb[0].mxu0
    %4455 = vmatprep.mubr.f32.mxu0 0.0
    %v4456 = vand.u32 %v2755, 4294901760
    %4457 = vmatmul.mubr.f32.gmra.mrb[0].mxu0 %v4456
    %v4458 = vpop.f32.mrb[0].mxu0
    %v4459 = vadd.f32 %v4200, %v4458
    %v4460 = vpop.f32.mrb[0].mxu0
    %4461 = vmatprep.mubr.f32.mxu0 0.0
    %v4462 = vand.u32 %v2758, 4294901760
    %4463 = vmatmul.mubr.f32.gmra.mrb[0].mxu0 %v4462
    %v4464 = vpop.f32.mrb[0].mxu0
    %v4465 = vadd.f32 %v4206, %v4464
    %v4466 = vpop.f32.mrb[0].mxu0
    %4467 = vmatprep.mubr.f32.mxu0 0.0
    %v4468 = vand.u32 %v2761, 4294901760
    %4469 = vmatmul.mubr.f32.gmra.mrb[0].mxu0 %v4468
    %v4470 = vpop.f32.mrb[0].mxu0
    %v4471 = vadd.f32 %v4212, %v4470
    %v4472 = vpop.f32.mrb[0].mxu0
    %4473 = vmatprep.mubr.f32.mxu0 0.0
    %v4474 = vand.u32 %v2764, 4294901760
    %4475 = vmatmul.mubr.f32.gmra.mrb[0].mxu0 %v4474
    %v4476 = vpop.f32.mrb[0].mxu0
    %v4477 = vadd.f32 %v4218, %v4476
    %v4478 = vpop.f32.mrb[0].mxu0
    %4479 = vmatprep.mubr.f32.mxu0 0.0
    %v4480 = vand.u32 %v2767, 4294901760
    %4481 = vmatmul.mubr.f32.gmra.mrb[0].mxu0 %v4480
    %v4482 = vpop.f32.mrb[0].mxu0
    %v4483 = vadd.f32 %v4224, %v4482
    %v4484 = vpop.f32.mrb[0].mxu0
    %4485 = vmatprep.mubr.f32.mxu0 0.0
    %v4486 = vand.u32 %v2770, 4294901760
    %4487 = vmatmul.mubr.f32.gmra.mrb[0].mxu0 %v4486
    %v4488 = vpop.f32.mrb[0].mxu0
    %v4489 = vadd.f32 %v4230, %v4488
    %v4490 = vpop.f32.mrb[0].mxu0
    %4491 = vmatprep.mubr.f32.mxu0 0.0
    %v4492 = vand.u32 %v2773, 4294901760
    %4493 = vmatmul.mubr.f32.gmra.mrb[0].mxu0 %v4492
    %v4494 = vpop.f32.mrb[0].mxu0
    %v4495 = vadd.f32 %v4236, %v4494
    %v4496 = vpop.f32.mrb[0].mxu0
    %4497 = vmatprep.mubr.f32.mxu0 0.0
    %v4498 = vand.u32 %v2776, 4294901760
    %4499 = vmatmul.mubr.f32.gmra.mrb[0].mxu0 %v4498
    %v4500 = vpop.f32.mrb[0].mxu0
    %v4501 = vadd.f32 %v4242, %v4500
    %v4502 = vpop.f32.mrb[0].mxu0
    %4503 = vmatprep.mubr.f32.mxu0 0.0
    %v4504 = vand.u32 %v2779, 4294901760
    %4505 = vmatmul.mubr.f32.gmra.mrb[0].mxu0 %v4504
    %v4506 = vpop.f32.mrb[0].mxu0
    %v4507 = vadd.f32 %v4248, %v4506
    %v4508 = vpop.f32.mrb[0].mxu0
    %4509 = vmatprep.mubr.f32.mxu0 0.0
    %v4510 = vand.u32 %v2782, 4294901760
    %4511 = vmatmul.mubr.f32.gmra.mrb[0].mxu0 %v4510
    %v4512 = vpop.f32.mrb[0].mxu0
    %v4513 = vadd.f32 %v4254, %v4512
    %v4514 = vpop.f32.mrb[0].mxu0
    %4515 = vmatprep.mubr.f32.mxu0 0.0
    %v4516 = vand.u32 %v2785, 4294901760
    %4517 = vmatmul.mubr.f32.gmra.mrb[0].mxu0 %v4516
    %v4518 = vpop.f32.mrb[0].mxu0
    %v4519 = vadd.f32 %v4260, %v4518
    %v4520 = vpop.f32.mrb[0].mxu0
    %4521 = vmatprep.mubr.f32.mxu0 0.0
    %v4522 = vand.u32 %v2788, 4294901760
    %4523 = vmatmul.mubr.f32.gmra.mrb[0].mxu0 %v4522
    %v4524 = vpop.f32.mrb[0].mxu0
    %v4525 = vadd.f32 %v4266, %v4524
    %v4526 = vpop.f32.mrb[0].mxu0
    %4527 = vmatprep.mubr.f32.mxu0 0.0
    %v4528 = vand.u32 %v2791, 4294901760
    %4529 = vmatmul.mubr.f32.gmra.mrb[0].mxu0 %v4528
    %v4530 = vpop.f32.mrb[0].mxu0
    %v4531 = vadd.f32 %v4272, %v4530
    %v4532 = vpop.f32.mrb[0].mxu0
    %4533 = vmatprep.mubr.f32.mxu0 0.0
    %v4534 = vand.u32 %v2794, 4294901760
    %4535 = vmatmul.mubr.f32.gmra.mrb[0].mxu0 %v4534
    %v4536 = vpop.f32.mrb[0].mxu0
    %v4537 = vadd.f32 %v4278, %v4536
    %v4538 = vpop.f32.mrb[0].mxu0
    %4539 = vmatprep.mubr.f32.mxu0 0.0
    %v4540 = vand.u32 %v2797, 4294901760
    %4541 = vmatmul.mubr.f32.gmra.mrb[0].mxu0 %v4540
    %v4542 = vpop.f32.mrb[0].mxu0
    %v4543 = vadd.f32 %v4284, %v4542
    %v4544 = vpop.f32.mrb[0].mxu0
    %4545 = vmatprep.mubr.f32.mxu0 0.0
    %v4546 = vand.u32 %v2800, 4294901760
    %4547 = vmatmul.mubr.f32.gmra.mrb[0].mxu0 %v4546
    %v4548 = vpop.f32.mrb[0].mxu0
    %v4549 = vadd.f32 %v4290, %v4548
    %v4550 = vpop.f32.mrb[0].mxu0
    %4551 = vmatprep.mubr.f32.mxu0 0.0
    %v4552 = vand.u32 %v2803, 4294901760
    %4553 = vmatmul.mubr.f32.gmra.mrb[0].mxu0 %v4552
    %v4554 = vpop.f32.mrb[0].mxu0
    %v4555 = vadd.f32 %v4296, %v4554
    %v4556 = vpop.f32.mrb[0].mxu0
    %4557 = vmatprep.mubr.f32.mxu0 0.0
    %v4558 = vand.u32 %v2806, 4294901760
    %4559 = vmatmul.mubr.f32.gmra.mrb[0].mxu0 %v4558
    %v4560 = vpop.f32.mrb[0].mxu0
    %v4561 = vadd.f32 %v4302, %v4560
    %v4562 = vpop.f32.mrb[0].mxu0
    %4563 = vmatprep.mubr.f32.mxu0 0.0
    %v4564 = vand.u32 %v2809, 4294901760
    %4565 = vmatmul.mubr.f32.gmra.mrb[0].mxu0 %v4564
    %v4566 = vpop.f32.mrb[0].mxu0
    %v4567 = vadd.f32 %v4308, %v4566
    %v4568 = vpop.f32.mrb[0].mxu0
    %4569 = vmatprep.mubr.f32.mxu0 0.0
    %v4570 = vand.u32 %v2812, 4294901760
    %4571 = vmatmul.mubr.f32.gmra.mrb[0].mxu0 %v4570
    %v4572 = vpop.f32.mrb[0].mxu0
    %v4573 = vadd.f32 %v4314, %v4572
    %v4574 = vpop.f32.mrb[0].mxu0
    %4575 = vmatprep.mubr.f32.mxu0 0.0
    %v4576 = vand.u32 %v2815, 4294901760
    %4577 = vmatmul.mubr.f32.gmra.mrb[0].mxu0 %v4576
    %v4578 = vpop.f32.mrb[0].mxu0
    %v4579 = vadd.f32 %v4320, %v4578
    %v4580 = vpop.f32.mrb[0].mxu0
    %4581 = vmatprep.mubr.f32.mxu0 0.0
    %v4582 = vand.u32 %v2818, 4294901760
    %4583 = vmatmul.mubr.f32.gmra.mrb[0].mxu0 %v4582
    %v4584 = vpop.f32.mrb[0].mxu0
    %v4585 = vadd.f32 %v4326, %v4584
    %v4586 = vpop.f32.mrb[0].mxu0
    %4587 = vmatprep.mubr.f32.mxu0 0.0
    %v4588 = vand.u32 %v2821, 4294901760
    %4589 = vmatmul.mubr.f32.gmra.mrb[0].mxu0 %v4588
    %v4590 = vpop.f32.mrb[0].mxu0
    %v4591 = vadd.f32 %v4332, %v4590
    %v4592 = vpop.f32.mrb[0].mxu0
    %4593 = vmatprep.mubr.f32.mxu0 0.0
    %v4594 = vand.u32 %v2824, 4294901760
    %4595 = vmatmul.mubr.f32.gmra.mrb[0].mxu0 %v4594
    %v4596 = vpop.f32.mrb[0].mxu0
    %v4597 = vadd.f32 %v4338, %v4596
    %v4598 = vpop.f32.mrb[0].mxu0
    %4599 = vmatprep.mubr.f32.mxu0 0.0
    %v4600 = vand.u32 %v2827, 4294901760
    %4601 = vmatmul.mubr.f32.gmra.mrb[0].mxu0 %v4600
    %v4602 = vpop.f32.mrb[0].mxu0
    %v4603 = vadd.f32 %v4344, %v4602
    %v4604 = vpop.f32.mrb[0].mxu0
    %4605 = vmatprep.mubr.f32.mxu0 0.0
    %v4606 = vand.u32 %v2830, 4294901760
    %4607 = vmatmul.mubr.f32.gmra.mrb[0].mxu0 %v4606
    %v4608 = vpop.f32.mrb[0].mxu0
    %v4609 = vadd.f32 %v4350, %v4608
    %v4610 = vpop.f32.mrb[0].mxu0
    %4611 = vmatprep.mubr.f32.mxu0 0.0
    %v4612 = vand.u32 %v2833, 4294901760
    %4613 = vmatmul.mubr.f32.gmra.mrb[0].mxu0 %v4612
    %v4614 = vpop.f32.mrb[0].mxu0
    %v4615 = vadd.f32 %v4356, %v4614
    %v4616 = vpop.f32.mrb[0].mxu0
    %4617 = vmatprep.mubr.f32.mxu0 0.0
    %v4618 = vand.u32 %v2836, 4294901760
    %4619 = vmatmul.mubr.f32.gmra.mrb[0].mxu0 %v4618
    %v4620 = vpop.f32.mrb[0].mxu0
    %v4621 = vadd.f32 %v4362, %v4620
    %v4622 = vpop.f32.mrb[0].mxu0
    %4623 = vmatprep.mubr.f32.mxu0 0.0
    %v4624 = vand.u32 %v2839, 4294901760
    %4625 = vmatmul.mubr.f32.gmra.mrb[0].mxu0 %v4624
    %v4626 = vpop.f32.mrb[0].mxu0
    %v4627 = vadd.f32 %v4368, %v4626
    %v4628 = vpop.f32.mrb[0].mxu0
    %4629 = vmatprep.mubr.f32.mxu0 0.0
    %v4630 = vand.u32 %v2842, 4294901760
    %4631 = vmatmul.mubr.f32.gmra.mrb[0].mxu0 %v4630
    %v4632 = vpop.f32.mrb[0].mxu0
    %v4633 = vadd.f32 %v4374, %v4632
    %v4634 = vpop.f32.mrb[0].mxu0
    %4635 = vdwg.mxu0
    %v4636 = vmax.f32 %v4447, 0.0
    %v4637 = vmax.f32 %v4453, 0.0
    %v4638 = vmax.f32 %v4459, 0.0
    %v4639 = vmax.f32 %v4465, 0.0
    %v4640 = vmax.f32 %v4471, 0.0
    %v4641 = vmax.f32 %v4477, 0.0
    %v4642 = vmax.f32 %v4483, 0.0
    %v4643 = vmax.f32 %v4489, 0.0
    %v4644 = vmax.f32 %v4495, 0.0
    %v4645 = vmax.f32 %v4501, 0.0
    %v4646 = vmax.f32 %v4507, 0.0
    %v4647 = vmax.f32 %v4513, 0.0
    %v4648 = vmax.f32 %v4519, 0.0
    %v4649 = vmax.f32 %v4525, 0.0
    %v4650 = vmax.f32 %v4531, 0.0
    %v4651 = vmax.f32 %v4537, 0.0
    %v4652 = vmax.f32 %v4543, 0.0
    %v4653 = vmax.f32 %v4549, 0.0
    %v4654 = vmax.f32 %v4555, 0.0
    %v4655 = vmax.f32 %v4561, 0.0
    %v4656 = vmax.f32 %v4567, 0.0
    %v4657 = vmax.f32 %v4573, 0.0
    %v4658 = vmax.f32 %v4579, 0.0
    %v4659 = vmax.f32 %v4585, 0.0
    %v4660 = vmax.f32 %v4591, 0.0
    %v4661 = vmax.f32 %v4597, 0.0
    %v4662 = vmax.f32 %v4603, 0.0
    %v4663 = vmax.f32 %v4609, 0.0
    %v4664 = vmax.f32 %v4615, 0.0
    %v4665 = vmax.f32 %v4621, 0.0
    %v4666 = vmax.f32 %v4627, 0.0
    %v4667 = vmax.f32 %v4633, 0.0
    %v4668 = vld [vmem:[%s4] sm:$0xff]
    %v4669 = vld [vmem:[%s4 + $0x8] sm:$0xff]
    %v4670 = vld [vmem:[%s4 + $0x10] sm:$0xff]
    %v4671 = vld [vmem:[%s4 + $0x18] sm:$0xff]
    %v4672 = vld [vmem:[%s4 + $0x20] sm:$0xff]
    %v4673 = vld [vmem:[%s4 + $0x28] sm:$0xff]
    %v4674 = vld [vmem:[%s4 + $0x30] sm:$0xff]
    %v4675 = vld [vmem:[%s4 + $0x38] sm:$0xff]
    %v4676 = vld [vmem:[%s4 + $0x40] sm:$0xff]
    %v4677 = vld [vmem:[%s4 + $0x48] sm:$0xff]
    %v4678 = vld [vmem:[%s4 + $0x50] sm:$0xff]
    %v4679 = vld [vmem:[%s4 + $0x58] sm:$0xff]
    %v4680 = vld [vmem:[%s4 + $0x60] sm:$0xff]
    %v4681 = vld [vmem:[%s4 + $0x68] sm:$0xff]
    %v4682 = vld [vmem:[%s4 + $0x70] sm:$0xff]
    %v4683 = vld [vmem:[%s4 + $0x78] sm:$0xff]
    %4684 = vmatprep.subr.mxu0 0.0
    %v4685 = vand.u32 %v4668, 4294901760
    %4686 = vmatpush1.msra.mxu0 %v4685
    %4687 = vmatprep.subr.mxu0 0.0
    %v4688 = vand.u32 %v4669, 4294901760
    %4689 = vmatpush1.msra.mxu0 %v4688
    %4690 = vmatprep.subr.mxu0 0.0
    %v4691 = vand.u32 %v4670, 4294901760
    %4692 = vmatpush1.msra.mxu0 %v4691
    %4693 = vmatprep.subr.mxu0 0.0
    %v4694 = vand.u32 %v4671, 4294901760
    %4695 = vmatpush1.msra.mxu0 %v4694
    %4696 = vmatprep.subr.mxu0 0.0
    %v4697 = vand.u32 %v4672, 4294901760
    %4698 = vmatpush1.msra.mxu0 %v4697
    %4699 = vmatprep.subr.mxu0 0.0
    %v4700 = vand.u32 %v4673, 4294901760
    %4701 = vmatpush1.msra.mxu0 %v4700
    %4702 = vmatprep.subr.mxu0 0.0
    %v4703 = vand.u32 %v4674, 4294901760
    %4704 = vmatpush1.msra.mxu0 %v4703
    %4705 = vmatprep.subr.mxu0 0.0
    %v4706 = vand.u32 %v4675, 4294901760
    %4707 = vmatpush1.msra.mxu0 %v4706
    %4708 = vmatprep.subr.mxu0 0.0
    %v4709 = vand.u32 %v4676, 4294901760
    %4710 = vmatpush1.msra.mxu0 %v4709
    %4711 = vmatprep.subr.mxu0 0.0
    %v4712 = vand.u32 %v4677, 4294901760
    %4713 = vmatpush1.msra.mxu0 %v4712
    %4714 = vmatprep.subr.mxu0 0.0
    %v4715 = vand.u32 %v4678, 4294901760
    %4716 = vmatpush1.msra.mxu0 %v4715
    %4717 = vmatprep.subr.mxu0 0.0
    %v4718 = vand.u32 %v4679, 4294901760
    %4719 = vmatpush1.msra.mxu0 %v4718
    %4720 = vmatprep.subr.mxu0 0.0
    %v4721 = vand.u32 %v4680, 4294901760
    %4722 = vmatpush1.msra.mxu0 %v4721
    %4723 = vmatprep.subr.mxu0 0.0
    %v4724 = vand.u32 %v4681, 4294901760
    %4725 = vmatpush1.msra.mxu0 %v4724
    %4726 = vmatprep.subr.mxu0 0.0
    %v4727 = vand.u32 %v4682, 4294901760
    %4728 = vmatpush1.msra.mxu0 %v4727
    %4729 = vmatprep.subr.mxu0 0.0
    %v4730 = vand.u32 %v4683, 4294901760
    %4731 = vmatpush1.msra.mxu0 %v4730
    %4732 = vmatprep.subr.mxu0 0.0
    %4733 = vmatpush1.msra.mxu0 0.0
    %4734 = vmatprep.subr.mxu0 0.0
    %4735 = vmatpush1.msra.mxu0 0.0
    %4736 = vmatprep.subr.mxu0 0.0
    %4737 = vmatpush1.msra.mxu0 0.0
    %4738 = vmatprep.subr.mxu0 0.0
    %4739 = vmatpush1.msra.mxu0 0.0
    %4740 = vmatprep.subr.mxu0 0.0
    %4741 = vmatpush1.msra.mxu0 0.0
    %4742 = vmatprep.subr.mxu0 0.0
    %4743 = vmatpush1.msra.mxu0 0.0
    %4744 = vmatprep.subr.mxu0 0.0
    %4745 = vmatpush1.msra.mxu0 0.0
    %4746 = vmatprep.subr.mxu0 0.0
    %4747 = vmatpush1.msra.mxu0 0.0
    %4748 = vmatprep.subr.mxu0 0.0
    %4749 = vmatpush1.msra.mxu0 0.0
    %4750 = vmatprep.subr.mxu0 0.0
    %4751 = vmatpush1.msra.mxu0 0.0
    %4752 = vmatprep.subr.mxu0 0.0
    %4753 = vmatpush1.msra.mxu0 0.0
    %4754 = vmatprep.subr.mxu0 0.0
    %4755 = vmatpush1.msra.mxu0 0.0
    %4756 = vmatprep.subr.mxu0 0.0
    %4757 = vmatpush1.msra.mxu0 0.0
    %4758 = vmatprep.subr.mxu0 0.0
    %4759 = vmatpush1.msra.mxu0 0.0
    %4760 = vmatprep.subr.mxu0 0.0
    %4761 = vmatpush1.msra.mxu0 0.0
    %4762 = vmatprep.subr.mxu0 0.0
    %4763 = vmatpush1.msra.mxu0 0.0
    %4764 = vmatprep.mubr.f32.mxu0 0.0
    %v4765 = vand.u32 %v4636, 4294901760
    %v4766 = vsub.f32 %v4636, %v4765
    %v4767 = vand.u32 %v4766, 4294901760
    %v4768 = vsub.f32 %v4766, %v4767
    %v4769 = vand.u32 %v4768, 4294901760
    %4770 = vmatmul.mubr.f32.gmra.mrb[0].mxu0 %v4769
    %v4771 = vpop.f32.mrb[0].mxu0
    %v4772 = vadd.f32 0.0, %v4771
    %v4773 = vpop.f32.mrb[0].mxu0
    %4774 = vmatprep.mubr.f32.mxu0 0.0
    %v4775 = vand.u32 %v4637, 4294901760
    %v4776 = vsub.f32 %v4637, %v4775
    %v4777 = vand.u32 %v4776, 4294901760
    %v4778 = vsub.f32 %v4776, %v4777
    %v4779 = vand.u32 %v4778, 4294901760
    %4780 = vmatmul.mubr.f32.gmra.mrb[0].mxu0 %v4779
    %v4781 = vpop.f32.mrb[0].mxu0
    %v4782 = vadd.f32 0.0, %v4781
    %v4783 = vpop.f32.mrb[0].mxu0
    %4784 = vmatprep.mubr.f32.mxu0 0.0
    %v4785 = vand.u32 %v4638, 4294901760
    %v4786 = vsub.f32 %v4638, %v4785
    %v4787 = vand.u32 %v4786, 4294901760
    %v4788 = vsub.f32 %v4786, %v4787
    %v4789 = vand.u32 %v4788, 4294901760
    %4790 = vmatmul.mubr.f32.gmra.mrb[0].mxu0 %v4789
    %v4791 = vpop.f32.mrb[0].mxu0
    %v4792 = vadd.f32 0.0, %v4791
    %v4793 = vpop.f32.mrb[0].mxu0
    %4794 = vmatprep.mubr.f32.mxu0 0.0
    %v4795 = vand.u32 %v4639, 4294901760
    %v4796 = vsub.f32 %v4639, %v4795
    %v4797 = vand.u32 %v4796, 4294901760
    %v4798 = vsub.f32 %v4796, %v4797
    %v4799 = vand.u32 %v4798, 4294901760
    %4800 = vmatmul.mubr.f32.gmra.mrb[0].mxu0 %v4799
    %v4801 = vpop.f32.mrb[0].mxu0
    %v4802 = vadd.f32 0.0, %v4801
    %v4803 = vpop.f32.mrb[0].mxu0
    %4804 = vmatprep.mubr.f32.mxu0 0.0
    %v4805 = vand.u32 %v4640, 4294901760
    %v4806 = vsub.f32 %v4640, %v4805
    %v4807 = vand.u32 %v4806, 4294901760
    %v4808 = vsub.f32 %v4806, %v4807
    %v4809 = vand.u32 %v4808, 4294901760
    %4810 = vmatmul.mubr.f32.gmra.mrb[0].mxu0 %v4809
    %v4811 = vpop.f32.mrb[0].mxu0
    %v4812 = vadd.f32 0.0, %v4811
    %v4813 = vpop.f32.mrb[0].mxu0
    %4814 = vmatprep.mubr.f32.mxu0 0.0
    %v4815 = vand.u32 %v4641, 4294901760
    %v4816 = vsub.f32 %v4641, %v4815
    %v4817 = vand.u32 %v4816, 4294901760
    %v4818 = vsub.f32 %v4816, %v4817
    %v4819 = vand.u32 %v4818, 4294901760
    %4820 = vmatmul.mubr.f32.gmra.mrb[0].mxu0 %v4819
    %v4821 = vpop.f32.mrb[0].mxu0
    %v4822 = vadd.f32 0.0, %v4821
    %v4823 = vpop.f32.mrb[0].mxu0
    %4824 = vmatprep.mubr.f32.mxu0 0.0
    %v4825 = vand.u32 %v4642, 4294901760
    %v4826 = vsub.f32 %v4642, %v4825
    %v4827 = vand.u32 %v4826, 4294901760
    %v4828 = vsub.f32 %v4826, %v4827
    %v4829 = vand.u32 %v4828, 4294901760
    %4830 = vmatmul.mubr.f32.gmra.mrb[0].mxu0 %v4829
    %v4831 = vpop.f32.mrb[0].mxu0
    %v4832 = vadd.f32 0.0, %v4831
    %v4833 = vpop.f32.mrb[0].mxu0
    %4834 = vmatprep.mubr.f32.mxu0 0.0
    %v4835 = vand.u32 %v4643, 4294901760
    %v4836 = vsub.f32 %v4643, %v4835
    %v4837 = vand.u32 %v4836, 4294901760
    %v4838 = vsub.f32 %v4836, %v4837
    %v4839 = vand.u32 %v4838, 4294901760
    %4840 = vmatmul.mubr.f32.gmra.mrb[0].mxu0 %v4839
    %v4841 = vpop.f32.mrb[0].mxu0
    %v4842 = vadd.f32 0.0, %v4841
    %v4843 = vpop.f32.mrb[0].mxu0
    %4844 = vmatprep.mubr.f32.mxu0 0.0
    %v4845 = vand.u32 %v4644, 4294901760
    %v4846 = vsub.f32 %v4644, %v4845
    %v4847 = vand.u32 %v4846, 4294901760
    %v4848 = vsub.f32 %v4846, %v4847
    %v4849 = vand.u32 %v4848, 4294901760
    %4850 = vmatmul.mubr.f32.gmra.mrb[0].mxu0 %v4849
    %v4851 = vpop.f32.mrb[0].mxu0
    %v4852 = vadd.f32 0.0, %v4851
    %v4853 = vpop.f32.mrb[0].mxu0
    %4854 = vmatprep.mubr.f32.mxu0 0.0
    %v4855 = vand.u32 %v4645, 4294901760
    %v4856 = vsub.f32 %v4645, %v4855
    %v4857 = vand.u32 %v4856, 4294901760
    %v4858 = vsub.f32 %v4856, %v4857
    %v4859 = vand.u32 %v4858, 4294901760
    %4860 = vmatmul.mubr.f32.gmra.mrb[0].mxu0 %v4859
    %v4861 = vpop.f32.mrb[0].mxu0
    %v4862 = vadd.f32 0.0, %v4861
    %v4863 = vpop.f32.mrb[0].mxu0
    %4864 = vmatprep.mubr.f32.mxu0 0.0
    %v4865 = vand.u32 %v4646, 4294901760
    %v4866 = vsub.f32 %v4646, %v4865
    %v4867 = vand.u32 %v4866, 4294901760
    %v4868 = vsub.f32 %v4866, %v4867
    %v4869 = vand.u32 %v4868, 4294901760
    %4870 = vmatmul.mubr.f32.gmra.mrb[0].mxu0 %v4869
    %v4871 = vpop.f32.mrb[0].mxu0
    %v4872 = vadd.f32 0.0, %v4871
    %v4873 = vpop.f32.mrb[0].mxu0
    %4874 = vmatprep.mubr.f32.mxu0 0.0
    %v4875 = vand.u32 %v4647, 4294901760
    %v4876 = vsub.f32 %v4647, %v4875
    %v4877 = vand.u32 %v4876, 4294901760
    %v4878 = vsub.f32 %v4876, %v4877
    %v4879 = vand.u32 %v4878, 4294901760
    %4880 = vmatmul.mubr.f32.gmra.mrb[0].mxu0 %v4879
    %v4881 = vpop.f32.mrb[0].mxu0
    %v4882 = vadd.f32 0.0, %v4881
    %v4883 = vpop.f32.mrb[0].mxu0
    %4884 = vmatprep.mubr.f32.mxu0 0.0
    %v4885 = vand.u32 %v4648, 4294901760
    %v4886 = vsub.f32 %v4648, %v4885
    %v4887 = vand.u32 %v4886, 4294901760
    %v4888 = vsub.f32 %v4886, %v4887
    %v4889 = vand.u32 %v4888, 4294901760
    %4890 = vmatmul.mubr.f32.gmra.mrb[0].mxu0 %v4889
    %v4891 = vpop.f32.mrb[0].mxu0
    %v4892 = vadd.f32 0.0, %v4891
    %v4893 = vpop.f32.mrb[0].mxu0
    %4894 = vmatprep.mubr.f32.mxu0 0.0
    %v4895 = vand.u32 %v4649, 4294901760
    %v4896 = vsub.f32 %v4649, %v4895
    %v4897 = vand.u32 %v4896, 4294901760
    %v4898 = vsub.f32 %v4896, %v4897
    %v4899 = vand.u32 %v4898, 4294901760
    %4900 = vmatmul.mubr.f32.gmra.mrb[0].mxu0 %v4899
    %v4901 = vpop.f32.mrb[0].mxu0
    %v4902 = vadd.f32 0.0, %v4901
    %v4903 = vpop.f32.mrb[0].mxu0
    %4904 = vmatprep.mubr.f32.mxu0 0.0
    %v4905 = vand.u32 %v4650, 4294901760
    %v4906 = vsub.f32 %v4650, %v4905
    %v4907 = vand.u32 %v4906, 4294901760
    %v4908 = vsub.f32 %v4906, %v4907
    %v4909 = vand.u32 %v4908, 4294901760
    %4910 = vmatmul.mubr.f32.gmra.mrb[0].mxu0 %v4909
    %v4911 = vpop.f32.mrb[0].mxu0
    %v4912 = vadd.f32 0.0, %v4911
    %v4913 = vpop.f32.mrb[0].mxu0
    %4914 = vmatprep.mubr.f32.mxu0 0.0
    %v4915 = vand.u32 %v4651, 4294901760
    %v4916 = vsub.f32 %v4651, %v4915
    %v4917 = vand.u32 %v4916, 4294901760
    %v4918 = vsub.f32 %v4916, %v4917
    %v4919 = vand.u32 %v4918, 4294901760
    %4920 = vmatmul.mubr.f32.gmra.mrb[0].mxu0 %v4919
    %v4921 = vpop.f32.mrb[0].mxu0
    %v4922 = vadd.f32 0.0, %v4921
    %v4923 = vpop.f32.mrb[0].mxu0
    %4924 = vmatprep.mubr.f32.mxu0 0.0
    %v4925 = vand.u32 %v4652, 4294901760
    %v4926 = vsub.f32 %v4652, %v4925
    %v4927 = vand.u32 %v4926, 4294901760
    %v4928 = vsub.f32 %v4926, %v4927
    %v4929 = vand.u32 %v4928, 4294901760
    %4930 = vmatmul.mubr.f32.gmra.mrb[0].mxu0 %v4929
    %v4931 = vpop.f32.mrb[0].mxu0
    %v4932 = vadd.f32 0.0, %v4931
    %v4933 = vpop.f32.mrb[0].mxu0
    %4934 = vmatprep.mubr.f32.mxu0 0.0
    %v4935 = vand.u32 %v4653, 4294901760
    %v4936 = vsub.f32 %v4653, %v4935
    %v4937 = vand.u32 %v4936, 4294901760
    %v4938 = vsub.f32 %v4936, %v4937
    %v4939 = vand.u32 %v4938, 4294901760
    %4940 = vmatmul.mubr.f32.gmra.mrb[0].mxu0 %v4939
    %v4941 = vpop.f32.mrb[0].mxu0
    %v4942 = vadd.f32 0.0, %v4941
    %v4943 = vpop.f32.mrb[0].mxu0
    %4944 = vmatprep.mubr.f32.mxu0 0.0
    %v4945 = vand.u32 %v4654, 4294901760
    %v4946 = vsub.f32 %v4654, %v4945
    %v4947 = vand.u32 %v4946, 4294901760
    %v4948 = vsub.f32 %v4946, %v4947
    %v4949 = vand.u32 %v4948, 4294901760
    %4950 = vmatmul.mubr.f32.gmra.mrb[0].mxu0 %v4949
    %v4951 = vpop.f32.mrb[0].mxu0
    %v4952 = vadd.f32 0.0, %v4951
    %v4953 = vpop.f32.mrb[0].mxu0
    %4954 = vmatprep.mubr.f32.mxu0 0.0
    %v4955 = vand.u32 %v4655, 4294901760
    %v4956 = vsub.f32 %v4655, %v4955
    %v4957 = vand.u32 %v4956, 4294901760
    %v4958 = vsub.f32 %v4956, %v4957
    %v4959 = vand.u32 %v4958, 4294901760
    %4960 = vmatmul.mubr.f32.gmra.mrb[0].mxu0 %v4959
    %v4961 = vpop.f32.mrb[0].mxu0
    %v4962 = vadd.f32 0.0, %v4961
    %v4963 = vpop.f32.mrb[0].mxu0
    %4964 = vmatprep.mubr.f32.mxu0 0.0
    %v4965 = vand.u32 %v4656, 4294901760
    %v4966 = vsub.f32 %v4656, %v4965
    %v4967 = vand.u32 %v4966, 4294901760
    %v4968 = vsub.f32 %v4966, %v4967
    %v4969 = vand.u32 %v4968, 4294901760
    %4970 = vmatmul.mubr.f32.gmra.mrb[0].mxu0 %v4969
    %v4971 = vpop.f32.mrb[0].mxu0
    %v4972 = vadd.f32 0.0, %v4971
    %v4973 = vpop.f32.mrb[0].mxu0
    %4974 = vmatprep.mubr.f32.mxu0 0.0
    %v4975 = vand.u32 %v4657, 4294901760
    %v4976 = vsub.f32 %v4657, %v4975
    %v4977 = vand.u32 %v4976, 4294901760
    %v4978 = vsub.f32 %v4976, %v4977
    %v4979 = vand.u32 %v4978, 4294901760
    %4980 = vmatmul.mubr.f32.gmra.mrb[0].mxu0 %v4979
    %v4981 = vpop.f32.mrb[0].mxu0
    %v4982 = vadd.f32 0.0, %v4981
    %v4983 = vpop.f32.mrb[0].mxu0
    %4984 = vmatprep.mubr.f32.mxu0 0.0
    %v4985 = vand.u32 %v4658, 4294901760
    %v4986 = vsub.f32 %v4658, %v4985
    %v4987 = vand.u32 %v4986, 4294901760
    %v4988 = vsub.f32 %v4986, %v4987
    %v4989 = vand.u32 %v4988, 4294901760
    %4990 = vmatmul.mubr.f32.gmra.mrb[0].mxu0 %v4989
    %v4991 = vpop.f32.mrb[0].mxu0
    %v4992 = vadd.f32 0.0, %v4991
    %v4993 = vpop.f32.mrb[0].mxu0
    %4994 = vmatprep.mubr.f32.mxu0 0.0
    %v4995 = vand.u32 %v4659, 4294901760
    %v4996 = vsub.f32 %v4659, %v4995
    %v4997 = vand.u32 %v4996, 4294901760
    %v4998 = vsub.f32 %v4996, %v4997
    %v4999 = vand.u32 %v4998, 4294901760
    %5000 = vmatmul.mubr.f32.gmra.mrb[0].mxu0 %v4999
    %v5001 = vpop.f32.mrb[0].mxu0
    %v5002 = vadd.f32 0.0, %v5001
    %v5003 = vpop.f32.mrb[0].mxu0
    %5004 = vmatprep.mubr.f32.mxu0 0.0
    %v5005 = vand.u32 %v4660, 4294901760
    %v5006 = vsub.f32 %v4660, %v5005
    %v5007 = vand.u32 %v5006, 4294901760
    %v5008 = vsub.f32 %v5006, %v5007
    %v5009 = vand.u32 %v5008, 4294901760
    %5010 = vmatmul.mubr.f32.gmra.mrb[0].mxu0 %v5009
    %v5011 = vpop.f32.mrb[0].mxu0
    %v5012 = vadd.f32 0.0, %v5011
    %v5013 = vpop.f32.mrb[0].mxu0
    %5014 = vmatprep.mubr.f32.mxu0 0.0
    %v5015 = vand.u32 %v4661, 4294901760
    %v5016 = vsub.f32 %v4661, %v5015
    %v5017 = vand.u32 %v5016, 4294901760
    %v5018 = vsub.f32 %v5016, %v5017
    %v5019 = vand.u32 %v5018, 4294901760
    %5020 = vmatmul.mubr.f32.gmra.mrb[0].mxu0 %v5019
    %v5021 = vpop.f32.mrb[0].mxu0
    %v5022 = vadd.f32 0.0, %v5021
    %v5023 = vpop.f32.mrb[0].mxu0
    %5024 = vmatprep.mubr.f32.mxu0 0.0
    %v5025 = vand.u32 %v4662, 4294901760
    %v5026 = vsub.f32 %v4662, %v5025
    %v5027 = vand.u32 %v5026, 4294901760
    %v5028 = vsub.f32 %v5026, %v5027
    %v5029 = vand.u32 %v5028, 4294901760
    %5030 = vmatmul.mubr.f32.gmra.mrb[0].mxu0 %v5029
    %v5031 = vpop.f32.mrb[0].mxu0
    %v5032 = vadd.f32 0.0, %v5031
    %v5033 = vpop.f32.mrb[0].mxu0
    %5034 = vmatprep.mubr.f32.mxu0 0.0
    %v5035 = vand.u32 %v4663, 4294901760
    %v5036 = vsub.f32 %v4663, %v5035
    %v5037 = vand.u32 %v5036, 4294901760
    %v5038 = vsub.f32 %v5036, %v5037
    %v5039 = vand.u32 %v5038, 4294901760
    %5040 = vmatmul.mubr.f32.gmra.mrb[0].mxu0 %v5039
    %v5041 = vpop.f32.mrb[0].mxu0
    %v5042 = vadd.f32 0.0, %v5041
    %v5043 = vpop.f32.mrb[0].mxu0
    %5044 = vmatprep.mubr.f32.mxu0 0.0
    %v5045 = vand.u32 %v4664, 4294901760
    %v5046 = vsub.f32 %v4664, %v5045
    %v5047 = vand.u32 %v5046, 4294901760
    %v5048 = vsub.f32 %v5046, %v5047
    %v5049 = vand.u32 %v5048, 4294901760
    %5050 = vmatmul.mubr.f32.gmra.mrb[0].mxu0 %v5049
    %v5051 = vpop.f32.mrb[0].mxu0
    %v5052 = vadd.f32 0.0, %v5051
    %v5053 = vpop.f32.mrb[0].mxu0
    %5054 = vmatprep.mubr.f32.mxu0 0.0
    %v5055 = vand.u32 %v4665, 4294901760
    %v5056 = vsub.f32 %v4665, %v5055
    %v5057 = vand.u32 %v5056, 4294901760
    %v5058 = vsub.f32 %v5056, %v5057
    %v5059 = vand.u32 %v5058, 4294901760
    %5060 = vmatmul.mubr.f32.gmra.mrb[0].mxu0 %v5059
    %v5061 = vpop.f32.mrb[0].mxu0
    %v5062 = vadd.f32 0.0, %v5061
    %v5063 = vpop.f32.mrb[0].mxu0
    %5064 = vmatprep.mubr.f32.mxu0 0.0
    %v5065 = vand.u32 %v4666, 4294901760
    %v5066 = vsub.f32 %v4666, %v5065
    %v5067 = vand.u32 %v5066, 4294901760
    %v5068 = vsub.f32 %v5066, %v5067
    %v5069 = vand.u32 %v5068, 4294901760
    %5070 = vmatmul.mubr.f32.gmra.mrb[0].mxu0 %v5069
    %v5071 = vpop.f32.mrb[0].mxu0
    %v5072 = vadd.f32 0.0, %v5071
    %v5073 = vpop.f32.mrb[0].mxu0
    %5074 = vmatprep.mubr.f32.mxu0 0.0
    %v5075 = vand.u32 %v4667, 4294901760
    %v5076 = vsub.f32 %v4667, %v5075
    %v5077 = vand.u32 %v5076, 4294901760
    %v5078 = vsub.f32 %v5076, %v5077
    %v5079 = vand.u32 %v5078, 4294901760
    %5080 = vmatmul.mubr.f32.gmra.mrb[0].mxu0 %v5079
    %v5081 = vpop.f32.mrb[0].mxu0
    %v5082 = vadd.f32 0.0, %v5081
    %v5083 = vpop.f32.mrb[0].mxu0
    %5084 = vdwg.mxu0
    %5085 = vmatprep.subr.mxu0 0.0
    %v5086 = vand.u32 %v4668, 4294901760
    %v5087 = vsub.f32 %v4668, %v5086
    %v5088 = vand.u32 %v5087, 4294901760
    %v5089 = vsub.f32 %v5087, %v5088
    %v5090 = vand.u32 %v5089, 4294901760
    %5091 = vmatpush1.msra.mxu0 %v5090
    %5092 = vmatprep.subr.mxu0 0.0
    %v5093 = vand.u32 %v4669, 4294901760
    %v5094 = vsub.f32 %v4669, %v5093
    %v5095 = vand.u32 %v5094, 4294901760
    %v5096 = vsub.f32 %v5094, %v5095
    %v5097 = vand.u32 %v5096, 4294901760
    %5098 = vmatpush1.msra.mxu0 %v5097
    %5099 = vmatprep.subr.mxu0 0.0
    %v5100 = vand.u32 %v4670, 4294901760
    %v5101 = vsub.f32 %v4670, %v5100
    %v5102 = vand.u32 %v5101, 4294901760
    %v5103 = vsub.f32 %v5101, %v5102
    %v5104 = vand.u32 %v5103, 4294901760
    %5105 = vmatpush1.msra.mxu0 %v5104
    %5106 = vmatprep.subr.mxu0 0.0
    %v5107 = vand.u32 %v4671, 4294901760
    %v5108 = vsub.f32 %v4671, %v5107
    %v5109 = vand.u32 %v5108, 4294901760
    %v5110 = vsub.f32 %v5108, %v5109
    %v5111 = vand.u32 %v5110, 4294901760
    %5112 = vmatpush1.msra.mxu0 %v5111
    %5113 = vmatprep.subr.mxu0 0.0
    %v5114 = vand.u32 %v4672, 4294901760
    %v5115 = vsub.f32 %v4672, %v5114
    %v5116 = vand.u32 %v5115, 4294901760
    %v5117 = vsub.f32 %v5115, %v5116
    %v5118 = vand.u32 %v5117, 4294901760
    %5119 = vmatpush1.msra.mxu0 %v5118
    %5120 = vmatprep.subr.mxu0 0.0
    %v5121 = vand.u32 %v4673, 4294901760
    %v5122 = vsub.f32 %v4673, %v5121
    %v5123 = vand.u32 %v5122, 4294901760
    %v5124 = vsub.f32 %v5122, %v5123
    %v5125 = vand.u32 %v5124, 4294901760
    %5126 = vmatpush1.msra.mxu0 %v5125
    %5127 = vmatprep.subr.mxu0 0.0
    %v5128 = vand.u32 %v4674, 4294901760
    %v5129 = vsub.f32 %v4674, %v5128
    %v5130 = vand.u32 %v5129, 4294901760
    %v5131 = vsub.f32 %v5129, %v5130
    %v5132 = vand.u32 %v5131, 4294901760
    %5133 = vmatpush1.msra.mxu0 %v5132
    %5134 = vmatprep.subr.mxu0 0.0
    %v5135 = vand.u32 %v4675, 4294901760
    %v5136 = vsub.f32 %v4675, %v5135
    %v5137 = vand.u32 %v5136, 4294901760
    %v5138 = vsub.f32 %v5136, %v5137
    %v5139 = vand.u32 %v5138, 4294901760
    %5140 = vmatpush1.msra.mxu0 %v5139
    %5141 = vmatprep.subr.mxu0 0.0
    %v5142 = vand.u32 %v4676, 4294901760
    %v5143 = vsub.f32 %v4676, %v5142
    %v5144 = vand.u32 %v5143, 4294901760
    %v5145 = vsub.f32 %v5143, %v5144
    %v5146 = vand.u32 %v5145, 4294901760
    %5147 = vmatpush1.msra.mxu0 %v5146
    %5148 = vmatprep.subr.mxu0 0.0
    %v5149 = vand.u32 %v4677, 4294901760
    %v5150 = vsub.f32 %v4677, %v5149
    %v5151 = vand.u32 %v5150, 4294901760
    %v5152 = vsub.f32 %v5150, %v5151
    %v5153 = vand.u32 %v5152, 4294901760
    %5154 = vmatpush1.msra.mxu0 %v5153
    %5155 = vmatprep.subr.mxu0 0.0
    %v5156 = vand.u32 %v4678, 4294901760
    %v5157 = vsub.f32 %v4678, %v5156
    %v5158 = vand.u32 %v5157, 4294901760
    %v5159 = vsub.f32 %v5157, %v5158
    %v5160 = vand.u32 %v5159, 4294901760
    %5161 = vmatpush1.msra.mxu0 %v5160
    %5162 = vmatprep.subr.mxu0 0.0
    %v5163 = vand.u32 %v4679, 4294901760
    %v5164 = vsub.f32 %v4679, %v5163
    %v5165 = vand.u32 %v5164, 4294901760
    %v5166 = vsub.f32 %v5164, %v5165
    %v5167 = vand.u32 %v5166, 4294901760
    %5168 = vmatpush1.msra.mxu0 %v5167
    %5169 = vmatprep.subr.mxu0 0.0
    %v5170 = vand.u32 %v4680, 4294901760
    %v5171 = vsub.f32 %v4680, %v5170
    %v5172 = vand.u32 %v5171, 4294901760
    %v5173 = vsub.f32 %v5171, %v5172
    %v5174 = vand.u32 %v5173, 4294901760
    %5175 = vmatpush1.msra.mxu0 %v5174
    %5176 = vmatprep.subr.mxu0 0.0
    %v5177 = vand.u32 %v4681, 4294901760
    %v5178 = vsub.f32 %v4681, %v5177
    %v5179 = vand.u32 %v5178, 4294901760
    %v5180 = vsub.f32 %v5178, %v5179
    %v5181 = vand.u32 %v5180, 4294901760
    %5182 = vmatpush1.msra.mxu0 %v5181
    %5183 = vmatprep.subr.mxu0 0.0
    %v5184 = vand.u32 %v4682, 4294901760
    %v5185 = vsub.f32 %v4682, %v5184
    %v5186 = vand.u32 %v5185, 4294901760
    %v5187 = vsub.f32 %v5185, %v5186
    %v5188 = vand.u32 %v5187, 4294901760
    %5189 = vmatpush1.msra.mxu0 %v5188
    %5190 = vmatprep.subr.mxu0 0.0
    %v5191 = vand.u32 %v4683, 4294901760
    %v5192 = vsub.f32 %v4683, %v5191
    %v5193 = vand.u32 %v5192, 4294901760
    %v5194 = vsub.f32 %v5192, %v5193
    %v5195 = vand.u32 %v5194, 4294901760
    %5196 = vmatpush1.msra.mxu0 %v5195
    %5197 = vmatprep.subr.mxu0 0.0
    %5198 = vmatpush1.msra.mxu0 0.0
    %5199 = vmatprep.subr.mxu0 0.0
    %5200 = vmatpush1.msra.mxu0 0.0
    %5201 = vmatprep.subr.mxu0 0.0
    %5202 = vmatpush1.msra.mxu0 0.0
    %5203 = vmatprep.subr.mxu0 0.0
    %5204 = vmatpush1.msra.mxu0 0.0
    %5205 = vmatprep.subr.mxu0 0.0
    %5206 = vmatpush1.msra.mxu0 0.0
    %5207 = vmatprep.subr.mxu0 0.0
    %5208 = vmatpush1.msra.mxu0 0.0
    %5209 = vmatprep.subr.mxu0 0.0
    %5210 = vmatpush1.msra.mxu0 0.0
    %5211 = vmatprep.subr.mxu0 0.0
    %5212 = vmatpush1.msra.mxu0 0.0
    %5213 = vmatprep.subr.mxu0 0.0
    %5214 = vmatpush1.msra.mxu0 0.0
    %5215 = vmatprep.subr.mxu0 0.0
    %5216 = vmatpush1.msra.mxu0 0.0
    %5217 = vmatprep.subr.mxu0 0.0
    %5218 = vmatpush1.msra.mxu0 0.0
    %5219 = vmatprep.subr.mxu0 0.0
    %5220 = vmatpush1.msra.mxu0 0.0
    %5221 = vmatprep.subr.mxu0 0.0
    %5222 = vmatpush1.msra.mxu0 0.0
    %5223 = vmatprep.subr.mxu0 0.0
    %5224 = vmatpush1.msra.mxu0 0.0
    %5225 = vmatprep.subr.mxu0 0.0
    %5226 = vmatpush1.msra.mxu0 0.0
    %5227 = vmatprep.subr.mxu0 0.0
    %5228 = vmatpush1.msra.mxu0 0.0
    %5229 = vmatprep.mubr.f32.mxu0 0.0
    %v5230 = vand.u32 %v4636, 4294901760
    %5231 = vmatmul.mubr.f32.gmra.mrb[0].mxu0 %v5230
    %v5232 = vpop.f32.mrb[0].mxu0
    %v5233 = vadd.f32 %v4772, %v5232
    %v5234 = vpop.f32.mrb[0].mxu0
    %5235 = vmatprep.mubr.f32.mxu0 0.0
    %v5236 = vand.u32 %v4637, 4294901760
    %5237 = vmatmul.mubr.f32.gmra.mrb[0].mxu0 %v5236
    %v5238 = vpop.f32.mrb[0].mxu0
    %v5239 = vadd.f32 %v4782, %v5238
    %v5240 = vpop.f32.mrb[0].mxu0
    %5241 = vmatprep.mubr.f32.mxu0 0.0
    %v5242 = vand.u32 %v4638, 4294901760
    %5243 = vmatmul.mubr.f32.gmra.mrb[0].mxu0 %v5242
    %v5244 = vpop.f32.mrb[0].mxu0
    %v5245 = vadd.f32 %v4792, %v5244
    %v5246 = vpop.f32.mrb[0].mxu0
    %5247 = vmatprep.mubr.f32.mxu0 0.0
    %v5248 = vand.u32 %v4639, 4294901760
    %5249 = vmatmul.mubr.f32.gmra.mrb[0].mxu0 %v5248
    %v5250 = vpop.f32.mrb[0].mxu0
    %v5251 = vadd.f32 %v4802, %v5250
    %v5252 = vpop.f32.mrb[0].mxu0
    %5253 = vmatprep.mubr.f32.mxu0 0.0
    %v5254 = vand.u32 %v4640, 4294901760
    %5255 = vmatmul.mubr.f32.gmra.mrb[0].mxu0 %v5254
    %v5256 = vpop.f32.mrb[0].mxu0
    %v5257 = vadd.f32 %v4812, %v5256
    %v5258 = vpop.f32.mrb[0].mxu0
    %5259 = vmatprep.mubr.f32.mxu0 0.0
    %v5260 = vand.u32 %v4641, 4294901760
    %5261 = vmatmul.mubr.f32.gmra.mrb[0].mxu0 %v5260
    %v5262 = vpop.f32.mrb[0].mxu0
    %v5263 = vadd.f32 %v4822, %v5262
    %v5264 = vpop.f32.mrb[0].mxu0
    %5265 = vmatprep.mubr.f32.mxu0 0.0
    %v5266 = vand.u32 %v4642, 4294901760
    %5267 = vmatmul.mubr.f32.gmra.mrb[0].mxu0 %v5266
    %v5268 = vpop.f32.mrb[0].mxu0
    %v5269 = vadd.f32 %v4832, %v5268
    %v5270 = vpop.f32.mrb[0].mxu0
    %5271 = vmatprep.mubr.f32.mxu0 0.0
    %v5272 = vand.u32 %v4643, 4294901760
    %5273 = vmatmul.mubr.f32.gmra.mrb[0].mxu0 %v5272
    %v5274 = vpop.f32.mrb[0].mxu0
    %v5275 = vadd.f32 %v4842, %v5274
    %v5276 = vpop.f32.mrb[0].mxu0
    %5277 = vmatprep.mubr.f32.mxu0 0.0
    %v5278 = vand.u32 %v4644, 4294901760
    %5279 = vmatmul.mubr.f32.gmra.mrb[0].mxu0 %v5278
    %v5280 = vpop.f32.mrb[0].mxu0
    %v5281 = vadd.f32 %v4852, %v5280
    %v5282 = vpop.f32.mrb[0].mxu0
    %5283 = vmatprep.mubr.f32.mxu0 0.0
    %v5284 = vand.u32 %v4645, 4294901760
    %5285 = vmatmul.mubr.f32.gmra.mrb[0].mxu0 %v5284
    %v5286 = vpop.f32.mrb[0].mxu0
    %v5287 = vadd.f32 %v4862, %v5286
    %v5288 = vpop.f32.mrb[0].mxu0
    %5289 = vmatprep.mubr.f32.mxu0 0.0
    %v5290 = vand.u32 %v4646, 4294901760
    %5291 = vmatmul.mubr.f32.gmra.mrb[0].mxu0 %v5290
    %v5292 = vpop.f32.mrb[0].mxu0
    %v5293 = vadd.f32 %v4872, %v5292
    %v5294 = vpop.f32.mrb[0].mxu0
    %5295 = vmatprep.mubr.f32.mxu0 0.0
    %v5296 = vand.u32 %v4647, 4294901760
    %5297 = vmatmul.mubr.f32.gmra.mrb[0].mxu0 %v5296
    %v5298 = vpop.f32.mrb[0].mxu0
    %v5299 = vadd.f32 %v4882, %v5298
    %v5300 = vpop.f32.mrb[0].mxu0
    %5301 = vmatprep.mubr.f32.mxu0 0.0
    %v5302 = vand.u32 %v4648, 4294901760
    %5303 = vmatmul.mubr.f32.gmra.mrb[0].mxu0 %v5302
    %v5304 = vpop.f32.mrb[0].mxu0
    %v5305 = vadd.f32 %v4892, %v5304
    %v5306 = vpop.f32.mrb[0].mxu0
    %5307 = vmatprep.mubr.f32.mxu0 0.0
    %v5308 = vand.u32 %v4649, 4294901760
    %5309 = vmatmul.mubr.f32.gmra.mrb[0].mxu0 %v5308
    %v5310 = vpop.f32.mrb[0].mxu0
    %v5311 = vadd.f32 %v4902, %v5310
    %v5312 = vpop.f32.mrb[0].mxu0
    %5313 = vmatprep.mubr.f32.mxu0 0.0
    %v5314 = vand.u32 %v4650, 4294901760
    %5315 = vmatmul.mubr.f32.gmra.mrb[0].mxu0 %v5314
    %v5316 = vpop.f32.mrb[0].mxu0
    %v5317 = vadd.f32 %v4912, %v5316
    %v5318 = vpop.f32.mrb[0].mxu0
    %5319 = vmatprep.mubr.f32.mxu0 0.0
    %v5320 = vand.u32 %v4651, 4294901760
    %5321 = vmatmul.mubr.f32.gmra.mrb[0].mxu0 %v5320
    %v5322 = vpop.f32.mrb[0].mxu0
    %v5323 = vadd.f32 %v4922, %v5322
    %v5324 = vpop.f32.mrb[0].mxu0
    %5325 = vmatprep.mubr.f32.mxu0 0.0
    %v5326 = vand.u32 %v4652, 4294901760
    %5327 = vmatmul.mubr.f32.gmra.mrb[0].mxu0 %v5326
    %v5328 = vpop.f32.mrb[0].mxu0
    %v5329 = vadd.f32 %v4932, %v5328
    %v5330 = vpop.f32.mrb[0].mxu0
    %5331 = vmatprep.mubr.f32.mxu0 0.0
    %v5332 = vand.u32 %v4653, 4294901760
    %5333 = vmatmul.mubr.f32.gmra.mrb[0].mxu0 %v5332
    %v5334 = vpop.f32.mrb[0].mxu0
    %v5335 = vadd.f32 %v4942, %v5334
    %v5336 = vpop.f32.mrb[0].mxu0
    %5337 = vmatprep.mubr.f32.mxu0 0.0
    %v5338 = vand.u32 %v4654, 4294901760
    %5339 = vmatmul.mubr.f32.gmra.mrb[0].mxu0 %v5338
    %v5340 = vpop.f32.mrb[0].mxu0
    %v5341 = vadd.f32 %v4952, %v5340
    %v5342 = vpop.f32.mrb[0].mxu0
    %5343 = vmatprep.mubr.f32.mxu0 0.0
    %v5344 = vand.u32 %v4655, 4294901760
    %5345 = vmatmul.mubr.f32.gmra.mrb[0].mxu0 %v5344
    %v5346 = vpop.f32.mrb[0].mxu0
    %v5347 = vadd.f32 %v4962, %v5346
    %v5348 = vpop.f32.mrb[0].mxu0
    %5349 = vmatprep.mubr.f32.mxu0 0.0
    %v5350 = vand.u32 %v4656, 4294901760
    %5351 = vmatmul.mubr.f32.gmra.mrb[0].mxu0 %v5350
    %v5352 = vpop.f32.mrb[0].mxu0
    %v5353 = vadd.f32 %v4972, %v5352
    %v5354 = vpop.f32.mrb[0].mxu0
    %5355 = vmatprep.mubr.f32.mxu0 0.0
    %v5356 = vand.u32 %v4657, 4294901760
    %5357 = vmatmul.mubr.f32.gmra.mrb[0].mxu0 %v5356
    %v5358 = vpop.f32.mrb[0].mxu0
    %v5359 = vadd.f32 %v4982, %v5358
    %v5360 = vpop.f32.mrb[0].mxu0
    %5361 = vmatprep.mubr.f32.mxu0 0.0
    %v5362 = vand.u32 %v4658, 4294901760
    %5363 = vmatmul.mubr.f32.gmra.mrb[0].mxu0 %v5362
    %v5364 = vpop.f32.mrb[0].mxu0
    %v5365 = vadd.f32 %v4992, %v5364
    %v5366 = vpop.f32.mrb[0].mxu0
    %5367 = vmatprep.mubr.f32.mxu0 0.0
    %v5368 = vand.u32 %v4659, 4294901760
    %5369 = vmatmul.mubr.f32.gmra.mrb[0].mxu0 %v5368
    %v5370 = vpop.f32.mrb[0].mxu0
    %v5371 = vadd.f32 %v5002, %v5370
    %v5372 = vpop.f32.mrb[0].mxu0
    %5373 = vmatprep.mubr.f32.mxu0 0.0
    %v5374 = vand.u32 %v4660, 4294901760
    %5375 = vmatmul.mubr.f32.gmra.mrb[0].mxu0 %v5374
    %v5376 = vpop.f32.mrb[0].mxu0
    %v5377 = vadd.f32 %v5012, %v5376
    %v5378 = vpop.f32.mrb[0].mxu0
    %5379 = vmatprep.mubr.f32.mxu0 0.0
    %v5380 = vand.u32 %v4661, 4294901760
    %5381 = vmatmul.mubr.f32.gmra.mrb[0].mxu0 %v5380
    %v5382 = vpop.f32.mrb[0].mxu0
    %v5383 = vadd.f32 %v5022, %v5382
    %v5384 = vpop.f32.mrb[0].mxu0
    %5385 = vmatprep.mubr.f32.mxu0 0.0
    %v5386 = vand.u32 %v4662, 4294901760
    %5387 = vmatmul.mubr.f32.gmra.mrb[0].mxu0 %v5386
    %v5388 = vpop.f32.mrb[0].mxu0
    %v5389 = vadd.f32 %v5032, %v5388
    %v5390 = vpop.f32.mrb[0].mxu0
    %5391 = vmatprep.mubr.f32.mxu0 0.0
    %v5392 = vand.u32 %v4663, 4294901760
    %5393 = vmatmul.mubr.f32.gmra.mrb[0].mxu0 %v5392
    %v5394 = vpop.f32.mrb[0].mxu0
    %v5395 = vadd.f32 %v5042, %v5394
    %v5396 = vpop.f32.mrb[0].mxu0
    %5397 = vmatprep.mubr.f32.mxu0 0.0
    %v5398 = vand.u32 %v4664, 4294901760
    %5399 = vmatmul.mubr.f32.gmra.mrb[0].mxu0 %v5398
    %v5400 = vpop.f32.mrb[0].mxu0
    %v5401 = vadd.f32 %v5052, %v5400
    %v5402 = vpop.f32.mrb[0].mxu0
    %5403 = vmatprep.mubr.f32.mxu0 0.0
    %v5404 = vand.u32 %v4665, 4294901760
    %5405 = vmatmul.mubr.f32.gmra.mrb[0].mxu0 %v5404
    %v5406 = vpop.f32.mrb[0].mxu0
    %v5407 = vadd.f32 %v5062, %v5406
    %v5408 = vpop.f32.mrb[0].mxu0
    %5409 = vmatprep.mubr.f32.mxu0 0.0
    %v5410 = vand.u32 %v4666, 4294901760
    %5411 = vmatmul.mubr.f32.gmra.mrb[0].mxu0 %v5410
    %v5412 = vpop.f32.mrb[0].mxu0
    %v5413 = vadd.f32 %v5072, %v5412
    %v5414 = vpop.f32.mrb[0].mxu0
    %5415 = vmatprep.mubr.f32.mxu0 0.0
    %v5416 = vand.u32 %v4667, 4294901760
    %5417 = vmatmul.mubr.f32.gmra.mrb[0].mxu0 %v5416
    %v5418 = vpop.f32.mrb[0].mxu0
    %v5419 = vadd.f32 %v5082, %v5418
    %v5420 = vpop.f32.mrb[0].mxu0
    %5421 = vdwg.mxu0
    %5422 = vmatprep.subr.mxu0 0.0
    %v5423 = vand.u32 %v4668, 4294901760
    %v5424 = vsub.f32 %v4668, %v5423
    %5425 = vmatpush1.msra.mxu0 %v5424
    %5426 = vmatprep.subr.mxu0 0.0
    %v5427 = vand.u32 %v4669, 4294901760
    %v5428 = vsub.f32 %v4669, %v5427
    %5429 = vmatpush1.msra.mxu0 %v5428
    %5430 = vmatprep.subr.mxu0 0.0
    %v5431 = vand.u32 %v4670, 4294901760
    %v5432 = vsub.f32 %v4670, %v5431
    %5433 = vmatpush1.msra.mxu0 %v5432
    %5434 = vmatprep.subr.mxu0 0.0
    %v5435 = vand.u32 %v4671, 4294901760
    %v5436 = vsub.f32 %v4671, %v5435
    %5437 = vmatpush1.msra.mxu0 %v5436
    %5438 = vmatprep.subr.mxu0 0.0
    %v5439 = vand.u32 %v4672, 4294901760
    %v5440 = vsub.f32 %v4672, %v5439
    %5441 = vmatpush1.msra.mxu0 %v5440
    %5442 = vmatprep.subr.mxu0 0.0
    %v5443 = vand.u32 %v4673, 4294901760
    %v5444 = vsub.f32 %v4673, %v5443
    %5445 = vmatpush1.msra.mxu0 %v5444
    %5446 = vmatprep.subr.mxu0 0.0
    %v5447 = vand.u32 %v4674, 4294901760
    %v5448 = vsub.f32 %v4674, %v5447
    %5449 = vmatpush1.msra.mxu0 %v5448
    %5450 = vmatprep.subr.mxu0 0.0
    %v5451 = vand.u32 %v4675, 4294901760
    %v5452 = vsub.f32 %v4675, %v5451
    %5453 = vmatpush1.msra.mxu0 %v5452
    %5454 = vmatprep.subr.mxu0 0.0
    %v5455 = vand.u32 %v4676, 4294901760
    %v5456 = vsub.f32 %v4676, %v5455
    %5457 = vmatpush1.msra.mxu0 %v5456
    %5458 = vmatprep.subr.mxu0 0.0
    %v5459 = vand.u32 %v4677, 4294901760
    %v5460 = vsub.f32 %v4677, %v5459
    %5461 = vmatpush1.msra.mxu0 %v5460
    %5462 = vmatprep.subr.mxu0 0.0
    %v5463 = vand.u32 %v4678, 4294901760
    %v5464 = vsub.f32 %v4678, %v5463
    %5465 = vmatpush1.msra.mxu0 %v5464
    %5466 = vmatprep.subr.mxu0 0.0
    %v5467 = vand.u32 %v4679, 4294901760
    %v5468 = vsub.f32 %v4679, %v5467
    %5469 = vmatpush1.msra.mxu0 %v5468
    %5470 = vmatprep.subr.mxu0 0.0
    %v5471 = vand.u32 %v4680, 4294901760
    %v5472 = vsub.f32 %v4680, %v5471
    %5473 = vmatpush1.msra.mxu0 %v5472
    %5474 = vmatprep.subr.mxu0 0.0
    %v5475 = vand.u32 %v4681, 4294901760
    %v5476 = vsub.f32 %v4681, %v5475
    %5477 = vmatpush1.msra.mxu0 %v5476
    %5478 = vmatprep.subr.mxu0 0.0
    %v5479 = vand.u32 %v4682, 4294901760
    %v5480 = vsub.f32 %v4682, %v5479
    %5481 = vmatpush1.msra.mxu0 %v5480
    %5482 = vmatprep.subr.mxu0 0.0
    %v5483 = vand.u32 %v4683, 4294901760
    %v5484 = vsub.f32 %v4683, %v5483
    %5485 = vmatpush1.msra.mxu0 %v5484
    %5486 = vmatprep.subr.mxu0 0.0
    %5487 = vmatpush1.msra.mxu0 0.0
    %5488 = vmatprep.subr.mxu0 0.0
    %5489 = vmatpush1.msra.mxu0 0.0
    %5490 = vmatprep.subr.mxu0 0.0
    %5491 = vmatpush1.msra.mxu0 0.0
    %5492 = vmatprep.subr.mxu0 0.0
    %5493 = vmatpush1.msra.mxu0 0.0
    %5494 = vmatprep.subr.mxu0 0.0
    %5495 = vmatpush1.msra.mxu0 0.0
    %5496 = vmatprep.subr.mxu0 0.0
    %5497 = vmatpush1.msra.mxu0 0.0
    %5498 = vmatprep.subr.mxu0 0.0
    %5499 = vmatpush1.msra.mxu0 0.0
    %5500 = vmatprep.subr.mxu0 0.0
    %5501 = vmatpush1.msra.mxu0 0.0
    %5502 = vmatprep.subr.mxu0 0.0
    %5503 = vmatpush1.msra.mxu0 0.0
    %5504 = vmatprep.subr.mxu0 0.0
    %5505 = vmatpush1.msra.mxu0 0.0
    %5506 = vmatprep.subr.mxu0 0.0
    %5507 = vmatpush1.msra.mxu0 0.0
    %5508 = vmatprep.subr.mxu0 0.0
    %5509 = vmatpush1.msra.mxu0 0.0
    %5510 = vmatprep.subr.mxu0 0.0
    %5511 = vmatpush1.msra.mxu0 0.0
    %5512 = vmatprep.subr.mxu0 0.0
    %5513 = vmatpush1.msra.mxu0 0.0
    %5514 = vmatprep.subr.mxu0 0.0
    %5515 = vmatpush1.msra.mxu0 0.0
    %5516 = vmatprep.subr.mxu0 0.0
    %5517 = vmatpush1.msra.mxu0 0.0
    %5518 = vmatprep.mubr.f32.mxu0 0.0
    %v5519 = vand.u32 %v4636, 4294901760
    %v5520 = vsub.f32 %v4636, %v5519
    %5521 = vmatmul.mubr.f32.gmra.mrb[0].mxu0 %v5520
    %v5522 = vpop.f32.mrb[0].mxu0
    %v5523 = vadd.f32 %v5233, %v5522
    %v5524 = vpop.f32.mrb[0].mxu0
    %5525 = vmatprep.mubr.f32.mxu0 0.0
    %v5526 = vand.u32 %v4637, 4294901760
    %v5527 = vsub.f32 %v4637, %v5526
    %5528 = vmatmul.mubr.f32.gmra.mrb[0].mxu0 %v5527
    %v5529 = vpop.f32.mrb[0].mxu0
    %v5530 = vadd.f32 %v5239, %v5529
    %v5531 = vpop.f32.mrb[0].mxu0
    %5532 = vmatprep.mubr.f32.mxu0 0.0
    %v5533 = vand.u32 %v4638, 4294901760
    %v5534 = vsub.f32 %v4638, %v5533
    %5535 = vmatmul.mubr.f32.gmra.mrb[0].mxu0 %v5534
    %v5536 = vpop.f32.mrb[0].mxu0
    %v5537 = vadd.f32 %v5245, %v5536
    %v5538 = vpop.f32.mrb[0].mxu0
    %5539 = vmatprep.mubr.f32.mxu0 0.0
    %v5540 = vand.u32 %v4639, 4294901760
    %v5541 = vsub.f32 %v4639, %v5540
    %5542 = vmatmul.mubr.f32.gmra.mrb[0].mxu0 %v5541
    %v5543 = vpop.f32.mrb[0].mxu0
    %v5544 = vadd.f32 %v5251, %v5543
    %v5545 = vpop.f32.mrb[0].mxu0
    %5546 = vmatprep.mubr.f32.mxu0 0.0
    %v5547 = vand.u32 %v4640, 4294901760
    %v5548 = vsub.f32 %v4640, %v5547
    %5549 = vmatmul.mubr.f32.gmra.mrb[0].mxu0 %v5548
    %v5550 = vpop.f32.mrb[0].mxu0
    %v5551 = vadd.f32 %v5257, %v5550
    %v5552 = vpop.f32.mrb[0].mxu0
    %5553 = vmatprep.mubr.f32.mxu0 0.0
    %v5554 = vand.u32 %v4641, 4294901760
    %v5555 = vsub.f32 %v4641, %v5554
    %5556 = vmatmul.mubr.f32.gmra.mrb[0].mxu0 %v5555
    %v5557 = vpop.f32.mrb[0].mxu0
    %v5558 = vadd.f32 %v5263, %v5557
    %v5559 = vpop.f32.mrb[0].mxu0
    %5560 = vmatprep.mubr.f32.mxu0 0.0
    %v5561 = vand.u32 %v4642, 4294901760
    %v5562 = vsub.f32 %v4642, %v5561
    %5563 = vmatmul.mubr.f32.gmra.mrb[0].mxu0 %v5562
    %v5564 = vpop.f32.mrb[0].mxu0
    %v5565 = vadd.f32 %v5269, %v5564
    %v5566 = vpop.f32.mrb[0].mxu0
    %5567 = vmatprep.mubr.f32.mxu0 0.0
    %v5568 = vand.u32 %v4643, 4294901760
    %v5569 = vsub.f32 %v4643, %v5568
    %5570 = vmatmul.mubr.f32.gmra.mrb[0].mxu0 %v5569
    %v5571 = vpop.f32.mrb[0].mxu0
    %v5572 = vadd.f32 %v5275, %v5571
    %v5573 = vpop.f32.mrb[0].mxu0
    %5574 = vmatprep.mubr.f32.mxu0 0.0
    %v5575 = vand.u32 %v4644, 4294901760
    %v5576 = vsub.f32 %v4644, %v5575
    %5577 = vmatmul.mubr.f32.gmra.mrb[0].mxu0 %v5576
    %v5578 = vpop.f32.mrb[0].mxu0
    %v5579 = vadd.f32 %v5281, %v5578
    %v5580 = vpop.f32.mrb[0].mxu0
    %5581 = vmatprep.mubr.f32.mxu0 0.0
    %v5582 = vand.u32 %v4645, 4294901760
    %v5583 = vsub.f32 %v4645, %v5582
    %5584 = vmatmul.mubr.f32.gmra.mrb[0].mxu0 %v5583
    %v5585 = vpop.f32.mrb[0].mxu0
    %v5586 = vadd.f32 %v5287, %v5585
    %v5587 = vpop.f32.mrb[0].mxu0
    %5588 = vmatprep.mubr.f32.mxu0 0.0
    %v5589 = vand.u32 %v4646, 4294901760
    %v5590 = vsub.f32 %v4646, %v5589
    %5591 = vmatmul.mubr.f32.gmra.mrb[0].mxu0 %v5590
    %v5592 = vpop.f32.mrb[0].mxu0
    %v5593 = vadd.f32 %v5293, %v5592
    %v5594 = vpop.f32.mrb[0].mxu0
    %5595 = vmatprep.mubr.f32.mxu0 0.0
    %v5596 = vand.u32 %v4647, 4294901760
    %v5597 = vsub.f32 %v4647, %v5596
    %5598 = vmatmul.mubr.f32.gmra.mrb[0].mxu0 %v5597
    %v5599 = vpop.f32.mrb[0].mxu0
    %v5600 = vadd.f32 %v5299, %v5599
    %v5601 = vpop.f32.mrb[0].mxu0
    %5602 = vmatprep.mubr.f32.mxu0 0.0
    %v5603 = vand.u32 %v4648, 4294901760
    %v5604 = vsub.f32 %v4648, %v5603
    %5605 = vmatmul.mubr.f32.gmra.mrb[0].mxu0 %v5604
    %v5606 = vpop.f32.mrb[0].mxu0
    %v5607 = vadd.f32 %v5305, %v5606
    %v5608 = vpop.f32.mrb[0].mxu0
    %5609 = vmatprep.mubr.f32.mxu0 0.0
    %v5610 = vand.u32 %v4649, 4294901760
    %v5611 = vsub.f32 %v4649, %v5610
    %5612 = vmatmul.mubr.f32.gmra.mrb[0].mxu0 %v5611
    %v5613 = vpop.f32.mrb[0].mxu0
    %v5614 = vadd.f32 %v5311, %v5613
    %v5615 = vpop.f32.mrb[0].mxu0
    %5616 = vmatprep.mubr.f32.mxu0 0.0
    %v5617 = vand.u32 %v4650, 4294901760
    %v5618 = vsub.f32 %v4650, %v5617
    %5619 = vmatmul.mubr.f32.gmra.mrb[0].mxu0 %v5618
    %v5620 = vpop.f32.mrb[0].mxu0
    %v5621 = vadd.f32 %v5317, %v5620
    %v5622 = vpop.f32.mrb[0].mxu0
    %5623 = vmatprep.mubr.f32.mxu0 0.0
    %v5624 = vand.u32 %v4651, 4294901760
    %v5625 = vsub.f32 %v4651, %v5624
    %5626 = vmatmul.mubr.f32.gmra.mrb[0].mxu0 %v5625
    %v5627 = vpop.f32.mrb[0].mxu0
    %v5628 = vadd.f32 %v5323, %v5627
    %v5629 = vpop.f32.mrb[0].mxu0
    %5630 = vmatprep.mubr.f32.mxu0 0.0
    %v5631 = vand.u32 %v4652, 4294901760
    %v5632 = vsub.f32 %v4652, %v5631
    %5633 = vmatmul.mubr.f32.gmra.mrb[0].mxu0 %v5632
    %v5634 = vpop.f32.mrb[0].mxu0
    %v5635 = vadd.f32 %v5329, %v5634
    %v5636 = vpop.f32.mrb[0].mxu0
    %5637 = vmatprep.mubr.f32.mxu0 0.0
    %v5638 = vand.u32 %v4653, 4294901760
    %v5639 = vsub.f32 %v4653, %v5638
    %5640 = vmatmul.mubr.f32.gmra.mrb[0].mxu0 %v5639
    %v5641 = vpop.f32.mrb[0].mxu0
    %v5642 = vadd.f32 %v5335, %v5641
    %v5643 = vpop.f32.mrb[0].mxu0
    %5644 = vmatprep.mubr.f32.mxu0 0.0
    %v5645 = vand.u32 %v4654, 4294901760
    %v5646 = vsub.f32 %v4654, %v5645
    %5647 = vmatmul.mubr.f32.gmra.mrb[0].mxu0 %v5646
    %v5648 = vpop.f32.mrb[0].mxu0
    %v5649 = vadd.f32 %v5341, %v5648
    %v5650 = vpop.f32.mrb[0].mxu0
    %5651 = vmatprep.mubr.f32.mxu0 0.0
    %v5652 = vand.u32 %v4655, 4294901760
    %v5653 = vsub.f32 %v4655, %v5652
    %5654 = vmatmul.mubr.f32.gmra.mrb[0].mxu0 %v5653
    %v5655 = vpop.f32.mrb[0].mxu0
    %v5656 = vadd.f32 %v5347, %v5655
    %v5657 = vpop.f32.mrb[0].mxu0
    %5658 = vmatprep.mubr.f32.mxu0 0.0
    %v5659 = vand.u32 %v4656, 4294901760
    %v5660 = vsub.f32 %v4656, %v5659
    %5661 = vmatmul.mubr.f32.gmra.mrb[0].mxu0 %v5660
    %v5662 = vpop.f32.mrb[0].mxu0
    %v5663 = vadd.f32 %v5353, %v5662
    %v5664 = vpop.f32.mrb[0].mxu0
    %5665 = vmatprep.mubr.f32.mxu0 0.0
    %v5666 = vand.u32 %v4657, 4294901760
    %v5667 = vsub.f32 %v4657, %v5666
    %5668 = vmatmul.mubr.f32.gmra.mrb[0].mxu0 %v5667
    %v5669 = vpop.f32.mrb[0].mxu0
    %v5670 = vadd.f32 %v5359, %v5669
    %v5671 = vpop.f32.mrb[0].mxu0
    %5672 = vmatprep.mubr.f32.mxu0 0.0
    %v5673 = vand.u32 %v4658, 4294901760
    %v5674 = vsub.f32 %v4658, %v5673
    %5675 = vmatmul.mubr.f32.gmra.mrb[0].mxu0 %v5674
    %v5676 = vpop.f32.mrb[0].mxu0
    %v5677 = vadd.f32 %v5365, %v5676
    %v5678 = vpop.f32.mrb[0].mxu0
    %5679 = vmatprep.mubr.f32.mxu0 0.0
    %v5680 = vand.u32 %v4659, 4294901760
    %v5681 = vsub.f32 %v4659, %v5680
    %5682 = vmatmul.mubr.f32.gmra.mrb[0].mxu0 %v5681
    %v5683 = vpop.f32.mrb[0].mxu0
    %v5684 = vadd.f32 %v5371, %v5683
    %v5685 = vpop.f32.mrb[0].mxu0
    %5686 = vmatprep.mubr.f32.mxu0 0.0
    %v5687 = vand.u32 %v4660, 4294901760
    %v5688 = vsub.f32 %v4660, %v5687
    %5689 = vmatmul.mubr.f32.gmra.mrb[0].mxu0 %v5688
    %v5690 = vpop.f32.mrb[0].mxu0
    %v5691 = vadd.f32 %v5377, %v5690
    %v5692 = vpop.f32.mrb[0].mxu0
    %5693 = vmatprep.mubr.f32.mxu0 0.0
    %v5694 = vand.u32 %v4661, 4294901760
    %v5695 = vsub.f32 %v4661, %v5694
    %5696 = vmatmul.mubr.f32.gmra.mrb[0].mxu0 %v5695
    %v5697 = vpop.f32.mrb[0].mxu0
    %v5698 = vadd.f32 %v5383, %v5697
    %v5699 = vpop.f32.mrb[0].mxu0
    %5700 = vmatprep.mubr.f32.mxu0 0.0
    %v5701 = vand.u32 %v4662, 4294901760
    %v5702 = vsub.f32 %v4662, %v5701
    %5703 = vmatmul.mubr.f32.gmra.mrb[0].mxu0 %v5702
    %v5704 = vpop.f32.mrb[0].mxu0
    %v5705 = vadd.f32 %v5389, %v5704
    %v5706 = vpop.f32.mrb[0].mxu0
    %5707 = vmatprep.mubr.f32.mxu0 0.0
    %v5708 = vand.u32 %v4663, 4294901760
    %v5709 = vsub.f32 %v4663, %v5708
    %5710 = vmatmul.mubr.f32.gmra.mrb[0].mxu0 %v5709
    %v5711 = vpop.f32.mrb[0].mxu0
    %v5712 = vadd.f32 %v5395, %v5711
    %v5713 = vpop.f32.mrb[0].mxu0
    %5714 = vmatprep.mubr.f32.mxu0 0.0
    %v5715 = vand.u32 %v4664, 4294901760
    %v5716 = vsub.f32 %v4664, %v5715
    %5717 = vmatmul.mubr.f32.gmra.mrb[0].mxu0 %v5716
    %v5718 = vpop.f32.mrb[0].mxu0
    %v5719 = vadd.f32 %v5401, %v5718
    %v5720 = vpop.f32.mrb[0].mxu0
    %5721 = vmatprep.mubr.f32.mxu0 0.0
    %v5722 = vand.u32 %v4665, 4294901760
    %v5723 = vsub.f32 %v4665, %v5722
    %5724 = vmatmul.mubr.f32.gmra.mrb[0].mxu0 %v5723
    %v5725 = vpop.f32.mrb[0].mxu0
    %v5726 = vadd.f32 %v5407, %v5725
    %v5727 = vpop.f32.mrb[0].mxu0
    %5728 = vmatprep.mubr.f32.mxu0 0.0
    %v5729 = vand.u32 %v4666, 4294901760
    %v5730 = vsub.f32 %v4666, %v5729
    %5731 = vmatmul.mubr.f32.gmra.mrb[0].mxu0 %v5730
    %v5732 = vpop.f32.mrb[0].mxu0
    %v5733 = vadd.f32 %v5413, %v5732
    %v5734 = vpop.f32.mrb[0].mxu0
    %5735 = vmatprep.mubr.f32.mxu0 0.0
    %v5736 = vand.u32 %v4667, 4294901760
    %v5737 = vsub.f32 %v4667, %v5736
    %5738 = vmatmul.mubr.f32.gmra.mrb[0].mxu0 %v5737
    %v5739 = vpop.f32.mrb[0].mxu0
    %v5740 = vadd.f32 %v5419, %v5739
    %v5741 = vpop.f32.mrb[0].mxu0
    %5742 = vdwg.mxu0
    %5743 = vmatprep.subr.mxu0 0.0
    %v5744 = vand.u32 %v4668, 4294901760
    %5745 = vmatpush1.msra.mxu0 %v5744
    %5746 = vmatprep.subr.mxu0 0.0
    %v5747 = vand.u32 %v4669, 4294901760
    %5748 = vmatpush1.msra.mxu0 %v5747
    %5749 = vmatprep.subr.mxu0 0.0
    %v5750 = vand.u32 %v4670, 4294901760
    %5751 = vmatpush1.msra.mxu0 %v5750
    %5752 = vmatprep.subr.mxu0 0.0
    %v5753 = vand.u32 %v4671, 4294901760
    %5754 = vmatpush1.msra.mxu0 %v5753
    %5755 = vmatprep.subr.mxu0 0.0
    %v5756 = vand.u32 %v4672, 4294901760
    %5757 = vmatpush1.msra.mxu0 %v5756
    %5758 = vmatprep.subr.mxu0 0.0
    %v5759 = vand.u32 %v4673, 4294901760
    %5760 = vmatpush1.msra.mxu0 %v5759
    %5761 = vmatprep.subr.mxu0 0.0
    %v5762 = vand.u32 %v4674, 4294901760
    %5763 = vmatpush1.msra.mxu0 %v5762
    %5764 = vmatprep.subr.mxu0 0.0
    %v5765 = vand.u32 %v4675, 4294901760
    %5766 = vmatpush1.msra.mxu0 %v5765
    %5767 = vmatprep.subr.mxu0 0.0
    %v5768 = vand.u32 %v4676, 4294901760
    %5769 = vmatpush1.msra.mxu0 %v5768
    %5770 = vmatprep.subr.mxu0 0.0
    %v5771 = vand.u32 %v4677, 4294901760
    %5772 = vmatpush1.msra.mxu0 %v5771
    %5773 = vmatprep.subr.mxu0 0.0
    %v5774 = vand.u32 %v4678, 4294901760
    %5775 = vmatpush1.msra.mxu0 %v5774
    %5776 = vmatprep.subr.mxu0 0.0
    %v5777 = vand.u32 %v4679, 4294901760
    %5778 = vmatpush1.msra.mxu0 %v5777
    %5779 = vmatprep.subr.mxu0 0.0
    %v5780 = vand.u32 %v4680, 4294901760
    %5781 = vmatpush1.msra.mxu0 %v5780
    %5782 = vmatprep.subr.mxu0 0.0
    %v5783 = vand.u32 %v4681, 4294901760
    %5784 = vmatpush1.msra.mxu0 %v5783
    %5785 = vmatprep.subr.mxu0 0.0
    %v5786 = vand.u32 %v4682, 4294901760
    %5787 = vmatpush1.msra.mxu0 %v5786
    %5788 = vmatprep.subr.mxu0 0.0
    %v5789 = vand.u32 %v4683, 4294901760
    %5790 = vmatpush1.msra.mxu0 %v5789
    %5791 = vmatprep.subr.mxu0 0.0
    %5792 = vmatpush1.msra.mxu0 0.0
    %5793 = vmatprep.subr.mxu0 0.0
    %5794 = vmatpush1.msra.mxu0 0.0
    %5795 = vmatprep.subr.mxu0 0.0
    %5796 = vmatpush1.msra.mxu0 0.0
    %5797 = vmatprep.subr.mxu0 0.0
    %5798 = vmatpush1.msra.mxu0 0.0
    %5799 = vmatprep.subr.mxu0 0.0
    %5800 = vmatpush1.msra.mxu0 0.0
    %5801 = vmatprep.subr.mxu0 0.0
    %5802 = vmatpush1.msra.mxu0 0.0
    %5803 = vmatprep.subr.mxu0 0.0
    %5804 = vmatpush1.msra.mxu0 0.0
    %5805 = vmatprep.subr.mxu0 0.0
    %5806 = vmatpush1.msra.mxu0 0.0
    %5807 = vmatprep.subr.mxu0 0.0
    %5808 = vmatpush1.msra.mxu0 0.0
    %5809 = vmatprep.subr.mxu0 0.0
    %5810 = vmatpush1.msra.mxu0 0.0
    %5811 = vmatprep.subr.mxu0 0.0
    %5812 = vmatpush1.msra.mxu0 0.0
    %5813 = vmatprep.subr.mxu0 0.0
    %5814 = vmatpush1.msra.mxu0 0.0
    %5815 = vmatprep.subr.mxu0 0.0
    %5816 = vmatpush1.msra.mxu0 0.0
    %5817 = vmatprep.subr.mxu0 0.0
    %5818 = vmatpush1.msra.mxu0 0.0
    %5819 = vmatprep.subr.mxu0 0.0
    %5820 = vmatpush1.msra.mxu0 0.0
    %5821 = vmatprep.subr.mxu0 0.0
    %5822 = vmatpush1.msra.mxu0 0.0
    %5823 = vmatprep.mubr.f32.mxu0 0.0
    %v5824 = vand.u32 %v4636, 4294901760
    %v5825 = vsub.f32 %v4636, %v5824
    %v5826 = vand.u32 %v5825, 4294901760
    %5827 = vmatmul.mubr.f32.gmra.mrb[0].mxu0 %v5826
    %v5828 = vpop.f32.mrb[0].mxu0
    %v5829 = vadd.f32 %v5523, %v5828
    %v5830 = vpop.f32.mrb[0].mxu0
    %5831 = vmatprep.mubr.f32.mxu0 0.0
    %v5832 = vand.u32 %v4637, 4294901760
    %v5833 = vsub.f32 %v4637, %v5832
    %v5834 = vand.u32 %v5833, 4294901760
    %5835 = vmatmul.mubr.f32.gmra.mrb[0].mxu0 %v5834
    %v5836 = vpop.f32.mrb[0].mxu0
    %v5837 = vadd.f32 %v5530, %v5836
    %v5838 = vpop.f32.mrb[0].mxu0
    %5839 = vmatprep.mubr.f32.mxu0 0.0
    %v5840 = vand.u32 %v4638, 4294901760
    %v5841 = vsub.f32 %v4638, %v5840
    %v5842 = vand.u32 %v5841, 4294901760
    %5843 = vmatmul.mubr.f32.gmra.mrb[0].mxu0 %v5842
    %v5844 = vpop.f32.mrb[0].mxu0
    %v5845 = vadd.f32 %v5537, %v5844
    %v5846 = vpop.f32.mrb[0].mxu0
    %5847 = vmatprep.mubr.f32.mxu0 0.0
    %v5848 = vand.u32 %v4639, 4294901760
    %v5849 = vsub.f32 %v4639, %v5848
    %v5850 = vand.u32 %v5849, 4294901760
    %5851 = vmatmul.mubr.f32.gmra.mrb[0].mxu0 %v5850
    %v5852 = vpop.f32.mrb[0].mxu0
    %v5853 = vadd.f32 %v5544, %v5852
    %v5854 = vpop.f32.mrb[0].mxu0
    %5855 = vmatprep.mubr.f32.mxu0 0.0
    %v5856 = vand.u32 %v4640, 4294901760
    %v5857 = vsub.f32 %v4640, %v5856
    %v5858 = vand.u32 %v5857, 4294901760
    %5859 = vmatmul.mubr.f32.gmra.mrb[0].mxu0 %v5858
    %v5860 = vpop.f32.mrb[0].mxu0
    %v5861 = vadd.f32 %v5551, %v5860
    %v5862 = vpop.f32.mrb[0].mxu0
    %5863 = vmatprep.mubr.f32.mxu0 0.0
    %v5864 = vand.u32 %v4641, 4294901760
    %v5865 = vsub.f32 %v4641, %v5864
    %v5866 = vand.u32 %v5865, 4294901760
    %5867 = vmatmul.mubr.f32.gmra.mrb[0].mxu0 %v5866
    %v5868 = vpop.f32.mrb[0].mxu0
    %v5869 = vadd.f32 %v5558, %v5868
    %v5870 = vpop.f32.mrb[0].mxu0
    %5871 = vmatprep.mubr.f32.mxu0 0.0
    %v5872 = vand.u32 %v4642, 4294901760
    %v5873 = vsub.f32 %v4642, %v5872
    %v5874 = vand.u32 %v5873, 4294901760
    %5875 = vmatmul.mubr.f32.gmra.mrb[0].mxu0 %v5874
    %v5876 = vpop.f32.mrb[0].mxu0
    %v5877 = vadd.f32 %v5565, %v5876
    %v5878 = vpop.f32.mrb[0].mxu0
    %5879 = vmatprep.mubr.f32.mxu0 0.0
    %v5880 = vand.u32 %v4643, 4294901760
    %v5881 = vsub.f32 %v4643, %v5880
    %v5882 = vand.u32 %v5881, 4294901760
    %5883 = vmatmul.mubr.f32.gmra.mrb[0].mxu0 %v5882
    %v5884 = vpop.f32.mrb[0].mxu0
    %v5885 = vadd.f32 %v5572, %v5884
    %v5886 = vpop.f32.mrb[0].mxu0
    %5887 = vmatprep.mubr.f32.mxu0 0.0
    %v5888 = vand.u32 %v4644, 4294901760
    %v5889 = vsub.f32 %v4644, %v5888
    %v5890 = vand.u32 %v5889, 4294901760
    %5891 = vmatmul.mubr.f32.gmra.mrb[0].mxu0 %v5890
    %v5892 = vpop.f32.mrb[0].mxu0
    %v5893 = vadd.f32 %v5579, %v5892
    %v5894 = vpop.f32.mrb[0].mxu0
    %5895 = vmatprep.mubr.f32.mxu0 0.0
    %v5896 = vand.u32 %v4645, 4294901760
    %v5897 = vsub.f32 %v4645, %v5896
    %v5898 = vand.u32 %v5897, 4294901760
    %5899 = vmatmul.mubr.f32.gmra.mrb[0].mxu0 %v5898
    %v5900 = vpop.f32.mrb[0].mxu0
    %v5901 = vadd.f32 %v5586, %v5900
    %v5902 = vpop.f32.mrb[0].mxu0
    %5903 = vmatprep.mubr.f32.mxu0 0.0
    %v5904 = vand.u32 %v4646, 4294901760
    %v5905 = vsub.f32 %v4646, %v5904
    %v5906 = vand.u32 %v5905, 4294901760
    %5907 = vmatmul.mubr.f32.gmra.mrb[0].mxu0 %v5906
    %v5908 = vpop.f32.mrb[0].mxu0
    %v5909 = vadd.f32 %v5593, %v5908
    %v5910 = vpop.f32.mrb[0].mxu0
    %5911 = vmatprep.mubr.f32.mxu0 0.0
    %v5912 = vand.u32 %v4647, 4294901760
    %v5913 = vsub.f32 %v4647, %v5912
    %v5914 = vand.u32 %v5913, 4294901760
    %5915 = vmatmul.mubr.f32.gmra.mrb[0].mxu0 %v5914
    %v5916 = vpop.f32.mrb[0].mxu0
    %v5917 = vadd.f32 %v5600, %v5916
    %v5918 = vpop.f32.mrb[0].mxu0
    %5919 = vmatprep.mubr.f32.mxu0 0.0
    %v5920 = vand.u32 %v4648, 4294901760
    %v5921 = vsub.f32 %v4648, %v5920
    %v5922 = vand.u32 %v5921, 4294901760
    %5923 = vmatmul.mubr.f32.gmra.mrb[0].mxu0 %v5922
    %v5924 = vpop.f32.mrb[0].mxu0
    %v5925 = vadd.f32 %v5607, %v5924
    %v5926 = vpop.f32.mrb[0].mxu0
    %5927 = vmatprep.mubr.f32.mxu0 0.0
    %v5928 = vand.u32 %v4649, 4294901760
    %v5929 = vsub.f32 %v4649, %v5928
    %v5930 = vand.u32 %v5929, 4294901760
    %5931 = vmatmul.mubr.f32.gmra.mrb[0].mxu0 %v5930
    %v5932 = vpop.f32.mrb[0].mxu0
    %v5933 = vadd.f32 %v5614, %v5932
    %v5934 = vpop.f32.mrb[0].mxu0
    %5935 = vmatprep.mubr.f32.mxu0 0.0
    %v5936 = vand.u32 %v4650, 4294901760
    %v5937 = vsub.f32 %v4650, %v5936
    %v5938 = vand.u32 %v5937, 4294901760
    %5939 = vmatmul.mubr.f32.gmra.mrb[0].mxu0 %v5938
    %v5940 = vpop.f32.mrb[0].mxu0
    %v5941 = vadd.f32 %v5621, %v5940
    %v5942 = vpop.f32.mrb[0].mxu0
    %5943 = vmatprep.mubr.f32.mxu0 0.0
    %v5944 = vand.u32 %v4651, 4294901760
    %v5945 = vsub.f32 %v4651, %v5944
    %v5946 = vand.u32 %v5945, 4294901760
    %5947 = vmatmul.mubr.f32.gmra.mrb[0].mxu0 %v5946
    %v5948 = vpop.f32.mrb[0].mxu0
    %v5949 = vadd.f32 %v5628, %v5948
    %v5950 = vpop.f32.mrb[0].mxu0
    %5951 = vmatprep.mubr.f32.mxu0 0.0
    %v5952 = vand.u32 %v4652, 4294901760
    %v5953 = vsub.f32 %v4652, %v5952
    %v5954 = vand.u32 %v5953, 4294901760
    %5955 = vmatmul.mubr.f32.gmra.mrb[0].mxu0 %v5954
    %v5956 = vpop.f32.mrb[0].mxu0
    %v5957 = vadd.f32 %v5635, %v5956
    %v5958 = vpop.f32.mrb[0].mxu0
    %5959 = vmatprep.mubr.f32.mxu0 0.0
    %v5960 = vand.u32 %v4653, 4294901760
    %v5961 = vsub.f32 %v4653, %v5960
    %v5962 = vand.u32 %v5961, 4294901760
    %5963 = vmatmul.mubr.f32.gmra.mrb[0].mxu0 %v5962
    %v5964 = vpop.f32.mrb[0].mxu0
    %v5965 = vadd.f32 %v5642, %v5964
    %v5966 = vpop.f32.mrb[0].mxu0
    %5967 = vmatprep.mubr.f32.mxu0 0.0
    %v5968 = vand.u32 %v4654, 4294901760
    %v5969 = vsub.f32 %v4654, %v5968
    %v5970 = vand.u32 %v5969, 4294901760
    %5971 = vmatmul.mubr.f32.gmra.mrb[0].mxu0 %v5970
    %v5972 = vpop.f32.mrb[0].mxu0
    %v5973 = vadd.f32 %v5649, %v5972
    %v5974 = vpop.f32.mrb[0].mxu0
    %5975 = vmatprep.mubr.f32.mxu0 0.0
    %v5976 = vand.u32 %v4655, 4294901760
    %v5977 = vsub.f32 %v4655, %v5976
    %v5978 = vand.u32 %v5977, 4294901760
    %5979 = vmatmul.mubr.f32.gmra.mrb[0].mxu0 %v5978
    %v5980 = vpop.f32.mrb[0].mxu0
    %v5981 = vadd.f32 %v5656, %v5980
    %v5982 = vpop.f32.mrb[0].mxu0
    %5983 = vmatprep.mubr.f32.mxu0 0.0
    %v5984 = vand.u32 %v4656, 4294901760
    %v5985 = vsub.f32 %v4656, %v5984
    %v5986 = vand.u32 %v5985, 4294901760
    %5987 = vmatmul.mubr.f32.gmra.mrb[0].mxu0 %v5986
    %v5988 = vpop.f32.mrb[0].mxu0
    %v5989 = vadd.f32 %v5663, %v5988
    %v5990 = vpop.f32.mrb[0].mxu0
    %5991 = vmatprep.mubr.f32.mxu0 0.0
    %v5992 = vand.u32 %v4657, 4294901760
    %v5993 = vsub.f32 %v4657, %v5992
    %v5994 = vand.u32 %v5993, 4294901760
    %5995 = vmatmul.mubr.f32.gmra.mrb[0].mxu0 %v5994
    %v5996 = vpop.f32.mrb[0].mxu0
    %v5997 = vadd.f32 %v5670, %v5996
    %v5998 = vpop.f32.mrb[0].mxu0
    %5999 = vmatprep.mubr.f32.mxu0 0.0
    %v6000 = vand.u32 %v4658, 4294901760
    %v6001 = vsub.f32 %v4658, %v6000
    %v6002 = vand.u32 %v6001, 4294901760
    %6003 = vmatmul.mubr.f32.gmra.mrb[0].mxu0 %v6002
    %v6004 = vpop.f32.mrb[0].mxu0
    %v6005 = vadd.f32 %v5677, %v6004
    %v6006 = vpop.f32.mrb[0].mxu0
    %6007 = vmatprep.mubr.f32.mxu0 0.0
    %v6008 = vand.u32 %v4659, 4294901760
    %v6009 = vsub.f32 %v4659, %v6008
    %v6010 = vand.u32 %v6009, 4294901760
    %6011 = vmatmul.mubr.f32.gmra.mrb[0].mxu0 %v6010
    %v6012 = vpop.f32.mrb[0].mxu0
    %v6013 = vadd.f32 %v5684, %v6012
    %v6014 = vpop.f32.mrb[0].mxu0
    %6015 = vmatprep.mubr.f32.mxu0 0.0
    %v6016 = vand.u32 %v4660, 4294901760
    %v6017 = vsub.f32 %v4660, %v6016
    %v6018 = vand.u32 %v6017, 4294901760
    %6019 = vmatmul.mubr.f32.gmra.mrb[0].mxu0 %v6018
    %v6020 = vpop.f32.mrb[0].mxu0
    %v6021 = vadd.f32 %v5691, %v6020
    %v6022 = vpop.f32.mrb[0].mxu0
    %6023 = vmatprep.mubr.f32.mxu0 0.0
    %v6024 = vand.u32 %v4661, 4294901760
    %v6025 = vsub.f32 %v4661, %v6024
    %v6026 = vand.u32 %v6025, 4294901760
    %6027 = vmatmul.mubr.f32.gmra.mrb[0].mxu0 %v6026
    %v6028 = vpop.f32.mrb[0].mxu0
    %v6029 = vadd.f32 %v5698, %v6028
    %v6030 = vpop.f32.mrb[0].mxu0
    %6031 = vmatprep.mubr.f32.mxu0 0.0
    %v6032 = vand.u32 %v4662, 4294901760
    %v6033 = vsub.f32 %v4662, %v6032
    %v6034 = vand.u32 %v6033, 4294901760
    %6035 = vmatmul.mubr.f32.gmra.mrb[0].mxu0 %v6034
    %v6036 = vpop.f32.mrb[0].mxu0
    %v6037 = vadd.f32 %v5705, %v6036
    %v6038 = vpop.f32.mrb[0].mxu0
    %6039 = vmatprep.mubr.f32.mxu0 0.0
    %v6040 = vand.u32 %v4663, 4294901760
    %v6041 = vsub.f32 %v4663, %v6040
    %v6042 = vand.u32 %v6041, 4294901760
    %6043 = vmatmul.mubr.f32.gmra.mrb[0].mxu0 %v6042
    %v6044 = vpop.f32.mrb[0].mxu0
    %v6045 = vadd.f32 %v5712, %v6044
    %v6046 = vpop.f32.mrb[0].mxu0
    %6047 = vmatprep.mubr.f32.mxu0 0.0
    %v6048 = vand.u32 %v4664, 4294901760
    %v6049 = vsub.f32 %v4664, %v6048
    %v6050 = vand.u32 %v6049, 4294901760
    %6051 = vmatmul.mubr.f32.gmra.mrb[0].mxu0 %v6050
    %v6052 = vpop.f32.mrb[0].mxu0
    %v6053 = vadd.f32 %v5719, %v6052
    %v6054 = vpop.f32.mrb[0].mxu0
    %6055 = vmatprep.mubr.f32.mxu0 0.0
    %v6056 = vand.u32 %v4665, 4294901760
    %v6057 = vsub.f32 %v4665, %v6056
    %v6058 = vand.u32 %v6057, 4294901760
    %6059 = vmatmul.mubr.f32.gmra.mrb[0].mxu0 %v6058
    %v6060 = vpop.f32.mrb[0].mxu0
    %v6061 = vadd.f32 %v5726, %v6060
    %v6062 = vpop.f32.mrb[0].mxu0
    %6063 = vmatprep.mubr.f32.mxu0 0.0
    %v6064 = vand.u32 %v4666, 4294901760
    %v6065 = vsub.f32 %v4666, %v6064
    %v6066 = vand.u32 %v6065, 4294901760
    %6067 = vmatmul.mubr.f32.gmra.mrb[0].mxu0 %v6066
    %v6068 = vpop.f32.mrb[0].mxu0
    %v6069 = vadd.f32 %v5733, %v6068
    %v6070 = vpop.f32.mrb[0].mxu0
    %6071 = vmatprep.mubr.f32.mxu0 0.0
    %v6072 = vand.u32 %v4667, 4294901760
    %v6073 = vsub.f32 %v4667, %v6072
    %v6074 = vand.u32 %v6073, 4294901760
    %6075 = vmatmul.mubr.f32.gmra.mrb[0].mxu0 %v6074
    %v6076 = vpop.f32.mrb[0].mxu0
    %v6077 = vadd.f32 %v5740, %v6076
    %v6078 = vpop.f32.mrb[0].mxu0
    %6079 = vdwg.mxu0
    %6080 = vmatprep.subr.mxu0 0.0
    %v6081 = vand.u32 %v4668, 4294901760
    %v6082 = vsub.f32 %v4668, %v6081
    %v6083 = vand.u32 %v6082, 4294901760
    %6084 = vmatpush1.msra.mxu0 %v6083
    %6085 = vmatprep.subr.mxu0 0.0
    %v6086 = vand.u32 %v4669, 4294901760
    %v6087 = vsub.f32 %v4669, %v6086
    %v6088 = vand.u32 %v6087, 4294901760
    %6089 = vmatpush1.msra.mxu0 %v6088
    %6090 = vmatprep.subr.mxu0 0.0
    %v6091 = vand.u32 %v4670, 4294901760
    %v6092 = vsub.f32 %v4670, %v6091
    %v6093 = vand.u32 %v6092, 4294901760
    %6094 = vmatpush1.msra.mxu0 %v6093
    %6095 = vmatprep.subr.mxu0 0.0
    %v6096 = vand.u32 %v4671, 4294901760
    %v6097 = vsub.f32 %v4671, %v6096
    %v6098 = vand.u32 %v6097, 4294901760
    %6099 = vmatpush1.msra.mxu0 %v6098
    %6100 = vmatprep.subr.mxu0 0.0
    %v6101 = vand.u32 %v4672, 4294901760
    %v6102 = vsub.f32 %v4672, %v6101
    %v6103 = vand.u32 %v6102, 4294901760
    %6104 = vmatpush1.msra.mxu0 %v6103
    %6105 = vmatprep.subr.mxu0 0.0
    %v6106 = vand.u32 %v4673, 4294901760
    %v6107 = vsub.f32 %v4673, %v6106
    %v6108 = vand.u32 %v6107, 4294901760
    %6109 = vmatpush1.msra.mxu0 %v6108
    %6110 = vmatprep.subr.mxu0 0.0
    %v6111 = vand.u32 %v4674, 4294901760
    %v6112 = vsub.f32 %v4674, %v6111
    %v6113 = vand.u32 %v6112, 4294901760
    %6114 = vmatpush1.msra.mxu0 %v6113
    %6115 = vmatprep.subr.mxu0 0.0
    %v6116 = vand.u32 %v4675, 4294901760
    %v6117 = vsub.f32 %v4675, %v6116
    %v6118 = vand.u32 %v6117, 4294901760
    %6119 = vmatpush1.msra.mxu0 %v6118
    %6120 = vmatprep.subr.mxu0 0.0
    %v6121 = vand.u32 %v4676, 4294901760
    %v6122 = vsub.f32 %v4676, %v6121
    %v6123 = vand.u32 %v6122, 4294901760
    %6124 = vmatpush1.msra.mxu0 %v6123
    %6125 = vmatprep.subr.mxu0 0.0
    %v6126 = vand.u32 %v4677, 4294901760
    %v6127 = vsub.f32 %v4677, %v6126
    %v6128 = vand.u32 %v6127, 4294901760
    %6129 = vmatpush1.msra.mxu0 %v6128
    %6130 = vmatprep.subr.mxu0 0.0
    %v6131 = vand.u32 %v4678, 4294901760
    %v6132 = vsub.f32 %v4678, %v6131
    %v6133 = vand.u32 %v6132, 4294901760
    %6134 = vmatpush1.msra.mxu0 %v6133
    %6135 = vmatprep.subr.mxu0 0.0
    %v6136 = vand.u32 %v4679, 4294901760
    %v6137 = vsub.f32 %v4679, %v6136
    %v6138 = vand.u32 %v6137, 4294901760
    %6139 = vmatpush1.msra.mxu0 %v6138
    %6140 = vmatprep.subr.mxu0 0.0
    %v6141 = vand.u32 %v4680, 4294901760
    %v6142 = vsub.f32 %v4680, %v6141
    %v6143 = vand.u32 %v6142, 4294901760
    %6144 = vmatpush1.msra.mxu0 %v6143
    %6145 = vmatprep.subr.mxu0 0.0
    %v6146 = vand.u32 %v4681, 4294901760
    %v6147 = vsub.f32 %v4681, %v6146
    %v6148 = vand.u32 %v6147, 4294901760
    %6149 = vmatpush1.msra.mxu0 %v6148
    %6150 = vmatprep.subr.mxu0 0.0
    %v6151 = vand.u32 %v4682, 4294901760
    %v6152 = vsub.f32 %v4682, %v6151
    %v6153 = vand.u32 %v6152, 4294901760
    %6154 = vmatpush1.msra.mxu0 %v6153
    %6155 = vmatprep.subr.mxu0 0.0
    %v6156 = vand.u32 %v4683, 4294901760
    %v6157 = vsub.f32 %v4683, %v6156
    %v6158 = vand.u32 %v6157, 4294901760
    %6159 = vmatpush1.msra.mxu0 %v6158
    %6160 = vmatprep.subr.mxu0 0.0
    %6161 = vmatpush1.msra.mxu0 0.0
    %6162 = vmatprep.subr.mxu0 0.0
    %6163 = vmatpush1.msra.mxu0 0.0
    %6164 = vmatprep.subr.mxu0 0.0
    %6165 = vmatpush1.msra.mxu0 0.0
    %6166 = vmatprep.subr.mxu0 0.0
    %6167 = vmatpush1.msra.mxu0 0.0
    %6168 = vmatprep.subr.mxu0 0.0
    %6169 = vmatpush1.msra.mxu0 0.0
    %6170 = vmatprep.subr.mxu0 0.0
    %6171 = vmatpush1.msra.mxu0 0.0
    %6172 = vmatprep.subr.mxu0 0.0
    %6173 = vmatpush1.msra.mxu0 0.0
    %6174 = vmatprep.subr.mxu0 0.0
    %6175 = vmatpush1.msra.mxu0 0.0
    %6176 = vmatprep.subr.mxu0 0.0
    %6177 = vmatpush1.msra.mxu0 0.0
    %6178 = vmatprep.subr.mxu0 0.0
    %6179 = vmatpush1.msra.mxu0 0.0
    %6180 = vmatprep.subr.mxu0 0.0
    %6181 = vmatpush1.msra.mxu0 0.0
    %6182 = vmatprep.subr.mxu0 0.0
    %6183 = vmatpush1.msra.mxu0 0.0
    %6184 = vmatprep.subr.mxu0 0.0
    %6185 = vmatpush1.msra.mxu0 0.0
    %6186 = vmatprep.subr.mxu0 0.0
    %6187 = vmatpush1.msra.mxu0 0.0
    %6188 = vmatprep.subr.mxu0 0.0
    %6189 = vmatpush1.msra.mxu0 0.0
    %6190 = vmatprep.subr.mxu0 0.0
    %6191 = vmatpush1.msra.mxu0 0.0
    %6192 = vmatprep.mubr.f32.mxu0 0.0
    %v6193 = vand.u32 %v4636, 4294901760
    %6194 = vmatmul.mubr.f32.gmra.mrb[0].mxu0 %v6193
    %v6195 = vpop.f32.mrb[0].mxu0
    %v6196 = vadd.f32 %v5829, %v6195
    %v6197 = vpop.f32.mrb[0].mxu0
    %6198 = vmatprep.mubr.f32.mxu0 0.0
    %v6199 = vand.u32 %v4637, 4294901760
    %6200 = vmatmul.mubr.f32.gmra.mrb[0].mxu0 %v6199
    %v6201 = vpop.f32.mrb[0].mxu0
    %v6202 = vadd.f32 %v5837, %v6201
    %v6203 = vpop.f32.mrb[0].mxu0
    %6204 = vmatprep.mubr.f32.mxu0 0.0
    %v6205 = vand.u32 %v4638, 4294901760
    %6206 = vmatmul.mubr.f32.gmra.mrb[0].mxu0 %v6205
    %v6207 = vpop.f32.mrb[0].mxu0
    %v6208 = vadd.f32 %v5845, %v6207
    %v6209 = vpop.f32.mrb[0].mxu0
    %6210 = vmatprep.mubr.f32.mxu0 0.0
    %v6211 = vand.u32 %v4639, 4294901760
    %6212 = vmatmul.mubr.f32.gmra.mrb[0].mxu0 %v6211
    %v6213 = vpop.f32.mrb[0].mxu0
    %v6214 = vadd.f32 %v5853, %v6213
    %v6215 = vpop.f32.mrb[0].mxu0
    %6216 = vmatprep.mubr.f32.mxu0 0.0
    %v6217 = vand.u32 %v4640, 4294901760
    %6218 = vmatmul.mubr.f32.gmra.mrb[0].mxu0 %v6217
    %v6219 = vpop.f32.mrb[0].mxu0
    %v6220 = vadd.f32 %v5861, %v6219
    %v6221 = vpop.f32.mrb[0].mxu0
    %6222 = vmatprep.mubr.f32.mxu0 0.0
    %v6223 = vand.u32 %v4641, 4294901760
    %6224 = vmatmul.mubr.f32.gmra.mrb[0].mxu0 %v6223
    %v6225 = vpop.f32.mrb[0].mxu0
    %v6226 = vadd.f32 %v5869, %v6225
    %v6227 = vpop.f32.mrb[0].mxu0
    %6228 = vmatprep.mubr.f32.mxu0 0.0
    %v6229 = vand.u32 %v4642, 4294901760
    %6230 = vmatmul.mubr.f32.gmra.mrb[0].mxu0 %v6229
    %v6231 = vpop.f32.mrb[0].mxu0
    %v6232 = vadd.f32 %v5877, %v6231
    %v6233 = vpop.f32.mrb[0].mxu0
    %6234 = vmatprep.mubr.f32.mxu0 0.0
    %v6235 = vand.u32 %v4643, 4294901760
    %6236 = vmatmul.mubr.f32.gmra.mrb[0].mxu0 %v6235
    %v6237 = vpop.f32.mrb[0].mxu0
    %v6238 = vadd.f32 %v5885, %v6237
    %v6239 = vpop.f32.mrb[0].mxu0
    %6240 = vmatprep.mubr.f32.mxu0 0.0
    %v6241 = vand.u32 %v4644, 4294901760
    %6242 = vmatmul.mubr.f32.gmra.mrb[0].mxu0 %v6241
    %v6243 = vpop.f32.mrb[0].mxu0
    %v6244 = vadd.f32 %v5893, %v6243
    %v6245 = vpop.f32.mrb[0].mxu0
    %6246 = vmatprep.mubr.f32.mxu0 0.0
    %v6247 = vand.u32 %v4645, 4294901760
    %6248 = vmatmul.mubr.f32.gmra.mrb[0].mxu0 %v6247
    %v6249 = vpop.f32.mrb[0].mxu0
    %v6250 = vadd.f32 %v5901, %v6249
    %v6251 = vpop.f32.mrb[0].mxu0
    %6252 = vmatprep.mubr.f32.mxu0 0.0
    %v6253 = vand.u32 %v4646, 4294901760
    %6254 = vmatmul.mubr.f32.gmra.mrb[0].mxu0 %v6253
    %v6255 = vpop.f32.mrb[0].mxu0
    %v6256 = vadd.f32 %v5909, %v6255
    %v6257 = vpop.f32.mrb[0].mxu0
    %6258 = vmatprep.mubr.f32.mxu0 0.0
    %v6259 = vand.u32 %v4647, 4294901760
    %6260 = vmatmul.mubr.f32.gmra.mrb[0].mxu0 %v6259
    %v6261 = vpop.f32.mrb[0].mxu0
    %v6262 = vadd.f32 %v5917, %v6261
    %v6263 = vpop.f32.mrb[0].mxu0
    %6264 = vmatprep.mubr.f32.mxu0 0.0
    %v6265 = vand.u32 %v4648, 4294901760
    %6266 = vmatmul.mubr.f32.gmra.mrb[0].mxu0 %v6265
    %v6267 = vpop.f32.mrb[0].mxu0
    %v6268 = vadd.f32 %v5925, %v6267
    %v6269 = vpop.f32.mrb[0].mxu0
    %6270 = vmatprep.mubr.f32.mxu0 0.0
    %v6271 = vand.u32 %v4649, 4294901760
    %6272 = vmatmul.mubr.f32.gmra.mrb[0].mxu0 %v6271
    %v6273 = vpop.f32.mrb[0].mxu0
    %v6274 = vadd.f32 %v5933, %v6273
    %v6275 = vpop.f32.mrb[0].mxu0
    %6276 = vmatprep.mubr.f32.mxu0 0.0
    %v6277 = vand.u32 %v4650, 4294901760
    %6278 = vmatmul.mubr.f32.gmra.mrb[0].mxu0 %v6277
    %v6279 = vpop.f32.mrb[0].mxu0
    %v6280 = vadd.f32 %v5941, %v6279
    %v6281 = vpop.f32.mrb[0].mxu0
    %6282 = vmatprep.mubr.f32.mxu0 0.0
    %v6283 = vand.u32 %v4651, 4294901760
    %6284 = vmatmul.mubr.f32.gmra.mrb[0].mxu0 %v6283
    %v6285 = vpop.f32.mrb[0].mxu0
    %v6286 = vadd.f32 %v5949, %v6285
    %v6287 = vpop.f32.mrb[0].mxu0
    %6288 = vmatprep.mubr.f32.mxu0 0.0
    %v6289 = vand.u32 %v4652, 4294901760
    %6290 = vmatmul.mubr.f32.gmra.mrb[0].mxu0 %v6289
    %v6291 = vpop.f32.mrb[0].mxu0
    %v6292 = vadd.f32 %v5957, %v6291
    %v6293 = vpop.f32.mrb[0].mxu0
    %6294 = vmatprep.mubr.f32.mxu0 0.0
    %v6295 = vand.u32 %v4653, 4294901760
    %6296 = vmatmul.mubr.f32.gmra.mrb[0].mxu0 %v6295
    %v6297 = vpop.f32.mrb[0].mxu0
    %v6298 = vadd.f32 %v5965, %v6297
    %v6299 = vpop.f32.mrb[0].mxu0
    %6300 = vmatprep.mubr.f32.mxu0 0.0
    %v6301 = vand.u32 %v4654, 4294901760
    %6302 = vmatmul.mubr.f32.gmra.mrb[0].mxu0 %v6301
    %v6303 = vpop.f32.mrb[0].mxu0
    %v6304 = vadd.f32 %v5973, %v6303
    %v6305 = vpop.f32.mrb[0].mxu0
    %6306 = vmatprep.mubr.f32.mxu0 0.0
    %v6307 = vand.u32 %v4655, 4294901760
    %6308 = vmatmul.mubr.f32.gmra.mrb[0].mxu0 %v6307
    %v6309 = vpop.f32.mrb[0].mxu0
    %v6310 = vadd.f32 %v5981, %v6309
    %v6311 = vpop.f32.mrb[0].mxu0
    %6312 = vmatprep.mubr.f32.mxu0 0.0
    %v6313 = vand.u32 %v4656, 4294901760
    %6314 = vmatmul.mubr.f32.gmra.mrb[0].mxu0 %v6313
    %v6315 = vpop.f32.mrb[0].mxu0
    %v6316 = vadd.f32 %v5989, %v6315
    %v6317 = vpop.f32.mrb[0].mxu0
    %6318 = vmatprep.mubr.f32.mxu0 0.0
    %v6319 = vand.u32 %v4657, 4294901760
    %6320 = vmatmul.mubr.f32.gmra.mrb[0].mxu0 %v6319
    %v6321 = vpop.f32.mrb[0].mxu0
    %v6322 = vadd.f32 %v5997, %v6321
    %v6323 = vpop.f32.mrb[0].mxu0
    %6324 = vmatprep.mubr.f32.mxu0 0.0
    %v6325 = vand.u32 %v4658, 4294901760
    %6326 = vmatmul.mubr.f32.gmra.mrb[0].mxu0 %v6325
    %v6327 = vpop.f32.mrb[0].mxu0
    %v6328 = vadd.f32 %v6005, %v6327
    %v6329 = vpop.f32.mrb[0].mxu0
    %6330 = vmatprep.mubr.f32.mxu0 0.0
    %v6331 = vand.u32 %v4659, 4294901760
    %6332 = vmatmul.mubr.f32.gmra.mrb[0].mxu0 %v6331
    %v6333 = vpop.f32.mrb[0].mxu0
    %v6334 = vadd.f32 %v6013, %v6333
    %v6335 = vpop.f32.mrb[0].mxu0
    %6336 = vmatprep.mubr.f32.mxu0 0.0
    %v6337 = vand.u32 %v4660, 4294901760
    %6338 = vmatmul.mubr.f32.gmra.mrb[0].mxu0 %v6337
    %v6339 = vpop.f32.mrb[0].mxu0
    %v6340 = vadd.f32 %v6021, %v6339
    %v6341 = vpop.f32.mrb[0].mxu0
    %6342 = vmatprep.mubr.f32.mxu0 0.0
    %v6343 = vand.u32 %v4661, 4294901760
    %6344 = vmatmul.mubr.f32.gmra.mrb[0].mxu0 %v6343
    %v6345 = vpop.f32.mrb[0].mxu0
    %v6346 = vadd.f32 %v6029, %v6345
    %v6347 = vpop.f32.mrb[0].mxu0
    %6348 = vmatprep.mubr.f32.mxu0 0.0
    %v6349 = vand.u32 %v4662, 4294901760
    %6350 = vmatmul.mubr.f32.gmra.mrb[0].mxu0 %v6349
    %v6351 = vpop.f32.mrb[0].mxu0
    %v6352 = vadd.f32 %v6037, %v6351
    %v6353 = vpop.f32.mrb[0].mxu0
    %6354 = vmatprep.mubr.f32.mxu0 0.0
    %v6355 = vand.u32 %v4663, 4294901760
    %6356 = vmatmul.mubr.f32.gmra.mrb[0].mxu0 %v6355
    %v6357 = vpop.f32.mrb[0].mxu0
    %v6358 = vadd.f32 %v6045, %v6357
    %v6359 = vpop.f32.mrb[0].mxu0
    %6360 = vmatprep.mubr.f32.mxu0 0.0
    %v6361 = vand.u32 %v4664, 4294901760
    %6362 = vmatmul.mubr.f32.gmra.mrb[0].mxu0 %v6361
    %v6363 = vpop.f32.mrb[0].mxu0
    %v6364 = vadd.f32 %v6053, %v6363
    %v6365 = vpop.f32.mrb[0].mxu0
    %6366 = vmatprep.mubr.f32.mxu0 0.0
    %v6367 = vand.u32 %v4665, 4294901760
    %6368 = vmatmul.mubr.f32.gmra.mrb[0].mxu0 %v6367
    %v6369 = vpop.f32.mrb[0].mxu0
    %v6370 = vadd.f32 %v6061, %v6369
    %v6371 = vpop.f32.mrb[0].mxu0
    %6372 = vmatprep.mubr.f32.mxu0 0.0
    %v6373 = vand.u32 %v4666, 4294901760
    %6374 = vmatmul.mubr.f32.gmra.mrb[0].mxu0 %v6373
    %v6375 = vpop.f32.mrb[0].mxu0
    %v6376 = vadd.f32 %v6069, %v6375
    %v6377 = vpop.f32.mrb[0].mxu0
    %6378 = vmatprep.mubr.f32.mxu0 0.0
    %v6379 = vand.u32 %v4667, 4294901760
    %6380 = vmatmul.mubr.f32.gmra.mrb[0].mxu0 %v6379
    %v6381 = vpop.f32.mrb[0].mxu0
    %v6382 = vadd.f32 %v6077, %v6381
    %v6383 = vpop.f32.mrb[0].mxu0
    %6384 = vdwg.mxu0
    %6385 = vmatprep.subr.mxu0 0.0
    %v6386 = vand.u32 %v4668, 4294901760
    %6387 = vmatpush1.msra.mxu0 %v6386
    %6388 = vmatprep.subr.mxu0 0.0
    %v6389 = vand.u32 %v4669, 4294901760
    %6390 = vmatpush1.msra.mxu0 %v6389
    %6391 = vmatprep.subr.mxu0 0.0
    %v6392 = vand.u32 %v4670, 4294901760
    %6393 = vmatpush1.msra.mxu0 %v6392
    %6394 = vmatprep.subr.mxu0 0.0
    %v6395 = vand.u32 %v4671, 4294901760
    %6396 = vmatpush1.msra.mxu0 %v6395
    %6397 = vmatprep.subr.mxu0 0.0
    %v6398 = vand.u32 %v4672, 4294901760
    %6399 = vmatpush1.msra.mxu0 %v6398
    %6400 = vmatprep.subr.mxu0 0.0
    %v6401 = vand.u32 %v4673, 4294901760
    %6402 = vmatpush1.msra.mxu0 %v6401
    %6403 = vmatprep.subr.mxu0 0.0
    %v6404 = vand.u32 %v4674, 4294901760
    %6405 = vmatpush1.msra.mxu0 %v6404
    %6406 = vmatprep.subr.mxu0 0.0
    %v6407 = vand.u32 %v4675, 4294901760
    %6408 = vmatpush1.msra.mxu0 %v6407
    %6409 = vmatprep.subr.mxu0 0.0
    %v6410 = vand.u32 %v4676, 4294901760
    %6411 = vmatpush1.msra.mxu0 %v6410
    %6412 = vmatprep.subr.mxu0 0.0
    %v6413 = vand.u32 %v4677, 4294901760
    %6414 = vmatpush1.msra.mxu0 %v6413
    %6415 = vmatprep.subr.mxu0 0.0
    %v6416 = vand.u32 %v4678, 4294901760
    %6417 = vmatpush1.msra.mxu0 %v6416
    %6418 = vmatprep.subr.mxu0 0.0
    %v6419 = vand.u32 %v4679, 4294901760
    %6420 = vmatpush1.msra.mxu0 %v6419
    %6421 = vmatprep.subr.mxu0 0.0
    %v6422 = vand.u32 %v4680, 4294901760
    %6423 = vmatpush1.msra.mxu0 %v6422
    %6424 = vmatprep.subr.mxu0 0.0
    %v6425 = vand.u32 %v4681, 4294901760
    %6426 = vmatpush1.msra.mxu0 %v6425
    %6427 = vmatprep.subr.mxu0 0.0
    %v6428 = vand.u32 %v4682, 4294901760
    %6429 = vmatpush1.msra.mxu0 %v6428
    %6430 = vmatprep.subr.mxu0 0.0
    %v6431 = vand.u32 %v4683, 4294901760
    %6432 = vmatpush1.msra.mxu0 %v6431
    %6433 = vmatprep.subr.mxu0 0.0
    %6434 = vmatpush1.msra.mxu0 0.0
    %6435 = vmatprep.subr.mxu0 0.0
    %6436 = vmatpush1.msra.mxu0 0.0
    %6437 = vmatprep.subr.mxu0 0.0
    %6438 = vmatpush1.msra.mxu0 0.0
    %6439 = vmatprep.subr.mxu0 0.0
    %6440 = vmatpush1.msra.mxu0 0.0
    %6441 = vmatprep.subr.mxu0 0.0
    %6442 = vmatpush1.msra.mxu0 0.0
    %6443 = vmatprep.subr.mxu0 0.0
    %6444 = vmatpush1.msra.mxu0 0.0
    %6445 = vmatprep.subr.mxu0 0.0
    %6446 = vmatpush1.msra.mxu0 0.0
    %6447 = vmatprep.subr.mxu0 0.0
    %6448 = vmatpush1.msra.mxu0 0.0
    %6449 = vmatprep.subr.mxu0 0.0
    %6450 = vmatpush1.msra.mxu0 0.0
    %6451 = vmatprep.subr.mxu0 0.0
    %6452 = vmatpush1.msra.mxu0 0.0
    %6453 = vmatprep.subr.mxu0 0.0
    %6454 = vmatpush1.msra.mxu0 0.0
    %6455 = vmatprep.subr.mxu0 0.0
    %6456 = vmatpush1.msra.mxu0 0.0
    %6457 = vmatprep.subr.mxu0 0.0
    %6458 = vmatpush1.msra.mxu0 0.0
    %6459 = vmatprep.subr.mxu0 0.0
    %6460 = vmatpush1.msra.mxu0 0.0
    %6461 = vmatprep.subr.mxu0 0.0
    %6462 = vmatpush1.msra.mxu0 0.0
    %6463 = vmatprep.subr.mxu0 0.0
    %6464 = vmatpush1.msra.mxu0 0.0
    %6465 = vmatprep.mubr.f32.mxu0 0.0
    %v6466 = vand.u32 %v4636, 4294901760
    %6467 = vmatmul.mubr.f32.gmra.mrb[0].mxu0 %v6466
    %v6468 = vpop.f32.mrb[0].mxu0
    %v6469 = vadd.f32 %v6196, %v6468
    %v6470 = vpop.f32.mrb[0].mxu0
    %6471 = vmatprep.mubr.f32.mxu0 0.0
    %v6472 = vand.u32 %v4637, 4294901760
    %6473 = vmatmul.mubr.f32.gmra.mrb[0].mxu0 %v6472
    %v6474 = vpop.f32.mrb[0].mxu0
    %v6475 = vadd.f32 %v6202, %v6474
    %v6476 = vpop.f32.mrb[0].mxu0
    %6477 = vmatprep.mubr.f32.mxu0 0.0
    %v6478 = vand.u32 %v4638, 4294901760
    %6479 = vmatmul.mubr.f32.gmra.mrb[0].mxu0 %v6478
    %v6480 = vpop.f32.mrb[0].mxu0
    %v6481 = vadd.f32 %v6208, %v6480
    %v6482 = vpop.f32.mrb[0].mxu0
    %6483 = vmatprep.mubr.f32.mxu0 0.0
    %v6484 = vand.u32 %v4639, 4294901760
    %6485 = vmatmul.mubr.f32.gmra.mrb[0].mxu0 %v6484
    %v6486 = vpop.f32.mrb[0].mxu0
    %v6487 = vadd.f32 %v6214, %v6486
    %v6488 = vpop.f32.mrb[0].mxu0
    %6489 = vmatprep.mubr.f32.mxu0 0.0
    %v6490 = vand.u32 %v4640, 4294901760
    %6491 = vmatmul.mubr.f32.gmra.mrb[0].mxu0 %v6490
    %v6492 = vpop.f32.mrb[0].mxu0
    %v6493 = vadd.f32 %v6220, %v6492
    %v6494 = vpop.f32.mrb[0].mxu0
    %6495 = vmatprep.mubr.f32.mxu0 0.0
    %v6496 = vand.u32 %v4641, 4294901760
    %6497 = vmatmul.mubr.f32.gmra.mrb[0].mxu0 %v6496
    %v6498 = vpop.f32.mrb[0].mxu0
    %v6499 = vadd.f32 %v6226, %v6498
    %v6500 = vpop.f32.mrb[0].mxu0
    %6501 = vmatprep.mubr.f32.mxu0 0.0
    %v6502 = vand.u32 %v4642, 4294901760
    %6503 = vmatmul.mubr.f32.gmra.mrb[0].mxu0 %v6502
    %v6504 = vpop.f32.mrb[0].mxu0
    %v6505 = vadd.f32 %v6232, %v6504
    %v6506 = vpop.f32.mrb[0].mxu0
    %6507 = vmatprep.mubr.f32.mxu0 0.0
    %v6508 = vand.u32 %v4643, 4294901760
    %6509 = vmatmul.mubr.f32.gmra.mrb[0].mxu0 %v6508
    %v6510 = vpop.f32.mrb[0].mxu0
    %v6511 = vadd.f32 %v6238, %v6510
    %v6512 = vpop.f32.mrb[0].mxu0
    %6513 = vmatprep.mubr.f32.mxu0 0.0
    %v6514 = vand.u32 %v4644, 4294901760
    %6515 = vmatmul.mubr.f32.gmra.mrb[0].mxu0 %v6514
    %v6516 = vpop.f32.mrb[0].mxu0
    %v6517 = vadd.f32 %v6244, %v6516
    %v6518 = vpop.f32.mrb[0].mxu0
    %6519 = vmatprep.mubr.f32.mxu0 0.0
    %v6520 = vand.u32 %v4645, 4294901760
    %6521 = vmatmul.mubr.f32.gmra.mrb[0].mxu0 %v6520
    %v6522 = vpop.f32.mrb[0].mxu0
    %v6523 = vadd.f32 %v6250, %v6522
    %v6524 = vpop.f32.mrb[0].mxu0
    %6525 = vmatprep.mubr.f32.mxu0 0.0
    %v6526 = vand.u32 %v4646, 4294901760
    %6527 = vmatmul.mubr.f32.gmra.mrb[0].mxu0 %v6526
    %v6528 = vpop.f32.mrb[0].mxu0
    %v6529 = vadd.f32 %v6256, %v6528
    %v6530 = vpop.f32.mrb[0].mxu0
    %6531 = vmatprep.mubr.f32.mxu0 0.0
    %v6532 = vand.u32 %v4647, 4294901760
    %6533 = vmatmul.mubr.f32.gmra.mrb[0].mxu0 %v6532
    %v6534 = vpop.f32.mrb[0].mxu0
    %v6535 = vadd.f32 %v6262, %v6534
    %v6536 = vpop.f32.mrb[0].mxu0
    %6537 = vmatprep.mubr.f32.mxu0 0.0
    %v6538 = vand.u32 %v4648, 4294901760
    %6539 = vmatmul.mubr.f32.gmra.mrb[0].mxu0 %v6538
    %v6540 = vpop.f32.mrb[0].mxu0
    %v6541 = vadd.f32 %v6268, %v6540
    %v6542 = vpop.f32.mrb[0].mxu0
    %6543 = vmatprep.mubr.f32.mxu0 0.0
    %v6544 = vand.u32 %v4649, 4294901760
    %6545 = vmatmul.mubr.f32.gmra.mrb[0].mxu0 %v6544
    %v6546 = vpop.f32.mrb[0].mxu0
    %v6547 = vadd.f32 %v6274, %v6546
    %v6548 = vpop.f32.mrb[0].mxu0
    %6549 = vmatprep.mubr.f32.mxu0 0.0
    %v6550 = vand.u32 %v4650, 4294901760
    %6551 = vmatmul.mubr.f32.gmra.mrb[0].mxu0 %v6550
    %v6552 = vpop.f32.mrb[0].mxu0
    %v6553 = vadd.f32 %v6280, %v6552
    %v6554 = vpop.f32.mrb[0].mxu0
    %6555 = vmatprep.mubr.f32.mxu0 0.0
    %v6556 = vand.u32 %v4651, 4294901760
    %6557 = vmatmul.mubr.f32.gmra.mrb[0].mxu0 %v6556
    %v6558 = vpop.f32.mrb[0].mxu0
    %v6559 = vadd.f32 %v6286, %v6558
    %v6560 = vpop.f32.mrb[0].mxu0
    %6561 = vmatprep.mubr.f32.mxu0 0.0
    %v6562 = vand.u32 %v4652, 4294901760
    %6563 = vmatmul.mubr.f32.gmra.mrb[0].mxu0 %v6562
    %v6564 = vpop.f32.mrb[0].mxu0
    %v6565 = vadd.f32 %v6292, %v6564
    %v6566 = vpop.f32.mrb[0].mxu0
    %6567 = vmatprep.mubr.f32.mxu0 0.0
    %v6568 = vand.u32 %v4653, 4294901760
    %6569 = vmatmul.mubr.f32.gmra.mrb[0].mxu0 %v6568
    %v6570 = vpop.f32.mrb[0].mxu0
    %v6571 = vadd.f32 %v6298, %v6570
    %v6572 = vpop.f32.mrb[0].mxu0
    %6573 = vmatprep.mubr.f32.mxu0 0.0
    %v6574 = vand.u32 %v4654, 4294901760
    %6575 = vmatmul.mubr.f32.gmra.mrb[0].mxu0 %v6574
    %v6576 = vpop.f32.mrb[0].mxu0
    %v6577 = vadd.f32 %v6304, %v6576
    %v6578 = vpop.f32.mrb[0].mxu0
    %6579 = vmatprep.mubr.f32.mxu0 0.0
    %v6580 = vand.u32 %v4655, 4294901760
    %6581 = vmatmul.mubr.f32.gmra.mrb[0].mxu0 %v6580
    %v6582 = vpop.f32.mrb[0].mxu0
    %v6583 = vadd.f32 %v6310, %v6582
    %v6584 = vpop.f32.mrb[0].mxu0
    %6585 = vmatprep.mubr.f32.mxu0 0.0
    %v6586 = vand.u32 %v4656, 4294901760
    %6587 = vmatmul.mubr.f32.gmra.mrb[0].mxu0 %v6586
    %v6588 = vpop.f32.mrb[0].mxu0
    %v6589 = vadd.f32 %v6316, %v6588
    %v6590 = vpop.f32.mrb[0].mxu0
    %6591 = vmatprep.mubr.f32.mxu0 0.0
    %v6592 = vand.u32 %v4657, 4294901760
    %6593 = vmatmul.mubr.f32.gmra.mrb[0].mxu0 %v6592
    %v6594 = vpop.f32.mrb[0].mxu0
    %v6595 = vadd.f32 %v6322, %v6594
    %v6596 = vpop.f32.mrb[0].mxu0
    %6597 = vmatprep.mubr.f32.mxu0 0.0
    %v6598 = vand.u32 %v4658, 4294901760
    %6599 = vmatmul.mubr.f32.gmra.mrb[0].mxu0 %v6598
    %v6600 = vpop.f32.mrb[0].mxu0
    %v6601 = vadd.f32 %v6328, %v6600
    %v6602 = vpop.f32.mrb[0].mxu0
    %6603 = vmatprep.mubr.f32.mxu0 0.0
    %v6604 = vand.u32 %v4659, 4294901760
    %6605 = vmatmul.mubr.f32.gmra.mrb[0].mxu0 %v6604
    %v6606 = vpop.f32.mrb[0].mxu0
    %v6607 = vadd.f32 %v6334, %v6606
    %v6608 = vpop.f32.mrb[0].mxu0
    %6609 = vmatprep.mubr.f32.mxu0 0.0
    %v6610 = vand.u32 %v4660, 4294901760
    %6611 = vmatmul.mubr.f32.gmra.mrb[0].mxu0 %v6610
    %v6612 = vpop.f32.mrb[0].mxu0
    %v6613 = vadd.f32 %v6340, %v6612
    %v6614 = vpop.f32.mrb[0].mxu0
    %6615 = vmatprep.mubr.f32.mxu0 0.0
    %v6616 = vand.u32 %v4661, 4294901760
    %6617 = vmatmul.mubr.f32.gmra.mrb[0].mxu0 %v6616
    %v6618 = vpop.f32.mrb[0].mxu0
    %v6619 = vadd.f32 %v6346, %v6618
    %v6620 = vpop.f32.mrb[0].mxu0
    %6621 = vmatprep.mubr.f32.mxu0 0.0
    %v6622 = vand.u32 %v4662, 4294901760
    %6623 = vmatmul.mubr.f32.gmra.mrb[0].mxu0 %v6622
    %v6624 = vpop.f32.mrb[0].mxu0
    %v6625 = vadd.f32 %v6352, %v6624
    %v6626 = vpop.f32.mrb[0].mxu0
    %6627 = vmatprep.mubr.f32.mxu0 0.0
    %v6628 = vand.u32 %v4663, 4294901760
    %6629 = vmatmul.mubr.f32.gmra.mrb[0].mxu0 %v6628
    %v6630 = vpop.f32.mrb[0].mxu0
    %v6631 = vadd.f32 %v6358, %v6630
    %v6632 = vpop.f32.mrb[0].mxu0
    %6633 = vmatprep.mubr.f32.mxu0 0.0
    %v6634 = vand.u32 %v4664, 4294901760
    %6635 = vmatmul.mubr.f32.gmra.mrb[0].mxu0 %v6634
    %v6636 = vpop.f32.mrb[0].mxu0
    %v6637 = vadd.f32 %v6364, %v6636
    %v6638 = vpop.f32.mrb[0].mxu0
    %6639 = vmatprep.mubr.f32.mxu0 0.0
    %v6640 = vand.u32 %v4665, 4294901760
    %6641 = vmatmul.mubr.f32.gmra.mrb[0].mxu0 %v6640
    %v6642 = vpop.f32.mrb[0].mxu0
    %v6643 = vadd.f32 %v6370, %v6642
    %v6644 = vpop.f32.mrb[0].mxu0
    %6645 = vmatprep.mubr.f32.mxu0 0.0
    %v6646 = vand.u32 %v4666, 4294901760
    %6647 = vmatmul.mubr.f32.gmra.mrb[0].mxu0 %v6646
    %v6648 = vpop.f32.mrb[0].mxu0
    %v6649 = vadd.f32 %v6376, %v6648
    %v6650 = vpop.f32.mrb[0].mxu0
    %6651 = vmatprep.mubr.f32.mxu0 0.0
    %v6652 = vand.u32 %v4667, 4294901760
    %6653 = vmatmul.mubr.f32.gmra.mrb[0].mxu0 %v6652
    %v6654 = vpop.f32.mrb[0].mxu0
    %v6655 = vadd.f32 %v6382, %v6654
    %v6656 = vpop.f32.mrb[0].mxu0
    %6657 = vdwg.mxu0
    %v6658 = vld [vmem:[%s5] sm:$0x1]
    %v6660 = vlaneseq
    %v6661 = vshrl.u32 %v6660, 7
    %v6662 = vsub.s32 0, %v6661
    %v6663 = vrot.slane %v6658, %v6662
    %6665 = vmatprep.subr.mxu0 0.0
    %v6666 = vand.u32 %v6469, 4294901760
    %6667 = vmatpush1.msra.mxu0 %v6666
    %6668 = vmatprep.subr.mxu0 0.0
    %v6669 = vand.u32 %v6475, 4294901760
    %6670 = vmatpush1.msra.mxu0 %v6669
    %6671 = vmatprep.subr.mxu0 0.0
    %v6672 = vand.u32 %v6481, 4294901760
    %6673 = vmatpush1.msra.mxu0 %v6672
    %6674 = vmatprep.subr.mxu0 0.0
    %v6675 = vand.u32 %v6487, 4294901760
    %6676 = vmatpush1.msra.mxu0 %v6675
    %6677 = vmatprep.subr.mxu0 0.0
    %v6678 = vand.u32 %v6493, 4294901760
    %6679 = vmatpush1.msra.mxu0 %v6678
    %6680 = vmatprep.subr.mxu0 0.0
    %v6681 = vand.u32 %v6499, 4294901760
    %6682 = vmatpush1.msra.mxu0 %v6681
    %6683 = vmatprep.subr.mxu0 0.0
    %v6684 = vand.u32 %v6505, 4294901760
    %6685 = vmatpush1.msra.mxu0 %v6684
    %6686 = vmatprep.subr.mxu0 0.0
    %v6687 = vand.u32 %v6511, 4294901760
    %6688 = vmatpush1.msra.mxu0 %v6687
    %6689 = vmatprep.subr.mxu0 0.0
    %v6690 = vand.u32 %v6517, 4294901760
    %6691 = vmatpush1.msra.mxu0 %v6690
    %6692 = vmatprep.subr.mxu0 0.0
    %v6693 = vand.u32 %v6523, 4294901760
    %6694 = vmatpush1.msra.mxu0 %v6693
    %6695 = vmatprep.subr.mxu0 0.0
    %v6696 = vand.u32 %v6529, 4294901760
    %6697 = vmatpush1.msra.mxu0 %v6696
    %6698 = vmatprep.subr.mxu0 0.0
    %v6699 = vand.u32 %v6535, 4294901760
    %6700 = vmatpush1.msra.mxu0 %v6699
    %6701 = vmatprep.subr.mxu0 0.0
    %v6702 = vand.u32 %v6541, 4294901760
    %6703 = vmatpush1.msra.mxu0 %v6702
    %6704 = vmatprep.subr.mxu0 0.0
    %v6705 = vand.u32 %v6547, 4294901760
    %6706 = vmatpush1.msra.mxu0 %v6705
    %6707 = vmatprep.subr.mxu0 0.0
    %v6708 = vand.u32 %v6553, 4294901760
    %6709 = vmatpush1.msra.mxu0 %v6708
    %6710 = vmatprep.subr.mxu0 0.0
    %v6711 = vand.u32 %v6559, 4294901760
    %6712 = vmatpush1.msra.mxu0 %v6711
    %6713 = vmatprep.subr.mxu0 0.0
    %v6714 = vand.u32 %v6565, 4294901760
    %6715 = vmatpush1.msra.mxu0 %v6714
    %6716 = vmatprep.subr.mxu0 0.0
    %v6717 = vand.u32 %v6571, 4294901760
    %6718 = vmatpush1.msra.mxu0 %v6717
    %6719 = vmatprep.subr.mxu0 0.0
    %v6720 = vand.u32 %v6577, 4294901760
    %6721 = vmatpush1.msra.mxu0 %v6720
    %6722 = vmatprep.subr.mxu0 0.0
    %v6723 = vand.u32 %v6583, 4294901760
    %6724 = vmatpush1.msra.mxu0 %v6723
    %6725 = vmatprep.subr.mxu0 0.0
    %v6726 = vand.u32 %v6589, 4294901760
    %6727 = vmatpush1.msra.mxu0 %v6726
    %6728 = vmatprep.subr.mxu0 0.0
    %v6729 = vand.u32 %v6595, 4294901760
    %6730 = vmatpush1.msra.mxu0 %v6729
    %6731 = vmatprep.subr.mxu0 0.0
    %v6732 = vand.u32 %v6601, 4294901760
    %6733 = vmatpush1.msra.mxu0 %v6732
    %6734 = vmatprep.subr.mxu0 0.0
    %v6735 = vand.u32 %v6607, 4294901760
    %6736 = vmatpush1.msra.mxu0 %v6735
    %6737 = vmatprep.subr.mxu0 0.0
    %v6738 = vand.u32 %v6613, 4294901760
    %6739 = vmatpush1.msra.mxu0 %v6738
    %6740 = vmatprep.subr.mxu0 0.0
    %v6741 = vand.u32 %v6619, 4294901760
    %6742 = vmatpush1.msra.mxu0 %v6741
    %6743 = vmatprep.subr.mxu0 0.0
    %v6744 = vand.u32 %v6625, 4294901760
    %6745 = vmatpush1.msra.mxu0 %v6744
    %6746 = vmatprep.subr.mxu0 0.0
    %v6747 = vand.u32 %v6631, 4294901760
    %6748 = vmatpush1.msra.mxu0 %v6747
    %6749 = vmatprep.subr.mxu0 0.0
    %v6750 = vand.u32 %v6637, 4294901760
    %6751 = vmatpush1.msra.mxu0 %v6750
    %6752 = vmatprep.subr.mxu0 0.0
    %v6753 = vand.u32 %v6643, 4294901760
    %6754 = vmatpush1.msra.mxu0 %v6753
    %6755 = vmatprep.subr.mxu0 0.0
    %v6756 = vand.u32 %v6649, 4294901760
    %6757 = vmatpush1.msra.mxu0 %v6756
    %6758 = vmatprep.subr.mxu0 0.0
    %v6759 = vand.u32 %v6655, 4294901760
    %6760 = vmatpush1.msra.mxu0 %v6759
    %v6761 = vand.u32 %v45, 4294901760
    %v6762 = vsub.f32 %v45, %v6761
    %v6763 = vand.u32 %v6762, 4294901760
    %v6764 = vsub.f32 %v6762, %v6763
    %v6765 = vand.u32 %v6764, 4294901760
    %6766 = vmatprep.mubr.f32.mxu0 %v6765
    %v6767 = vand.u32 %v44, 4294901760
    %v6768 = vsub.f32 %v44, %v6767
    %v6769 = vand.u32 %v6768, 4294901760
    %v6770 = vsub.f32 %v6768, %v6769
    %v6771 = vand.u32 %v6770, 4294901760
    %6772 = vmatmul.mubr.f32.gmra.mrb[0].mxu0 %v6771
    %v6773 = vpop.f32.mrb[0].mxu0
    %v6774 = vadd.f32 %v6663, %v6773
    %v6775 = vpop.f32.mrb[0].mxu0
    %v6776 = vand.u32 %v47, 4294901760
    %v6777 = vsub.f32 %v47, %v6776
    %v6778 = vand.u32 %v6777, 4294901760
    %v6779 = vsub.f32 %v6777, %v6778
    %v6780 = vand.u32 %v6779, 4294901760
    %6781 = vmatprep.mubr.f32.mxu0 %v6780
    %v6782 = vand.u32 %v46, 4294901760
    %v6783 = vsub.f32 %v46, %v6782
    %v6784 = vand.u32 %v6783, 4294901760
    %v6785 = vsub.f32 %v6783, %v6784
    %v6786 = vand.u32 %v6785, 4294901760
    %6787 = vmatmul.mubr.f32.gmra.mrb[0].mxu0 %v6786
    %v6788 = vpop.f32.mrb[0].mxu0
    %v6789 = vadd.f32 %v6663, %v6788
    %v6790 = vpop.f32.mrb[0].mxu0
    %v6791 = vand.u32 %v49, 4294901760
    %v6792 = vsub.f32 %v49, %v6791
    %v6793 = vand.u32 %v6792, 4294901760
    %v6794 = vsub.f32 %v6792, %v6793
    %v6795 = vand.u32 %v6794, 4294901760
    %6796 = vmatprep.mubr.f32.mxu0 %v6795
    %v6797 = vand.u32 %v48, 4294901760
    %v6798 = vsub.f32 %v48, %v6797
    %v6799 = vand.u32 %v6798, 4294901760
    %v6800 = vsub.f32 %v6798, %v6799
    %v6801 = vand.u32 %v6800, 4294901760
    %6802 = vmatmul.mubr.f32.gmra.mrb[0].mxu0 %v6801
    %v6803 = vpop.f32.mrb[0].mxu0
    %v6804 = vadd.f32 %v6663, %v6803
    %v6805 = vpop.f32.mrb[0].mxu0
    %v6806 = vand.u32 %v51, 4294901760
    %v6807 = vsub.f32 %v51, %v6806
    %v6808 = vand.u32 %v6807, 4294901760
    %v6809 = vsub.f32 %v6807, %v6808
    %v6810 = vand.u32 %v6809, 4294901760
    %6811 = vmatprep.mubr.f32.mxu0 %v6810
    %v6812 = vand.u32 %v50, 4294901760
    %v6813 = vsub.f32 %v50, %v6812
    %v6814 = vand.u32 %v6813, 4294901760
    %v6815 = vsub.f32 %v6813, %v6814
    %v6816 = vand.u32 %v6815, 4294901760
    %6817 = vmatmul.mubr.f32.gmra.mrb[0].mxu0 %v6816
    %v6818 = vpop.f32.mrb[0].mxu0
    %v6819 = vadd.f32 %v6663, %v6818
    %v6820 = vpop.f32.mrb[0].mxu0
    %v6821 = vand.u32 %v53, 4294901760
    %v6822 = vsub.f32 %v53, %v6821
    %v6823 = vand.u32 %v6822, 4294901760
    %v6824 = vsub.f32 %v6822, %v6823
    %v6825 = vand.u32 %v6824, 4294901760
    %6826 = vmatprep.mubr.f32.mxu0 %v6825
    %v6827 = vand.u32 %v52, 4294901760
    %v6828 = vsub.f32 %v52, %v6827
    %v6829 = vand.u32 %v6828, 4294901760
    %v6830 = vsub.f32 %v6828, %v6829
    %v6831 = vand.u32 %v6830, 4294901760
    %6832 = vmatmul.mubr.f32.gmra.mrb[0].mxu0 %v6831
    %v6833 = vpop.f32.mrb[0].mxu0
    %v6834 = vadd.f32 %v6663, %v6833
    %v6835 = vpop.f32.mrb[0].mxu0
    %v6836 = vand.u32 %v55, 4294901760
    %v6837 = vsub.f32 %v55, %v6836
    %v6838 = vand.u32 %v6837, 4294901760
    %v6839 = vsub.f32 %v6837, %v6838
    %v6840 = vand.u32 %v6839, 4294901760
    %6841 = vmatprep.mubr.f32.mxu0 %v6840
    %v6842 = vand.u32 %v54, 4294901760
    %v6843 = vsub.f32 %v54, %v6842
    %v6844 = vand.u32 %v6843, 4294901760
    %v6845 = vsub.f32 %v6843, %v6844
    %v6846 = vand.u32 %v6845, 4294901760
    %6847 = vmatmul.mubr.f32.gmra.mrb[0].mxu0 %v6846
    %v6848 = vpop.f32.mrb[0].mxu0
    %v6849 = vadd.f32 %v6663, %v6848
    %v6850 = vpop.f32.mrb[0].mxu0
    %v6851 = vand.u32 %v57, 4294901760
    %v6852 = vsub.f32 %v57, %v6851
    %v6853 = vand.u32 %v6852, 4294901760
    %v6854 = vsub.f32 %v6852, %v6853
    %v6855 = vand.u32 %v6854, 4294901760
    %6856 = vmatprep.mubr.f32.mxu0 %v6855
    %v6857 = vand.u32 %v56, 4294901760
    %v6858 = vsub.f32 %v56, %v6857
    %v6859 = vand.u32 %v6858, 4294901760
    %v6860 = vsub.f32 %v6858, %v6859
    %v6861 = vand.u32 %v6860, 4294901760
    %6862 = vmatmul.mubr.f32.gmra.mrb[0].mxu0 %v6861
    %v6863 = vpop.f32.mrb[0].mxu0
    %v6864 = vadd.f32 %v6663, %v6863
    %v6865 = vpop.f32.mrb[0].mxu0
    %v6866 = vand.u32 %v59, 4294901760
    %v6867 = vsub.f32 %v59, %v6866
    %v6868 = vand.u32 %v6867, 4294901760
    %v6869 = vsub.f32 %v6867, %v6868
    %v6870 = vand.u32 %v6869, 4294901760
    %6871 = vmatprep.mubr.f32.mxu0 %v6870
    %v6872 = vand.u32 %v58, 4294901760
    %v6873 = vsub.f32 %v58, %v6872
    %v6874 = vand.u32 %v6873, 4294901760
    %v6875 = vsub.f32 %v6873, %v6874
    %v6876 = vand.u32 %v6875, 4294901760
    %6877 = vmatmul.mubr.f32.gmra.mrb[0].mxu0 %v6876
    %v6878 = vpop.f32.mrb[0].mxu0
    %v6879 = vadd.f32 %v6663, %v6878
    %v6880 = vpop.f32.mrb[0].mxu0
    %v6881 = vand.u32 %v61, 4294901760
    %v6882 = vsub.f32 %v61, %v6881
    %v6883 = vand.u32 %v6882, 4294901760
    %v6884 = vsub.f32 %v6882, %v6883
    %v6885 = vand.u32 %v6884, 4294901760
    %6886 = vmatprep.mubr.f32.mxu0 %v6885
    %v6887 = vand.u32 %v60, 4294901760
    %v6888 = vsub.f32 %v60, %v6887
    %v6889 = vand.u32 %v6888, 4294901760
    %v6890 = vsub.f32 %v6888, %v6889
    %v6891 = vand.u32 %v6890, 4294901760
    %6892 = vmatmul.mubr.f32.gmra.mrb[0].mxu0 %v6891
    %v6893 = vpop.f32.mrb[0].mxu0
    %v6894 = vadd.f32 %v6663, %v6893
    %v6895 = vpop.f32.mrb[0].mxu0
    %v6896 = vand.u32 %v63, 4294901760
    %v6897 = vsub.f32 %v63, %v6896
    %v6898 = vand.u32 %v6897, 4294901760
    %v6899 = vsub.f32 %v6897, %v6898
    %v6900 = vand.u32 %v6899, 4294901760
    %6901 = vmatprep.mubr.f32.mxu0 %v6900
    %v6902 = vand.u32 %v62, 4294901760
    %v6903 = vsub.f32 %v62, %v6902
    %v6904 = vand.u32 %v6903, 4294901760
    %v6905 = vsub.f32 %v6903, %v6904
    %v6906 = vand.u32 %v6905, 4294901760
    %6907 = vmatmul.mubr.f32.gmra.mrb[0].mxu0 %v6906
    %v6908 = vpop.f32.mrb[0].mxu0
    %v6909 = vadd.f32 %v6663, %v6908
    %v6910 = vpop.f32.mrb[0].mxu0
    %v6911 = vand.u32 %v65, 4294901760
    %v6912 = vsub.f32 %v65, %v6911
    %v6913 = vand.u32 %v6912, 4294901760
    %v6914 = vsub.f32 %v6912, %v6913
    %v6915 = vand.u32 %v6914, 4294901760
    %6916 = vmatprep.mubr.f32.mxu0 %v6915
    %v6917 = vand.u32 %v64, 4294901760
    %v6918 = vsub.f32 %v64, %v6917
    %v6919 = vand.u32 %v6918, 4294901760
    %v6920 = vsub.f32 %v6918, %v6919
    %v6921 = vand.u32 %v6920, 4294901760
    %6922 = vmatmul.mubr.f32.gmra.mrb[0].mxu0 %v6921
    %v6923 = vpop.f32.mrb[0].mxu0
    %v6924 = vadd.f32 %v6663, %v6923
    %v6925 = vpop.f32.mrb[0].mxu0
    %v6926 = vand.u32 %v67, 4294901760
    %v6927 = vsub.f32 %v67, %v6926
    %v6928 = vand.u32 %v6927, 4294901760
    %v6929 = vsub.f32 %v6927, %v6928
    %v6930 = vand.u32 %v6929, 4294901760
    %6931 = vmatprep.mubr.f32.mxu0 %v6930
    %v6932 = vand.u32 %v66, 4294901760
    %v6933 = vsub.f32 %v66, %v6932
    %v6934 = vand.u32 %v6933, 4294901760
    %v6935 = vsub.f32 %v6933, %v6934
    %v6936 = vand.u32 %v6935, 4294901760
    %6937 = vmatmul.mubr.f32.gmra.mrb[0].mxu0 %v6936
    %v6938 = vpop.f32.mrb[0].mxu0
    %v6939 = vadd.f32 %v6663, %v6938
    %v6940 = vpop.f32.mrb[0].mxu0
    %v6941 = vand.u32 %v69, 4294901760
    %v6942 = vsub.f32 %v69, %v6941
    %v6943 = vand.u32 %v6942, 4294901760
    %v6944 = vsub.f32 %v6942, %v6943
    %v6945 = vand.u32 %v6944, 4294901760
    %6946 = vmatprep.mubr.f32.mxu0 %v6945
    %v6947 = vand.u32 %v68, 4294901760
    %v6948 = vsub.f32 %v68, %v6947
    %v6949 = vand.u32 %v6948, 4294901760
    %v6950 = vsub.f32 %v6948, %v6949
    %v6951 = vand.u32 %v6950, 4294901760
    %6952 = vmatmul.mubr.f32.gmra.mrb[0].mxu0 %v6951
    %v6953 = vpop.f32.mrb[0].mxu0
    %v6954 = vadd.f32 %v6663, %v6953
    %v6955 = vpop.f32.mrb[0].mxu0
    %v6956 = vand.u32 %v71, 4294901760
    %v6957 = vsub.f32 %v71, %v6956
    %v6958 = vand.u32 %v6957, 4294901760
    %v6959 = vsub.f32 %v6957, %v6958
    %v6960 = vand.u32 %v6959, 4294901760
    %6961 = vmatprep.mubr.f32.mxu0 %v6960
    %v6962 = vand.u32 %v70, 4294901760
    %v6963 = vsub.f32 %v70, %v6962
    %v6964 = vand.u32 %v6963, 4294901760
    %v6965 = vsub.f32 %v6963, %v6964
    %v6966 = vand.u32 %v6965, 4294901760
    %6967 = vmatmul.mubr.f32.gmra.mrb[0].mxu0 %v6966
    %v6968 = vpop.f32.mrb[0].mxu0
    %v6969 = vadd.f32 %v6663, %v6968
    %v6970 = vpop.f32.mrb[0].mxu0
    %v6971 = vand.u32 %v73, 4294901760
    %v6972 = vsub.f32 %v73, %v6971
    %v6973 = vand.u32 %v6972, 4294901760
    %v6974 = vsub.f32 %v6972, %v6973
    %v6975 = vand.u32 %v6974, 4294901760
    %6976 = vmatprep.mubr.f32.mxu0 %v6975
    %v6977 = vand.u32 %v72, 4294901760
    %v6978 = vsub.f32 %v72, %v6977
    %v6979 = vand.u32 %v6978, 4294901760
    %v6980 = vsub.f32 %v6978, %v6979
    %v6981 = vand.u32 %v6980, 4294901760
    %6982 = vmatmul.mubr.f32.gmra.mrb[0].mxu0 %v6981
    %v6983 = vpop.f32.mrb[0].mxu0
    %v6984 = vadd.f32 %v6663, %v6983
    %v6985 = vpop.f32.mrb[0].mxu0
    %v6986 = vand.u32 %v75, 4294901760
    %v6987 = vsub.f32 %v75, %v6986
    %v6988 = vand.u32 %v6987, 4294901760
    %v6989 = vsub.f32 %v6987, %v6988
    %v6990 = vand.u32 %v6989, 4294901760
    %6991 = vmatprep.mubr.f32.mxu0 %v6990
    %v6992 = vand.u32 %v74, 4294901760
    %v6993 = vsub.f32 %v74, %v6992
    %v6994 = vand.u32 %v6993, 4294901760
    %v6995 = vsub.f32 %v6993, %v6994
    %v6996 = vand.u32 %v6995, 4294901760
    %6997 = vmatmul.mubr.f32.gmra.mrb[0].mxu0 %v6996
    %v6998 = vpop.f32.mrb[0].mxu0
    %v6999 = vadd.f32 %v6663, %v6998
    %v7000 = vpop.f32.mrb[0].mxu0
    %v7001 = vand.u32 %v77, 4294901760
    %v7002 = vsub.f32 %v77, %v7001
    %v7003 = vand.u32 %v7002, 4294901760
    %v7004 = vsub.f32 %v7002, %v7003
    %v7005 = vand.u32 %v7004, 4294901760
    %7006 = vmatprep.mubr.f32.mxu0 %v7005
    %v7007 = vand.u32 %v76, 4294901760
    %v7008 = vsub.f32 %v76, %v7007
    %v7009 = vand.u32 %v7008, 4294901760
    %v7010 = vsub.f32 %v7008, %v7009
    %v7011 = vand.u32 %v7010, 4294901760
    %7012 = vmatmul.mubr.f32.gmra.mrb[0].mxu0 %v7011
    %v7013 = vpop.f32.mrb[0].mxu0
    %v7014 = vadd.f32 %v6663, %v7013
    %v7015 = vpop.f32.mrb[0].mxu0
    %v7016 = vand.u32 %v79, 4294901760
    %v7017 = vsub.f32 %v79, %v7016
    %v7018 = vand.u32 %v7017, 4294901760
    %v7019 = vsub.f32 %v7017, %v7018
    %v7020 = vand.u32 %v7019, 4294901760
    %7021 = vmatprep.mubr.f32.mxu0 %v7020
    %v7022 = vand.u32 %v78, 4294901760
    %v7023 = vsub.f32 %v78, %v7022
    %v7024 = vand.u32 %v7023, 4294901760
    %v7025 = vsub.f32 %v7023, %v7024
    %v7026 = vand.u32 %v7025, 4294901760
    %7027 = vmatmul.mubr.f32.gmra.mrb[0].mxu0 %v7026
    %v7028 = vpop.f32.mrb[0].mxu0
    %v7029 = vadd.f32 %v6663, %v7028
    %v7030 = vpop.f32.mrb[0].mxu0
    %v7031 = vand.u32 %v81, 4294901760
    %v7032 = vsub.f32 %v81, %v7031
    %v7033 = vand.u32 %v7032, 4294901760
    %v7034 = vsub.f32 %v7032, %v7033
    %v7035 = vand.u32 %v7034, 4294901760
    %7036 = vmatprep.mubr.f32.mxu0 %v7035
    %v7037 = vand.u32 %v80, 4294901760
    %v7038 = vsub.f32 %v80, %v7037
    %v7039 = vand.u32 %v7038, 4294901760
    %v7040 = vsub.f32 %v7038, %v7039
    %v7041 = vand.u32 %v7040, 4294901760
    %7042 = vmatmul.mubr.f32.gmra.mrb[0].mxu0 %v7041
    %v7043 = vpop.f32.mrb[0].mxu0
    %v7044 = vadd.f32 %v6663, %v7043
    %v7045 = vpop.f32.mrb[0].mxu0
    %v7046 = vand.u32 %v83, 4294901760
    %v7047 = vsub.f32 %v83, %v7046
    %v7048 = vand.u32 %v7047, 4294901760
    %v7049 = vsub.f32 %v7047, %v7048
    %v7050 = vand.u32 %v7049, 4294901760
    %7051 = vmatprep.mubr.f32.mxu0 %v7050
    %v7052 = vand.u32 %v82, 4294901760
    %v7053 = vsub.f32 %v82, %v7052
    %v7054 = vand.u32 %v7053, 4294901760
    %v7055 = vsub.f32 %v7053, %v7054
    %v7056 = vand.u32 %v7055, 4294901760
    %7057 = vmatmul.mubr.f32.gmra.mrb[0].mxu0 %v7056
    %v7058 = vpop.f32.mrb[0].mxu0
    %v7059 = vadd.f32 %v6663, %v7058
    %v7060 = vpop.f32.mrb[0].mxu0
    %v7061 = vand.u32 %v85, 4294901760
    %v7062 = vsub.f32 %v85, %v7061
    %v7063 = vand.u32 %v7062, 4294901760
    %v7064 = vsub.f32 %v7062, %v7063
    %v7065 = vand.u32 %v7064, 4294901760
    %7066 = vmatprep.mubr.f32.mxu0 %v7065
    %v7067 = vand.u32 %v84, 4294901760
    %v7068 = vsub.f32 %v84, %v7067
    %v7069 = vand.u32 %v7068, 4294901760
    %v7070 = vsub.f32 %v7068, %v7069
    %v7071 = vand.u32 %v7070, 4294901760
    %7072 = vmatmul.mubr.f32.gmra.mrb[0].mxu0 %v7071
    %v7073 = vpop.f32.mrb[0].mxu0
    %v7074 = vadd.f32 %v6663, %v7073
    %v7075 = vpop.f32.mrb[0].mxu0
    %v7076 = vand.u32 %v87, 4294901760
    %v7077 = vsub.f32 %v87, %v7076
    %v7078 = vand.u32 %v7077, 4294901760
    %v7079 = vsub.f32 %v7077, %v7078
    %v7080 = vand.u32 %v7079, 4294901760
    %7081 = vmatprep.mubr.f32.mxu0 %v7080
    %v7082 = vand.u32 %v86, 4294901760
    %v7083 = vsub.f32 %v86, %v7082
    %v7084 = vand.u32 %v7083, 4294901760
    %v7085 = vsub.f32 %v7083, %v7084
    %v7086 = vand.u32 %v7085, 4294901760
    %7087 = vmatmul.mubr.f32.gmra.mrb[0].mxu0 %v7086
    %v7088 = vpop.f32.mrb[0].mxu0
    %v7089 = vadd.f32 %v6663, %v7088
    %v7090 = vpop.f32.mrb[0].mxu0
    %v7091 = vand.u32 %v89, 4294901760
    %v7092 = vsub.f32 %v89, %v7091
    %v7093 = vand.u32 %v7092, 4294901760
    %v7094 = vsub.f32 %v7092, %v7093
    %v7095 = vand.u32 %v7094, 4294901760
    %7096 = vmatprep.mubr.f32.mxu0 %v7095
    %v7097 = vand.u32 %v88, 4294901760
    %v7098 = vsub.f32 %v88, %v7097
    %v7099 = vand.u32 %v7098, 4294901760
    %v7100 = vsub.f32 %v7098, %v7099
    %v7101 = vand.u32 %v7100, 4294901760
    %7102 = vmatmul.mubr.f32.gmra.mrb[0].mxu0 %v7101
    %v7103 = vpop.f32.mrb[0].mxu0
    %v7104 = vadd.f32 %v6663, %v7103
    %v7105 = vpop.f32.mrb[0].mxu0
    %v7106 = vand.u32 %v91, 4294901760
    %v7107 = vsub.f32 %v91, %v7106
    %v7108 = vand.u32 %v7107, 4294901760
    %v7109 = vsub.f32 %v7107, %v7108
    %v7110 = vand.u32 %v7109, 4294901760
    %7111 = vmatprep.mubr.f32.mxu0 %v7110
    %v7112 = vand.u32 %v90, 4294901760
    %v7113 = vsub.f32 %v90, %v7112
    %v7114 = vand.u32 %v7113, 4294901760
    %v7115 = vsub.f32 %v7113, %v7114
    %v7116 = vand.u32 %v7115, 4294901760
    %7117 = vmatmul.mubr.f32.gmra.mrb[0].mxu0 %v7116
    %v7118 = vpop.f32.mrb[0].mxu0
    %v7119 = vadd.f32 %v6663, %v7118
    %v7120 = vpop.f32.mrb[0].mxu0
    %v7121 = vand.u32 %v93, 4294901760
    %v7122 = vsub.f32 %v93, %v7121
    %v7123 = vand.u32 %v7122, 4294901760
    %v7124 = vsub.f32 %v7122, %v7123
    %v7125 = vand.u32 %v7124, 4294901760
    %7126 = vmatprep.mubr.f32.mxu0 %v7125
    %v7127 = vand.u32 %v92, 4294901760
    %v7128 = vsub.f32 %v92, %v7127
    %v7129 = vand.u32 %v7128, 4294901760
    %v7130 = vsub.f32 %v7128, %v7129
    %v7131 = vand.u32 %v7130, 4294901760
    %7132 = vmatmul.mubr.f32.gmra.mrb[0].mxu0 %v7131
    %v7133 = vpop.f32.mrb[0].mxu0
    %v7134 = vadd.f32 %v6663, %v7133
    %v7135 = vpop.f32.mrb[0].mxu0
    %v7136 = vand.u32 %v95, 4294901760
    %v7137 = vsub.f32 %v95, %v7136
    %v7138 = vand.u32 %v7137, 4294901760
    %v7139 = vsub.f32 %v7137, %v7138
    %v7140 = vand.u32 %v7139, 4294901760
    %7141 = vmatprep.mubr.f32.mxu0 %v7140
    %v7142 = vand.u32 %v94, 4294901760
    %v7143 = vsub.f32 %v94, %v7142
    %v7144 = vand.u32 %v7143, 4294901760
    %v7145 = vsub.f32 %v7143, %v7144
    %v7146 = vand.u32 %v7145, 4294901760
    %7147 = vmatmul.mubr.f32.gmra.mrb[0].mxu0 %v7146
    %v7148 = vpop.f32.mrb[0].mxu0
    %v7149 = vadd.f32 %v6663, %v7148
    %v7150 = vpop.f32.mrb[0].mxu0
    %v7151 = vand.u32 %v97, 4294901760
    %v7152 = vsub.f32 %v97, %v7151
    %v7153 = vand.u32 %v7152, 4294901760
    %v7154 = vsub.f32 %v7152, %v7153
    %v7155 = vand.u32 %v7154, 4294901760
    %7156 = vmatprep.mubr.f32.mxu0 %v7155
    %v7157 = vand.u32 %v96, 4294901760
    %v7158 = vsub.f32 %v96, %v7157
    %v7159 = vand.u32 %v7158, 4294901760
    %v7160 = vsub.f32 %v7158, %v7159
    %v7161 = vand.u32 %v7160, 4294901760
    %7162 = vmatmul.mubr.f32.gmra.mrb[0].mxu0 %v7161
    %v7163 = vpop.f32.mrb[0].mxu0
    %v7164 = vadd.f32 %v6663, %v7163
    %v7165 = vpop.f32.mrb[0].mxu0
    %v7166 = vand.u32 %v99, 4294901760
    %v7167 = vsub.f32 %v99, %v7166
    %v7168 = vand.u32 %v7167, 4294901760
    %v7169 = vsub.f32 %v7167, %v7168
    %v7170 = vand.u32 %v7169, 4294901760
    %7171 = vmatprep.mubr.f32.mxu0 %v7170
    %v7172 = vand.u32 %v98, 4294901760
    %v7173 = vsub.f32 %v98, %v7172
    %v7174 = vand.u32 %v7173, 4294901760
    %v7175 = vsub.f32 %v7173, %v7174
    %v7176 = vand.u32 %v7175, 4294901760
    %7177 = vmatmul.mubr.f32.gmra.mrb[0].mxu0 %v7176
    %v7178 = vpop.f32.mrb[0].mxu0
    %v7179 = vadd.f32 %v6663, %v7178
    %v7180 = vpop.f32.mrb[0].mxu0
    %v7181 = vand.u32 %v101, 4294901760
    %v7182 = vsub.f32 %v101, %v7181
    %v7183 = vand.u32 %v7182, 4294901760
    %v7184 = vsub.f32 %v7182, %v7183
    %v7185 = vand.u32 %v7184, 4294901760
    %7186 = vmatprep.mubr.f32.mxu0 %v7185
    %v7187 = vand.u32 %v100, 4294901760
    %v7188 = vsub.f32 %v100, %v7187
    %v7189 = vand.u32 %v7188, 4294901760
    %v7190 = vsub.f32 %v7188, %v7189
    %v7191 = vand.u32 %v7190, 4294901760
    %7192 = vmatmul.mubr.f32.gmra.mrb[0].mxu0 %v7191
    %v7193 = vpop.f32.mrb[0].mxu0
    %v7194 = vadd.f32 %v6663, %v7193
    %v7195 = vpop.f32.mrb[0].mxu0
    %v7196 = vand.u32 %v103, 4294901760
    %v7197 = vsub.f32 %v103, %v7196
    %v7198 = vand.u32 %v7197, 4294901760
    %v7199 = vsub.f32 %v7197, %v7198
    %v7200 = vand.u32 %v7199, 4294901760
    %7201 = vmatprep.mubr.f32.mxu0 %v7200
    %v7202 = vand.u32 %v102, 4294901760
    %v7203 = vsub.f32 %v102, %v7202
    %v7204 = vand.u32 %v7203, 4294901760
    %v7205 = vsub.f32 %v7203, %v7204
    %v7206 = vand.u32 %v7205, 4294901760
    %7207 = vmatmul.mubr.f32.gmra.mrb[0].mxu0 %v7206
    %v7208 = vpop.f32.mrb[0].mxu0
    %v7209 = vadd.f32 %v6663, %v7208
    %v7210 = vpop.f32.mrb[0].mxu0
    %v7211 = vand.u32 %v105, 4294901760
    %v7212 = vsub.f32 %v105, %v7211
    %v7213 = vand.u32 %v7212, 4294901760
    %v7214 = vsub.f32 %v7212, %v7213
    %v7215 = vand.u32 %v7214, 4294901760
    %7216 = vmatprep.mubr.f32.mxu0 %v7215
    %v7217 = vand.u32 %v104, 4294901760
    %v7218 = vsub.f32 %v104, %v7217
    %v7219 = vand.u32 %v7218, 4294901760
    %v7220 = vsub.f32 %v7218, %v7219
    %v7221 = vand.u32 %v7220, 4294901760
    %7222 = vmatmul.mubr.f32.gmra.mrb[0].mxu0 %v7221
    %v7223 = vpop.f32.mrb[0].mxu0
    %v7224 = vadd.f32 %v6663, %v7223
    %v7225 = vpop.f32.mrb[0].mxu0
    %v7226 = vand.u32 %v107, 4294901760
    %v7227 = vsub.f32 %v107, %v7226
    %v7228 = vand.u32 %v7227, 4294901760
    %v7229 = vsub.f32 %v7227, %v7228
    %v7230 = vand.u32 %v7229, 4294901760
    %7231 = vmatprep.mubr.f32.mxu0 %v7230
    %v7232 = vand.u32 %v106, 4294901760
    %v7233 = vsub.f32 %v106, %v7232
    %v7234 = vand.u32 %v7233, 4294901760
    %v7235 = vsub.f32 %v7233, %v7234
    %v7236 = vand.u32 %v7235, 4294901760
    %7237 = vmatmul.mubr.f32.gmra.mrb[0].mxu0 %v7236
    %v7238 = vpop.f32.mrb[0].mxu0
    %v7239 = vadd.f32 %v6663, %v7238
    %v7240 = vpop.f32.mrb[0].mxu0
    %7241 = vdwg.mxu0
    %7242 = vmatprep.subr.mxu0 0.0
    %v7243 = vand.u32 %v6469, 4294901760
    %v7244 = vsub.f32 %v6469, %v7243
    %v7245 = vand.u32 %v7244, 4294901760
    %v7246 = vsub.f32 %v7244, %v7245
    %v7247 = vand.u32 %v7246, 4294901760
    %7248 = vmatpush1.msra.mxu0 %v7247
    %7249 = vmatprep.subr.mxu0 0.0
    %v7250 = vand.u32 %v6475, 4294901760
    %v7251 = vsub.f32 %v6475, %v7250
    %v7252 = vand.u32 %v7251, 4294901760
    %v7253 = vsub.f32 %v7251, %v7252
    %v7254 = vand.u32 %v7253, 4294901760
    %7255 = vmatpush1.msra.mxu0 %v7254
    %7256 = vmatprep.subr.mxu0 0.0
    %v7257 = vand.u32 %v6481, 4294901760
    %v7258 = vsub.f32 %v6481, %v7257
    %v7259 = vand.u32 %v7258, 4294901760
    %v7260 = vsub.f32 %v7258, %v7259
    %v7261 = vand.u32 %v7260, 4294901760
    %7262 = vmatpush1.msra.mxu0 %v7261
    %7263 = vmatprep.subr.mxu0 0.0
    %v7264 = vand.u32 %v6487, 4294901760
    %v7265 = vsub.f32 %v6487, %v7264
    %v7266 = vand.u32 %v7265, 4294901760
    %v7267 = vsub.f32 %v7265, %v7266
    %v7268 = vand.u32 %v7267, 4294901760
    %7269 = vmatpush1.msra.mxu0 %v7268
    %7270 = vmatprep.subr.mxu0 0.0
    %v7271 = vand.u32 %v6493, 4294901760
    %v7272 = vsub.f32 %v6493, %v7271
    %v7273 = vand.u32 %v7272, 4294901760
    %v7274 = vsub.f32 %v7272, %v7273
    %v7275 = vand.u32 %v7274, 4294901760
    %7276 = vmatpush1.msra.mxu0 %v7275
    %7277 = vmatprep.subr.mxu0 0.0
    %v7278 = vand.u32 %v6499, 4294901760
    %v7279 = vsub.f32 %v6499, %v7278
    %v7280 = vand.u32 %v7279, 4294901760
    %v7281 = vsub.f32 %v7279, %v7280
    %v7282 = vand.u32 %v7281, 4294901760
    %7283 = vmatpush1.msra.mxu0 %v7282
    %7284 = vmatprep.subr.mxu0 0.0
    %v7285 = vand.u32 %v6505, 4294901760
    %v7286 = vsub.f32 %v6505, %v7285
    %v7287 = vand.u32 %v7286, 4294901760
    %v7288 = vsub.f32 %v7286, %v7287
    %v7289 = vand.u32 %v7288, 4294901760
    %7290 = vmatpush1.msra.mxu0 %v7289
    %7291 = vmatprep.subr.mxu0 0.0
    %v7292 = vand.u32 %v6511, 4294901760
    %v7293 = vsub.f32 %v6511, %v7292
    %v7294 = vand.u32 %v7293, 4294901760
    %v7295 = vsub.f32 %v7293, %v7294
    %v7296 = vand.u32 %v7295, 4294901760
    %7297 = vmatpush1.msra.mxu0 %v7296
    %7298 = vmatprep.subr.mxu0 0.0
    %v7299 = vand.u32 %v6517, 4294901760
    %v7300 = vsub.f32 %v6517, %v7299
    %v7301 = vand.u32 %v7300, 4294901760
    %v7302 = vsub.f32 %v7300, %v7301
    %v7303 = vand.u32 %v7302, 4294901760
    %7304 = vmatpush1.msra.mxu0 %v7303
    %7305 = vmatprep.subr.mxu0 0.0
    %v7306 = vand.u32 %v6523, 4294901760
    %v7307 = vsub.f32 %v6523, %v7306
    %v7308 = vand.u32 %v7307, 4294901760
    %v7309 = vsub.f32 %v7307, %v7308
    %v7310 = vand.u32 %v7309, 4294901760
    %7311 = vmatpush1.msra.mxu0 %v7310
    %7312 = vmatprep.subr.mxu0 0.0
    %v7313 = vand.u32 %v6529, 4294901760
    %v7314 = vsub.f32 %v6529, %v7313
    %v7315 = vand.u32 %v7314, 4294901760
    %v7316 = vsub.f32 %v7314, %v7315
    %v7317 = vand.u32 %v7316, 4294901760
    %7318 = vmatpush1.msra.mxu0 %v7317
    %7319 = vmatprep.subr.mxu0 0.0
    %v7320 = vand.u32 %v6535, 4294901760
    %v7321 = vsub.f32 %v6535, %v7320
    %v7322 = vand.u32 %v7321, 4294901760
    %v7323 = vsub.f32 %v7321, %v7322
    %v7324 = vand.u32 %v7323, 4294901760
    %7325 = vmatpush1.msra.mxu0 %v7324
    %7326 = vmatprep.subr.mxu0 0.0
    %v7327 = vand.u32 %v6541, 4294901760
    %v7328 = vsub.f32 %v6541, %v7327
    %v7329 = vand.u32 %v7328, 4294901760
    %v7330 = vsub.f32 %v7328, %v7329
    %v7331 = vand.u32 %v7330, 4294901760
    %7332 = vmatpush1.msra.mxu0 %v7331
    %7333 = vmatprep.subr.mxu0 0.0
    %v7334 = vand.u32 %v6547, 4294901760
    %v7335 = vsub.f32 %v6547, %v7334
    %v7336 = vand.u32 %v7335, 4294901760
    %v7337 = vsub.f32 %v7335, %v7336
    %v7338 = vand.u32 %v7337, 4294901760
    %7339 = vmatpush1.msra.mxu0 %v7338
    %7340 = vmatprep.subr.mxu0 0.0
    %v7341 = vand.u32 %v6553, 4294901760
    %v7342 = vsub.f32 %v6553, %v7341
    %v7343 = vand.u32 %v7342, 4294901760
    %v7344 = vsub.f32 %v7342, %v7343
    %v7345 = vand.u32 %v7344, 4294901760
    %7346 = vmatpush1.msra.mxu0 %v7345
    %7347 = vmatprep.subr.mxu0 0.0
    %v7348 = vand.u32 %v6559, 4294901760
    %v7349 = vsub.f32 %v6559, %v7348
    %v7350 = vand.u32 %v7349, 4294901760
    %v7351 = vsub.f32 %v7349, %v7350
    %v7352 = vand.u32 %v7351, 4294901760
    %7353 = vmatpush1.msra.mxu0 %v7352
    %7354 = vmatprep.subr.mxu0 0.0
    %v7355 = vand.u32 %v6565, 4294901760
    %v7356 = vsub.f32 %v6565, %v7355
    %v7357 = vand.u32 %v7356, 4294901760
    %v7358 = vsub.f32 %v7356, %v7357
    %v7359 = vand.u32 %v7358, 4294901760
    %7360 = vmatpush1.msra.mxu0 %v7359
    %7361 = vmatprep.subr.mxu0 0.0
    %v7362 = vand.u32 %v6571, 4294901760
    %v7363 = vsub.f32 %v6571, %v7362
    %v7364 = vand.u32 %v7363, 4294901760
    %v7365 = vsub.f32 %v7363, %v7364
    %v7366 = vand.u32 %v7365, 4294901760
    %7367 = vmatpush1.msra.mxu0 %v7366
    %7368 = vmatprep.subr.mxu0 0.0
    %v7369 = vand.u32 %v6577, 4294901760
    %v7370 = vsub.f32 %v6577, %v7369
    %v7371 = vand.u32 %v7370, 4294901760
    %v7372 = vsub.f32 %v7370, %v7371
    %v7373 = vand.u32 %v7372, 4294901760
    %7374 = vmatpush1.msra.mxu0 %v7373
    %7375 = vmatprep.subr.mxu0 0.0
    %v7376 = vand.u32 %v6583, 4294901760
    %v7377 = vsub.f32 %v6583, %v7376
    %v7378 = vand.u32 %v7377, 4294901760
    %v7379 = vsub.f32 %v7377, %v7378
    %v7380 = vand.u32 %v7379, 4294901760
    %7381 = vmatpush1.msra.mxu0 %v7380
    %7382 = vmatprep.subr.mxu0 0.0
    %v7383 = vand.u32 %v6589, 4294901760
    %v7384 = vsub.f32 %v6589, %v7383
    %v7385 = vand.u32 %v7384, 4294901760
    %v7386 = vsub.f32 %v7384, %v7385
    %v7387 = vand.u32 %v7386, 4294901760
    %7388 = vmatpush1.msra.mxu0 %v7387
    %7389 = vmatprep.subr.mxu0 0.0
    %v7390 = vand.u32 %v6595, 4294901760
    %v7391 = vsub.f32 %v6595, %v7390
    %v7392 = vand.u32 %v7391, 4294901760
    %v7393 = vsub.f32 %v7391, %v7392
    %v7394 = vand.u32 %v7393, 4294901760
    %7395 = vmatpush1.msra.mxu0 %v7394
    %7396 = vmatprep.subr.mxu0 0.0
    %v7397 = vand.u32 %v6601, 4294901760
    %v7398 = vsub.f32 %v6601, %v7397
    %v7399 = vand.u32 %v7398, 4294901760
    %v7400 = vsub.f32 %v7398, %v7399
    %v7401 = vand.u32 %v7400, 4294901760
    %7402 = vmatpush1.msra.mxu0 %v7401
    %7403 = vmatprep.subr.mxu0 0.0
    %v7404 = vand.u32 %v6607, 4294901760
    %v7405 = vsub.f32 %v6607, %v7404
    %v7406 = vand.u32 %v7405, 4294901760
    %v7407 = vsub.f32 %v7405, %v7406
    %v7408 = vand.u32 %v7407, 4294901760
    %7409 = vmatpush1.msra.mxu0 %v7408
    %7410 = vmatprep.subr.mxu0 0.0
    %v7411 = vand.u32 %v6613, 4294901760
    %v7412 = vsub.f32 %v6613, %v7411
    %v7413 = vand.u32 %v7412, 4294901760
    %v7414 = vsub.f32 %v7412, %v7413
    %v7415 = vand.u32 %v7414, 4294901760
    %7416 = vmatpush1.msra.mxu0 %v7415
    %7417 = vmatprep.subr.mxu0 0.0
    %v7418 = vand.u32 %v6619, 4294901760
    %v7419 = vsub.f32 %v6619, %v7418
    %v7420 = vand.u32 %v7419, 4294901760
    %v7421 = vsub.f32 %v7419, %v7420
    %v7422 = vand.u32 %v7421, 4294901760
    %7423 = vmatpush1.msra.mxu0 %v7422
    %7424 = vmatprep.subr.mxu0 0.0
    %v7425 = vand.u32 %v6625, 4294901760
    %v7426 = vsub.f32 %v6625, %v7425
    %v7427 = vand.u32 %v7426, 4294901760
    %v7428 = vsub.f32 %v7426, %v7427
    %v7429 = vand.u32 %v7428, 4294901760
    %7430 = vmatpush1.msra.mxu0 %v7429
    %7431 = vmatprep.subr.mxu0 0.0
    %v7432 = vand.u32 %v6631, 4294901760
    %v7433 = vsub.f32 %v6631, %v7432
    %v7434 = vand.u32 %v7433, 4294901760
    %v7435 = vsub.f32 %v7433, %v7434
    %v7436 = vand.u32 %v7435, 4294901760
    %7437 = vmatpush1.msra.mxu0 %v7436
    %7438 = vmatprep.subr.mxu0 0.0
    %v7439 = vand.u32 %v6637, 4294901760
    %v7440 = vsub.f32 %v6637, %v7439
    %v7441 = vand.u32 %v7440, 4294901760
    %v7442 = vsub.f32 %v7440, %v7441
    %v7443 = vand.u32 %v7442, 4294901760
    %7444 = vmatpush1.msra.mxu0 %v7443
    %7445 = vmatprep.subr.mxu0 0.0
    %v7446 = vand.u32 %v6643, 4294901760
    %v7447 = vsub.f32 %v6643, %v7446
    %v7448 = vand.u32 %v7447, 4294901760
    %v7449 = vsub.f32 %v7447, %v7448
    %v7450 = vand.u32 %v7449, 4294901760
    %7451 = vmatpush1.msra.mxu0 %v7450
    %7452 = vmatprep.subr.mxu0 0.0
    %v7453 = vand.u32 %v6649, 4294901760
    %v7454 = vsub.f32 %v6649, %v7453
    %v7455 = vand.u32 %v7454, 4294901760
    %v7456 = vsub.f32 %v7454, %v7455
    %v7457 = vand.u32 %v7456, 4294901760
    %7458 = vmatpush1.msra.mxu0 %v7457
    %7459 = vmatprep.subr.mxu0 0.0
    %v7460 = vand.u32 %v6655, 4294901760
    %v7461 = vsub.f32 %v6655, %v7460
    %v7462 = vand.u32 %v7461, 4294901760
    %v7463 = vsub.f32 %v7461, %v7462
    %v7464 = vand.u32 %v7463, 4294901760
    %7465 = vmatpush1.msra.mxu0 %v7464
    %v7466 = vand.u32 %v45, 4294901760
    %7467 = vmatprep.mubr.f32.mxu0 %v7466
    %v7468 = vand.u32 %v44, 4294901760
    %7469 = vmatmul.mubr.f32.gmra.mrb[0].mxu0 %v7468
    %v7470 = vpop.f32.mrb[0].mxu0
    %v7471 = vadd.f32 %v6774, %v7470
    %v7472 = vpop.f32.mrb[0].mxu0
    %v7473 = vand.u32 %v47, 4294901760
    %7474 = vmatprep.mubr.f32.mxu0 %v7473
    %v7475 = vand.u32 %v46, 4294901760
    %7476 = vmatmul.mubr.f32.gmra.mrb[0].mxu0 %v7475
    %v7477 = vpop.f32.mrb[0].mxu0
    %v7478 = vadd.f32 %v6789, %v7477
    %v7479 = vpop.f32.mrb[0].mxu0
    %v7480 = vand.u32 %v49, 4294901760
    %7481 = vmatprep.mubr.f32.mxu0 %v7480
    %v7482 = vand.u32 %v48, 4294901760
    %7483 = vmatmul.mubr.f32.gmra.mrb[0].mxu0 %v7482
    %v7484 = vpop.f32.mrb[0].mxu0
    %v7485 = vadd.f32 %v6804, %v7484
    %v7486 = vpop.f32.mrb[0].mxu0
    %v7487 = vand.u32 %v51, 4294901760
    %7488 = vmatprep.mubr.f32.mxu0 %v7487
    %v7489 = vand.u32 %v50, 4294901760
    %7490 = vmatmul.mubr.f32.gmra.mrb[0].mxu0 %v7489
    %v7491 = vpop.f32.mrb[0].mxu0
    %v7492 = vadd.f32 %v6819, %v7491
    %v7493 = vpop.f32.mrb[0].mxu0
    %v7494 = vand.u32 %v53, 4294901760
    %7495 = vmatprep.mubr.f32.mxu0 %v7494
    %v7496 = vand.u32 %v52, 4294901760
    %7497 = vmatmul.mubr.f32.gmra.mrb[0].mxu0 %v7496
    %v7498 = vpop.f32.mrb[0].mxu0
    %v7499 = vadd.f32 %v6834, %v7498
    %v7500 = vpop.f32.mrb[0].mxu0
    %v7501 = vand.u32 %v55, 4294901760
    %7502 = vmatprep.mubr.f32.mxu0 %v7501
    %v7503 = vand.u32 %v54, 4294901760
    %7504 = vmatmul.mubr.f32.gmra.mrb[0].mxu0 %v7503
    %v7505 = vpop.f32.mrb[0].mxu0
    %v7506 = vadd.f32 %v6849, %v7505
    %v7507 = vpop.f32.mrb[0].mxu0
    %v7508 = vand.u32 %v57, 4294901760
    %7509 = vmatprep.mubr.f32.mxu0 %v7508
    %v7510 = vand.u32 %v56, 4294901760
    %7511 = vmatmul.mubr.f32.gmra.mrb[0].mxu0 %v7510
    %v7512 = vpop.f32.mrb[0].mxu0
    %v7513 = vadd.f32 %v6864, %v7512
    %v7514 = vpop.f32.mrb[0].mxu0
    %v7515 = vand.u32 %v59, 4294901760
    %7516 = vmatprep.mubr.f32.mxu0 %v7515
    %v7517 = vand.u32 %v58, 4294901760
    %7518 = vmatmul.mubr.f32.gmra.mrb[0].mxu0 %v7517
    %v7519 = vpop.f32.mrb[0].mxu0
    %v7520 = vadd.f32 %v6879, %v7519
    %v7521 = vpop.f32.mrb[0].mxu0
    %v7522 = vand.u32 %v61, 4294901760
    %7523 = vmatprep.mubr.f32.mxu0 %v7522
    %v7524 = vand.u32 %v60, 4294901760
    %7525 = vmatmul.mubr.f32.gmra.mrb[0].mxu0 %v7524
    %v7526 = vpop.f32.mrb[0].mxu0
    %v7527 = vadd.f32 %v6894, %v7526
    %v7528 = vpop.f32.mrb[0].mxu0
    %v7529 = vand.u32 %v63, 4294901760
    %7530 = vmatprep.mubr.f32.mxu0 %v7529
    %v7531 = vand.u32 %v62, 4294901760
    %7532 = vmatmul.mubr.f32.gmra.mrb[0].mxu0 %v7531
    %v7533 = vpop.f32.mrb[0].mxu0
    %v7534 = vadd.f32 %v6909, %v7533
    %v7535 = vpop.f32.mrb[0].mxu0
    %v7536 = vand.u32 %v65, 4294901760
    %7537 = vmatprep.mubr.f32.mxu0 %v7536
    %v7538 = vand.u32 %v64, 4294901760
    %7539 = vmatmul.mubr.f32.gmra.mrb[0].mxu0 %v7538
    %v7540 = vpop.f32.mrb[0].mxu0
    %v7541 = vadd.f32 %v6924, %v7540
    %v7542 = vpop.f32.mrb[0].mxu0
    %v7543 = vand.u32 %v67, 4294901760
    %7544 = vmatprep.mubr.f32.mxu0 %v7543
    %v7545 = vand.u32 %v66, 4294901760
    %7546 = vmatmul.mubr.f32.gmra.mrb[0].mxu0 %v7545
    %v7547 = vpop.f32.mrb[0].mxu0
    %v7548 = vadd.f32 %v6939, %v7547
    %v7549 = vpop.f32.mrb[0].mxu0
    %v7550 = vand.u32 %v69, 4294901760
    %7551 = vmatprep.mubr.f32.mxu0 %v7550
    %v7552 = vand.u32 %v68, 4294901760
    %7553 = vmatmul.mubr.f32.gmra.mrb[0].mxu0 %v7552
    %v7554 = vpop.f32.mrb[0].mxu0
    %v7555 = vadd.f32 %v6954, %v7554
    %v7556 = vpop.f32.mrb[0].mxu0
    %v7557 = vand.u32 %v71, 4294901760
    %7558 = vmatprep.mubr.f32.mxu0 %v7557
    %v7559 = vand.u32 %v70, 4294901760
    %7560 = vmatmul.mubr.f32.gmra.mrb[0].mxu0 %v7559
    %v7561 = vpop.f32.mrb[0].mxu0
    %v7562 = vadd.f32 %v6969, %v7561
    %v7563 = vpop.f32.mrb[0].mxu0
    %v7564 = vand.u32 %v73, 4294901760
    %7565 = vmatprep.mubr.f32.mxu0 %v7564
    %v7566 = vand.u32 %v72, 4294901760
    %7567 = vmatmul.mubr.f32.gmra.mrb[0].mxu0 %v7566
    %v7568 = vpop.f32.mrb[0].mxu0
    %v7569 = vadd.f32 %v6984, %v7568
    %v7570 = vpop.f32.mrb[0].mxu0
    %v7571 = vand.u32 %v75, 4294901760
    %7572 = vmatprep.mubr.f32.mxu0 %v7571
    %v7573 = vand.u32 %v74, 4294901760
    %7574 = vmatmul.mubr.f32.gmra.mrb[0].mxu0 %v7573
    %v7575 = vpop.f32.mrb[0].mxu0
    %v7576 = vadd.f32 %v6999, %v7575
    %v7577 = vpop.f32.mrb[0].mxu0
    %v7578 = vand.u32 %v77, 4294901760
    %7579 = vmatprep.mubr.f32.mxu0 %v7578
    %v7580 = vand.u32 %v76, 4294901760
    %7581 = vmatmul.mubr.f32.gmra.mrb[0].mxu0 %v7580
    %v7582 = vpop.f32.mrb[0].mxu0
    %v7583 = vadd.f32 %v7014, %v7582
    %v7584 = vpop.f32.mrb[0].mxu0
    %v7585 = vand.u32 %v79, 4294901760
    %7586 = vmatprep.mubr.f32.mxu0 %v7585
    %v7587 = vand.u32 %v78, 4294901760
    %7588 = vmatmul.mubr.f32.gmra.mrb[0].mxu0 %v7587
    %v7589 = vpop.f32.mrb[0].mxu0
    %v7590 = vadd.f32 %v7029, %v7589
    %v7591 = vpop.f32.mrb[0].mxu0
    %v7592 = vand.u32 %v81, 4294901760
    %7593 = vmatprep.mubr.f32.mxu0 %v7592
    %v7594 = vand.u32 %v80, 4294901760
    %7595 = vmatmul.mubr.f32.gmra.mrb[0].mxu0 %v7594
    %v7596 = vpop.f32.mrb[0].mxu0
    %v7597 = vadd.f32 %v7044, %v7596
    %v7598 = vpop.f32.mrb[0].mxu0
    %v7599 = vand.u32 %v83, 4294901760
    %7600 = vmatprep.mubr.f32.mxu0 %v7599
    %v7601 = vand.u32 %v82, 4294901760
    %7602 = vmatmul.mubr.f32.gmra.mrb[0].mxu0 %v7601
    %v7603 = vpop.f32.mrb[0].mxu0
    %v7604 = vadd.f32 %v7059, %v7603
    %v7605 = vpop.f32.mrb[0].mxu0
    %v7606 = vand.u32 %v85, 4294901760
    %7607 = vmatprep.mubr.f32.mxu0 %v7606
    %v7608 = vand.u32 %v84, 4294901760
    %7609 = vmatmul.mubr.f32.gmra.mrb[0].mxu0 %v7608
    %v7610 = vpop.f32.mrb[0].mxu0
    %v7611 = vadd.f32 %v7074, %v7610
    %v7612 = vpop.f32.mrb[0].mxu0
    %v7613 = vand.u32 %v87, 4294901760
    %7614 = vmatprep.mubr.f32.mxu0 %v7613
    %v7615 = vand.u32 %v86, 4294901760
    %7616 = vmatmul.mubr.f32.gmra.mrb[0].mxu0 %v7615
    %v7617 = vpop.f32.mrb[0].mxu0
    %v7618 = vadd.f32 %v7089, %v7617
    %v7619 = vpop.f32.mrb[0].mxu0
    %v7620 = vand.u32 %v89, 4294901760
    %7621 = vmatprep.mubr.f32.mxu0 %v7620
    %v7622 = vand.u32 %v88, 4294901760
    %7623 = vmatmul.mubr.f32.gmra.mrb[0].mxu0 %v7622
    %v7624 = vpop.f32.mrb[0].mxu0
    %v7625 = vadd.f32 %v7104, %v7624
    %v7626 = vpop.f32.mrb[0].mxu0
    %v7627 = vand.u32 %v91, 4294901760
    %7628 = vmatprep.mubr.f32.mxu0 %v7627
    %v7629 = vand.u32 %v90, 4294901760
    %7630 = vmatmul.mubr.f32.gmra.mrb[0].mxu0 %v7629
    %v7631 = vpop.f32.mrb[0].mxu0
    %v7632 = vadd.f32 %v7119, %v7631
    %v7633 = vpop.f32.mrb[0].mxu0
    %v7634 = vand.u32 %v93, 4294901760
    %7635 = vmatprep.mubr.f32.mxu0 %v7634
    %v7636 = vand.u32 %v92, 4294901760
    %7637 = vmatmul.mubr.f32.gmra.mrb[0].mxu0 %v7636
    %v7638 = vpop.f32.mrb[0].mxu0
    %v7639 = vadd.f32 %v7134, %v7638
    %v7640 = vpop.f32.mrb[0].mxu0
    %v7641 = vand.u32 %v95, 4294901760
    %7642 = vmatprep.mubr.f32.mxu0 %v7641
    %v7643 = vand.u32 %v94, 4294901760
    %7644 = vmatmul.mubr.f32.gmra.mrb[0].mxu0 %v7643
    %v7645 = vpop.f32.mrb[0].mxu0
    %v7646 = vadd.f32 %v7149, %v7645
    %v7647 = vpop.f32.mrb[0].mxu0
    %v7648 = vand.u32 %v97, 4294901760
    %7649 = vmatprep.mubr.f32.mxu0 %v7648
    %v7650 = vand.u32 %v96, 4294901760
    %7651 = vmatmul.mubr.f32.gmra.mrb[0].mxu0 %v7650
    %v7652 = vpop.f32.mrb[0].mxu0
    %v7653 = vadd.f32 %v7164, %v7652
    %v7654 = vpop.f32.mrb[0].mxu0
    %v7655 = vand.u32 %v99, 4294901760
    %7656 = vmatprep.mubr.f32.mxu0 %v7655
    %v7657 = vand.u32 %v98, 4294901760
    %7658 = vmatmul.mubr.f32.gmra.mrb[0].mxu0 %v7657
    %v7659 = vpop.f32.mrb[0].mxu0
    %v7660 = vadd.f32 %v7179, %v7659
    %v7661 = vpop.f32.mrb[0].mxu0
    %v7662 = vand.u32 %v101, 4294901760
    %7663 = vmatprep.mubr.f32.mxu0 %v7662
    %v7664 = vand.u32 %v100, 4294901760
    %7665 = vmatmul.mubr.f32.gmra.mrb[0].mxu0 %v7664
    %v7666 = vpop.f32.mrb[0].mxu0
    %v7667 = vadd.f32 %v7194, %v7666
    %v7668 = vpop.f32.mrb[0].mxu0
    %v7669 = vand.u32 %v103, 4294901760
    %7670 = vmatprep.mubr.f32.mxu0 %v7669
    %v7671 = vand.u32 %v102, 4294901760
    %7672 = vmatmul.mubr.f32.gmra.mrb[0].mxu0 %v7671
    %v7673 = vpop.f32.mrb[0].mxu0
    %v7674 = vadd.f32 %v7209, %v7673
    %v7675 = vpop.f32.mrb[0].mxu0
    %v7676 = vand.u32 %v105, 4294901760
    %7677 = vmatprep.mubr.f32.mxu0 %v7676
    %v7678 = vand.u32 %v104, 4294901760
    %7679 = vmatmul.mubr.f32.gmra.mrb[0].mxu0 %v7678
    %v7680 = vpop.f32.mrb[0].mxu0
    %v7681 = vadd.f32 %v7224, %v7680
    %v7682 = vpop.f32.mrb[0].mxu0
    %v7683 = vand.u32 %v107, 4294901760
    %7684 = vmatprep.mubr.f32.mxu0 %v7683
    %v7685 = vand.u32 %v106, 4294901760
    %7686 = vmatmul.mubr.f32.gmra.mrb[0].mxu0 %v7685
    %v7687 = vpop.f32.mrb[0].mxu0
    %v7688 = vadd.f32 %v7239, %v7687
    %v7689 = vpop.f32.mrb[0].mxu0
    %7690 = vdwg.mxu0
    %7691 = vmatprep.subr.mxu0 0.0
    %v7692 = vand.u32 %v6469, 4294901760
    %v7693 = vsub.f32 %v6469, %v7692
    %7694 = vmatpush1.msra.mxu0 %v7693
    %7695 = vmatprep.subr.mxu0 0.0
    %v7696 = vand.u32 %v6475, 4294901760
    %v7697 = vsub.f32 %v6475, %v7696
    %7698 = vmatpush1.msra.mxu0 %v7697
    %7699 = vmatprep.subr.mxu0 0.0
    %v7700 = vand.u32 %v6481, 4294901760
    %v7701 = vsub.f32 %v6481, %v7700
    %7702 = vmatpush1.msra.mxu0 %v7701
    %7703 = vmatprep.subr.mxu0 0.0
    %v7704 = vand.u32 %v6487, 4294901760
    %v7705 = vsub.f32 %v6487, %v7704
    %7706 = vmatpush1.msra.mxu0 %v7705
    %7707 = vmatprep.subr.mxu0 0.0
    %v7708 = vand.u32 %v6493, 4294901760
    %v7709 = vsub.f32 %v6493, %v7708
    %7710 = vmatpush1.msra.mxu0 %v7709
    %7711 = vmatprep.subr.mxu0 0.0
    %v7712 = vand.u32 %v6499, 4294901760
    %v7713 = vsub.f32 %v6499, %v7712
    %7714 = vmatpush1.msra.mxu0 %v7713
    %7715 = vmatprep.subr.mxu0 0.0
    %v7716 = vand.u32 %v6505, 4294901760
    %v7717 = vsub.f32 %v6505, %v7716
    %7718 = vmatpush1.msra.mxu0 %v7717
    %7719 = vmatprep.subr.mxu0 0.0
    %v7720 = vand.u32 %v6511, 4294901760
    %v7721 = vsub.f32 %v6511, %v7720
    %7722 = vmatpush1.msra.mxu0 %v7721
    %7723 = vmatprep.subr.mxu0 0.0
    %v7724 = vand.u32 %v6517, 4294901760
    %v7725 = vsub.f32 %v6517, %v7724
    %7726 = vmatpush1.msra.mxu0 %v7725
    %7727 = vmatprep.subr.mxu0 0.0
    %v7728 = vand.u32 %v6523, 4294901760
    %v7729 = vsub.f32 %v6523, %v7728
    %7730 = vmatpush1.msra.mxu0 %v7729
    %7731 = vmatprep.subr.mxu0 0.0
    %v7732 = vand.u32 %v6529, 4294901760
    %v7733 = vsub.f32 %v6529, %v7732
    %7734 = vmatpush1.msra.mxu0 %v7733
    %7735 = vmatprep.subr.mxu0 0.0
    %v7736 = vand.u32 %v6535, 4294901760
    %v7737 = vsub.f32 %v6535, %v7736
    %7738 = vmatpush1.msra.mxu0 %v7737
    %7739 = vmatprep.subr.mxu0 0.0
    %v7740 = vand.u32 %v6541, 4294901760
    %v7741 = vsub.f32 %v6541, %v7740
    %7742 = vmatpush1.msra.mxu0 %v7741
    %7743 = vmatprep.subr.mxu0 0.0
    %v7744 = vand.u32 %v6547, 4294901760
    %v7745 = vsub.f32 %v6547, %v7744
    %7746 = vmatpush1.msra.mxu0 %v7745
    %7747 = vmatprep.subr.mxu0 0.0
    %v7748 = vand.u32 %v6553, 4294901760
    %v7749 = vsub.f32 %v6553, %v7748
    %7750 = vmatpush1.msra.mxu0 %v7749
    %7751 = vmatprep.subr.mxu0 0.0
    %v7752 = vand.u32 %v6559, 4294901760
    %v7753 = vsub.f32 %v6559, %v7752
    %7754 = vmatpush1.msra.mxu0 %v7753
    %7755 = vmatprep.subr.mxu0 0.0
    %v7756 = vand.u32 %v6565, 4294901760
    %v7757 = vsub.f32 %v6565, %v7756
    %7758 = vmatpush1.msra.mxu0 %v7757
    %7759 = vmatprep.subr.mxu0 0.0
    %v7760 = vand.u32 %v6571, 4294901760
    %v7761 = vsub.f32 %v6571, %v7760
    %7762 = vmatpush1.msra.mxu0 %v7761
    %7763 = vmatprep.subr.mxu0 0.0
    %v7764 = vand.u32 %v6577, 4294901760
    %v7765 = vsub.f32 %v6577, %v7764
    %7766 = vmatpush1.msra.mxu0 %v7765
    %7767 = vmatprep.subr.mxu0 0.0
    %v7768 = vand.u32 %v6583, 4294901760
    %v7769 = vsub.f32 %v6583, %v7768
    %7770 = vmatpush1.msra.mxu0 %v7769
    %7771 = vmatprep.subr.mxu0 0.0
    %v7772 = vand.u32 %v6589, 4294901760
    %v7773 = vsub.f32 %v6589, %v7772
    %7774 = vmatpush1.msra.mxu0 %v7773
    %7775 = vmatprep.subr.mxu0 0.0
    %v7776 = vand.u32 %v6595, 4294901760
    %v7777 = vsub.f32 %v6595, %v7776
    %7778 = vmatpush1.msra.mxu0 %v7777
    %7779 = vmatprep.subr.mxu0 0.0
    %v7780 = vand.u32 %v6601, 4294901760
    %v7781 = vsub.f32 %v6601, %v7780
    %7782 = vmatpush1.msra.mxu0 %v7781
    %7783 = vmatprep.subr.mxu0 0.0
    %v7784 = vand.u32 %v6607, 4294901760
    %v7785 = vsub.f32 %v6607, %v7784
    %7786 = vmatpush1.msra.mxu0 %v7785
    %7787 = vmatprep.subr.mxu0 0.0
    %v7788 = vand.u32 %v6613, 4294901760
    %v7789 = vsub.f32 %v6613, %v7788
    %7790 = vmatpush1.msra.mxu0 %v7789
    %7791 = vmatprep.subr.mxu0 0.0
    %v7792 = vand.u32 %v6619, 4294901760
    %v7793 = vsub.f32 %v6619, %v7792
    %7794 = vmatpush1.msra.mxu0 %v7793
    %7795 = vmatprep.subr.mxu0 0.0
    %v7796 = vand.u32 %v6625, 4294901760
    %v7797 = vsub.f32 %v6625, %v7796
    %7798 = vmatpush1.msra.mxu0 %v7797
    %7799 = vmatprep.subr.mxu0 0.0
    %v7800 = vand.u32 %v6631, 4294901760
    %v7801 = vsub.f32 %v6631, %v7800
    %7802 = vmatpush1.msra.mxu0 %v7801
    %7803 = vmatprep.subr.mxu0 0.0
    %v7804 = vand.u32 %v6637, 4294901760
    %v7805 = vsub.f32 %v6637, %v7804
    %7806 = vmatpush1.msra.mxu0 %v7805
    %7807 = vmatprep.subr.mxu0 0.0
    %v7808 = vand.u32 %v6643, 4294901760
    %v7809 = vsub.f32 %v6643, %v7808
    %7810 = vmatpush1.msra.mxu0 %v7809
    %7811 = vmatprep.subr.mxu0 0.0
    %v7812 = vand.u32 %v6649, 4294901760
    %v7813 = vsub.f32 %v6649, %v7812
    %7814 = vmatpush1.msra.mxu0 %v7813
    %7815 = vmatprep.subr.mxu0 0.0
    %v7816 = vand.u32 %v6655, 4294901760
    %v7817 = vsub.f32 %v6655, %v7816
    %7818 = vmatpush1.msra.mxu0 %v7817
    %v7819 = vand.u32 %v45, 4294901760
    %v7820 = vsub.f32 %v45, %v7819
    %7821 = vmatprep.mubr.f32.mxu0 %v7820
    %v7822 = vand.u32 %v44, 4294901760
    %v7823 = vsub.f32 %v44, %v7822
    %7824 = vmatmul.mubr.f32.gmra.mrb[0].mxu0 %v7823
    %v7825 = vpop.f32.mrb[0].mxu0
    %v7826 = vadd.f32 %v7471, %v7825
    %v7827 = vpop.f32.mrb[0].mxu0
    %v7828 = vand.u32 %v47, 4294901760
    %v7829 = vsub.f32 %v47, %v7828
    %7830 = vmatprep.mubr.f32.mxu0 %v7829
    %v7831 = vand.u32 %v46, 4294901760
    %v7832 = vsub.f32 %v46, %v7831
    %7833 = vmatmul.mubr.f32.gmra.mrb[0].mxu0 %v7832
    %v7834 = vpop.f32.mrb[0].mxu0
    %v7835 = vadd.f32 %v7478, %v7834
    %v7836 = vpop.f32.mrb[0].mxu0
    %v7837 = vand.u32 %v49, 4294901760
    %v7838 = vsub.f32 %v49, %v7837
    %7839 = vmatprep.mubr.f32.mxu0 %v7838
    %v7840 = vand.u32 %v48, 4294901760
    %v7841 = vsub.f32 %v48, %v7840
    %7842 = vmatmul.mubr.f32.gmra.mrb[0].mxu0 %v7841
    %v7843 = vpop.f32.mrb[0].mxu0
    %v7844 = vadd.f32 %v7485, %v7843
    %v7845 = vpop.f32.mrb[0].mxu0
    %v7846 = vand.u32 %v51, 4294901760
    %v7847 = vsub.f32 %v51, %v7846
    %7848 = vmatprep.mubr.f32.mxu0 %v7847
    %v7849 = vand.u32 %v50, 4294901760
    %v7850 = vsub.f32 %v50, %v7849
    %7851 = vmatmul.mubr.f32.gmra.mrb[0].mxu0 %v7850
    %v7852 = vpop.f32.mrb[0].mxu0
    %v7853 = vadd.f32 %v7492, %v7852
    %v7854 = vpop.f32.mrb[0].mxu0
    %v7855 = vand.u32 %v53, 4294901760
    %v7856 = vsub.f32 %v53, %v7855
    %7857 = vmatprep.mubr.f32.mxu0 %v7856
    %v7858 = vand.u32 %v52, 4294901760
    %v7859 = vsub.f32 %v52, %v7858
    %7860 = vmatmul.mubr.f32.gmra.mrb[0].mxu0 %v7859
    %v7861 = vpop.f32.mrb[0].mxu0
    %v7862 = vadd.f32 %v7499, %v7861
    %v7863 = vpop.f32.mrb[0].mxu0
    %v7864 = vand.u32 %v55, 4294901760
    %v7865 = vsub.f32 %v55, %v7864
    %7866 = vmatprep.mubr.f32.mxu0 %v7865
    %v7867 = vand.u32 %v54, 4294901760
    %v7868 = vsub.f32 %v54, %v7867
    %7869 = vmatmul.mubr.f32.gmra.mrb[0].mxu0 %v7868
    %v7870 = vpop.f32.mrb[0].mxu0
    %v7871 = vadd.f32 %v7506, %v7870
    %v7872 = vpop.f32.mrb[0].mxu0
    %v7873 = vand.u32 %v57, 4294901760
    %v7874 = vsub.f32 %v57, %v7873
    %7875 = vmatprep.mubr.f32.mxu0 %v7874
    %v7876 = vand.u32 %v56, 4294901760
    %v7877 = vsub.f32 %v56, %v7876
    %7878 = vmatmul.mubr.f32.gmra.mrb[0].mxu0 %v7877
    %v7879 = vpop.f32.mrb[0].mxu0
    %v7880 = vadd.f32 %v7513, %v7879
    %v7881 = vpop.f32.mrb[0].mxu0
    %v7882 = vand.u32 %v59, 4294901760
    %v7883 = vsub.f32 %v59, %v7882
    %7884 = vmatprep.mubr.f32.mxu0 %v7883
    %v7885 = vand.u32 %v58, 4294901760
    %v7886 = vsub.f32 %v58, %v7885
    %7887 = vmatmul.mubr.f32.gmra.mrb[0].mxu0 %v7886
    %v7888 = vpop.f32.mrb[0].mxu0
    %v7889 = vadd.f32 %v7520, %v7888
    %v7890 = vpop.f32.mrb[0].mxu0
    %v7891 = vand.u32 %v61, 4294901760
    %v7892 = vsub.f32 %v61, %v7891
    %7893 = vmatprep.mubr.f32.mxu0 %v7892
    %v7894 = vand.u32 %v60, 4294901760
    %v7895 = vsub.f32 %v60, %v7894
    %7896 = vmatmul.mubr.f32.gmra.mrb[0].mxu0 %v7895
    %v7897 = vpop.f32.mrb[0].mxu0
    %v7898 = vadd.f32 %v7527, %v7897
    %v7899 = vpop.f32.mrb[0].mxu0
    %v7900 = vand.u32 %v63, 4294901760
    %v7901 = vsub.f32 %v63, %v7900
    %7902 = vmatprep.mubr.f32.mxu0 %v7901
    %v7903 = vand.u32 %v62, 4294901760
    %v7904 = vsub.f32 %v62, %v7903
    %7905 = vmatmul.mubr.f32.gmra.mrb[0].mxu0 %v7904
    %v7906 = vpop.f32.mrb[0].mxu0
    %v7907 = vadd.f32 %v7534, %v7906
    %v7908 = vpop.f32.mrb[0].mxu0
    %v7909 = vand.u32 %v65, 4294901760
    %v7910 = vsub.f32 %v65, %v7909
    %7911 = vmatprep.mubr.f32.mxu0 %v7910
    %v7912 = vand.u32 %v64, 4294901760
    %v7913 = vsub.f32 %v64, %v7912
    %7914 = vmatmul.mubr.f32.gmra.mrb[0].mxu0 %v7913
    %v7915 = vpop.f32.mrb[0].mxu0
    %v7916 = vadd.f32 %v7541, %v7915
    %v7917 = vpop.f32.mrb[0].mxu0
    %v7918 = vand.u32 %v67, 4294901760
    %v7919 = vsub.f32 %v67, %v7918
    %7920 = vmatprep.mubr.f32.mxu0 %v7919
    %v7921 = vand.u32 %v66, 4294901760
    %v7922 = vsub.f32 %v66, %v7921
    %7923 = vmatmul.mubr.f32.gmra.mrb[0].mxu0 %v7922
    %v7924 = vpop.f32.mrb[0].mxu0
    %v7925 = vadd.f32 %v7548, %v7924
    %v7926 = vpop.f32.mrb[0].mxu0
    %v7927 = vand.u32 %v69, 4294901760
    %v7928 = vsub.f32 %v69, %v7927
    %7929 = vmatprep.mubr.f32.mxu0 %v7928
    %v7930 = vand.u32 %v68, 4294901760
    %v7931 = vsub.f32 %v68, %v7930
    %7932 = vmatmul.mubr.f32.gmra.mrb[0].mxu0 %v7931
    %v7933 = vpop.f32.mrb[0].mxu0
    %v7934 = vadd.f32 %v7555, %v7933
    %v7935 = vpop.f32.mrb[0].mxu0
    %v7936 = vand.u32 %v71, 4294901760
    %v7937 = vsub.f32 %v71, %v7936
    %7938 = vmatprep.mubr.f32.mxu0 %v7937
    %v7939 = vand.u32 %v70, 4294901760
    %v7940 = vsub.f32 %v70, %v7939
    %7941 = vmatmul.mubr.f32.gmra.mrb[0].mxu0 %v7940
    %v7942 = vpop.f32.mrb[0].mxu0
    %v7943 = vadd.f32 %v7562, %v7942
    %v7944 = vpop.f32.mrb[0].mxu0
    %v7945 = vand.u32 %v73, 4294901760
    %v7946 = vsub.f32 %v73, %v7945
    %7947 = vmatprep.mubr.f32.mxu0 %v7946
    %v7948 = vand.u32 %v72, 4294901760
    %v7949 = vsub.f32 %v72, %v7948
    %7950 = vmatmul.mubr.f32.gmra.mrb[0].mxu0 %v7949
    %v7951 = vpop.f32.mrb[0].mxu0
    %v7952 = vadd.f32 %v7569, %v7951
    %v7953 = vpop.f32.mrb[0].mxu0
    %v7954 = vand.u32 %v75, 4294901760
    %v7955 = vsub.f32 %v75, %v7954
    %7956 = vmatprep.mubr.f32.mxu0 %v7955
    %v7957 = vand.u32 %v74, 4294901760
    %v7958 = vsub.f32 %v74, %v7957
    %7959 = vmatmul.mubr.f32.gmra.mrb[0].mxu0 %v7958
    %v7960 = vpop.f32.mrb[0].mxu0
    %v7961 = vadd.f32 %v7576, %v7960
    %v7962 = vpop.f32.mrb[0].mxu0
    %v7963 = vand.u32 %v77, 4294901760
    %v7964 = vsub.f32 %v77, %v7963
    %7965 = vmatprep.mubr.f32.mxu0 %v7964
    %v7966 = vand.u32 %v76, 4294901760
    %v7967 = vsub.f32 %v76, %v7966
    %7968 = vmatmul.mubr.f32.gmra.mrb[0].mxu0 %v7967
    %v7969 = vpop.f32.mrb[0].mxu0
    %v7970 = vadd.f32 %v7583, %v7969
    %v7971 = vpop.f32.mrb[0].mxu0
    %v7972 = vand.u32 %v79, 4294901760
    %v7973 = vsub.f32 %v79, %v7972
    %7974 = vmatprep.mubr.f32.mxu0 %v7973
    %v7975 = vand.u32 %v78, 4294901760
    %v7976 = vsub.f32 %v78, %v7975
    %7977 = vmatmul.mubr.f32.gmra.mrb[0].mxu0 %v7976
    %v7978 = vpop.f32.mrb[0].mxu0
    %v7979 = vadd.f32 %v7590, %v7978
    %v7980 = vpop.f32.mrb[0].mxu0
    %v7981 = vand.u32 %v81, 4294901760
    %v7982 = vsub.f32 %v81, %v7981
    %7983 = vmatprep.mubr.f32.mxu0 %v7982
    %v7984 = vand.u32 %v80, 4294901760
    %v7985 = vsub.f32 %v80, %v7984
    %7986 = vmatmul.mubr.f32.gmra.mrb[0].mxu0 %v7985
    %v7987 = vpop.f32.mrb[0].mxu0
    %v7988 = vadd.f32 %v7597, %v7987
    %v7989 = vpop.f32.mrb[0].mxu0
    %v7990 = vand.u32 %v83, 4294901760
    %v7991 = vsub.f32 %v83, %v7990
    %7992 = vmatprep.mubr.f32.mxu0 %v7991
    %v7993 = vand.u32 %v82, 4294901760
    %v7994 = vsub.f32 %v82, %v7993
    %7995 = vmatmul.mubr.f32.gmra.mrb[0].mxu0 %v7994
    %v7996 = vpop.f32.mrb[0].mxu0
    %v7997 = vadd.f32 %v7604, %v7996
    %v7998 = vpop.f32.mrb[0].mxu0
    %v7999 = vand.u32 %v85, 4294901760
    %v8000 = vsub.f32 %v85, %v7999
    %8001 = vmatprep.mubr.f32.mxu0 %v8000
    %v8002 = vand.u32 %v84, 4294901760
    %v8003 = vsub.f32 %v84, %v8002
    %8004 = vmatmul.mubr.f32.gmra.mrb[0].mxu0 %v8003
    %v8005 = vpop.f32.mrb[0].mxu0
    %v8006 = vadd.f32 %v7611, %v8005
    %v8007 = vpop.f32.mrb[0].mxu0
    %v8008 = vand.u32 %v87, 4294901760
    %v8009 = vsub.f32 %v87, %v8008
    %8010 = vmatprep.mubr.f32.mxu0 %v8009
    %v8011 = vand.u32 %v86, 4294901760
    %v8012 = vsub.f32 %v86, %v8011
    %8013 = vmatmul.mubr.f32.gmra.mrb[0].mxu0 %v8012
    %v8014 = vpop.f32.mrb[0].mxu0
    %v8015 = vadd.f32 %v7618, %v8014
    %v8016 = vpop.f32.mrb[0].mxu0
    %v8017 = vand.u32 %v89, 4294901760
    %v8018 = vsub.f32 %v89, %v8017
    %8019 = vmatprep.mubr.f32.mxu0 %v8018
    %v8020 = vand.u32 %v88, 4294901760
    %v8021 = vsub.f32 %v88, %v8020
    %8022 = vmatmul.mubr.f32.gmra.mrb[0].mxu0 %v8021
    %v8023 = vpop.f32.mrb[0].mxu0
    %v8024 = vadd.f32 %v7625, %v8023
    %v8025 = vpop.f32.mrb[0].mxu0
    %v8026 = vand.u32 %v91, 4294901760
    %v8027 = vsub.f32 %v91, %v8026
    %8028 = vmatprep.mubr.f32.mxu0 %v8027
    %v8029 = vand.u32 %v90, 4294901760
    %v8030 = vsub.f32 %v90, %v8029
    %8031 = vmatmul.mubr.f32.gmra.mrb[0].mxu0 %v8030
    %v8032 = vpop.f32.mrb[0].mxu0
    %v8033 = vadd.f32 %v7632, %v8032
    %v8034 = vpop.f32.mrb[0].mxu0
    %v8035 = vand.u32 %v93, 4294901760
    %v8036 = vsub.f32 %v93, %v8035
    %8037 = vmatprep.mubr.f32.mxu0 %v8036
    %v8038 = vand.u32 %v92, 4294901760
    %v8039 = vsub.f32 %v92, %v8038
    %8040 = vmatmul.mubr.f32.gmra.mrb[0].mxu0 %v8039
    %v8041 = vpop.f32.mrb[0].mxu0
    %v8042 = vadd.f32 %v7639, %v8041
    %v8043 = vpop.f32.mrb[0].mxu0
    %v8044 = vand.u32 %v95, 4294901760
    %v8045 = vsub.f32 %v95, %v8044
    %8046 = vmatprep.mubr.f32.mxu0 %v8045
    %v8047 = vand.u32 %v94, 4294901760
    %v8048 = vsub.f32 %v94, %v8047
    %8049 = vmatmul.mubr.f32.gmra.mrb[0].mxu0 %v8048
    %v8050 = vpop.f32.mrb[0].mxu0
    %v8051 = vadd.f32 %v7646, %v8050
    %v8052 = vpop.f32.mrb[0].mxu0
    %v8053 = vand.u32 %v97, 4294901760
    %v8054 = vsub.f32 %v97, %v8053
    %8055 = vmatprep.mubr.f32.mxu0 %v8054
    %v8056 = vand.u32 %v96, 4294901760
    %v8057 = vsub.f32 %v96, %v8056
    %8058 = vmatmul.mubr.f32.gmra.mrb[0].mxu0 %v8057
    %v8059 = vpop.f32.mrb[0].mxu0
    %v8060 = vadd.f32 %v7653, %v8059
    %v8061 = vpop.f32.mrb[0].mxu0
    %v8062 = vand.u32 %v99, 4294901760
    %v8063 = vsub.f32 %v99, %v8062
    %8064 = vmatprep.mubr.f32.mxu0 %v8063
    %v8065 = vand.u32 %v98, 4294901760
    %v8066 = vsub.f32 %v98, %v8065
    %8067 = vmatmul.mubr.f32.gmra.mrb[0].mxu0 %v8066
    %v8068 = vpop.f32.mrb[0].mxu0
    %v8069 = vadd.f32 %v7660, %v8068
    %v8070 = vpop.f32.mrb[0].mxu0
    %v8071 = vand.u32 %v101, 4294901760
    %v8072 = vsub.f32 %v101, %v8071
    %8073 = vmatprep.mubr.f32.mxu0 %v8072
    %v8074 = vand.u32 %v100, 4294901760
    %v8075 = vsub.f32 %v100, %v8074
    %8076 = vmatmul.mubr.f32.gmra.mrb[0].mxu0 %v8075
    %v8077 = vpop.f32.mrb[0].mxu0
    %v8078 = vadd.f32 %v7667, %v8077
    %v8079 = vpop.f32.mrb[0].mxu0
    %v8080 = vand.u32 %v103, 4294901760
    %v8081 = vsub.f32 %v103, %v8080
    %8082 = vmatprep.mubr.f32.mxu0 %v8081
    %v8083 = vand.u32 %v102, 4294901760
    %v8084 = vsub.f32 %v102, %v8083
    %8085 = vmatmul.mubr.f32.gmra.mrb[0].mxu0 %v8084
    %v8086 = vpop.f32.mrb[0].mxu0
    %v8087 = vadd.f32 %v7674, %v8086
    %v8088 = vpop.f32.mrb[0].mxu0
    %v8089 = vand.u32 %v105, 4294901760
    %v8090 = vsub.f32 %v105, %v8089
    %8091 = vmatprep.mubr.f32.mxu0 %v8090
    %v8092 = vand.u32 %v104, 4294901760
    %v8093 = vsub.f32 %v104, %v8092
    %8094 = vmatmul.mubr.f32.gmra.mrb[0].mxu0 %v8093
    %v8095 = vpop.f32.mrb[0].mxu0
    %v8096 = vadd.f32 %v7681, %v8095
    %v8097 = vpop.f32.mrb[0].mxu0
    %v8098 = vand.u32 %v107, 4294901760
    %v8099 = vsub.f32 %v107, %v8098
    %8100 = vmatprep.mubr.f32.mxu0 %v8099
    %v8101 = vand.u32 %v106, 4294901760
    %v8102 = vsub.f32 %v106, %v8101
    %8103 = vmatmul.mubr.f32.gmra.mrb[0].mxu0 %v8102
    %v8104 = vpop.f32.mrb[0].mxu0
    %v8105 = vadd.f32 %v7688, %v8104
    %v8106 = vpop.f32.mrb[0].mxu0
    %8107 = vdwg.mxu0
    %8108 = vmatprep.subr.mxu0 0.0
    %v8109 = vand.u32 %v6469, 4294901760
    %8110 = vmatpush1.msra.mxu0 %v8109
    %8111 = vmatprep.subr.mxu0 0.0
    %v8112 = vand.u32 %v6475, 4294901760
    %8113 = vmatpush1.msra.mxu0 %v8112
    %8114 = vmatprep.subr.mxu0 0.0
    %v8115 = vand.u32 %v6481, 4294901760
    %8116 = vmatpush1.msra.mxu0 %v8115
    %8117 = vmatprep.subr.mxu0 0.0
    %v8118 = vand.u32 %v6487, 4294901760
    %8119 = vmatpush1.msra.mxu0 %v8118
    %8120 = vmatprep.subr.mxu0 0.0
    %v8121 = vand.u32 %v6493, 4294901760
    %8122 = vmatpush1.msra.mxu0 %v8121
    %8123 = vmatprep.subr.mxu0 0.0
    %v8124 = vand.u32 %v6499, 4294901760
    %8125 = vmatpush1.msra.mxu0 %v8124
    %8126 = vmatprep.subr.mxu0 0.0
    %v8127 = vand.u32 %v6505, 4294901760
    %8128 = vmatpush1.msra.mxu0 %v8127
    %8129 = vmatprep.subr.mxu0 0.0
    %v8130 = vand.u32 %v6511, 4294901760
    %8131 = vmatpush1.msra.mxu0 %v8130
    %8132 = vmatprep.subr.mxu0 0.0
    %v8133 = vand.u32 %v6517, 4294901760
    %8134 = vmatpush1.msra.mxu0 %v8133
    %8135 = vmatprep.subr.mxu0 0.0
    %v8136 = vand.u32 %v6523, 4294901760
    %8137 = vmatpush1.msra.mxu0 %v8136
    %8138 = vmatprep.subr.mxu0 0.0
    %v8139 = vand.u32 %v6529, 4294901760
    %8140 = vmatpush1.msra.mxu0 %v8139
    %8141 = vmatprep.subr.mxu0 0.0
    %v8142 = vand.u32 %v6535, 4294901760
    %8143 = vmatpush1.msra.mxu0 %v8142
    %8144 = vmatprep.subr.mxu0 0.0
    %v8145 = vand.u32 %v6541, 4294901760
    %8146 = vmatpush1.msra.mxu0 %v8145
    %8147 = vmatprep.subr.mxu0 0.0
    %v8148 = vand.u32 %v6547, 4294901760
    %8149 = vmatpush1.msra.mxu0 %v8148
    %8150 = vmatprep.subr.mxu0 0.0
    %v8151 = vand.u32 %v6553, 4294901760
    %8152 = vmatpush1.msra.mxu0 %v8151
    %8153 = vmatprep.subr.mxu0 0.0
    %v8154 = vand.u32 %v6559, 4294901760
    %8155 = vmatpush1.msra.mxu0 %v8154
    %8156 = vmatprep.subr.mxu0 0.0
    %v8157 = vand.u32 %v6565, 4294901760
    %8158 = vmatpush1.msra.mxu0 %v8157
    %8159 = vmatprep.subr.mxu0 0.0
    %v8160 = vand.u32 %v6571, 4294901760
    %8161 = vmatpush1.msra.mxu0 %v8160
    %8162 = vmatprep.subr.mxu0 0.0
    %v8163 = vand.u32 %v6577, 4294901760
    %8164 = vmatpush1.msra.mxu0 %v8163
    %8165 = vmatprep.subr.mxu0 0.0
    %v8166 = vand.u32 %v6583, 4294901760
    %8167 = vmatpush1.msra.mxu0 %v8166
    %8168 = vmatprep.subr.mxu0 0.0
    %v8169 = vand.u32 %v6589, 4294901760
    %8170 = vmatpush1.msra.mxu0 %v8169
    %8171 = vmatprep.subr.mxu0 0.0
    %v8172 = vand.u32 %v6595, 4294901760
    %8173 = vmatpush1.msra.mxu0 %v8172
    %8174 = vmatprep.subr.mxu0 0.0
    %v8175 = vand.u32 %v6601, 4294901760
    %8176 = vmatpush1.msra.mxu0 %v8175
    %8177 = vmatprep.subr.mxu0 0.0
    %v8178 = vand.u32 %v6607, 4294901760
    %8179 = vmatpush1.msra.mxu0 %v8178
    %8180 = vmatprep.subr.mxu0 0.0
    %v8181 = vand.u32 %v6613, 4294901760
    %8182 = vmatpush1.msra.mxu0 %v8181
    %8183 = vmatprep.subr.mxu0 0.0
    %v8184 = vand.u32 %v6619, 4294901760
    %8185 = vmatpush1.msra.mxu0 %v8184
    %8186 = vmatprep.subr.mxu0 0.0
    %v8187 = vand.u32 %v6625, 4294901760
    %8188 = vmatpush1.msra.mxu0 %v8187
    %8189 = vmatprep.subr.mxu0 0.0
    %v8190 = vand.u32 %v6631, 4294901760
    %8191 = vmatpush1.msra.mxu0 %v8190
    %8192 = vmatprep.subr.mxu0 0.0
    %v8193 = vand.u32 %v6637, 4294901760
    %8194 = vmatpush1.msra.mxu0 %v8193
    %8195 = vmatprep.subr.mxu0 0.0
    %v8196 = vand.u32 %v6643, 4294901760
    %8197 = vmatpush1.msra.mxu0 %v8196
    %8198 = vmatprep.subr.mxu0 0.0
    %v8199 = vand.u32 %v6649, 4294901760
    %8200 = vmatpush1.msra.mxu0 %v8199
    %8201 = vmatprep.subr.mxu0 0.0
    %v8202 = vand.u32 %v6655, 4294901760
    %8203 = vmatpush1.msra.mxu0 %v8202
    %v8204 = vand.u32 %v45, 4294901760
    %v8205 = vsub.f32 %v45, %v8204
    %v8206 = vand.u32 %v8205, 4294901760
    %8207 = vmatprep.mubr.f32.mxu0 %v8206
    %v8208 = vand.u32 %v44, 4294901760
    %v8209 = vsub.f32 %v44, %v8208
    %v8210 = vand.u32 %v8209, 4294901760
    %8211 = vmatmul.mubr.f32.gmra.mrb[0].mxu0 %v8210
    %v8212 = vpop.f32.mrb[0].mxu0
    %v8213 = vadd.f32 %v7826, %v8212
    %v8214 = vpop.f32.mrb[0].mxu0
    %v8215 = vand.u32 %v47, 4294901760
    %v8216 = vsub.f32 %v47, %v8215
    %v8217 = vand.u32 %v8216, 4294901760
    %8218 = vmatprep.mubr.f32.mxu0 %v8217
    %v8219 = vand.u32 %v46, 4294901760
    %v8220 = vsub.f32 %v46, %v8219
    %v8221 = vand.u32 %v8220, 4294901760
    %8222 = vmatmul.mubr.f32.gmra.mrb[0].mxu0 %v8221
    %v8223 = vpop.f32.mrb[0].mxu0
    %v8224 = vadd.f32 %v7835, %v8223
    %v8225 = vpop.f32.mrb[0].mxu0
    %v8226 = vand.u32 %v49, 4294901760
    %v8227 = vsub.f32 %v49, %v8226
    %v8228 = vand.u32 %v8227, 4294901760
    %8229 = vmatprep.mubr.f32.mxu0 %v8228
    %v8230 = vand.u32 %v48, 4294901760
    %v8231 = vsub.f32 %v48, %v8230
    %v8232 = vand.u32 %v8231, 4294901760
    %8233 = vmatmul.mubr.f32.gmra.mrb[0].mxu0 %v8232
    %v8234 = vpop.f32.mrb[0].mxu0
    %v8235 = vadd.f32 %v7844, %v8234
    %v8236 = vpop.f32.mrb[0].mxu0
    %v8237 = vand.u32 %v51, 4294901760
    %v8238 = vsub.f32 %v51, %v8237
    %v8239 = vand.u32 %v8238, 4294901760
    %8240 = vmatprep.mubr.f32.mxu0 %v8239
    %v8241 = vand.u32 %v50, 4294901760
    %v8242 = vsub.f32 %v50, %v8241
    %v8243 = vand.u32 %v8242, 4294901760
    %8244 = vmatmul.mubr.f32.gmra.mrb[0].mxu0 %v8243
    %v8245 = vpop.f32.mrb[0].mxu0
    %v8246 = vadd.f32 %v7853, %v8245
    %v8247 = vpop.f32.mrb[0].mxu0
    %v8248 = vand.u32 %v53, 4294901760
    %v8249 = vsub.f32 %v53, %v8248
    %v8250 = vand.u32 %v8249, 4294901760
    %8251 = vmatprep.mubr.f32.mxu0 %v8250
    %v8252 = vand.u32 %v52, 4294901760
    %v8253 = vsub.f32 %v52, %v8252
    %v8254 = vand.u32 %v8253, 4294901760
    %8255 = vmatmul.mubr.f32.gmra.mrb[0].mxu0 %v8254
    %v8256 = vpop.f32.mrb[0].mxu0
    %v8257 = vadd.f32 %v7862, %v8256
    %v8258 = vpop.f32.mrb[0].mxu0
    %v8259 = vand.u32 %v55, 4294901760
    %v8260 = vsub.f32 %v55, %v8259
    %v8261 = vand.u32 %v8260, 4294901760
    %8262 = vmatprep.mubr.f32.mxu0 %v8261
    %v8263 = vand.u32 %v54, 4294901760
    %v8264 = vsub.f32 %v54, %v8263
    %v8265 = vand.u32 %v8264, 4294901760
    %8266 = vmatmul.mubr.f32.gmra.mrb[0].mxu0 %v8265
    %v8267 = vpop.f32.mrb[0].mxu0
    %v8268 = vadd.f32 %v7871, %v8267
    %v8269 = vpop.f32.mrb[0].mxu0
    %v8270 = vand.u32 %v57, 4294901760
    %v8271 = vsub.f32 %v57, %v8270
    %v8272 = vand.u32 %v8271, 4294901760
    %8273 = vmatprep.mubr.f32.mxu0 %v8272
    %v8274 = vand.u32 %v56, 4294901760
    %v8275 = vsub.f32 %v56, %v8274
    %v8276 = vand.u32 %v8275, 4294901760
    %8277 = vmatmul.mubr.f32.gmra.mrb[0].mxu0 %v8276
    %v8278 = vpop.f32.mrb[0].mxu0
    %v8279 = vadd.f32 %v7880, %v8278
    %v8280 = vpop.f32.mrb[0].mxu0
    %v8281 = vand.u32 %v59, 4294901760
    %v8282 = vsub.f32 %v59, %v8281
    %v8283 = vand.u32 %v8282, 4294901760
    %8284 = vmatprep.mubr.f32.mxu0 %v8283
    %v8285 = vand.u32 %v58, 4294901760
    %v8286 = vsub.f32 %v58, %v8285
    %v8287 = vand.u32 %v8286, 4294901760
    %8288 = vmatmul.mubr.f32.gmra.mrb[0].mxu0 %v8287
    %v8289 = vpop.f32.mrb[0].mxu0
    %v8290 = vadd.f32 %v7889, %v8289
    %v8291 = vpop.f32.mrb[0].mxu0
    %v8292 = vand.u32 %v61, 4294901760
    %v8293 = vsub.f32 %v61, %v8292
    %v8294 = vand.u32 %v8293, 4294901760
    %8295 = vmatprep.mubr.f32.mxu0 %v8294
    %v8296 = vand.u32 %v60, 4294901760
    %v8297 = vsub.f32 %v60, %v8296
    %v8298 = vand.u32 %v8297, 4294901760
    %8299 = vmatmul.mubr.f32.gmra.mrb[0].mxu0 %v8298
    %v8300 = vpop.f32.mrb[0].mxu0
    %v8301 = vadd.f32 %v7898, %v8300
    %v8302 = vpop.f32.mrb[0].mxu0
    %v8303 = vand.u32 %v63, 4294901760
    %v8304 = vsub.f32 %v63, %v8303
    %v8305 = vand.u32 %v8304, 4294901760
    %8306 = vmatprep.mubr.f32.mxu0 %v8305
    %v8307 = vand.u32 %v62, 4294901760
    %v8308 = vsub.f32 %v62, %v8307
    %v8309 = vand.u32 %v8308, 4294901760
    %8310 = vmatmul.mubr.f32.gmra.mrb[0].mxu0 %v8309
    %v8311 = vpop.f32.mrb[0].mxu0
    %v8312 = vadd.f32 %v7907, %v8311
    %v8313 = vpop.f32.mrb[0].mxu0
    %v8314 = vand.u32 %v65, 4294901760
    %v8315 = vsub.f32 %v65, %v8314
    %v8316 = vand.u32 %v8315, 4294901760
    %8317 = vmatprep.mubr.f32.mxu0 %v8316
    %v8318 = vand.u32 %v64, 4294901760
    %v8319 = vsub.f32 %v64, %v8318
    %v8320 = vand.u32 %v8319, 4294901760
    %8321 = vmatmul.mubr.f32.gmra.mrb[0].mxu0 %v8320
    %v8322 = vpop.f32.mrb[0].mxu0
    %v8323 = vadd.f32 %v7916, %v8322
    %v8324 = vpop.f32.mrb[0].mxu0
    %v8325 = vand.u32 %v67, 4294901760
    %v8326 = vsub.f32 %v67, %v8325
    %v8327 = vand.u32 %v8326, 4294901760
    %8328 = vmatprep.mubr.f32.mxu0 %v8327
    %v8329 = vand.u32 %v66, 4294901760
    %v8330 = vsub.f32 %v66, %v8329
    %v8331 = vand.u32 %v8330, 4294901760
    %8332 = vmatmul.mubr.f32.gmra.mrb[0].mxu0 %v8331
    %v8333 = vpop.f32.mrb[0].mxu0
    %v8334 = vadd.f32 %v7925, %v8333
    %v8335 = vpop.f32.mrb[0].mxu0
    %v8336 = vand.u32 %v69, 4294901760
    %v8337 = vsub.f32 %v69, %v8336
    %v8338 = vand.u32 %v8337, 4294901760
    %8339 = vmatprep.mubr.f32.mxu0 %v8338
    %v8340 = vand.u32 %v68, 4294901760
    %v8341 = vsub.f32 %v68, %v8340
    %v8342 = vand.u32 %v8341, 4294901760
    %8343 = vmatmul.mubr.f32.gmra.mrb[0].mxu0 %v8342
    %v8344 = vpop.f32.mrb[0].mxu0
    %v8345 = vadd.f32 %v7934, %v8344
    %v8346 = vpop.f32.mrb[0].mxu0
    %v8347 = vand.u32 %v71, 4294901760
    %v8348 = vsub.f32 %v71, %v8347
    %v8349 = vand.u32 %v8348, 4294901760
    %8350 = vmatprep.mubr.f32.mxu0 %v8349
    %v8351 = vand.u32 %v70, 4294901760
    %v8352 = vsub.f32 %v70, %v8351
    %v8353 = vand.u32 %v8352, 4294901760
    %8354 = vmatmul.mubr.f32.gmra.mrb[0].mxu0 %v8353
    %v8355 = vpop.f32.mrb[0].mxu0
    %v8356 = vadd.f32 %v7943, %v8355
    %v8357 = vpop.f32.mrb[0].mxu0
    %v8358 = vand.u32 %v73, 4294901760
    %v8359 = vsub.f32 %v73, %v8358
    %v8360 = vand.u32 %v8359, 4294901760
    %8361 = vmatprep.mubr.f32.mxu0 %v8360
    %v8362 = vand.u32 %v72, 4294901760
    %v8363 = vsub.f32 %v72, %v8362
    %v8364 = vand.u32 %v8363, 4294901760
    %8365 = vmatmul.mubr.f32.gmra.mrb[0].mxu0 %v8364
    %v8366 = vpop.f32.mrb[0].mxu0
    %v8367 = vadd.f32 %v7952, %v8366
    %v8368 = vpop.f32.mrb[0].mxu0
    %v8369 = vand.u32 %v75, 4294901760
    %v8370 = vsub.f32 %v75, %v8369
    %v8371 = vand.u32 %v8370, 4294901760
    %8372 = vmatprep.mubr.f32.mxu0 %v8371
    %v8373 = vand.u32 %v74, 4294901760
    %v8374 = vsub.f32 %v74, %v8373
    %v8375 = vand.u32 %v8374, 4294901760
    %8376 = vmatmul.mubr.f32.gmra.mrb[0].mxu0 %v8375
    %v8377 = vpop.f32.mrb[0].mxu0
    %v8378 = vadd.f32 %v7961, %v8377
    %v8379 = vpop.f32.mrb[0].mxu0
    %v8380 = vand.u32 %v77, 4294901760
    %v8381 = vsub.f32 %v77, %v8380
    %v8382 = vand.u32 %v8381, 4294901760
    %8383 = vmatprep.mubr.f32.mxu0 %v8382
    %v8384 = vand.u32 %v76, 4294901760
    %v8385 = vsub.f32 %v76, %v8384
    %v8386 = vand.u32 %v8385, 4294901760
    %8387 = vmatmul.mubr.f32.gmra.mrb[0].mxu0 %v8386
    %v8388 = vpop.f32.mrb[0].mxu0
    %v8389 = vadd.f32 %v7970, %v8388
    %v8390 = vpop.f32.mrb[0].mxu0
    %v8391 = vand.u32 %v79, 4294901760
    %v8392 = vsub.f32 %v79, %v8391
    %v8393 = vand.u32 %v8392, 4294901760
    %8394 = vmatprep.mubr.f32.mxu0 %v8393
    %v8395 = vand.u32 %v78, 4294901760
    %v8396 = vsub.f32 %v78, %v8395
    %v8397 = vand.u32 %v8396, 4294901760
    %8398 = vmatmul.mubr.f32.gmra.mrb[0].mxu0 %v8397
    %v8399 = vpop.f32.mrb[0].mxu0
    %v8400 = vadd.f32 %v7979, %v8399
    %v8401 = vpop.f32.mrb[0].mxu0
    %v8402 = vand.u32 %v81, 4294901760
    %v8403 = vsub.f32 %v81, %v8402
    %v8404 = vand.u32 %v8403, 4294901760
    %8405 = vmatprep.mubr.f32.mxu0 %v8404
    %v8406 = vand.u32 %v80, 4294901760
    %v8407 = vsub.f32 %v80, %v8406
    %v8408 = vand.u32 %v8407, 4294901760
    %8409 = vmatmul.mubr.f32.gmra.mrb[0].mxu0 %v8408
    %v8410 = vpop.f32.mrb[0].mxu0
    %v8411 = vadd.f32 %v7988, %v8410
    %v8412 = vpop.f32.mrb[0].mxu0
    %v8413 = vand.u32 %v83, 4294901760
    %v8414 = vsub.f32 %v83, %v8413
    %v8415 = vand.u32 %v8414, 4294901760
    %8416 = vmatprep.mubr.f32.mxu0 %v8415
    %v8417 = vand.u32 %v82, 4294901760
    %v8418 = vsub.f32 %v82, %v8417
    %v8419 = vand.u32 %v8418, 4294901760
    %8420 = vmatmul.mubr.f32.gmra.mrb[0].mxu0 %v8419
    %v8421 = vpop.f32.mrb[0].mxu0
    %v8422 = vadd.f32 %v7997, %v8421
    %v8423 = vpop.f32.mrb[0].mxu0
    %v8424 = vand.u32 %v85, 4294901760
    %v8425 = vsub.f32 %v85, %v8424
    %v8426 = vand.u32 %v8425, 4294901760
    %8427 = vmatprep.mubr.f32.mxu0 %v8426
    %v8428 = vand.u32 %v84, 4294901760
    %v8429 = vsub.f32 %v84, %v8428
    %v8430 = vand.u32 %v8429, 4294901760
    %8431 = vmatmul.mubr.f32.gmra.mrb[0].mxu0 %v8430
    %v8432 = vpop.f32.mrb[0].mxu0
    %v8433 = vadd.f32 %v8006, %v8432
    %v8434 = vpop.f32.mrb[0].mxu0
    %v8435 = vand.u32 %v87, 4294901760
    %v8436 = vsub.f32 %v87, %v8435
    %v8437 = vand.u32 %v8436, 4294901760
    %8438 = vmatprep.mubr.f32.mxu0 %v8437
    %v8439 = vand.u32 %v86, 4294901760
    %v8440 = vsub.f32 %v86, %v8439
    %v8441 = vand.u32 %v8440, 4294901760
    %8442 = vmatmul.mubr.f32.gmra.mrb[0].mxu0 %v8441
    %v8443 = vpop.f32.mrb[0].mxu0
    %v8444 = vadd.f32 %v8015, %v8443
    %v8445 = vpop.f32.mrb[0].mxu0
    %v8446 = vand.u32 %v89, 4294901760
    %v8447 = vsub.f32 %v89, %v8446
    %v8448 = vand.u32 %v8447, 4294901760
    %8449 = vmatprep.mubr.f32.mxu0 %v8448
    %v8450 = vand.u32 %v88, 4294901760
    %v8451 = vsub.f32 %v88, %v8450
    %v8452 = vand.u32 %v8451, 4294901760
    %8453 = vmatmul.mubr.f32.gmra.mrb[0].mxu0 %v8452
    %v8454 = vpop.f32.mrb[0].mxu0
    %v8455 = vadd.f32 %v8024, %v8454
    %v8456 = vpop.f32.mrb[0].mxu0
    %v8457 = vand.u32 %v91, 4294901760
    %v8458 = vsub.f32 %v91, %v8457
    %v8459 = vand.u32 %v8458, 4294901760
    %8460 = vmatprep.mubr.f32.mxu0 %v8459
    %v8461 = vand.u32 %v90, 4294901760
    %v8462 = vsub.f32 %v90, %v8461
    %v8463 = vand.u32 %v8462, 4294901760
    %8464 = vmatmul.mubr.f32.gmra.mrb[0].mxu0 %v8463
    %v8465 = vpop.f32.mrb[0].mxu0
    %v8466 = vadd.f32 %v8033, %v8465
    %v8467 = vpop.f32.mrb[0].mxu0
    %v8468 = vand.u32 %v93, 4294901760
    %v8469 = vsub.f32 %v93, %v8468
    %v8470 = vand.u32 %v8469, 4294901760
    %8471 = vmatprep.mubr.f32.mxu0 %v8470
    %v8472 = vand.u32 %v92, 4294901760
    %v8473 = vsub.f32 %v92, %v8472
    %v8474 = vand.u32 %v8473, 4294901760
    %8475 = vmatmul.mubr.f32.gmra.mrb[0].mxu0 %v8474
    %v8476 = vpop.f32.mrb[0].mxu0
    %v8477 = vadd.f32 %v8042, %v8476
    %v8478 = vpop.f32.mrb[0].mxu0
    %v8479 = vand.u32 %v95, 4294901760
    %v8480 = vsub.f32 %v95, %v8479
    %v8481 = vand.u32 %v8480, 4294901760
    %8482 = vmatprep.mubr.f32.mxu0 %v8481
    %v8483 = vand.u32 %v94, 4294901760
    %v8484 = vsub.f32 %v94, %v8483
    %v8485 = vand.u32 %v8484, 4294901760
    %8486 = vmatmul.mubr.f32.gmra.mrb[0].mxu0 %v8485
    %v8487 = vpop.f32.mrb[0].mxu0
    %v8488 = vadd.f32 %v8051, %v8487
    %v8489 = vpop.f32.mrb[0].mxu0
    %v8490 = vand.u32 %v97, 4294901760
    %v8491 = vsub.f32 %v97, %v8490
    %v8492 = vand.u32 %v8491, 4294901760
    %8493 = vmatprep.mubr.f32.mxu0 %v8492
    %v8494 = vand.u32 %v96, 4294901760
    %v8495 = vsub.f32 %v96, %v8494
    %v8496 = vand.u32 %v8495, 4294901760
    %8497 = vmatmul.mubr.f32.gmra.mrb[0].mxu0 %v8496
    %v8498 = vpop.f32.mrb[0].mxu0
    %v8499 = vadd.f32 %v8060, %v8498
    %v8500 = vpop.f32.mrb[0].mxu0
    %v8501 = vand.u32 %v99, 4294901760
    %v8502 = vsub.f32 %v99, %v8501
    %v8503 = vand.u32 %v8502, 4294901760
    %8504 = vmatprep.mubr.f32.mxu0 %v8503
    %v8505 = vand.u32 %v98, 4294901760
    %v8506 = vsub.f32 %v98, %v8505
    %v8507 = vand.u32 %v8506, 4294901760
    %8508 = vmatmul.mubr.f32.gmra.mrb[0].mxu0 %v8507
    %v8509 = vpop.f32.mrb[0].mxu0
    %v8510 = vadd.f32 %v8069, %v8509
    %v8511 = vpop.f32.mrb[0].mxu0
    %v8512 = vand.u32 %v101, 4294901760
    %v8513 = vsub.f32 %v101, %v8512
    %v8514 = vand.u32 %v8513, 4294901760
    %8515 = vmatprep.mubr.f32.mxu0 %v8514
    %v8516 = vand.u32 %v100, 4294901760
    %v8517 = vsub.f32 %v100, %v8516
    %v8518 = vand.u32 %v8517, 4294901760
    %8519 = vmatmul.mubr.f32.gmra.mrb[0].mxu0 %v8518
    %v8520 = vpop.f32.mrb[0].mxu0
    %v8521 = vadd.f32 %v8078, %v8520
    %v8522 = vpop.f32.mrb[0].mxu0
    %v8523 = vand.u32 %v103, 4294901760
    %v8524 = vsub.f32 %v103, %v8523
    %v8525 = vand.u32 %v8524, 4294901760
    %8526 = vmatprep.mubr.f32.mxu0 %v8525
    %v8527 = vand.u32 %v102, 4294901760
    %v8528 = vsub.f32 %v102, %v8527
    %v8529 = vand.u32 %v8528, 4294901760
    %8530 = vmatmul.mubr.f32.gmra.mrb[0].mxu0 %v8529
    %v8531 = vpop.f32.mrb[0].mxu0
    %v8532 = vadd.f32 %v8087, %v8531
    %v8533 = vpop.f32.mrb[0].mxu0
    %v8534 = vand.u32 %v105, 4294901760
    %v8535 = vsub.f32 %v105, %v8534
    %v8536 = vand.u32 %v8535, 4294901760
    %8537 = vmatprep.mubr.f32.mxu0 %v8536
    %v8538 = vand.u32 %v104, 4294901760
    %v8539 = vsub.f32 %v104, %v8538
    %v8540 = vand.u32 %v8539, 4294901760
    %8541 = vmatmul.mubr.f32.gmra.mrb[0].mxu0 %v8540
    %v8542 = vpop.f32.mrb[0].mxu0
    %v8543 = vadd.f32 %v8096, %v8542
    %v8544 = vpop.f32.mrb[0].mxu0
    %v8545 = vand.u32 %v107, 4294901760
    %v8546 = vsub.f32 %v107, %v8545
    %v8547 = vand.u32 %v8546, 4294901760
    %8548 = vmatprep.mubr.f32.mxu0 %v8547
    %v8549 = vand.u32 %v106, 4294901760
    %v8550 = vsub.f32 %v106, %v8549
    %v8551 = vand.u32 %v8550, 4294901760
    %8552 = vmatmul.mubr.f32.gmra.mrb[0].mxu0 %v8551
    %v8553 = vpop.f32.mrb[0].mxu0
    %v8554 = vadd.f32 %v8105, %v8553
    %v8555 = vpop.f32.mrb[0].mxu0
    %8556 = vdwg.mxu0
    %8557 = vmatprep.subr.mxu0 0.0
    %v8558 = vand.u32 %v6469, 4294901760
    %v8559 = vsub.f32 %v6469, %v8558
    %v8560 = vand.u32 %v8559, 4294901760
    %8561 = vmatpush1.msra.mxu0 %v8560
    %8562 = vmatprep.subr.mxu0 0.0
    %v8563 = vand.u32 %v6475, 4294901760
    %v8564 = vsub.f32 %v6475, %v8563
    %v8565 = vand.u32 %v8564, 4294901760
    %8566 = vmatpush1.msra.mxu0 %v8565
    %8567 = vmatprep.subr.mxu0 0.0
    %v8568 = vand.u32 %v6481, 4294901760
    %v8569 = vsub.f32 %v6481, %v8568
    %v8570 = vand.u32 %v8569, 4294901760
    %8571 = vmatpush1.msra.mxu0 %v8570
    %8572 = vmatprep.subr.mxu0 0.0
    %v8573 = vand.u32 %v6487, 4294901760
    %v8574 = vsub.f32 %v6487, %v8573
    %v8575 = vand.u32 %v8574, 4294901760
    %8576 = vmatpush1.msra.mxu0 %v8575
    %8577 = vmatprep.subr.mxu0 0.0
    %v8578 = vand.u32 %v6493, 4294901760
    %v8579 = vsub.f32 %v6493, %v8578
    %v8580 = vand.u32 %v8579, 4294901760
    %8581 = vmatpush1.msra.mxu0 %v8580
    %8582 = vmatprep.subr.mxu0 0.0
    %v8583 = vand.u32 %v6499, 4294901760
    %v8584 = vsub.f32 %v6499, %v8583
    %v8585 = vand.u32 %v8584, 4294901760
    %8586 = vmatpush1.msra.mxu0 %v8585
    %8587 = vmatprep.subr.mxu0 0.0
    %v8588 = vand.u32 %v6505, 4294901760
    %v8589 = vsub.f32 %v6505, %v8588
    %v8590 = vand.u32 %v8589, 4294901760
    %8591 = vmatpush1.msra.mxu0 %v8590
    %8592 = vmatprep.subr.mxu0 0.0
    %v8593 = vand.u32 %v6511, 4294901760
    %v8594 = vsub.f32 %v6511, %v8593
    %v8595 = vand.u32 %v8594, 4294901760
    %8596 = vmatpush1.msra.mxu0 %v8595
    %8597 = vmatprep.subr.mxu0 0.0
    %v8598 = vand.u32 %v6517, 4294901760
    %v8599 = vsub.f32 %v6517, %v8598
    %v8600 = vand.u32 %v8599, 4294901760
    %8601 = vmatpush1.msra.mxu0 %v8600
    %8602 = vmatprep.subr.mxu0 0.0
    %v8603 = vand.u32 %v6523, 4294901760
    %v8604 = vsub.f32 %v6523, %v8603
    %v8605 = vand.u32 %v8604, 4294901760
    %8606 = vmatpush1.msra.mxu0 %v8605
    %8607 = vmatprep.subr.mxu0 0.0
    %v8608 = vand.u32 %v6529, 4294901760
    %v8609 = vsub.f32 %v6529, %v8608
    %v8610 = vand.u32 %v8609, 4294901760
    %8611 = vmatpush1.msra.mxu0 %v8610
    %8612 = vmatprep.subr.mxu0 0.0
    %v8613 = vand.u32 %v6535, 4294901760
    %v8614 = vsub.f32 %v6535, %v8613
    %v8615 = vand.u32 %v8614, 4294901760
    %8616 = vmatpush1.msra.mxu0 %v8615
    %8617 = vmatprep.subr.mxu0 0.0
    %v8618 = vand.u32 %v6541, 4294901760
    %v8619 = vsub.f32 %v6541, %v8618
    %v8620 = vand.u32 %v8619, 4294901760
    %8621 = vmatpush1.msra.mxu0 %v8620
    %8622 = vmatprep.subr.mxu0 0.0
    %v8623 = vand.u32 %v6547, 4294901760
    %v8624 = vsub.f32 %v6547, %v8623
    %v8625 = vand.u32 %v8624, 4294901760
    %8626 = vmatpush1.msra.mxu0 %v8625
    %8627 = vmatprep.subr.mxu0 0.0
    %v8628 = vand.u32 %v6553, 4294901760
    %v8629 = vsub.f32 %v6553, %v8628
    %v8630 = vand.u32 %v8629, 4294901760
    %8631 = vmatpush1.msra.mxu0 %v8630
    %8632 = vmatprep.subr.mxu0 0.0
    %v8633 = vand.u32 %v6559, 4294901760
    %v8634 = vsub.f32 %v6559, %v8633
    %v8635 = vand.u32 %v8634, 4294901760
    %8636 = vmatpush1.msra.mxu0 %v8635
    %8637 = vmatprep.subr.mxu0 0.0
    %v8638 = vand.u32 %v6565, 4294901760
    %v8639 = vsub.f32 %v6565, %v8638
    %v8640 = vand.u32 %v8639, 4294901760
    %8641 = vmatpush1.msra.mxu0 %v8640
    %8642 = vmatprep.subr.mxu0 0.0
    %v8643 = vand.u32 %v6571, 4294901760
    %v8644 = vsub.f32 %v6571, %v8643
    %v8645 = vand.u32 %v8644, 4294901760
    %8646 = vmatpush1.msra.mxu0 %v8645
    %8647 = vmatprep.subr.mxu0 0.0
    %v8648 = vand.u32 %v6577, 4294901760
    %v8649 = vsub.f32 %v6577, %v8648
    %v8650 = vand.u32 %v8649, 4294901760
    %8651 = vmatpush1.msra.mxu0 %v8650
    %8652 = vmatprep.subr.mxu0 0.0
    %v8653 = vand.u32 %v6583, 4294901760
    %v8654 = vsub.f32 %v6583, %v8653
    %v8655 = vand.u32 %v8654, 4294901760
    %8656 = vmatpush1.msra.mxu0 %v8655
    %8657 = vmatprep.subr.mxu0 0.0
    %v8658 = vand.u32 %v6589, 4294901760
    %v8659 = vsub.f32 %v6589, %v8658
    %v8660 = vand.u32 %v8659, 4294901760
    %8661 = vmatpush1.msra.mxu0 %v8660
    %8662 = vmatprep.subr.mxu0 0.0
    %v8663 = vand.u32 %v6595, 4294901760
    %v8664 = vsub.f32 %v6595, %v8663
    %v8665 = vand.u32 %v8664, 4294901760
    %8666 = vmatpush1.msra.mxu0 %v8665
    %8667 = vmatprep.subr.mxu0 0.0
    %v8668 = vand.u32 %v6601, 4294901760
    %v8669 = vsub.f32 %v6601, %v8668
    %v8670 = vand.u32 %v8669, 4294901760
    %8671 = vmatpush1.msra.mxu0 %v8670
    %8672 = vmatprep.subr.mxu0 0.0
    %v8673 = vand.u32 %v6607, 4294901760
    %v8674 = vsub.f32 %v6607, %v8673
    %v8675 = vand.u32 %v8674, 4294901760
    %8676 = vmatpush1.msra.mxu0 %v8675
    %8677 = vmatprep.subr.mxu0 0.0
    %v8678 = vand.u32 %v6613, 4294901760
    %v8679 = vsub.f32 %v6613, %v8678
    %v8680 = vand.u32 %v8679, 4294901760
    %8681 = vmatpush1.msra.mxu0 %v8680
    %8682 = vmatprep.subr.mxu0 0.0
    %v8683 = vand.u32 %v6619, 4294901760
    %v8684 = vsub.f32 %v6619, %v8683
    %v8685 = vand.u32 %v8684, 4294901760
    %8686 = vmatpush1.msra.mxu0 %v8685
    %8687 = vmatprep.subr.mxu0 0.0
    %v8688 = vand.u32 %v6625, 4294901760
    %v8689 = vsub.f32 %v6625, %v8688
    %v8690 = vand.u32 %v8689, 4294901760
    %8691 = vmatpush1.msra.mxu0 %v8690
    %8692 = vmatprep.subr.mxu0 0.0
    %v8693 = vand.u32 %v6631, 4294901760
    %v8694 = vsub.f32 %v6631, %v8693
    %v8695 = vand.u32 %v8694, 4294901760
    %8696 = vmatpush1.msra.mxu0 %v8695
    %8697 = vmatprep.subr.mxu0 0.0
    %v8698 = vand.u32 %v6637, 4294901760
    %v8699 = vsub.f32 %v6637, %v8698
    %v8700 = vand.u32 %v8699, 4294901760
    %8701 = vmatpush1.msra.mxu0 %v8700
    %8702 = vmatprep.subr.mxu0 0.0
    %v8703 = vand.u32 %v6643, 4294901760
    %v8704 = vsub.f32 %v6643, %v8703
    %v8705 = vand.u32 %v8704, 4294901760
    %8706 = vmatpush1.msra.mxu0 %v8705
    %8707 = vmatprep.subr.mxu0 0.0
    %v8708 = vand.u32 %v6649, 4294901760
    %v8709 = vsub.f32 %v6649, %v8708
    %v8710 = vand.u32 %v8709, 4294901760
    %8711 = vmatpush1.msra.mxu0 %v8710
    %8712 = vmatprep.subr.mxu0 0.0
    %v8713 = vand.u32 %v6655, 4294901760
    %v8714 = vsub.f32 %v6655, %v8713
    %v8715 = vand.u32 %v8714, 4294901760
    %8716 = vmatpush1.msra.mxu0 %v8715
    %v8717 = vand.u32 %v45, 4294901760
    %8718 = vmatprep.mubr.f32.mxu0 %v8717
    %v8719 = vand.u32 %v44, 4294901760
    %8720 = vmatmul.mubr.f32.gmra.mrb[0].mxu0 %v8719
    %v8721 = vpop.f32.mrb[0].mxu0
    %v8722 = vadd.f32 %v8213, %v8721
    %v8723 = vpop.f32.mrb[0].mxu0
    %v8724 = vand.u32 %v47, 4294901760
    %8725 = vmatprep.mubr.f32.mxu0 %v8724
    %v8726 = vand.u32 %v46, 4294901760
    %8727 = vmatmul.mubr.f32.gmra.mrb[0].mxu0 %v8726
    %v8728 = vpop.f32.mrb[0].mxu0
    %v8729 = vadd.f32 %v8224, %v8728
    %v8730 = vpop.f32.mrb[0].mxu0
    %v8731 = vand.u32 %v49, 4294901760
    %8732 = vmatprep.mubr.f32.mxu0 %v8731
    %v8733 = vand.u32 %v48, 4294901760
    %8734 = vmatmul.mubr.f32.gmra.mrb[0].mxu0 %v8733
    %v8735 = vpop.f32.mrb[0].mxu0
    %v8736 = vadd.f32 %v8235, %v8735
    %v8737 = vpop.f32.mrb[0].mxu0
    %v8738 = vand.u32 %v51, 4294901760
    %8739 = vmatprep.mubr.f32.mxu0 %v8738
    %v8740 = vand.u32 %v50, 4294901760
    %8741 = vmatmul.mubr.f32.gmra.mrb[0].mxu0 %v8740
    %v8742 = vpop.f32.mrb[0].mxu0
    %v8743 = vadd.f32 %v8246, %v8742
    %v8744 = vpop.f32.mrb[0].mxu0
    %v8745 = vand.u32 %v53, 4294901760
    %8746 = vmatprep.mubr.f32.mxu0 %v8745
    %v8747 = vand.u32 %v52, 4294901760
    %8748 = vmatmul.mubr.f32.gmra.mrb[0].mxu0 %v8747
    %v8749 = vpop.f32.mrb[0].mxu0
    %v8750 = vadd.f32 %v8257, %v8749
    %v8751 = vpop.f32.mrb[0].mxu0
    %v8752 = vand.u32 %v55, 4294901760
    %8753 = vmatprep.mubr.f32.mxu0 %v8752
    %v8754 = vand.u32 %v54, 4294901760
    %8755 = vmatmul.mubr.f32.gmra.mrb[0].mxu0 %v8754
    %v8756 = vpop.f32.mrb[0].mxu0
    %v8757 = vadd.f32 %v8268, %v8756
    %v8758 = vpop.f32.mrb[0].mxu0
    %v8759 = vand.u32 %v57, 4294901760
    %8760 = vmatprep.mubr.f32.mxu0 %v8759
    %v8761 = vand.u32 %v56, 4294901760
    %8762 = vmatmul.mubr.f32.gmra.mrb[0].mxu0 %v8761
    %v8763 = vpop.f32.mrb[0].mxu0
    %v8764 = vadd.f32 %v8279, %v8763
    %v8765 = vpop.f32.mrb[0].mxu0
    %v8766 = vand.u32 %v59, 4294901760
    %8767 = vmatprep.mubr.f32.mxu0 %v8766
    %v8768 = vand.u32 %v58, 4294901760
    %8769 = vmatmul.mubr.f32.gmra.mrb[0].mxu0 %v8768
    %v8770 = vpop.f32.mrb[0].mxu0
    %v8771 = vadd.f32 %v8290, %v8770
    %v8772 = vpop.f32.mrb[0].mxu0
    %v8773 = vand.u32 %v61, 4294901760
    %8774 = vmatprep.mubr.f32.mxu0 %v8773
    %v8775 = vand.u32 %v60, 4294901760
    %8776 = vmatmul.mubr.f32.gmra.mrb[0].mxu0 %v8775
    %v8777 = vpop.f32.mrb[0].mxu0
    %v8778 = vadd.f32 %v8301, %v8777
    %v8779 = vpop.f32.mrb[0].mxu0
    %v8780 = vand.u32 %v63, 4294901760
    %8781 = vmatprep.mubr.f32.mxu0 %v8780
    %v8782 = vand.u32 %v62, 4294901760
    %8783 = vmatmul.mubr.f32.gmra.mrb[0].mxu0 %v8782
    %v8784 = vpop.f32.mrb[0].mxu0
    %v8785 = vadd.f32 %v8312, %v8784
    %v8786 = vpop.f32.mrb[0].mxu0
    %v8787 = vand.u32 %v65, 4294901760
    %8788 = vmatprep.mubr.f32.mxu0 %v8787
    %v8789 = vand.u32 %v64, 4294901760
    %8790 = vmatmul.mubr.f32.gmra.mrb[0].mxu0 %v8789
    %v8791 = vpop.f32.mrb[0].mxu0
    %v8792 = vadd.f32 %v8323, %v8791
    %v8793 = vpop.f32.mrb[0].mxu0
    %v8794 = vand.u32 %v67, 4294901760
    %8795 = vmatprep.mubr.f32.mxu0 %v8794
    %v8796 = vand.u32 %v66, 4294901760
    %8797 = vmatmul.mubr.f32.gmra.mrb[0].mxu0 %v8796
    %v8798 = vpop.f32.mrb[0].mxu0
    %v8799 = vadd.f32 %v8334, %v8798
    %v8800 = vpop.f32.mrb[0].mxu0
    %v8801 = vand.u32 %v69, 4294901760
    %8802 = vmatprep.mubr.f32.mxu0 %v8801
    %v8803 = vand.u32 %v68, 4294901760
    %8804 = vmatmul.mubr.f32.gmra.mrb[0].mxu0 %v8803
    %v8805 = vpop.f32.mrb[0].mxu0
    %v8806 = vadd.f32 %v8345, %v8805
    %v8807 = vpop.f32.mrb[0].mxu0
    %v8808 = vand.u32 %v71, 4294901760
    %8809 = vmatprep.mubr.f32.mxu0 %v8808
    %v8810 = vand.u32 %v70, 4294901760
    %8811 = vmatmul.mubr.f32.gmra.mrb[0].mxu0 %v8810
    %v8812 = vpop.f32.mrb[0].mxu0
    %v8813 = vadd.f32 %v8356, %v8812
    %v8814 = vpop.f32.mrb[0].mxu0
    %v8815 = vand.u32 %v73, 4294901760
    %8816 = vmatprep.mubr.f32.mxu0 %v8815
    %v8817 = vand.u32 %v72, 4294901760
    %8818 = vmatmul.mubr.f32.gmra.mrb[0].mxu0 %v8817
    %v8819 = vpop.f32.mrb[0].mxu0
    %v8820 = vadd.f32 %v8367, %v8819
    %v8821 = vpop.f32.mrb[0].mxu0
    %v8822 = vand.u32 %v75, 4294901760
    %8823 = vmatprep.mubr.f32.mxu0 %v8822
    %v8824 = vand.u32 %v74, 4294901760
    %8825 = vmatmul.mubr.f32.gmra.mrb[0].mxu0 %v8824
    %v8826 = vpop.f32.mrb[0].mxu0
    %v8827 = vadd.f32 %v8378, %v8826
    %v8828 = vpop.f32.mrb[0].mxu0
    %v8829 = vand.u32 %v77, 4294901760
    %8830 = vmatprep.mubr.f32.mxu0 %v8829
    %v8831 = vand.u32 %v76, 4294901760
    %8832 = vmatmul.mubr.f32.gmra.mrb[0].mxu0 %v8831
    %v8833 = vpop.f32.mrb[0].mxu0
    %v8834 = vadd.f32 %v8389, %v8833
    %v8835 = vpop.f32.mrb[0].mxu0
    %v8836 = vand.u32 %v79, 4294901760
    %8837 = vmatprep.mubr.f32.mxu0 %v8836
    %v8838 = vand.u32 %v78, 4294901760
    %8839 = vmatmul.mubr.f32.gmra.mrb[0].mxu0 %v8838
    %v8840 = vpop.f32.mrb[0].mxu0
    %v8841 = vadd.f32 %v8400, %v8840
    %v8842 = vpop.f32.mrb[0].mxu0
    %v8843 = vand.u32 %v81, 4294901760
    %8844 = vmatprep.mubr.f32.mxu0 %v8843
    %v8845 = vand.u32 %v80, 4294901760
    %8846 = vmatmul.mubr.f32.gmra.mrb[0].mxu0 %v8845
    %v8847 = vpop.f32.mrb[0].mxu0
    %v8848 = vadd.f32 %v8411, %v8847
    %v8849 = vpop.f32.mrb[0].mxu0
    %v8850 = vand.u32 %v83, 4294901760
    %8851 = vmatprep.mubr.f32.mxu0 %v8850
    %v8852 = vand.u32 %v82, 4294901760
    %8853 = vmatmul.mubr.f32.gmra.mrb[0].mxu0 %v8852
    %v8854 = vpop.f32.mrb[0].mxu0
    %v8855 = vadd.f32 %v8422, %v8854
    %v8856 = vpop.f32.mrb[0].mxu0
    %v8857 = vand.u32 %v85, 4294901760
    %8858 = vmatprep.mubr.f32.mxu0 %v8857
    %v8859 = vand.u32 %v84, 4294901760
    %8860 = vmatmul.mubr.f32.gmra.mrb[0].mxu0 %v8859
    %v8861 = vpop.f32.mrb[0].mxu0
    %v8862 = vadd.f32 %v8433, %v8861
    %v8863 = vpop.f32.mrb[0].mxu0
    %v8864 = vand.u32 %v87, 4294901760
    %8865 = vmatprep.mubr.f32.mxu0 %v8864
    %v8866 = vand.u32 %v86, 4294901760
    %8867 = vmatmul.mubr.f32.gmra.mrb[0].mxu0 %v8866
    %v8868 = vpop.f32.mrb[0].mxu0
    %v8869 = vadd.f32 %v8444, %v8868
    %v8870 = vpop.f32.mrb[0].mxu0
    %v8871 = vand.u32 %v89, 4294901760
    %8872 = vmatprep.mubr.f32.mxu0 %v8871
    %v8873 = vand.u32 %v88, 4294901760
    %8874 = vmatmul.mubr.f32.gmra.mrb[0].mxu0 %v8873
    %v8875 = vpop.f32.mrb[0].mxu0
    %v8876 = vadd.f32 %v8455, %v8875
    %v8877 = vpop.f32.mrb[0].mxu0
    %v8878 = vand.u32 %v91, 4294901760
    %8879 = vmatprep.mubr.f32.mxu0 %v8878
    %v8880 = vand.u32 %v90, 4294901760
    %8881 = vmatmul.mubr.f32.gmra.mrb[0].mxu0 %v8880
    %v8882 = vpop.f32.mrb[0].mxu0
    %v8883 = vadd.f32 %v8466, %v8882
    %v8884 = vpop.f32.mrb[0].mxu0
    %v8885 = vand.u32 %v93, 4294901760
    %8886 = vmatprep.mubr.f32.mxu0 %v8885
    %v8887 = vand.u32 %v92, 4294901760
    %8888 = vmatmul.mubr.f32.gmra.mrb[0].mxu0 %v8887
    %v8889 = vpop.f32.mrb[0].mxu0
    %v8890 = vadd.f32 %v8477, %v8889
    %v8891 = vpop.f32.mrb[0].mxu0
    %v8892 = vand.u32 %v95, 4294901760
    %8893 = vmatprep.mubr.f32.mxu0 %v8892
    %v8894 = vand.u32 %v94, 4294901760
    %8895 = vmatmul.mubr.f32.gmra.mrb[0].mxu0 %v8894
    %v8896 = vpop.f32.mrb[0].mxu0
    %v8897 = vadd.f32 %v8488, %v8896
    %v8898 = vpop.f32.mrb[0].mxu0
    %v8899 = vand.u32 %v97, 4294901760
    %8900 = vmatprep.mubr.f32.mxu0 %v8899
    %v8901 = vand.u32 %v96, 4294901760
    %8902 = vmatmul.mubr.f32.gmra.mrb[0].mxu0 %v8901
    %v8903 = vpop.f32.mrb[0].mxu0
    %v8904 = vadd.f32 %v8499, %v8903
    %v8905 = vpop.f32.mrb[0].mxu0
    %v8906 = vand.u32 %v99, 4294901760
    %8907 = vmatprep.mubr.f32.mxu0 %v8906
    %v8908 = vand.u32 %v98, 4294901760
    %8909 = vmatmul.mubr.f32.gmra.mrb[0].mxu0 %v8908
    %v8910 = vpop.f32.mrb[0].mxu0
    %v8911 = vadd.f32 %v8510, %v8910
    %v8912 = vpop.f32.mrb[0].mxu0
    %v8913 = vand.u32 %v101, 4294901760
    %8914 = vmatprep.mubr.f32.mxu0 %v8913
    %v8915 = vand.u32 %v100, 4294901760
    %8916 = vmatmul.mubr.f32.gmra.mrb[0].mxu0 %v8915
    %v8917 = vpop.f32.mrb[0].mxu0
    %v8918 = vadd.f32 %v8521, %v8917
    %v8919 = vpop.f32.mrb[0].mxu0
    %v8920 = vand.u32 %v103, 4294901760
    %8921 = vmatprep.mubr.f32.mxu0 %v8920
    %v8922 = vand.u32 %v102, 4294901760
    %8923 = vmatmul.mubr.f32.gmra.mrb[0].mxu0 %v8922
    %v8924 = vpop.f32.mrb[0].mxu0
    %v8925 = vadd.f32 %v8532, %v8924
    %v8926 = vpop.f32.mrb[0].mxu0
    %v8927 = vand.u32 %v105, 4294901760
    %8928 = vmatprep.mubr.f32.mxu0 %v8927
    %v8929 = vand.u32 %v104, 4294901760
    %8930 = vmatmul.mubr.f32.gmra.mrb[0].mxu0 %v8929
    %v8931 = vpop.f32.mrb[0].mxu0
    %v8932 = vadd.f32 %v8543, %v8931
    %v8933 = vpop.f32.mrb[0].mxu0
    %v8934 = vand.u32 %v107, 4294901760
    %8935 = vmatprep.mubr.f32.mxu0 %v8934
    %v8936 = vand.u32 %v106, 4294901760
    %8937 = vmatmul.mubr.f32.gmra.mrb[0].mxu0 %v8936
    %v8938 = vpop.f32.mrb[0].mxu0
    %v8939 = vadd.f32 %v8554, %v8938
    %v8940 = vpop.f32.mrb[0].mxu0
    %8941 = vdwg.mxu0
    %8942 = vmatprep.subr.mxu0 0.0
    %v8943 = vand.u32 %v6469, 4294901760
    %8944 = vmatpush1.msra.mxu0 %v8943
    %8945 = vmatprep.subr.mxu0 0.0
    %v8946 = vand.u32 %v6475, 4294901760
    %8947 = vmatpush1.msra.mxu0 %v8946
    %8948 = vmatprep.subr.mxu0 0.0
    %v8949 = vand.u32 %v6481, 4294901760
    %8950 = vmatpush1.msra.mxu0 %v8949
    %8951 = vmatprep.subr.mxu0 0.0
    %v8952 = vand.u32 %v6487, 4294901760
    %8953 = vmatpush1.msra.mxu0 %v8952
    %8954 = vmatprep.subr.mxu0 0.0
    %v8955 = vand.u32 %v6493, 4294901760
    %8956 = vmatpush1.msra.mxu0 %v8955
    %8957 = vmatprep.subr.mxu0 0.0
    %v8958 = vand.u32 %v6499, 4294901760
    %8959 = vmatpush1.msra.mxu0 %v8958
    %8960 = vmatprep.subr.mxu0 0.0
    %v8961 = vand.u32 %v6505, 4294901760
    %8962 = vmatpush1.msra.mxu0 %v8961
    %8963 = vmatprep.subr.mxu0 0.0
    %v8964 = vand.u32 %v6511, 4294901760
    %8965 = vmatpush1.msra.mxu0 %v8964
    %8966 = vmatprep.subr.mxu0 0.0
    %v8967 = vand.u32 %v6517, 4294901760
    %8968 = vmatpush1.msra.mxu0 %v8967
    %8969 = vmatprep.subr.mxu0 0.0
    %v8970 = vand.u32 %v6523, 4294901760
    %8971 = vmatpush1.msra.mxu0 %v8970
    %8972 = vmatprep.subr.mxu0 0.0
    %v8973 = vand.u32 %v6529, 4294901760
    %8974 = vmatpush1.msra.mxu0 %v8973
    %8975 = vmatprep.subr.mxu0 0.0
    %v8976 = vand.u32 %v6535, 4294901760
    %8977 = vmatpush1.msra.mxu0 %v8976
    %8978 = vmatprep.subr.mxu0 0.0
    %v8979 = vand.u32 %v6541, 4294901760
    %8980 = vmatpush1.msra.mxu0 %v8979
    %8981 = vmatprep.subr.mxu0 0.0
    %v8982 = vand.u32 %v6547, 4294901760
    %8983 = vmatpush1.msra.mxu0 %v8982
    %8984 = vmatprep.subr.mxu0 0.0
    %v8985 = vand.u32 %v6553, 4294901760
    %8986 = vmatpush1.msra.mxu0 %v8985
    %8987 = vmatprep.subr.mxu0 0.0
    %v8988 = vand.u32 %v6559, 4294901760
    %8989 = vmatpush1.msra.mxu0 %v8988
    %8990 = vmatprep.subr.mxu0 0.0
    %v8991 = vand.u32 %v6565, 4294901760
    %8992 = vmatpush1.msra.mxu0 %v8991
    %8993 = vmatprep.subr.mxu0 0.0
    %v8994 = vand.u32 %v6571, 4294901760
    %8995 = vmatpush1.msra.mxu0 %v8994
    %8996 = vmatprep.subr.mxu0 0.0
    %v8997 = vand.u32 %v6577, 4294901760
    %8998 = vmatpush1.msra.mxu0 %v8997
    %8999 = vmatprep.subr.mxu0 0.0
    %v9000 = vand.u32 %v6583, 4294901760
    %9001 = vmatpush1.msra.mxu0 %v9000
    %9002 = vmatprep.subr.mxu0 0.0
    %v9003 = vand.u32 %v6589, 4294901760
    %9004 = vmatpush1.msra.mxu0 %v9003
    %9005 = vmatprep.subr.mxu0 0.0
    %v9006 = vand.u32 %v6595, 4294901760
    %9007 = vmatpush1.msra.mxu0 %v9006
    %9008 = vmatprep.subr.mxu0 0.0
    %v9009 = vand.u32 %v6601, 4294901760
    %9010 = vmatpush1.msra.mxu0 %v9009
    %9011 = vmatprep.subr.mxu0 0.0
    %v9012 = vand.u32 %v6607, 4294901760
    %9013 = vmatpush1.msra.mxu0 %v9012
    %9014 = vmatprep.subr.mxu0 0.0
    %v9015 = vand.u32 %v6613, 4294901760
    %9016 = vmatpush1.msra.mxu0 %v9015
    %9017 = vmatprep.subr.mxu0 0.0
    %v9018 = vand.u32 %v6619, 4294901760
    %9019 = vmatpush1.msra.mxu0 %v9018
    %9020 = vmatprep.subr.mxu0 0.0
    %v9021 = vand.u32 %v6625, 4294901760
    %9022 = vmatpush1.msra.mxu0 %v9021
    %9023 = vmatprep.subr.mxu0 0.0
    %v9024 = vand.u32 %v6631, 4294901760
    %9025 = vmatpush1.msra.mxu0 %v9024
    %9026 = vmatprep.subr.mxu0 0.0
    %v9027 = vand.u32 %v6637, 4294901760
    %9028 = vmatpush1.msra.mxu0 %v9027
    %9029 = vmatprep.subr.mxu0 0.0
    %v9030 = vand.u32 %v6643, 4294901760
    %9031 = vmatpush1.msra.mxu0 %v9030
    %9032 = vmatprep.subr.mxu0 0.0
    %v9033 = vand.u32 %v6649, 4294901760
    %9034 = vmatpush1.msra.mxu0 %v9033
    %9035 = vmatprep.subr.mxu0 0.0
    %v9036 = vand.u32 %v6655, 4294901760
    %9037 = vmatpush1.msra.mxu0 %v9036
    %v9038 = vand.u32 %v45, 4294901760
    %9039 = vmatprep.mubr.f32.mxu0 %v9038
    %v9040 = vand.u32 %v44, 4294901760
    %9041 = vmatmul.mubr.f32.gmra.mrb[0].mxu0 %v9040
    %v9042 = vpop.f32.mrb[0].mxu0
    %v9043 = vadd.f32 %v8722, %v9042
    %v9044 = vpop.f32.mrb[0].mxu0
    %v9045 = vand.u32 %v47, 4294901760
    %9046 = vmatprep.mubr.f32.mxu0 %v9045
    %v9047 = vand.u32 %v46, 4294901760
    %9048 = vmatmul.mubr.f32.gmra.mrb[0].mxu0 %v9047
    %v9049 = vpop.f32.mrb[0].mxu0
    %v9050 = vadd.f32 %v8729, %v9049
    %v9051 = vpop.f32.mrb[0].mxu0
    %v9052 = vand.u32 %v49, 4294901760
    %9053 = vmatprep.mubr.f32.mxu0 %v9052
    %v9054 = vand.u32 %v48, 4294901760
    %9055 = vmatmul.mubr.f32.gmra.mrb[0].mxu0 %v9054
    %v9056 = vpop.f32.mrb[0].mxu0
    %v9057 = vadd.f32 %v8736, %v9056
    %v9058 = vpop.f32.mrb[0].mxu0
    %v9059 = vand.u32 %v51, 4294901760
    %9060 = vmatprep.mubr.f32.mxu0 %v9059
    %v9061 = vand.u32 %v50, 4294901760
    %9062 = vmatmul.mubr.f32.gmra.mrb[0].mxu0 %v9061
    %v9063 = vpop.f32.mrb[0].mxu0
    %v9064 = vadd.f32 %v8743, %v9063
    %v9065 = vpop.f32.mrb[0].mxu0
    %v9066 = vand.u32 %v53, 4294901760
    %9067 = vmatprep.mubr.f32.mxu0 %v9066
    %v9068 = vand.u32 %v52, 4294901760
    %9069 = vmatmul.mubr.f32.gmra.mrb[0].mxu0 %v9068
    %v9070 = vpop.f32.mrb[0].mxu0
    %v9071 = vadd.f32 %v8750, %v9070
    %v9072 = vpop.f32.mrb[0].mxu0
    %v9073 = vand.u32 %v55, 4294901760
    %9074 = vmatprep.mubr.f32.mxu0 %v9073
    %v9075 = vand.u32 %v54, 4294901760
    %9076 = vmatmul.mubr.f32.gmra.mrb[0].mxu0 %v9075
    %v9077 = vpop.f32.mrb[0].mxu0
    %v9078 = vadd.f32 %v8757, %v9077
    %v9079 = vpop.f32.mrb[0].mxu0
    %v9080 = vand.u32 %v57, 4294901760
    %9081 = vmatprep.mubr.f32.mxu0 %v9080
    %v9082 = vand.u32 %v56, 4294901760
    %9083 = vmatmul.mubr.f32.gmra.mrb[0].mxu0 %v9082
    %v9084 = vpop.f32.mrb[0].mxu0
    %v9085 = vadd.f32 %v8764, %v9084
    %v9086 = vpop.f32.mrb[0].mxu0
    %v9087 = vand.u32 %v59, 4294901760
    %9088 = vmatprep.mubr.f32.mxu0 %v9087
    %v9089 = vand.u32 %v58, 4294901760
    %9090 = vmatmul.mubr.f32.gmra.mrb[0].mxu0 %v9089
    %v9091 = vpop.f32.mrb[0].mxu0
    %v9092 = vadd.f32 %v8771, %v9091
    %v9093 = vpop.f32.mrb[0].mxu0
    %v9094 = vand.u32 %v61, 4294901760
    %9095 = vmatprep.mubr.f32.mxu0 %v9094
    %v9096 = vand.u32 %v60, 4294901760
    %9097 = vmatmul.mubr.f32.gmra.mrb[0].mxu0 %v9096
    %v9098 = vpop.f32.mrb[0].mxu0
    %v9099 = vadd.f32 %v8778, %v9098
    %v9100 = vpop.f32.mrb[0].mxu0
    %v9101 = vand.u32 %v63, 4294901760
    %9102 = vmatprep.mubr.f32.mxu0 %v9101
    %v9103 = vand.u32 %v62, 4294901760
    %9104 = vmatmul.mubr.f32.gmra.mrb[0].mxu0 %v9103
    %v9105 = vpop.f32.mrb[0].mxu0
    %v9106 = vadd.f32 %v8785, %v9105
    %v9107 = vpop.f32.mrb[0].mxu0
    %v9108 = vand.u32 %v65, 4294901760
    %9109 = vmatprep.mubr.f32.mxu0 %v9108
    %v9110 = vand.u32 %v64, 4294901760
    %9111 = vmatmul.mubr.f32.gmra.mrb[0].mxu0 %v9110
    %v9112 = vpop.f32.mrb[0].mxu0
    %v9113 = vadd.f32 %v8792, %v9112
    %v9114 = vpop.f32.mrb[0].mxu0
    %v9115 = vand.u32 %v67, 4294901760
    %9116 = vmatprep.mubr.f32.mxu0 %v9115
    %v9117 = vand.u32 %v66, 4294901760
    %9118 = vmatmul.mubr.f32.gmra.mrb[0].mxu0 %v9117
    %v9119 = vpop.f32.mrb[0].mxu0
    %v9120 = vadd.f32 %v8799, %v9119
    %v9121 = vpop.f32.mrb[0].mxu0
    %v9122 = vand.u32 %v69, 4294901760
    %9123 = vmatprep.mubr.f32.mxu0 %v9122
    %v9124 = vand.u32 %v68, 4294901760
    %9125 = vmatmul.mubr.f32.gmra.mrb[0].mxu0 %v9124
    %v9126 = vpop.f32.mrb[0].mxu0
    %v9127 = vadd.f32 %v8806, %v9126
    %v9128 = vpop.f32.mrb[0].mxu0
    %v9129 = vand.u32 %v71, 4294901760
    %9130 = vmatprep.mubr.f32.mxu0 %v9129
    %v9131 = vand.u32 %v70, 4294901760
    %9132 = vmatmul.mubr.f32.gmra.mrb[0].mxu0 %v9131
    %v9133 = vpop.f32.mrb[0].mxu0
    %v9134 = vadd.f32 %v8813, %v9133
    %v9135 = vpop.f32.mrb[0].mxu0
    %v9136 = vand.u32 %v73, 4294901760
    %9137 = vmatprep.mubr.f32.mxu0 %v9136
    %v9138 = vand.u32 %v72, 4294901760
    %9139 = vmatmul.mubr.f32.gmra.mrb[0].mxu0 %v9138
    %v9140 = vpop.f32.mrb[0].mxu0
    %v9141 = vadd.f32 %v8820, %v9140
    %v9142 = vpop.f32.mrb[0].mxu0
    %v9143 = vand.u32 %v75, 4294901760
    %9144 = vmatprep.mubr.f32.mxu0 %v9143
    %v9145 = vand.u32 %v74, 4294901760
    %9146 = vmatmul.mubr.f32.gmra.mrb[0].mxu0 %v9145
    %v9147 = vpop.f32.mrb[0].mxu0
    %v9148 = vadd.f32 %v8827, %v9147
    %v9149 = vpop.f32.mrb[0].mxu0
    %v9150 = vand.u32 %v77, 4294901760
    %9151 = vmatprep.mubr.f32.mxu0 %v9150
    %v9152 = vand.u32 %v76, 4294901760
    %9153 = vmatmul.mubr.f32.gmra.mrb[0].mxu0 %v9152
    %v9154 = vpop.f32.mrb[0].mxu0
    %v9155 = vadd.f32 %v8834, %v9154
    %v9156 = vpop.f32.mrb[0].mxu0
    %v9157 = vand.u32 %v79, 4294901760
    %9158 = vmatprep.mubr.f32.mxu0 %v9157
    %v9159 = vand.u32 %v78, 4294901760
    %9160 = vmatmul.mubr.f32.gmra.mrb[0].mxu0 %v9159
    %v9161 = vpop.f32.mrb[0].mxu0
    %v9162 = vadd.f32 %v8841, %v9161
    %v9163 = vpop.f32.mrb[0].mxu0
    %v9164 = vand.u32 %v81, 4294901760
    %9165 = vmatprep.mubr.f32.mxu0 %v9164
    %v9166 = vand.u32 %v80, 4294901760
    %9167 = vmatmul.mubr.f32.gmra.mrb[0].mxu0 %v9166
    %v9168 = vpop.f32.mrb[0].mxu0
    %v9169 = vadd.f32 %v8848, %v9168
    %v9170 = vpop.f32.mrb[0].mxu0
    %v9171 = vand.u32 %v83, 4294901760
    %9172 = vmatprep.mubr.f32.mxu0 %v9171
    %v9173 = vand.u32 %v82, 4294901760
    %9174 = vmatmul.mubr.f32.gmra.mrb[0].mxu0 %v9173
    %v9175 = vpop.f32.mrb[0].mxu0
    %v9176 = vadd.f32 %v8855, %v9175
    %v9177 = vpop.f32.mrb[0].mxu0
    %v9178 = vand.u32 %v85, 4294901760
    %9179 = vmatprep.mubr.f32.mxu0 %v9178
    %v9180 = vand.u32 %v84, 4294901760
    %9181 = vmatmul.mubr.f32.gmra.mrb[0].mxu0 %v9180
    %v9182 = vpop.f32.mrb[0].mxu0
    %v9183 = vadd.f32 %v8862, %v9182
    %v9184 = vpop.f32.mrb[0].mxu0
    %v9185 = vand.u32 %v87, 4294901760
    %9186 = vmatprep.mubr.f32.mxu0 %v9185
    %v9187 = vand.u32 %v86, 4294901760
    %9188 = vmatmul.mubr.f32.gmra.mrb[0].mxu0 %v9187
    %v9189 = vpop.f32.mrb[0].mxu0
    %v9190 = vadd.f32 %v8869, %v9189
    %v9191 = vpop.f32.mrb[0].mxu0
    %v9192 = vand.u32 %v89, 4294901760
    %9193 = vmatprep.mubr.f32.mxu0 %v9192
    %v9194 = vand.u32 %v88, 4294901760
    %9195 = vmatmul.mubr.f32.gmra.mrb[0].mxu0 %v9194
    %v9196 = vpop.f32.mrb[0].mxu0
    %v9197 = vadd.f32 %v8876, %v9196
    %v9198 = vpop.f32.mrb[0].mxu0
    %v9199 = vand.u32 %v91, 4294901760
    %9200 = vmatprep.mubr.f32.mxu0 %v9199
    %v9201 = vand.u32 %v90, 4294901760
    %9202 = vmatmul.mubr.f32.gmra.mrb[0].mxu0 %v9201
    %v9203 = vpop.f32.mrb[0].mxu0
    %v9204 = vadd.f32 %v8883, %v9203
    %v9205 = vpop.f32.mrb[0].mxu0
    %v9206 = vand.u32 %v93, 4294901760
    %9207 = vmatprep.mubr.f32.mxu0 %v9206
    %v9208 = vand.u32 %v92, 4294901760
    %9209 = vmatmul.mubr.f32.gmra.mrb[0].mxu0 %v9208
    %v9210 = vpop.f32.mrb[0].mxu0
    %v9211 = vadd.f32 %v8890, %v9210
    %v9212 = vpop.f32.mrb[0].mxu0
    %v9213 = vand.u32 %v95, 4294901760
    %9214 = vmatprep.mubr.f32.mxu0 %v9213
    %v9215 = vand.u32 %v94, 4294901760
    %9216 = vmatmul.mubr.f32.gmra.mrb[0].mxu0 %v9215
    %v9217 = vpop.f32.mrb[0].mxu0
    %v9218 = vadd.f32 %v8897, %v9217
    %v9219 = vpop.f32.mrb[0].mxu0
    %v9220 = vand.u32 %v97, 4294901760
    %9221 = vmatprep.mubr.f32.mxu0 %v9220
    %v9222 = vand.u32 %v96, 4294901760
    %9223 = vmatmul.mubr.f32.gmra.mrb[0].mxu0 %v9222
    %v9224 = vpop.f32.mrb[0].mxu0
    %v9225 = vadd.f32 %v8904, %v9224
    %v9226 = vpop.f32.mrb[0].mxu0
    %v9227 = vand.u32 %v99, 4294901760
    %9228 = vmatprep.mubr.f32.mxu0 %v9227
    %v9229 = vand.u32 %v98, 4294901760
    %9230 = vmatmul.mubr.f32.gmra.mrb[0].mxu0 %v9229
    %v9231 = vpop.f32.mrb[0].mxu0
    %v9232 = vadd.f32 %v8911, %v9231
    %v9233 = vpop.f32.mrb[0].mxu0
    %v9234 = vand.u32 %v101, 4294901760
    %9235 = vmatprep.mubr.f32.mxu0 %v9234
    %v9236 = vand.u32 %v100, 4294901760
    %9237 = vmatmul.mubr.f32.gmra.mrb[0].mxu0 %v9236
    %v9238 = vpop.f32.mrb[0].mxu0
    %v9239 = vadd.f32 %v8918, %v9238
    %v9240 = vpop.f32.mrb[0].mxu0
    %v9241 = vand.u32 %v103, 4294901760
    %9242 = vmatprep.mubr.f32.mxu0 %v9241
    %v9243 = vand.u32 %v102, 4294901760
    %9244 = vmatmul.mubr.f32.gmra.mrb[0].mxu0 %v9243
    %v9245 = vpop.f32.mrb[0].mxu0
    %v9246 = vadd.f32 %v8925, %v9245
    %v9247 = vpop.f32.mrb[0].mxu0
    %v9248 = vand.u32 %v105, 4294901760
    %9249 = vmatprep.mubr.f32.mxu0 %v9248
    %v9250 = vand.u32 %v104, 4294901760
    %9251 = vmatmul.mubr.f32.gmra.mrb[0].mxu0 %v9250
    %v9252 = vpop.f32.mrb[0].mxu0
    %v9253 = vadd.f32 %v8932, %v9252
    %v9254 = vpop.f32.mrb[0].mxu0
    %v9255 = vand.u32 %v107, 4294901760
    %9256 = vmatprep.mubr.f32.mxu0 %v9255
    %v9257 = vand.u32 %v106, 4294901760
    %9258 = vmatmul.mubr.f32.gmra.mrb[0].mxu0 %v9257
    %v9259 = vpop.f32.mrb[0].mxu0
    %v9260 = vadd.f32 %v8939, %v9259
    %v9261 = vpop.f32.mrb[0].mxu0
    %9262 = vdwg.mxu0
    %v9263 = vmax.f32 %v9043, 0.0
    %v9264 = vmax.f32 %v9050, 0.0
    %v9265 = vmax.f32 %v9057, 0.0
    %v9266 = vmax.f32 %v9064, 0.0
    %v9267 = vmax.f32 %v9071, 0.0
    %v9268 = vmax.f32 %v9078, 0.0
    %v9269 = vmax.f32 %v9085, 0.0
    %v9270 = vmax.f32 %v9092, 0.0
    %v9271 = vmax.f32 %v9099, 0.0
    %v9272 = vmax.f32 %v9106, 0.0
    %v9273 = vmax.f32 %v9113, 0.0
    %v9274 = vmax.f32 %v9120, 0.0
    %v9275 = vmax.f32 %v9127, 0.0
    %v9276 = vmax.f32 %v9134, 0.0
    %v9277 = vmax.f32 %v9141, 0.0
    %v9278 = vmax.f32 %v9148, 0.0
    %v9279 = vmax.f32 %v9155, 0.0
    %v9280 = vmax.f32 %v9162, 0.0
    %v9281 = vmax.f32 %v9169, 0.0
    %v9282 = vmax.f32 %v9176, 0.0
    %v9283 = vmax.f32 %v9183, 0.0
    %v9284 = vmax.f32 %v9190, 0.0
    %v9285 = vmax.f32 %v9197, 0.0
    %v9286 = vmax.f32 %v9204, 0.0
    %v9287 = vmax.f32 %v9211, 0.0
    %v9288 = vmax.f32 %v9218, 0.0
    %v9289 = vmax.f32 %v9225, 0.0
    %v9290 = vmax.f32 %v9232, 0.0
    %v9291 = vmax.f32 %v9239, 0.0
    %v9292 = vmax.f32 %v9246, 0.0
    %v9293 = vmax.f32 %v9253, 0.0
    %v9294 = vmax.f32 %v9260, 0.0
    %v9295 = vld [vmem:[%s6] sm:$0xff]
    %v9296 = vld [vmem:[%s6 + $0x8] sm:$0xff]
    %v9297 = vld [vmem:[%s6 + $0x10] sm:$0xff]
    %v9298 = vld [vmem:[%s6 + $0x18] sm:$0xff]
    %v9299 = vld [vmem:[%s6 + $0x20] sm:$0xff]
    %v9300 = vld [vmem:[%s6 + $0x28] sm:$0xff]
    %v9301 = vld [vmem:[%s6 + $0x30] sm:$0xff]
    %v9302 = vld [vmem:[%s6 + $0x38] sm:$0xff]
    %v9303 = vld [vmem:[%s6 + $0x40] sm:$0xff]
    %v9304 = vld [vmem:[%s6 + $0x48] sm:$0xff]
    %v9305 = vld [vmem:[%s6 + $0x50] sm:$0xff]
    %v9306 = vld [vmem:[%s6 + $0x58] sm:$0xff]
    %v9307 = vld [vmem:[%s6 + $0x60] sm:$0xff]
    %v9308 = vld [vmem:[%s6 + $0x68] sm:$0xff]
    %v9309 = vld [vmem:[%s6 + $0x70] sm:$0xff]
    %v9310 = vld [vmem:[%s6 + $0x78] sm:$0xff]
    %v9311 = vld [vmem:[%s7] sm:$0x1]
    %v9313 = vlaneseq
    %v9314 = vshrl.u32 %v9313, 7
    %v9315 = vsub.s32 0, %v9314
    %v9316 = vrot.slane %v9311, %v9315
    %9318 = vmatprep.subr.mxu0 0.0
    %v9319 = vand.u32 %v9295, 4294901760
    %9320 = vmatpush1.msra.mxu0 %v9319
    %9321 = vmatprep.subr.mxu0 0.0
    %v9322 = vand.u32 %v9296, 4294901760
    %9323 = vmatpush1.msra.mxu0 %v9322
    %9324 = vmatprep.subr.mxu0 0.0
    %v9325 = vand.u32 %v9297, 4294901760
    %9326 = vmatpush1.msra.mxu0 %v9325
    %9327 = vmatprep.subr.mxu0 0.0
    %v9328 = vand.u32 %v9298, 4294901760
    %9329 = vmatpush1.msra.mxu0 %v9328
    %9330 = vmatprep.subr.mxu0 0.0
    %v9331 = vand.u32 %v9299, 4294901760
    %9332 = vmatpush1.msra.mxu0 %v9331
    %9333 = vmatprep.subr.mxu0 0.0
    %v9334 = vand.u32 %v9300, 4294901760
    %9335 = vmatpush1.msra.mxu0 %v9334
    %9336 = vmatprep.subr.mxu0 0.0
    %v9337 = vand.u32 %v9301, 4294901760
    %9338 = vmatpush1.msra.mxu0 %v9337
    %9339 = vmatprep.subr.mxu0 0.0
    %v9340 = vand.u32 %v9302, 4294901760
    %9341 = vmatpush1.msra.mxu0 %v9340
    %9342 = vmatprep.subr.mxu0 0.0
    %v9343 = vand.u32 %v9303, 4294901760
    %9344 = vmatpush1.msra.mxu0 %v9343
    %9345 = vmatprep.subr.mxu0 0.0
    %v9346 = vand.u32 %v9304, 4294901760
    %9347 = vmatpush1.msra.mxu0 %v9346
    %9348 = vmatprep.subr.mxu0 0.0
    %v9349 = vand.u32 %v9305, 4294901760
    %9350 = vmatpush1.msra.mxu0 %v9349
    %9351 = vmatprep.subr.mxu0 0.0
    %v9352 = vand.u32 %v9306, 4294901760
    %9353 = vmatpush1.msra.mxu0 %v9352
    %9354 = vmatprep.subr.mxu0 0.0
    %v9355 = vand.u32 %v9307, 4294901760
    %9356 = vmatpush1.msra.mxu0 %v9355
    %9357 = vmatprep.subr.mxu0 0.0
    %v9358 = vand.u32 %v9308, 4294901760
    %9359 = vmatpush1.msra.mxu0 %v9358
    %9360 = vmatprep.subr.mxu0 0.0
    %v9361 = vand.u32 %v9309, 4294901760
    %9362 = vmatpush1.msra.mxu0 %v9361
    %9363 = vmatprep.subr.mxu0 0.0
    %v9364 = vand.u32 %v9310, 4294901760
    %9365 = vmatpush1.msra.mxu0 %v9364
    %9366 = vmatprep.subr.mxu0 0.0
    %9367 = vmatpush1.msra.mxu0 0.0
    %9368 = vmatprep.subr.mxu0 0.0
    %9369 = vmatpush1.msra.mxu0 0.0
    %9370 = vmatprep.subr.mxu0 0.0
    %9371 = vmatpush1.msra.mxu0 0.0
    %9372 = vmatprep.subr.mxu0 0.0
    %9373 = vmatpush1.msra.mxu0 0.0
    %9374 = vmatprep.subr.mxu0 0.0
    %9375 = vmatpush1.msra.mxu0 0.0
    %9376 = vmatprep.subr.mxu0 0.0
    %9377 = vmatpush1.msra.mxu0 0.0
    %9378 = vmatprep.subr.mxu0 0.0
    %9379 = vmatpush1.msra.mxu0 0.0
    %9380 = vmatprep.subr.mxu0 0.0
    %9381 = vmatpush1.msra.mxu0 0.0
    %9382 = vmatprep.subr.mxu0 0.0
    %9383 = vmatpush1.msra.mxu0 0.0
    %9384 = vmatprep.subr.mxu0 0.0
    %9385 = vmatpush1.msra.mxu0 0.0
    %9386 = vmatprep.subr.mxu0 0.0
    %9387 = vmatpush1.msra.mxu0 0.0
    %9388 = vmatprep.subr.mxu0 0.0
    %9389 = vmatpush1.msra.mxu0 0.0
    %9390 = vmatprep.subr.mxu0 0.0
    %9391 = vmatpush1.msra.mxu0 0.0
    %9392 = vmatprep.subr.mxu0 0.0
    %9393 = vmatpush1.msra.mxu0 0.0
    %9394 = vmatprep.subr.mxu0 0.0
    %9395 = vmatpush1.msra.mxu0 0.0
    %9396 = vmatprep.subr.mxu0 0.0
    %9397 = vmatpush1.msra.mxu0 0.0
    %9398 = vmatprep.mubr.f32.mxu0 0.0
    %v9399 = vand.u32 %v9263, 4294901760
    %v9400 = vsub.f32 %v9263, %v9399
    %v9401 = vand.u32 %v9400, 4294901760
    %v9402 = vsub.f32 %v9400, %v9401
    %v9403 = vand.u32 %v9402, 4294901760
    %9404 = vmatmul.mubr.f32.gmra.mrb[0].mxu0 %v9403
    %v9405 = vpop.f32.mrb[0].mxu0
    %v9406 = vadd.f32 %v9316, %v9405
    %v9407 = vpop.f32.mrb[0].mxu0
    %9408 = vmatprep.mubr.f32.mxu0 0.0
    %v9409 = vand.u32 %v9264, 4294901760
    %v9410 = vsub.f32 %v9264, %v9409
    %v9411 = vand.u32 %v9410, 4294901760
    %v9412 = vsub.f32 %v9410, %v9411
    %v9413 = vand.u32 %v9412, 4294901760
    %9414 = vmatmul.mubr.f32.gmra.mrb[0].mxu0 %v9413
    %v9415 = vpop.f32.mrb[0].mxu0
    %v9416 = vadd.f32 %v9316, %v9415
    %v9417 = vpop.f32.mrb[0].mxu0
    %9418 = vmatprep.mubr.f32.mxu0 0.0
    %v9419 = vand.u32 %v9265, 4294901760
    %v9420 = vsub.f32 %v9265, %v9419
    %v9421 = vand.u32 %v9420, 4294901760
    %v9422 = vsub.f32 %v9420, %v9421
    %v9423 = vand.u32 %v9422, 4294901760
    %9424 = vmatmul.mubr.f32.gmra.mrb[0].mxu0 %v9423
    %v9425 = vpop.f32.mrb[0].mxu0
    %v9426 = vadd.f32 %v9316, %v9425
    %v9427 = vpop.f32.mrb[0].mxu0
    %9428 = vmatprep.mubr.f32.mxu0 0.0
    %v9429 = vand.u32 %v9266, 4294901760
    %v9430 = vsub.f32 %v9266, %v9429
    %v9431 = vand.u32 %v9430, 4294901760
    %v9432 = vsub.f32 %v9430, %v9431
    %v9433 = vand.u32 %v9432, 4294901760
    %9434 = vmatmul.mubr.f32.gmra.mrb[0].mxu0 %v9433
    %v9435 = vpop.f32.mrb[0].mxu0
    %v9436 = vadd.f32 %v9316, %v9435
    %v9437 = vpop.f32.mrb[0].mxu0
    %9438 = vmatprep.mubr.f32.mxu0 0.0
    %v9439 = vand.u32 %v9267, 4294901760
    %v9440 = vsub.f32 %v9267, %v9439
    %v9441 = vand.u32 %v9440, 4294901760
    %v9442 = vsub.f32 %v9440, %v9441
    %v9443 = vand.u32 %v9442, 4294901760
    %9444 = vmatmul.mubr.f32.gmra.mrb[0].mxu0 %v9443
    %v9445 = vpop.f32.mrb[0].mxu0
    %v9446 = vadd.f32 %v9316, %v9445
    %v9447 = vpop.f32.mrb[0].mxu0
    %9448 = vmatprep.mubr.f32.mxu0 0.0
    %v9449 = vand.u32 %v9268, 4294901760
    %v9450 = vsub.f32 %v9268, %v9449
    %v9451 = vand.u32 %v9450, 4294901760
    %v9452 = vsub.f32 %v9450, %v9451
    %v9453 = vand.u32 %v9452, 4294901760
    %9454 = vmatmul.mubr.f32.gmra.mrb[0].mxu0 %v9453
    %v9455 = vpop.f32.mrb[0].mxu0
    %v9456 = vadd.f32 %v9316, %v9455
    %v9457 = vpop.f32.mrb[0].mxu0
    %9458 = vmatprep.mubr.f32.mxu0 0.0
    %v9459 = vand.u32 %v9269, 4294901760
    %v9460 = vsub.f32 %v9269, %v9459
    %v9461 = vand.u32 %v9460, 4294901760
    %v9462 = vsub.f32 %v9460, %v9461
    %v9463 = vand.u32 %v9462, 4294901760
    %9464 = vmatmul.mubr.f32.gmra.mrb[0].mxu0 %v9463
    %v9465 = vpop.f32.mrb[0].mxu0
    %v9466 = vadd.f32 %v9316, %v9465
    %v9467 = vpop.f32.mrb[0].mxu0
    %9468 = vmatprep.mubr.f32.mxu0 0.0
    %v9469 = vand.u32 %v9270, 4294901760
    %v9470 = vsub.f32 %v9270, %v9469
    %v9471 = vand.u32 %v9470, 4294901760
    %v9472 = vsub.f32 %v9470, %v9471
    %v9473 = vand.u32 %v9472, 4294901760
    %9474 = vmatmul.mubr.f32.gmra.mrb[0].mxu0 %v9473
    %v9475 = vpop.f32.mrb[0].mxu0
    %v9476 = vadd.f32 %v9316, %v9475
    %v9477 = vpop.f32.mrb[0].mxu0
    %9478 = vmatprep.mubr.f32.mxu0 0.0
    %v9479 = vand.u32 %v9271, 4294901760
    %v9480 = vsub.f32 %v9271, %v9479
    %v9481 = vand.u32 %v9480, 4294901760
    %v9482 = vsub.f32 %v9480, %v9481
    %v9483 = vand.u32 %v9482, 4294901760
    %9484 = vmatmul.mubr.f32.gmra.mrb[0].mxu0 %v9483
    %v9485 = vpop.f32.mrb[0].mxu0
    %v9486 = vadd.f32 %v9316, %v9485
    %v9487 = vpop.f32.mrb[0].mxu0
    %9488 = vmatprep.mubr.f32.mxu0 0.0
    %v9489 = vand.u32 %v9272, 4294901760
    %v9490 = vsub.f32 %v9272, %v9489
    %v9491 = vand.u32 %v9490, 4294901760
    %v9492 = vsub.f32 %v9490, %v9491
    %v9493 = vand.u32 %v9492, 4294901760
    %9494 = vmatmul.mubr.f32.gmra.mrb[0].mxu0 %v9493
    %v9495 = vpop.f32.mrb[0].mxu0
    %v9496 = vadd.f32 %v9316, %v9495
    %v9497 = vpop.f32.mrb[0].mxu0
    %9498 = vmatprep.mubr.f32.mxu0 0.0
    %v9499 = vand.u32 %v9273, 4294901760
    %v9500 = vsub.f32 %v9273, %v9499
    %v9501 = vand.u32 %v9500, 4294901760
    %v9502 = vsub.f32 %v9500, %v9501
    %v9503 = vand.u32 %v9502, 4294901760
    %9504 = vmatmul.mubr.f32.gmra.mrb[0].mxu0 %v9503
    %v9505 = vpop.f32.mrb[0].mxu0
    %v9506 = vadd.f32 %v9316, %v9505
    %v9507 = vpop.f32.mrb[0].mxu0
    %9508 = vmatprep.mubr.f32.mxu0 0.0
    %v9509 = vand.u32 %v9274, 4294901760
    %v9510 = vsub.f32 %v9274, %v9509
    %v9511 = vand.u32 %v9510, 4294901760
    %v9512 = vsub.f32 %v9510, %v9511
    %v9513 = vand.u32 %v9512, 4294901760
    %9514 = vmatmul.mubr.f32.gmra.mrb[0].mxu0 %v9513
    %v9515 = vpop.f32.mrb[0].mxu0
    %v9516 = vadd.f32 %v9316, %v9515
    %v9517 = vpop.f32.mrb[0].mxu0
    %9518 = vmatprep.mubr.f32.mxu0 0.0
    %v9519 = vand.u32 %v9275, 4294901760
    %v9520 = vsub.f32 %v9275, %v9519
    %v9521 = vand.u32 %v9520, 4294901760
    %v9522 = vsub.f32 %v9520, %v9521
    %v9523 = vand.u32 %v9522, 4294901760
    %9524 = vmatmul.mubr.f32.gmra.mrb[0].mxu0 %v9523
    %v9525 = vpop.f32.mrb[0].mxu0
    %v9526 = vadd.f32 %v9316, %v9525
    %v9527 = vpop.f32.mrb[0].mxu0
    %9528 = vmatprep.mubr.f32.mxu0 0.0
    %v9529 = vand.u32 %v9276, 4294901760
    %v9530 = vsub.f32 %v9276, %v9529
    %v9531 = vand.u32 %v9530, 4294901760
    %v9532 = vsub.f32 %v9530, %v9531
    %v9533 = vand.u32 %v9532, 4294901760
    %9534 = vmatmul.mubr.f32.gmra.mrb[0].mxu0 %v9533
    %v9535 = vpop.f32.mrb[0].mxu0
    %v9536 = vadd.f32 %v9316, %v9535
    %v9537 = vpop.f32.mrb[0].mxu0
    %9538 = vmatprep.mubr.f32.mxu0 0.0
    %v9539 = vand.u32 %v9277, 4294901760
    %v9540 = vsub.f32 %v9277, %v9539
    %v9541 = vand.u32 %v9540, 4294901760
    %v9542 = vsub.f32 %v9540, %v9541
    %v9543 = vand.u32 %v9542, 4294901760
    %9544 = vmatmul.mubr.f32.gmra.mrb[0].mxu0 %v9543
    %v9545 = vpop.f32.mrb[0].mxu0
    %v9546 = vadd.f32 %v9316, %v9545
    %v9547 = vpop.f32.mrb[0].mxu0
    %9548 = vmatprep.mubr.f32.mxu0 0.0
    %v9549 = vand.u32 %v9278, 4294901760
    %v9550 = vsub.f32 %v9278, %v9549
    %v9551 = vand.u32 %v9550, 4294901760
    %v9552 = vsub.f32 %v9550, %v9551
    %v9553 = vand.u32 %v9552, 4294901760
    %9554 = vmatmul.mubr.f32.gmra.mrb[0].mxu0 %v9553
    %v9555 = vpop.f32.mrb[0].mxu0
    %v9556 = vadd.f32 %v9316, %v9555
    %v9557 = vpop.f32.mrb[0].mxu0
    %9558 = vmatprep.mubr.f32.mxu0 0.0
    %v9559 = vand.u32 %v9279, 4294901760
    %v9560 = vsub.f32 %v9279, %v9559
    %v9561 = vand.u32 %v9560, 4294901760
    %v9562 = vsub.f32 %v9560, %v9561
    %v9563 = vand.u32 %v9562, 4294901760
    %9564 = vmatmul.mubr.f32.gmra.mrb[0].mxu0 %v9563
    %v9565 = vpop.f32.mrb[0].mxu0
    %v9566 = vadd.f32 %v9316, %v9565
    %v9567 = vpop.f32.mrb[0].mxu0
    %9568 = vmatprep.mubr.f32.mxu0 0.0
    %v9569 = vand.u32 %v9280, 4294901760
    %v9570 = vsub.f32 %v9280, %v9569
    %v9571 = vand.u32 %v9570, 4294901760
    %v9572 = vsub.f32 %v9570, %v9571
    %v9573 = vand.u32 %v9572, 4294901760
    %9574 = vmatmul.mubr.f32.gmra.mrb[0].mxu0 %v9573
    %v9575 = vpop.f32.mrb[0].mxu0
    %v9576 = vadd.f32 %v9316, %v9575
    %v9577 = vpop.f32.mrb[0].mxu0
    %9578 = vmatprep.mubr.f32.mxu0 0.0
    %v9579 = vand.u32 %v9281, 4294901760
    %v9580 = vsub.f32 %v9281, %v9579
    %v9581 = vand.u32 %v9580, 4294901760
    %v9582 = vsub.f32 %v9580, %v9581
    %v9583 = vand.u32 %v9582, 4294901760
    %9584 = vmatmul.mubr.f32.gmra.mrb[0].mxu0 %v9583
    %v9585 = vpop.f32.mrb[0].mxu0
    %v9586 = vadd.f32 %v9316, %v9585
    %v9587 = vpop.f32.mrb[0].mxu0
    %9588 = vmatprep.mubr.f32.mxu0 0.0
    %v9589 = vand.u32 %v9282, 4294901760
    %v9590 = vsub.f32 %v9282, %v9589
    %v9591 = vand.u32 %v9590, 4294901760
    %v9592 = vsub.f32 %v9590, %v9591
    %v9593 = vand.u32 %v9592, 4294901760
    %9594 = vmatmul.mubr.f32.gmra.mrb[0].mxu0 %v9593
    %v9595 = vpop.f32.mrb[0].mxu0
    %v9596 = vadd.f32 %v9316, %v9595
    %v9597 = vpop.f32.mrb[0].mxu0
    %9598 = vmatprep.mubr.f32.mxu0 0.0
    %v9599 = vand.u32 %v9283, 4294901760
    %v9600 = vsub.f32 %v9283, %v9599
    %v9601 = vand.u32 %v9600, 4294901760
    %v9602 = vsub.f32 %v9600, %v9601
    %v9603 = vand.u32 %v9602, 4294901760
    %9604 = vmatmul.mubr.f32.gmra.mrb[0].mxu0 %v9603
    %v9605 = vpop.f32.mrb[0].mxu0
    %v9606 = vadd.f32 %v9316, %v9605
    %v9607 = vpop.f32.mrb[0].mxu0
    %9608 = vmatprep.mubr.f32.mxu0 0.0
    %v9609 = vand.u32 %v9284, 4294901760
    %v9610 = vsub.f32 %v9284, %v9609
    %v9611 = vand.u32 %v9610, 4294901760
    %v9612 = vsub.f32 %v9610, %v9611
    %v9613 = vand.u32 %v9612, 4294901760
    %9614 = vmatmul.mubr.f32.gmra.mrb[0].mxu0 %v9613
    %v9615 = vpop.f32.mrb[0].mxu0
    %v9616 = vadd.f32 %v9316, %v9615
    %v9617 = vpop.f32.mrb[0].mxu0
    %9618 = vmatprep.mubr.f32.mxu0 0.0
    %v9619 = vand.u32 %v9285, 4294901760
    %v9620 = vsub.f32 %v9285, %v9619
    %v9621 = vand.u32 %v9620, 4294901760
    %v9622 = vsub.f32 %v9620, %v9621
    %v9623 = vand.u32 %v9622, 4294901760
    %9624 = vmatmul.mubr.f32.gmra.mrb[0].mxu0 %v9623
    %v9625 = vpop.f32.mrb[0].mxu0
    %v9626 = vadd.f32 %v9316, %v9625
    %v9627 = vpop.f32.mrb[0].mxu0
    %9628 = vmatprep.mubr.f32.mxu0 0.0
    %v9629 = vand.u32 %v9286, 4294901760
    %v9630 = vsub.f32 %v9286, %v9629
    %v9631 = vand.u32 %v9630, 4294901760
    %v9632 = vsub.f32 %v9630, %v9631
    %v9633 = vand.u32 %v9632, 4294901760
    %9634 = vmatmul.mubr.f32.gmra.mrb[0].mxu0 %v9633
    %v9635 = vpop.f32.mrb[0].mxu0
    %v9636 = vadd.f32 %v9316, %v9635
    %v9637 = vpop.f32.mrb[0].mxu0
    %9638 = vmatprep.mubr.f32.mxu0 0.0
    %v9639 = vand.u32 %v9287, 4294901760
    %v9640 = vsub.f32 %v9287, %v9639
    %v9641 = vand.u32 %v9640, 4294901760
    %v9642 = vsub.f32 %v9640, %v9641
    %v9643 = vand.u32 %v9642, 4294901760
    %9644 = vmatmul.mubr.f32.gmra.mrb[0].mxu0 %v9643
    %v9645 = vpop.f32.mrb[0].mxu0
    %v9646 = vadd.f32 %v9316, %v9645
    %v9647 = vpop.f32.mrb[0].mxu0
    %9648 = vmatprep.mubr.f32.mxu0 0.0
    %v9649 = vand.u32 %v9288, 4294901760
    %v9650 = vsub.f32 %v9288, %v9649
    %v9651 = vand.u32 %v9650, 4294901760
    %v9652 = vsub.f32 %v9650, %v9651
    %v9653 = vand.u32 %v9652, 4294901760
    %9654 = vmatmul.mubr.f32.gmra.mrb[0].mxu0 %v9653
    %v9655 = vpop.f32.mrb[0].mxu0
    %v9656 = vadd.f32 %v9316, %v9655
    %v9657 = vpop.f32.mrb[0].mxu0
    %9658 = vmatprep.mubr.f32.mxu0 0.0
    %v9659 = vand.u32 %v9289, 4294901760
    %v9660 = vsub.f32 %v9289, %v9659
    %v9661 = vand.u32 %v9660, 4294901760
    %v9662 = vsub.f32 %v9660, %v9661
    %v9663 = vand.u32 %v9662, 4294901760
    %9664 = vmatmul.mubr.f32.gmra.mrb[0].mxu0 %v9663
    %v9665 = vpop.f32.mrb[0].mxu0
    %v9666 = vadd.f32 %v9316, %v9665
    %v9667 = vpop.f32.mrb[0].mxu0
    %9668 = vmatprep.mubr.f32.mxu0 0.0
    %v9669 = vand.u32 %v9290, 4294901760
    %v9670 = vsub.f32 %v9290, %v9669
    %v9671 = vand.u32 %v9670, 4294901760
    %v9672 = vsub.f32 %v9670, %v9671
    %v9673 = vand.u32 %v9672, 4294901760
    %9674 = vmatmul.mubr.f32.gmra.mrb[0].mxu0 %v9673
    %v9675 = vpop.f32.mrb[0].mxu0
    %v9676 = vadd.f32 %v9316, %v9675
    %v9677 = vpop.f32.mrb[0].mxu0
    %9678 = vmatprep.mubr.f32.mxu0 0.0
    %v9679 = vand.u32 %v9291, 4294901760
    %v9680 = vsub.f32 %v9291, %v9679
    %v9681 = vand.u32 %v9680, 4294901760
    %v9682 = vsub.f32 %v9680, %v9681
    %v9683 = vand.u32 %v9682, 4294901760
    %9684 = vmatmul.mubr.f32.gmra.mrb[0].mxu0 %v9683
    %v9685 = vpop.f32.mrb[0].mxu0
    %v9686 = vadd.f32 %v9316, %v9685
    %v9687 = vpop.f32.mrb[0].mxu0
    %9688 = vmatprep.mubr.f32.mxu0 0.0
    %v9689 = vand.u32 %v9292, 4294901760
    %v9690 = vsub.f32 %v9292, %v9689
    %v9691 = vand.u32 %v9690, 4294901760
    %v9692 = vsub.f32 %v9690, %v9691
    %v9693 = vand.u32 %v9692, 4294901760
    %9694 = vmatmul.mubr.f32.gmra.mrb[0].mxu0 %v9693
    %v9695 = vpop.f32.mrb[0].mxu0
    %v9696 = vadd.f32 %v9316, %v9695
    %v9697 = vpop.f32.mrb[0].mxu0
    %9698 = vmatprep.mubr.f32.mxu0 0.0
    %v9699 = vand.u32 %v9293, 4294901760
    %v9700 = vsub.f32 %v9293, %v9699
    %v9701 = vand.u32 %v9700, 4294901760
    %v9702 = vsub.f32 %v9700, %v9701
    %v9703 = vand.u32 %v9702, 4294901760
    %9704 = vmatmul.mubr.f32.gmra.mrb[0].mxu0 %v9703
    %v9705 = vpop.f32.mrb[0].mxu0
    %v9706 = vadd.f32 %v9316, %v9705
    %v9707 = vpop.f32.mrb[0].mxu0
    %9708 = vmatprep.mubr.f32.mxu0 0.0
    %v9709 = vand.u32 %v9294, 4294901760
    %v9710 = vsub.f32 %v9294, %v9709
    %v9711 = vand.u32 %v9710, 4294901760
    %v9712 = vsub.f32 %v9710, %v9711
    %v9713 = vand.u32 %v9712, 4294901760
    %9714 = vmatmul.mubr.f32.gmra.mrb[0].mxu0 %v9713
    %v9715 = vpop.f32.mrb[0].mxu0
    %v9716 = vadd.f32 %v9316, %v9715
    %v9717 = vpop.f32.mrb[0].mxu0
    %9718 = vdwg.mxu0
    %9719 = vmatprep.subr.mxu0 0.0
    %v9720 = vand.u32 %v9295, 4294901760
    %v9721 = vsub.f32 %v9295, %v9720
    %v9722 = vand.u32 %v9721, 4294901760
    %v9723 = vsub.f32 %v9721, %v9722
    %v9724 = vand.u32 %v9723, 4294901760
    %9725 = vmatpush1.msra.mxu0 %v9724
    %9726 = vmatprep.subr.mxu0 0.0
    %v9727 = vand.u32 %v9296, 4294901760
    %v9728 = vsub.f32 %v9296, %v9727
    %v9729 = vand.u32 %v9728, 4294901760
    %v9730 = vsub.f32 %v9728, %v9729
    %v9731 = vand.u32 %v9730, 4294901760
    %9732 = vmatpush1.msra.mxu0 %v9731
    %9733 = vmatprep.subr.mxu0 0.0
    %v9734 = vand.u32 %v9297, 4294901760
    %v9735 = vsub.f32 %v9297, %v9734
    %v9736 = vand.u32 %v9735, 4294901760
    %v9737 = vsub.f32 %v9735, %v9736
    %v9738 = vand.u32 %v9737, 4294901760
    %9739 = vmatpush1.msra.mxu0 %v9738
    %9740 = vmatprep.subr.mxu0 0.0
    %v9741 = vand.u32 %v9298, 4294901760
    %v9742 = vsub.f32 %v9298, %v9741
    %v9743 = vand.u32 %v9742, 4294901760
    %v9744 = vsub.f32 %v9742, %v9743
    %v9745 = vand.u32 %v9744, 4294901760
    %9746 = vmatpush1.msra.mxu0 %v9745
    %9747 = vmatprep.subr.mxu0 0.0
    %v9748 = vand.u32 %v9299, 4294901760
    %v9749 = vsub.f32 %v9299, %v9748
    %v9750 = vand.u32 %v9749, 4294901760
    %v9751 = vsub.f32 %v9749, %v9750
    %v9752 = vand.u32 %v9751, 4294901760
    %9753 = vmatpush1.msra.mxu0 %v9752
    %9754 = vmatprep.subr.mxu0 0.0
    %v9755 = vand.u32 %v9300, 4294901760
    %v9756 = vsub.f32 %v9300, %v9755
    %v9757 = vand.u32 %v9756, 4294901760
    %v9758 = vsub.f32 %v9756, %v9757
    %v9759 = vand.u32 %v9758, 4294901760
    %9760 = vmatpush1.msra.mxu0 %v9759
    %9761 = vmatprep.subr.mxu0 0.0
    %v9762 = vand.u32 %v9301, 4294901760
    %v9763 = vsub.f32 %v9301, %v9762
    %v9764 = vand.u32 %v9763, 4294901760
    %v9765 = vsub.f32 %v9763, %v9764
    %v9766 = vand.u32 %v9765, 4294901760
    %9767 = vmatpush1.msra.mxu0 %v9766
    %9768 = vmatprep.subr.mxu0 0.0
    %v9769 = vand.u32 %v9302, 4294901760
    %v9770 = vsub.f32 %v9302, %v9769
    %v9771 = vand.u32 %v9770, 4294901760
    %v9772 = vsub.f32 %v9770, %v9771
    %v9773 = vand.u32 %v9772, 4294901760
    %9774 = vmatpush1.msra.mxu0 %v9773
    %9775 = vmatprep.subr.mxu0 0.0
    %v9776 = vand.u32 %v9303, 4294901760
    %v9777 = vsub.f32 %v9303, %v9776
    %v9778 = vand.u32 %v9777, 4294901760
    %v9779 = vsub.f32 %v9777, %v9778
    %v9780 = vand.u32 %v9779, 4294901760
    %9781 = vmatpush1.msra.mxu0 %v9780
    %9782 = vmatprep.subr.mxu0 0.0
    %v9783 = vand.u32 %v9304, 4294901760
    %v9784 = vsub.f32 %v9304, %v9783
    %v9785 = vand.u32 %v9784, 4294901760
    %v9786 = vsub.f32 %v9784, %v9785
    %v9787 = vand.u32 %v9786, 4294901760
    %9788 = vmatpush1.msra.mxu0 %v9787
    %9789 = vmatprep.subr.mxu0 0.0
    %v9790 = vand.u32 %v9305, 4294901760
    %v9791 = vsub.f32 %v9305, %v9790
    %v9792 = vand.u32 %v9791, 4294901760
    %v9793 = vsub.f32 %v9791, %v9792
    %v9794 = vand.u32 %v9793, 4294901760
    %9795 = vmatpush1.msra.mxu0 %v9794
    %9796 = vmatprep.subr.mxu0 0.0
    %v9797 = vand.u32 %v9306, 4294901760
    %v9798 = vsub.f32 %v9306, %v9797
    %v9799 = vand.u32 %v9798, 4294901760
    %v9800 = vsub.f32 %v9798, %v9799
    %v9801 = vand.u32 %v9800, 4294901760
    %9802 = vmatpush1.msra.mxu0 %v9801
    %9803 = vmatprep.subr.mxu0 0.0
    %v9804 = vand.u32 %v9307, 4294901760
    %v9805 = vsub.f32 %v9307, %v9804
    %v9806 = vand.u32 %v9805, 4294901760
    %v9807 = vsub.f32 %v9805, %v9806
    %v9808 = vand.u32 %v9807, 4294901760
    %9809 = vmatpush1.msra.mxu0 %v9808
    %9810 = vmatprep.subr.mxu0 0.0
    %v9811 = vand.u32 %v9308, 4294901760
    %v9812 = vsub.f32 %v9308, %v9811
    %v9813 = vand.u32 %v9812, 4294901760
    %v9814 = vsub.f32 %v9812, %v9813
    %v9815 = vand.u32 %v9814, 4294901760
    %9816 = vmatpush1.msra.mxu0 %v9815
    %9817 = vmatprep.subr.mxu0 0.0
    %v9818 = vand.u32 %v9309, 4294901760
    %v9819 = vsub.f32 %v9309, %v9818
    %v9820 = vand.u32 %v9819, 4294901760
    %v9821 = vsub.f32 %v9819, %v9820
    %v9822 = vand.u32 %v9821, 4294901760
    %9823 = vmatpush1.msra.mxu0 %v9822
    %9824 = vmatprep.subr.mxu0 0.0
    %v9825 = vand.u32 %v9310, 4294901760
    %v9826 = vsub.f32 %v9310, %v9825
    %v9827 = vand.u32 %v9826, 4294901760
    %v9828 = vsub.f32 %v9826, %v9827
    %v9829 = vand.u32 %v9828, 4294901760
    %9830 = vmatpush1.msra.mxu0 %v9829
    %9831 = vmatprep.subr.mxu0 0.0
    %9832 = vmatpush1.msra.mxu0 0.0
    %9833 = vmatprep.subr.mxu0 0.0
    %9834 = vmatpush1.msra.mxu0 0.0
    %9835 = vmatprep.subr.mxu0 0.0
    %9836 = vmatpush1.msra.mxu0 0.0
    %9837 = vmatprep.subr.mxu0 0.0
    %9838 = vmatpush1.msra.mxu0 0.0
    %9839 = vmatprep.subr.mxu0 0.0
    %9840 = vmatpush1.msra.mxu0 0.0
    %9841 = vmatprep.subr.mxu0 0.0
    %9842 = vmatpush1.msra.mxu0 0.0
    %9843 = vmatprep.subr.mxu0 0.0
    %9844 = vmatpush1.msra.mxu0 0.0
    %9845 = vmatprep.subr.mxu0 0.0
    %9846 = vmatpush1.msra.mxu0 0.0
    %9847 = vmatprep.subr.mxu0 0.0
    %9848 = vmatpush1.msra.mxu0 0.0
    %9849 = vmatprep.subr.mxu0 0.0
    %9850 = vmatpush1.msra.mxu0 0.0
    %9851 = vmatprep.subr.mxu0 0.0
    %9852 = vmatpush1.msra.mxu0 0.0
    %9853 = vmatprep.subr.mxu0 0.0
    %9854 = vmatpush1.msra.mxu0 0.0
    %9855 = vmatprep.subr.mxu0 0.0
    %9856 = vmatpush1.msra.mxu0 0.0
    %9857 = vmatprep.subr.mxu0 0.0
    %9858 = vmatpush1.msra.mxu0 0.0
    %9859 = vmatprep.subr.mxu0 0.0
    %9860 = vmatpush1.msra.mxu0 0.0
    %9861 = vmatprep.subr.mxu0 0.0
    %9862 = vmatpush1.msra.mxu0 0.0
    %9863 = vmatprep.mubr.f32.mxu0 0.0
    %v9864 = vand.u32 %v9263, 4294901760
    %9865 = vmatmul.mubr.f32.gmra.mrb[0].mxu0 %v9864
    %v9866 = vpop.f32.mrb[0].mxu0
    %v9867 = vadd.f32 %v9406, %v9866
    %v9868 = vpop.f32.mrb[0].mxu0
    %9869 = vmatprep.mubr.f32.mxu0 0.0
    %v9870 = vand.u32 %v9264, 4294901760
    %9871 = vmatmul.mubr.f32.gmra.mrb[0].mxu0 %v9870
    %v9872 = vpop.f32.mrb[0].mxu0
    %v9873 = vadd.f32 %v9416, %v9872
    %v9874 = vpop.f32.mrb[0].mxu0
    %9875 = vmatprep.mubr.f32.mxu0 0.0
    %v9876 = vand.u32 %v9265, 4294901760
    %9877 = vmatmul.mubr.f32.gmra.mrb[0].mxu0 %v9876
    %v9878 = vpop.f32.mrb[0].mxu0
    %v9879 = vadd.f32 %v9426, %v9878
    %v9880 = vpop.f32.mrb[0].mxu0
    %9881 = vmatprep.mubr.f32.mxu0 0.0
    %v9882 = vand.u32 %v9266, 4294901760
    %9883 = vmatmul.mubr.f32.gmra.mrb[0].mxu0 %v9882
    %v9884 = vpop.f32.mrb[0].mxu0
    %v9885 = vadd.f32 %v9436, %v9884
    %v9886 = vpop.f32.mrb[0].mxu0
    %9887 = vmatprep.mubr.f32.mxu0 0.0
    %v9888 = vand.u32 %v9267, 4294901760
    %9889 = vmatmul.mubr.f32.gmra.mrb[0].mxu0 %v9888
    %v9890 = vpop.f32.mrb[0].mxu0
    %v9891 = vadd.f32 %v9446, %v9890
    %v9892 = vpop.f32.mrb[0].mxu0
    %9893 = vmatprep.mubr.f32.mxu0 0.0
    %v9894 = vand.u32 %v9268, 4294901760
    %9895 = vmatmul.mubr.f32.gmra.mrb[0].mxu0 %v9894
    %v9896 = vpop.f32.mrb[0].mxu0
    %v9897 = vadd.f32 %v9456, %v9896
    %v9898 = vpop.f32.mrb[0].mxu0
    %9899 = vmatprep.mubr.f32.mxu0 0.0
    %v9900 = vand.u32 %v9269, 4294901760
    %9901 = vmatmul.mubr.f32.gmra.mrb[0].mxu0 %v9900
    %v9902 = vpop.f32.mrb[0].mxu0
    %v9903 = vadd.f32 %v9466, %v9902
    %v9904 = vpop.f32.mrb[0].mxu0
    %9905 = vmatprep.mubr.f32.mxu0 0.0
    %v9906 = vand.u32 %v9270, 4294901760
    %9907 = vmatmul.mubr.f32.gmra.mrb[0].mxu0 %v9906
    %v9908 = vpop.f32.mrb[0].mxu0
    %v9909 = vadd.f32 %v9476, %v9908
    %v9910 = vpop.f32.mrb[0].mxu0
    %9911 = vmatprep.mubr.f32.mxu0 0.0
    %v9912 = vand.u32 %v9271, 4294901760
    %9913 = vmatmul.mubr.f32.gmra.mrb[0].mxu0 %v9912
    %v9914 = vpop.f32.mrb[0].mxu0
    %v9915 = vadd.f32 %v9486, %v9914
    %v9916 = vpop.f32.mrb[0].mxu0
    %9917 = vmatprep.mubr.f32.mxu0 0.0
    %v9918 = vand.u32 %v9272, 4294901760
    %9919 = vmatmul.mubr.f32.gmra.mrb[0].mxu0 %v9918
    %v9920 = vpop.f32.mrb[0].mxu0
    %v9921 = vadd.f32 %v9496, %v9920
    %v9922 = vpop.f32.mrb[0].mxu0
    %9923 = vmatprep.mubr.f32.mxu0 0.0
    %v9924 = vand.u32 %v9273, 4294901760
    %9925 = vmatmul.mubr.f32.gmra.mrb[0].mxu0 %v9924
    %v9926 = vpop.f32.mrb[0].mxu0
    %v9927 = vadd.f32 %v9506, %v9926
    %v9928 = vpop.f32.mrb[0].mxu0
    %9929 = vmatprep.mubr.f32.mxu0 0.0
    %v9930 = vand.u32 %v9274, 4294901760
    %9931 = vmatmul.mubr.f32.gmra.mrb[0].mxu0 %v9930
    %v9932 = vpop.f32.mrb[0].mxu0
    %v9933 = vadd.f32 %v9516, %v9932
    %v9934 = vpop.f32.mrb[0].mxu0
    %9935 = vmatprep.mubr.f32.mxu0 0.0
    %v9936 = vand.u32 %v9275, 4294901760
    %9937 = vmatmul.mubr.f32.gmra.mrb[0].mxu0 %v9936
    %v9938 = vpop.f32.mrb[0].mxu0
    %v9939 = vadd.f32 %v9526, %v9938
    %v9940 = vpop.f32.mrb[0].mxu0
    %9941 = vmatprep.mubr.f32.mxu0 0.0
    %v9942 = vand.u32 %v9276, 4294901760
    %9943 = vmatmul.mubr.f32.gmra.mrb[0].mxu0 %v9942
    %v9944 = vpop.f32.mrb[0].mxu0
    %v9945 = vadd.f32 %v9536, %v9944
    %v9946 = vpop.f32.mrb[0].mxu0
    %9947 = vmatprep.mubr.f32.mxu0 0.0
    %v9948 = vand.u32 %v9277, 4294901760
    %9949 = vmatmul.mubr.f32.gmra.mrb[0].mxu0 %v9948
    %v9950 = vpop.f32.mrb[0].mxu0
    %v9951 = vadd.f32 %v9546, %v9950
    %v9952 = vpop.f32.mrb[0].mxu0
    %9953 = vmatprep.mubr.f32.mxu0 0.0
    %v9954 = vand.u32 %v9278, 4294901760
    %9955 = vmatmul.mubr.f32.gmra.mrb[0].mxu0 %v9954
    %v9956 = vpop.f32.mrb[0].mxu0
    %v9957 = vadd.f32 %v9556, %v9956
    %v9958 = vpop.f32.mrb[0].mxu0
    %9959 = vmatprep.mubr.f32.mxu0 0.0
    %v9960 = vand.u32 %v9279, 4294901760
    %9961 = vmatmul.mubr.f32.gmra.mrb[0].mxu0 %v9960
    %v9962 = vpop.f32.mrb[0].mxu0
    %v9963 = vadd.f32 %v9566, %v9962
    %v9964 = vpop.f32.mrb[0].mxu0
    %9965 = vmatprep.mubr.f32.mxu0 0.0
    %v9966 = vand.u32 %v9280, 4294901760
    %9967 = vmatmul.mubr.f32.gmra.mrb[0].mxu0 %v9966
    %v9968 = vpop.f32.mrb[0].mxu0
    %v9969 = vadd.f32 %v9576, %v9968
    %v9970 = vpop.f32.mrb[0].mxu0
    %9971 = vmatprep.mubr.f32.mxu0 0.0
    %v9972 = vand.u32 %v9281, 4294901760
    %9973 = vmatmul.mubr.f32.gmra.mrb[0].mxu0 %v9972
    %v9974 = vpop.f32.mrb[0].mxu0
    %v9975 = vadd.f32 %v9586, %v9974
    %v9976 = vpop.f32.mrb[0].mxu0
    %9977 = vmatprep.mubr.f32.mxu0 0.0
    %v9978 = vand.u32 %v9282, 4294901760
    %9979 = vmatmul.mubr.f32.gmra.mrb[0].mxu0 %v9978
    %v9980 = vpop.f32.mrb[0].mxu0
    %v9981 = vadd.f32 %v9596, %v9980
    %v9982 = vpop.f32.mrb[0].mxu0
    %9983 = vmatprep.mubr.f32.mxu0 0.0
    %v9984 = vand.u32 %v9283, 4294901760
    %9985 = vmatmul.mubr.f32.gmra.mrb[0].mxu0 %v9984
    %v9986 = vpop.f32.mrb[0].mxu0
    %v9987 = vadd.f32 %v9606, %v9986
    %v9988 = vpop.f32.mrb[0].mxu0
    %9989 = vmatprep.mubr.f32.mxu0 0.0
    %v9990 = vand.u32 %v9284, 4294901760
    %9991 = vmatmul.mubr.f32.gmra.mrb[0].mxu0 %v9990
    %v9992 = vpop.f32.mrb[0].mxu0
    %v9993 = vadd.f32 %v9616, %v9992
    %v9994 = vpop.f32.mrb[0].mxu0
    %9995 = vmatprep.mubr.f32.mxu0 0.0
    %v9996 = vand.u32 %v9285, 4294901760
    %9997 = vmatmul.mubr.f32.gmra.mrb[0].mxu0 %v9996
    %v9998 = vpop.f32.mrb[0].mxu0
    %v9999 = vadd.f32 %v9626, %v9998
    %v10000 = vpop.f32.mrb[0].mxu0
    %10001 = vmatprep.mubr.f32.mxu0 0.0
    %v10002 = vand.u32 %v9286, 4294901760
    %10003 = vmatmul.mubr.f32.gmra.mrb[0].mxu0 %v10002
    %v10004 = vpop.f32.mrb[0].mxu0
    %v10005 = vadd.f32 %v9636, %v10004
    %v10006 = vpop.f32.mrb[0].mxu0
    %10007 = vmatprep.mubr.f32.mxu0 0.0
    %v10008 = vand.u32 %v9287, 4294901760
    %10009 = vmatmul.mubr.f32.gmra.mrb[0].mxu0 %v10008
    %v10010 = vpop.f32.mrb[0].mxu0
    %v10011 = vadd.f32 %v9646, %v10010
    %v10012 = vpop.f32.mrb[0].mxu0
    %10013 = vmatprep.mubr.f32.mxu0 0.0
    %v10014 = vand.u32 %v9288, 4294901760
    %10015 = vmatmul.mubr.f32.gmra.mrb[0].mxu0 %v10014
    %v10016 = vpop.f32.mrb[0].mxu0
    %v10017 = vadd.f32 %v9656, %v10016
    %v10018 = vpop.f32.mrb[0].mxu0
    %10019 = vmatprep.mubr.f32.mxu0 0.0
    %v10020 = vand.u32 %v9289, 4294901760
    %10021 = vmatmul.mubr.f32.gmra.mrb[0].mxu0 %v10020
    %v10022 = vpop.f32.mrb[0].mxu0
    %v10023 = vadd.f32 %v9666, %v10022
    %v10024 = vpop.f32.mrb[0].mxu0
    %10025 = vmatprep.mubr.f32.mxu0 0.0
    %v10026 = vand.u32 %v9290, 4294901760
    %10027 = vmatmul.mubr.f32.gmra.mrb[0].mxu0 %v10026
    %v10028 = vpop.f32.mrb[0].mxu0
    %v10029 = vadd.f32 %v9676, %v10028
    %v10030 = vpop.f32.mrb[0].mxu0
    %10031 = vmatprep.mubr.f32.mxu0 0.0
    %v10032 = vand.u32 %v9291, 4294901760
    %10033 = vmatmul.mubr.f32.gmra.mrb[0].mxu0 %v10032
    %v10034 = vpop.f32.mrb[0].mxu0
    %v10035 = vadd.f32 %v9686, %v10034
    %v10036 = vpop.f32.mrb[0].mxu0
    %10037 = vmatprep.mubr.f32.mxu0 0.0
    %v10038 = vand.u32 %v9292, 4294901760
    %10039 = vmatmul.mubr.f32.gmra.mrb[0].mxu0 %v10038
    %v10040 = vpop.f32.mrb[0].mxu0
    %v10041 = vadd.f32 %v9696, %v10040
    %v10042 = vpop.f32.mrb[0].mxu0
    %10043 = vmatprep.mubr.f32.mxu0 0.0
    %v10044 = vand.u32 %v9293, 4294901760
    %10045 = vmatmul.mubr.f32.gmra.mrb[0].mxu0 %v10044
    %v10046 = vpop.f32.mrb[0].mxu0
    %v10047 = vadd.f32 %v9706, %v10046
    %v10048 = vpop.f32.mrb[0].mxu0
    %10049 = vmatprep.mubr.f32.mxu0 0.0
    %v10050 = vand.u32 %v9294, 4294901760
    %10051 = vmatmul.mubr.f32.gmra.mrb[0].mxu0 %v10050
    %v10052 = vpop.f32.mrb[0].mxu0
    %v10053 = vadd.f32 %v9716, %v10052
    %v10054 = vpop.f32.mrb[0].mxu0
    %10055 = vdwg.mxu0
    %10056 = vmatprep.subr.mxu0 0.0
    %v10057 = vand.u32 %v9295, 4294901760
    %v10058 = vsub.f32 %v9295, %v10057
    %10059 = vmatpush1.msra.mxu0 %v10058
    %10060 = vmatprep.subr.mxu0 0.0
    %v10061 = vand.u32 %v9296, 4294901760
    %v10062 = vsub.f32 %v9296, %v10061
    %10063 = vmatpush1.msra.mxu0 %v10062
    %10064 = vmatprep.subr.mxu0 0.0
    %v10065 = vand.u32 %v9297, 4294901760
    %v10066 = vsub.f32 %v9297, %v10065
    %10067 = vmatpush1.msra.mxu0 %v10066
    %10068 = vmatprep.subr.mxu0 0.0
    %v10069 = vand.u32 %v9298, 4294901760
    %v10070 = vsub.f32 %v9298, %v10069
    %10071 = vmatpush1.msra.mxu0 %v10070
    %10072 = vmatprep.subr.mxu0 0.0
    %v10073 = vand.u32 %v9299, 4294901760
    %v10074 = vsub.f32 %v9299, %v10073
    %10075 = vmatpush1.msra.mxu0 %v10074
    %10076 = vmatprep.subr.mxu0 0.0
    %v10077 = vand.u32 %v9300, 4294901760
    %v10078 = vsub.f32 %v9300, %v10077
    %10079 = vmatpush1.msra.mxu0 %v10078
    %10080 = vmatprep.subr.mxu0 0.0
    %v10081 = vand.u32 %v9301, 4294901760
    %v10082 = vsub.f32 %v9301, %v10081
    %10083 = vmatpush1.msra.mxu0 %v10082
    %10084 = vmatprep.subr.mxu0 0.0
    %v10085 = vand.u32 %v9302, 4294901760
    %v10086 = vsub.f32 %v9302, %v10085
    %10087 = vmatpush1.msra.mxu0 %v10086
    %10088 = vmatprep.subr.mxu0 0.0
    %v10089 = vand.u32 %v9303, 4294901760
    %v10090 = vsub.f32 %v9303, %v10089
    %10091 = vmatpush1.msra.mxu0 %v10090
    %10092 = vmatprep.subr.mxu0 0.0
    %v10093 = vand.u32 %v9304, 4294901760
    %v10094 = vsub.f32 %v9304, %v10093
    %10095 = vmatpush1.msra.mxu0 %v10094
    %10096 = vmatprep.subr.mxu0 0.0
    %v10097 = vand.u32 %v9305, 4294901760
    %v10098 = vsub.f32 %v9305, %v10097
    %10099 = vmatpush1.msra.mxu0 %v10098
    %10100 = vmatprep.subr.mxu0 0.0
    %v10101 = vand.u32 %v9306, 4294901760
    %v10102 = vsub.f32 %v9306, %v10101
    %10103 = vmatpush1.msra.mxu0 %v10102
    %10104 = vmatprep.subr.mxu0 0.0
    %v10105 = vand.u32 %v9307, 4294901760
    %v10106 = vsub.f32 %v9307, %v10105
    %10107 = vmatpush1.msra.mxu0 %v10106
    %10108 = vmatprep.subr.mxu0 0.0
    %v10109 = vand.u32 %v9308, 4294901760
    %v10110 = vsub.f32 %v9308, %v10109
    %10111 = vmatpush1.msra.mxu0 %v10110
    %10112 = vmatprep.subr.mxu0 0.0
    %v10113 = vand.u32 %v9309, 4294901760
    %v10114 = vsub.f32 %v9309, %v10113
    %10115 = vmatpush1.msra.mxu0 %v10114
    %10116 = vmatprep.subr.mxu0 0.0
    %v10117 = vand.u32 %v9310, 4294901760
    %v10118 = vsub.f32 %v9310, %v10117
    %10119 = vmatpush1.msra.mxu0 %v10118
    %10120 = vmatprep.subr.mxu0 0.0
    %10121 = vmatpush1.msra.mxu0 0.0
    %10122 = vmatprep.subr.mxu0 0.0
    %10123 = vmatpush1.msra.mxu0 0.0
    %10124 = vmatprep.subr.mxu0 0.0
    %10125 = vmatpush1.msra.mxu0 0.0
    %10126 = vmatprep.subr.mxu0 0.0
    %10127 = vmatpush1.msra.mxu0 0.0
    %10128 = vmatprep.subr.mxu0 0.0
    %10129 = vmatpush1.msra.mxu0 0.0
    %10130 = vmatprep.subr.mxu0 0.0
    %10131 = vmatpush1.msra.mxu0 0.0
    %10132 = vmatprep.subr.mxu0 0.0
    %10133 = vmatpush1.msra.mxu0 0.0
    %10134 = vmatprep.subr.mxu0 0.0
    %10135 = vmatpush1.msra.mxu0 0.0
    %10136 = vmatprep.subr.mxu0 0.0
    %10137 = vmatpush1.msra.mxu0 0.0
    %10138 = vmatprep.subr.mxu0 0.0
    %10139 = vmatpush1.msra.mxu0 0.0
    %10140 = vmatprep.subr.mxu0 0.0
    %10141 = vmatpush1.msra.mxu0 0.0
    %10142 = vmatprep.subr.mxu0 0.0
    %10143 = vmatpush1.msra.mxu0 0.0
    %10144 = vmatprep.subr.mxu0 0.0
    %10145 = vmatpush1.msra.mxu0 0.0
    %10146 = vmatprep.subr.mxu0 0.0
    %10147 = vmatpush1.msra.mxu0 0.0
    %10148 = vmatprep.subr.mxu0 0.0
    %10149 = vmatpush1.msra.mxu0 0.0
    %10150 = vmatprep.subr.mxu0 0.0
    %10151 = vmatpush1.msra.mxu0 0.0
    %10152 = vmatprep.mubr.f32.mxu0 0.0
    %v10153 = vand.u32 %v9263, 4294901760
    %v10154 = vsub.f32 %v9263, %v10153
    %10155 = vmatmul.mubr.f32.gmra.mrb[0].mxu0 %v10154
    %v10156 = vpop.f32.mrb[0].mxu0
    %v10157 = vadd.f32 %v9867, %v10156
    %v10158 = vpop.f32.mrb[0].mxu0
    %10159 = vmatprep.mubr.f32.mxu0 0.0
    %v10160 = vand.u32 %v9264, 4294901760
    %v10161 = vsub.f32 %v9264, %v10160
    %10162 = vmatmul.mubr.f32.gmra.mrb[0].mxu0 %v10161
    %v10163 = vpop.f32.mrb[0].mxu0
    %v10164 = vadd.f32 %v9873, %v10163
    %v10165 = vpop.f32.mrb[0].mxu0
    %10166 = vmatprep.mubr.f32.mxu0 0.0
    %v10167 = vand.u32 %v9265, 4294901760
    %v10168 = vsub.f32 %v9265, %v10167
    %10169 = vmatmul.mubr.f32.gmra.mrb[0].mxu0 %v10168
    %v10170 = vpop.f32.mrb[0].mxu0
    %v10171 = vadd.f32 %v9879, %v10170
    %v10172 = vpop.f32.mrb[0].mxu0
    %10173 = vmatprep.mubr.f32.mxu0 0.0
    %v10174 = vand.u32 %v9266, 4294901760
    %v10175 = vsub.f32 %v9266, %v10174
    %10176 = vmatmul.mubr.f32.gmra.mrb[0].mxu0 %v10175
    %v10177 = vpop.f32.mrb[0].mxu0
    %v10178 = vadd.f32 %v9885, %v10177
    %v10179 = vpop.f32.mrb[0].mxu0
    %10180 = vmatprep.mubr.f32.mxu0 0.0
    %v10181 = vand.u32 %v9267, 4294901760
    %v10182 = vsub.f32 %v9267, %v10181
    %10183 = vmatmul.mubr.f32.gmra.mrb[0].mxu0 %v10182
    %v10184 = vpop.f32.mrb[0].mxu0
    %v10185 = vadd.f32 %v9891, %v10184
    %v10186 = vpop.f32.mrb[0].mxu0
    %10187 = vmatprep.mubr.f32.mxu0 0.0
    %v10188 = vand.u32 %v9268, 4294901760
    %v10189 = vsub.f32 %v9268, %v10188
    %10190 = vmatmul.mubr.f32.gmra.mrb[0].mxu0 %v10189
    %v10191 = vpop.f32.mrb[0].mxu0
    %v10192 = vadd.f32 %v9897, %v10191
    %v10193 = vpop.f32.mrb[0].mxu0
    %10194 = vmatprep.mubr.f32.mxu0 0.0
    %v10195 = vand.u32 %v9269, 4294901760
    %v10196 = vsub.f32 %v9269, %v10195
    %10197 = vmatmul.mubr.f32.gmra.mrb[0].mxu0 %v10196
    %v10198 = vpop.f32.mrb[0].mxu0
    %v10199 = vadd.f32 %v9903, %v10198
    %v10200 = vpop.f32.mrb[0].mxu0
    %10201 = vmatprep.mubr.f32.mxu0 0.0
    %v10202 = vand.u32 %v9270, 4294901760
    %v10203 = vsub.f32 %v9270, %v10202
    %10204 = vmatmul.mubr.f32.gmra.mrb[0].mxu0 %v10203
    %v10205 = vpop.f32.mrb[0].mxu0
    %v10206 = vadd.f32 %v9909, %v10205
    %v10207 = vpop.f32.mrb[0].mxu0
    %10208 = vmatprep.mubr.f32.mxu0 0.0
    %v10209 = vand.u32 %v9271, 4294901760
    %v10210 = vsub.f32 %v9271, %v10209
    %10211 = vmatmul.mubr.f32.gmra.mrb[0].mxu0 %v10210
    %v10212 = vpop.f32.mrb[0].mxu0
    %v10213 = vadd.f32 %v9915, %v10212
    %v10214 = vpop.f32.mrb[0].mxu0
    %10215 = vmatprep.mubr.f32.mxu0 0.0
    %v10216 = vand.u32 %v9272, 4294901760
    %v10217 = vsub.f32 %v9272, %v10216
    %10218 = vmatmul.mubr.f32.gmra.mrb[0].mxu0 %v10217
    %v10219 = vpop.f32.mrb[0].mxu0
    %v10220 = vadd.f32 %v9921, %v10219
    %v10221 = vpop.f32.mrb[0].mxu0
    %10222 = vmatprep.mubr.f32.mxu0 0.0
    %v10223 = vand.u32 %v9273, 4294901760
    %v10224 = vsub.f32 %v9273, %v10223
    %10225 = vmatmul.mubr.f32.gmra.mrb[0].mxu0 %v10224
    %v10226 = vpop.f32.mrb[0].mxu0
    %v10227 = vadd.f32 %v9927, %v10226
    %v10228 = vpop.f32.mrb[0].mxu0
    %10229 = vmatprep.mubr.f32.mxu0 0.0
    %v10230 = vand.u32 %v9274, 4294901760
    %v10231 = vsub.f32 %v9274, %v10230
    %10232 = vmatmul.mubr.f32.gmra.mrb[0].mxu0 %v10231
    %v10233 = vpop.f32.mrb[0].mxu0
    %v10234 = vadd.f32 %v9933, %v10233
    %v10235 = vpop.f32.mrb[0].mxu0
    %10236 = vmatprep.mubr.f32.mxu0 0.0
    %v10237 = vand.u32 %v9275, 4294901760
    %v10238 = vsub.f32 %v9275, %v10237
    %10239 = vmatmul.mubr.f32.gmra.mrb[0].mxu0 %v10238
    %v10240 = vpop.f32.mrb[0].mxu0
    %v10241 = vadd.f32 %v9939, %v10240
    %v10242 = vpop.f32.mrb[0].mxu0
    %10243 = vmatprep.mubr.f32.mxu0 0.0
    %v10244 = vand.u32 %v9276, 4294901760
    %v10245 = vsub.f32 %v9276, %v10244
    %10246 = vmatmul.mubr.f32.gmra.mrb[0].mxu0 %v10245
    %v10247 = vpop.f32.mrb[0].mxu0
    %v10248 = vadd.f32 %v9945, %v10247
    %v10249 = vpop.f32.mrb[0].mxu0
    %10250 = vmatprep.mubr.f32.mxu0 0.0
    %v10251 = vand.u32 %v9277, 4294901760
    %v10252 = vsub.f32 %v9277, %v10251
    %10253 = vmatmul.mubr.f32.gmra.mrb[0].mxu0 %v10252
    %v10254 = vpop.f32.mrb[0].mxu0
    %v10255 = vadd.f32 %v9951, %v10254
    %v10256 = vpop.f32.mrb[0].mxu0
    %10257 = vmatprep.mubr.f32.mxu0 0.0
    %v10258 = vand.u32 %v9278, 4294901760
    %v10259 = vsub.f32 %v9278, %v10258
    %10260 = vmatmul.mubr.f32.gmra.mrb[0].mxu0 %v10259
    %v10261 = vpop.f32.mrb[0].mxu0
    %v10262 = vadd.f32 %v9957, %v10261
    %v10263 = vpop.f32.mrb[0].mxu0
    %10264 = vmatprep.mubr.f32.mxu0 0.0
    %v10265 = vand.u32 %v9279, 4294901760
    %v10266 = vsub.f32 %v9279, %v10265
    %10267 = vmatmul.mubr.f32.gmra.mrb[0].mxu0 %v10266
    %v10268 = vpop.f32.mrb[0].mxu0
    %v10269 = vadd.f32 %v9963, %v10268
    %v10270 = vpop.f32.mrb[0].mxu0
    %10271 = vmatprep.mubr.f32.mxu0 0.0
    %v10272 = vand.u32 %v9280, 4294901760
    %v10273 = vsub.f32 %v9280, %v10272
    %10274 = vmatmul.mubr.f32.gmra.mrb[0].mxu0 %v10273
    %v10275 = vpop.f32.mrb[0].mxu0
    %v10276 = vadd.f32 %v9969, %v10275
    %v10277 = vpop.f32.mrb[0].mxu0
    %10278 = vmatprep.mubr.f32.mxu0 0.0
    %v10279 = vand.u32 %v9281, 4294901760
    %v10280 = vsub.f32 %v9281, %v10279
    %10281 = vmatmul.mubr.f32.gmra.mrb[0].mxu0 %v10280
    %v10282 = vpop.f32.mrb[0].mxu0
    %v10283 = vadd.f32 %v9975, %v10282
    %v10284 = vpop.f32.mrb[0].mxu0
    %10285 = vmatprep.mubr.f32.mxu0 0.0
    %v10286 = vand.u32 %v9282, 4294901760
    %v10287 = vsub.f32 %v9282, %v10286
    %10288 = vmatmul.mubr.f32.gmra.mrb[0].mxu0 %v10287
    %v10289 = vpop.f32.mrb[0].mxu0
    %v10290 = vadd.f32 %v9981, %v10289
    %v10291 = vpop.f32.mrb[0].mxu0
    %10292 = vmatprep.mubr.f32.mxu0 0.0
    %v10293 = vand.u32 %v9283, 4294901760
    %v10294 = vsub.f32 %v9283, %v10293
    %10295 = vmatmul.mubr.f32.gmra.mrb[0].mxu0 %v10294
    %v10296 = vpop.f32.mrb[0].mxu0
    %v10297 = vadd.f32 %v9987, %v10296
    %v10298 = vpop.f32.mrb[0].mxu0
    %10299 = vmatprep.mubr.f32.mxu0 0.0
    %v10300 = vand.u32 %v9284, 4294901760
    %v10301 = vsub.f32 %v9284, %v10300
    %10302 = vmatmul.mubr.f32.gmra.mrb[0].mxu0 %v10301
    %v10303 = vpop.f32.mrb[0].mxu0
    %v10304 = vadd.f32 %v9993, %v10303
    %v10305 = vpop.f32.mrb[0].mxu0
    %10306 = vmatprep.mubr.f32.mxu0 0.0
    %v10307 = vand.u32 %v9285, 4294901760
    %v10308 = vsub.f32 %v9285, %v10307
    %10309 = vmatmul.mubr.f32.gmra.mrb[0].mxu0 %v10308
    %v10310 = vpop.f32.mrb[0].mxu0
    %v10311 = vadd.f32 %v9999, %v10310
    %v10312 = vpop.f32.mrb[0].mxu0
    %10313 = vmatprep.mubr.f32.mxu0 0.0
    %v10314 = vand.u32 %v9286, 4294901760
    %v10315 = vsub.f32 %v9286, %v10314
    %10316 = vmatmul.mubr.f32.gmra.mrb[0].mxu0 %v10315
    %v10317 = vpop.f32.mrb[0].mxu0
    %v10318 = vadd.f32 %v10005, %v10317
    %v10319 = vpop.f32.mrb[0].mxu0
    %10320 = vmatprep.mubr.f32.mxu0 0.0
    %v10321 = vand.u32 %v9287, 4294901760
    %v10322 = vsub.f32 %v9287, %v10321
    %10323 = vmatmul.mubr.f32.gmra.mrb[0].mxu0 %v10322
    %v10324 = vpop.f32.mrb[0].mxu0
    %v10325 = vadd.f32 %v10011, %v10324
    %v10326 = vpop.f32.mrb[0].mxu0
    %10327 = vmatprep.mubr.f32.mxu0 0.0
    %v10328 = vand.u32 %v9288, 4294901760
    %v10329 = vsub.f32 %v9288, %v10328
    %10330 = vmatmul.mubr.f32.gmra.mrb[0].mxu0 %v10329
    %v10331 = vpop.f32.mrb[0].mxu0
    %v10332 = vadd.f32 %v10017, %v10331
    %v10333 = vpop.f32.mrb[0].mxu0
    %10334 = vmatprep.mubr.f32.mxu0 0.0
    %v10335 = vand.u32 %v9289, 4294901760
    %v10336 = vsub.f32 %v9289, %v10335
    %10337 = vmatmul.mubr.f32.gmra.mrb[0].mxu0 %v10336
    %v10338 = vpop.f32.mrb[0].mxu0
    %v10339 = vadd.f32 %v10023, %v10338
    %v10340 = vpop.f32.mrb[0].mxu0
    %10341 = vmatprep.mubr.f32.mxu0 0.0
    %v10342 = vand.u32 %v9290, 4294901760
    %v10343 = vsub.f32 %v9290, %v10342
    %10344 = vmatmul.mubr.f32.gmra.mrb[0].mxu0 %v10343
    %v10345 = vpop.f32.mrb[0].mxu0
    %v10346 = vadd.f32 %v10029, %v10345
    %v10347 = vpop.f32.mrb[0].mxu0
    %10348 = vmatprep.mubr.f32.mxu0 0.0
    %v10349 = vand.u32 %v9291, 4294901760
    %v10350 = vsub.f32 %v9291, %v10349
    %10351 = vmatmul.mubr.f32.gmra.mrb[0].mxu0 %v10350
    %v10352 = vpop.f32.mrb[0].mxu0
    %v10353 = vadd.f32 %v10035, %v10352
    %v10354 = vpop.f32.mrb[0].mxu0
    %10355 = vmatprep.mubr.f32.mxu0 0.0
    %v10356 = vand.u32 %v9292, 4294901760
    %v10357 = vsub.f32 %v9292, %v10356
    %10358 = vmatmul.mubr.f32.gmra.mrb[0].mxu0 %v10357
    %v10359 = vpop.f32.mrb[0].mxu0
    %v10360 = vadd.f32 %v10041, %v10359
    %v10361 = vpop.f32.mrb[0].mxu0
    %10362 = vmatprep.mubr.f32.mxu0 0.0
    %v10363 = vand.u32 %v9293, 4294901760
    %v10364 = vsub.f32 %v9293, %v10363
    %10365 = vmatmul.mubr.f32.gmra.mrb[0].mxu0 %v10364
    %v10366 = vpop.f32.mrb[0].mxu0
    %v10367 = vadd.f32 %v10047, %v10366
    %v10368 = vpop.f32.mrb[0].mxu0
    %10369 = vmatprep.mubr.f32.mxu0 0.0
    %v10370 = vand.u32 %v9294, 4294901760
    %v10371 = vsub.f32 %v9294, %v10370
    %10372 = vmatmul.mubr.f32.gmra.mrb[0].mxu0 %v10371
    %v10373 = vpop.f32.mrb[0].mxu0
    %v10374 = vadd.f32 %v10053, %v10373
    %v10375 = vpop.f32.mrb[0].mxu0
    %10376 = vdwg.mxu0
    %10377 = vmatprep.subr.mxu0 0.0
    %v10378 = vand.u32 %v9295, 4294901760
    %10379 = vmatpush1.msra.mxu0 %v10378
    %10380 = vmatprep.subr.mxu0 0.0
    %v10381 = vand.u32 %v9296, 4294901760
    %10382 = vmatpush1.msra.mxu0 %v10381
    %10383 = vmatprep.subr.mxu0 0.0
    %v10384 = vand.u32 %v9297, 4294901760
    %10385 = vmatpush1.msra.mxu0 %v10384
    %10386 = vmatprep.subr.mxu0 0.0
    %v10387 = vand.u32 %v9298, 4294901760
    %10388 = vmatpush1.msra.mxu0 %v10387
    %10389 = vmatprep.subr.mxu0 0.0
    %v10390 = vand.u32 %v9299, 4294901760
    %10391 = vmatpush1.msra.mxu0 %v10390
    %10392 = vmatprep.subr.mxu0 0.0
    %v10393 = vand.u32 %v9300, 4294901760
    %10394 = vmatpush1.msra.mxu0 %v10393
    %10395 = vmatprep.subr.mxu0 0.0
    %v10396 = vand.u32 %v9301, 4294901760
    %10397 = vmatpush1.msra.mxu0 %v10396
    %10398 = vmatprep.subr.mxu0 0.0
    %v10399 = vand.u32 %v9302, 4294901760
    %10400 = vmatpush1.msra.mxu0 %v10399
    %10401 = vmatprep.subr.mxu0 0.0
    %v10402 = vand.u32 %v9303, 4294901760
    %10403 = vmatpush1.msra.mxu0 %v10402
    %10404 = vmatprep.subr.mxu0 0.0
    %v10405 = vand.u32 %v9304, 4294901760
    %10406 = vmatpush1.msra.mxu0 %v10405
    %10407 = vmatprep.subr.mxu0 0.0
    %v10408 = vand.u32 %v9305, 4294901760
    %10409 = vmatpush1.msra.mxu0 %v10408
    %10410 = vmatprep.subr.mxu0 0.0
    %v10411 = vand.u32 %v9306, 4294901760
    %10412 = vmatpush1.msra.mxu0 %v10411
    %10413 = vmatprep.subr.mxu0 0.0
    %v10414 = vand.u32 %v9307, 4294901760
    %10415 = vmatpush1.msra.mxu0 %v10414
    %10416 = vmatprep.subr.mxu0 0.0
    %v10417 = vand.u32 %v9308, 4294901760
    %10418 = vmatpush1.msra.mxu0 %v10417
    %10419 = vmatprep.subr.mxu0 0.0
    %v10420 = vand.u32 %v9309, 4294901760
    %10421 = vmatpush1.msra.mxu0 %v10420
    %10422 = vmatprep.subr.mxu0 0.0
    %v10423 = vand.u32 %v9310, 4294901760
    %10424 = vmatpush1.msra.mxu0 %v10423
    %10425 = vmatprep.subr.mxu0 0.0
    %10426 = vmatpush1.msra.mxu0 0.0
    %10427 = vmatprep.subr.mxu0 0.0
    %10428 = vmatpush1.msra.mxu0 0.0
    %10429 = vmatprep.subr.mxu0 0.0
    %10430 = vmatpush1.msra.mxu0 0.0
    %10431 = vmatprep.subr.mxu0 0.0
    %10432 = vmatpush1.msra.mxu0 0.0
    %10433 = vmatprep.subr.mxu0 0.0
    %10434 = vmatpush1.msra.mxu0 0.0
    %10435 = vmatprep.subr.mxu0 0.0
    %10436 = vmatpush1.msra.mxu0 0.0
    %10437 = vmatprep.subr.mxu0 0.0
    %10438 = vmatpush1.msra.mxu0 0.0
    %10439 = vmatprep.subr.mxu0 0.0
    %10440 = vmatpush1.msra.mxu0 0.0
    %10441 = vmatprep.subr.mxu0 0.0
    %10442 = vmatpush1.msra.mxu0 0.0
    %10443 = vmatprep.subr.mxu0 0.0
    %10444 = vmatpush1.msra.mxu0 0.0
    %10445 = vmatprep.subr.mxu0 0.0
    %10446 = vmatpush1.msra.mxu0 0.0
    %10447 = vmatprep.subr.mxu0 0.0
    %10448 = vmatpush1.msra.mxu0 0.0
    %10449 = vmatprep.subr.mxu0 0.0
    %10450 = vmatpush1.msra.mxu0 0.0
    %10451 = vmatprep.subr.mxu0 0.0
    %10452 = vmatpush1.msra.mxu0 0.0
    %10453 = vmatprep.subr.mxu0 0.0
    %10454 = vmatpush1.msra.mxu0 0.0
    %10455 = vmatprep.subr.mxu0 0.0
    %10456 = vmatpush1.msra.mxu0 0.0
    %10457 = vmatprep.mubr.f32.mxu0 0.0
    %v10458 = vand.u32 %v9263, 4294901760
    %v10459 = vsub.f32 %v9263, %v10458
    %v10460 = vand.u32 %v10459, 4294901760
    %10461 = vmatmul.mubr.f32.gmra.mrb[0].mxu0 %v10460
    %v10462 = vpop.f32.mrb[0].mxu0
    %v10463 = vadd.f32 %v10157, %v10462
    %v10464 = vpop.f32.mrb[0].mxu0
    %10465 = vmatprep.mubr.f32.mxu0 0.0
    %v10466 = vand.u32 %v9264, 4294901760
    %v10467 = vsub.f32 %v9264, %v10466
    %v10468 = vand.u32 %v10467, 4294901760
    %10469 = vmatmul.mubr.f32.gmra.mrb[0].mxu0 %v10468
    %v10470 = vpop.f32.mrb[0].mxu0
    %v10471 = vadd.f32 %v10164, %v10470
    %v10472 = vpop.f32.mrb[0].mxu0
    %10473 = vmatprep.mubr.f32.mxu0 0.0
    %v10474 = vand.u32 %v9265, 4294901760
    %v10475 = vsub.f32 %v9265, %v10474
    %v10476 = vand.u32 %v10475, 4294901760
    %10477 = vmatmul.mubr.f32.gmra.mrb[0].mxu0 %v10476
    %v10478 = vpop.f32.mrb[0].mxu0
    %v10479 = vadd.f32 %v10171, %v10478
    %v10480 = vpop.f32.mrb[0].mxu0
    %10481 = vmatprep.mubr.f32.mxu0 0.0
    %v10482 = vand.u32 %v9266, 4294901760
    %v10483 = vsub.f32 %v9266, %v10482
    %v10484 = vand.u32 %v10483, 4294901760
    %10485 = vmatmul.mubr.f32.gmra.mrb[0].mxu0 %v10484
    %v10486 = vpop.f32.mrb[0].mxu0
    %v10487 = vadd.f32 %v10178, %v10486
    %v10488 = vpop.f32.mrb[0].mxu0
    %10489 = vmatprep.mubr.f32.mxu0 0.0
    %v10490 = vand.u32 %v9267, 4294901760
    %v10491 = vsub.f32 %v9267, %v10490
    %v10492 = vand.u32 %v10491, 4294901760
    %10493 = vmatmul.mubr.f32.gmra.mrb[0].mxu0 %v10492
    %v10494 = vpop.f32.mrb[0].mxu0
    %v10495 = vadd.f32 %v10185, %v10494
    %v10496 = vpop.f32.mrb[0].mxu0
    %10497 = vmatprep.mubr.f32.mxu0 0.0
    %v10498 = vand.u32 %v9268, 4294901760
    %v10499 = vsub.f32 %v9268, %v10498
    %v10500 = vand.u32 %v10499, 4294901760
    %10501 = vmatmul.mubr.f32.gmra.mrb[0].mxu0 %v10500
    %v10502 = vpop.f32.mrb[0].mxu0
    %v10503 = vadd.f32 %v10192, %v10502
    %v10504 = vpop.f32.mrb[0].mxu0
    %10505 = vmatprep.mubr.f32.mxu0 0.0
    %v10506 = vand.u32 %v9269, 4294901760
    %v10507 = vsub.f32 %v9269, %v10506
    %v10508 = vand.u32 %v10507, 4294901760
    %10509 = vmatmul.mubr.f32.gmra.mrb[0].mxu0 %v10508
    %v10510 = vpop.f32.mrb[0].mxu0
    %v10511 = vadd.f32 %v10199, %v10510
    %v10512 = vpop.f32.mrb[0].mxu0
    %10513 = vmatprep.mubr.f32.mxu0 0.0
    %v10514 = vand.u32 %v9270, 4294901760
    %v10515 = vsub.f32 %v9270, %v10514
    %v10516 = vand.u32 %v10515, 4294901760
    %10517 = vmatmul.mubr.f32.gmra.mrb[0].mxu0 %v10516
    %v10518 = vpop.f32.mrb[0].mxu0
    %v10519 = vadd.f32 %v10206, %v10518
    %v10520 = vpop.f32.mrb[0].mxu0
    %10521 = vmatprep.mubr.f32.mxu0 0.0
    %v10522 = vand.u32 %v9271, 4294901760
    %v10523 = vsub.f32 %v9271, %v10522
    %v10524 = vand.u32 %v10523, 4294901760
    %10525 = vmatmul.mubr.f32.gmra.mrb[0].mxu0 %v10524
    %v10526 = vpop.f32.mrb[0].mxu0
    %v10527 = vadd.f32 %v10213, %v10526
    %v10528 = vpop.f32.mrb[0].mxu0
    %10529 = vmatprep.mubr.f32.mxu0 0.0
    %v10530 = vand.u32 %v9272, 4294901760
    %v10531 = vsub.f32 %v9272, %v10530
    %v10532 = vand.u32 %v10531, 4294901760
    %10533 = vmatmul.mubr.f32.gmra.mrb[0].mxu0 %v10532
    %v10534 = vpop.f32.mrb[0].mxu0
    %v10535 = vadd.f32 %v10220, %v10534
    %v10536 = vpop.f32.mrb[0].mxu0
    %10537 = vmatprep.mubr.f32.mxu0 0.0
    %v10538 = vand.u32 %v9273, 4294901760
    %v10539 = vsub.f32 %v9273, %v10538
    %v10540 = vand.u32 %v10539, 4294901760
    %10541 = vmatmul.mubr.f32.gmra.mrb[0].mxu0 %v10540
    %v10542 = vpop.f32.mrb[0].mxu0
    %v10543 = vadd.f32 %v10227, %v10542
    %v10544 = vpop.f32.mrb[0].mxu0
    %10545 = vmatprep.mubr.f32.mxu0 0.0
    %v10546 = vand.u32 %v9274, 4294901760
    %v10547 = vsub.f32 %v9274, %v10546
    %v10548 = vand.u32 %v10547, 4294901760
    %10549 = vmatmul.mubr.f32.gmra.mrb[0].mxu0 %v10548
    %v10550 = vpop.f32.mrb[0].mxu0
    %v10551 = vadd.f32 %v10234, %v10550
    %v10552 = vpop.f32.mrb[0].mxu0
    %10553 = vmatprep.mubr.f32.mxu0 0.0
    %v10554 = vand.u32 %v9275, 4294901760
    %v10555 = vsub.f32 %v9275, %v10554
    %v10556 = vand.u32 %v10555, 4294901760
    %10557 = vmatmul.mubr.f32.gmra.mrb[0].mxu0 %v10556
    %v10558 = vpop.f32.mrb[0].mxu0
    %v10559 = vadd.f32 %v10241, %v10558
    %v10560 = vpop.f32.mrb[0].mxu0
    %10561 = vmatprep.mubr.f32.mxu0 0.0
    %v10562 = vand.u32 %v9276, 4294901760
    %v10563 = vsub.f32 %v9276, %v10562
    %v10564 = vand.u32 %v10563, 4294901760
    %10565 = vmatmul.mubr.f32.gmra.mrb[0].mxu0 %v10564
    %v10566 = vpop.f32.mrb[0].mxu0
    %v10567 = vadd.f32 %v10248, %v10566
    %v10568 = vpop.f32.mrb[0].mxu0
    %10569 = vmatprep.mubr.f32.mxu0 0.0
    %v10570 = vand.u32 %v9277, 4294901760
    %v10571 = vsub.f32 %v9277, %v10570
    %v10572 = vand.u32 %v10571, 4294901760
    %10573 = vmatmul.mubr.f32.gmra.mrb[0].mxu0 %v10572
    %v10574 = vpop.f32.mrb[0].mxu0
    %v10575 = vadd.f32 %v10255, %v10574
    %v10576 = vpop.f32.mrb[0].mxu0
    %10577 = vmatprep.mubr.f32.mxu0 0.0
    %v10578 = vand.u32 %v9278, 4294901760
    %v10579 = vsub.f32 %v9278, %v10578
    %v10580 = vand.u32 %v10579, 4294901760
    %10581 = vmatmul.mubr.f32.gmra.mrb[0].mxu0 %v10580
    %v10582 = vpop.f32.mrb[0].mxu0
    %v10583 = vadd.f32 %v10262, %v10582
    %v10584 = vpop.f32.mrb[0].mxu0
    %10585 = vmatprep.mubr.f32.mxu0 0.0
    %v10586 = vand.u32 %v9279, 4294901760
    %v10587 = vsub.f32 %v9279, %v10586
    %v10588 = vand.u32 %v10587, 4294901760
    %10589 = vmatmul.mubr.f32.gmra.mrb[0].mxu0 %v10588
    %v10590 = vpop.f32.mrb[0].mxu0
    %v10591 = vadd.f32 %v10269, %v10590
    %v10592 = vpop.f32.mrb[0].mxu0
    %10593 = vmatprep.mubr.f32.mxu0 0.0
    %v10594 = vand.u32 %v9280, 4294901760
    %v10595 = vsub.f32 %v9280, %v10594
    %v10596 = vand.u32 %v10595, 4294901760
    %10597 = vmatmul.mubr.f32.gmra.mrb[0].mxu0 %v10596
    %v10598 = vpop.f32.mrb[0].mxu0
    %v10599 = vadd.f32 %v10276, %v10598
    %v10600 = vpop.f32.mrb[0].mxu0
    %10601 = vmatprep.mubr.f32.mxu0 0.0
    %v10602 = vand.u32 %v9281, 4294901760
    %v10603 = vsub.f32 %v9281, %v10602
    %v10604 = vand.u32 %v10603, 4294901760
    %10605 = vmatmul.mubr.f32.gmra.mrb[0].mxu0 %v10604
    %v10606 = vpop.f32.mrb[0].mxu0
    %v10607 = vadd.f32 %v10283, %v10606
    %v10608 = vpop.f32.mrb[0].mxu0
    %10609 = vmatprep.mubr.f32.mxu0 0.0
    %v10610 = vand.u32 %v9282, 4294901760
    %v10611 = vsub.f32 %v9282, %v10610
    %v10612 = vand.u32 %v10611, 4294901760
    %10613 = vmatmul.mubr.f32.gmra.mrb[0].mxu0 %v10612
    %v10614 = vpop.f32.mrb[0].mxu0
    %v10615 = vadd.f32 %v10290, %v10614
    %v10616 = vpop.f32.mrb[0].mxu0
    %10617 = vmatprep.mubr.f32.mxu0 0.0
    %v10618 = vand.u32 %v9283, 4294901760
    %v10619 = vsub.f32 %v9283, %v10618
    %v10620 = vand.u32 %v10619, 4294901760
    %10621 = vmatmul.mubr.f32.gmra.mrb[0].mxu0 %v10620
    %v10622 = vpop.f32.mrb[0].mxu0
    %v10623 = vadd.f32 %v10297, %v10622
    %v10624 = vpop.f32.mrb[0].mxu0
    %10625 = vmatprep.mubr.f32.mxu0 0.0
    %v10626 = vand.u32 %v9284, 4294901760
    %v10627 = vsub.f32 %v9284, %v10626
    %v10628 = vand.u32 %v10627, 4294901760
    %10629 = vmatmul.mubr.f32.gmra.mrb[0].mxu0 %v10628
    %v10630 = vpop.f32.mrb[0].mxu0
    %v10631 = vadd.f32 %v10304, %v10630
    %v10632 = vpop.f32.mrb[0].mxu0
    %10633 = vmatprep.mubr.f32.mxu0 0.0
    %v10634 = vand.u32 %v9285, 4294901760
    %v10635 = vsub.f32 %v9285, %v10634
    %v10636 = vand.u32 %v10635, 4294901760
    %10637 = vmatmul.mubr.f32.gmra.mrb[0].mxu0 %v10636
    %v10638 = vpop.f32.mrb[0].mxu0
    %v10639 = vadd.f32 %v10311, %v10638
    %v10640 = vpop.f32.mrb[0].mxu0
    %10641 = vmatprep.mubr.f32.mxu0 0.0
    %v10642 = vand.u32 %v9286, 4294901760
    %v10643 = vsub.f32 %v9286, %v10642
    %v10644 = vand.u32 %v10643, 4294901760
    %10645 = vmatmul.mubr.f32.gmra.mrb[0].mxu0 %v10644
    %v10646 = vpop.f32.mrb[0].mxu0
    %v10647 = vadd.f32 %v10318, %v10646
    %v10648 = vpop.f32.mrb[0].mxu0
    %10649 = vmatprep.mubr.f32.mxu0 0.0
    %v10650 = vand.u32 %v9287, 4294901760
    %v10651 = vsub.f32 %v9287, %v10650
    %v10652 = vand.u32 %v10651, 4294901760
    %10653 = vmatmul.mubr.f32.gmra.mrb[0].mxu0 %v10652
    %v10654 = vpop.f32.mrb[0].mxu0
    %v10655 = vadd.f32 %v10325, %v10654
    %v10656 = vpop.f32.mrb[0].mxu0
    %10657 = vmatprep.mubr.f32.mxu0 0.0
    %v10658 = vand.u32 %v9288, 4294901760
    %v10659 = vsub.f32 %v9288, %v10658
    %v10660 = vand.u32 %v10659, 4294901760
    %10661 = vmatmul.mubr.f32.gmra.mrb[0].mxu0 %v10660
    %v10662 = vpop.f32.mrb[0].mxu0
    %v10663 = vadd.f32 %v10332, %v10662
    %v10664 = vpop.f32.mrb[0].mxu0
    %10665 = vmatprep.mubr.f32.mxu0 0.0
    %v10666 = vand.u32 %v9289, 4294901760
    %v10667 = vsub.f32 %v9289, %v10666
    %v10668 = vand.u32 %v10667, 4294901760
    %10669 = vmatmul.mubr.f32.gmra.mrb[0].mxu0 %v10668
    %v10670 = vpop.f32.mrb[0].mxu0
    %v10671 = vadd.f32 %v10339, %v10670
    %v10672 = vpop.f32.mrb[0].mxu0
    %10673 = vmatprep.mubr.f32.mxu0 0.0
    %v10674 = vand.u32 %v9290, 4294901760
    %v10675 = vsub.f32 %v9290, %v10674
    %v10676 = vand.u32 %v10675, 4294901760
    %10677 = vmatmul.mubr.f32.gmra.mrb[0].mxu0 %v10676
    %v10678 = vpop.f32.mrb[0].mxu0
    %v10679 = vadd.f32 %v10346, %v10678
    %v10680 = vpop.f32.mrb[0].mxu0
    %10681 = vmatprep.mubr.f32.mxu0 0.0
    %v10682 = vand.u32 %v9291, 4294901760
    %v10683 = vsub.f32 %v9291, %v10682
    %v10684 = vand.u32 %v10683, 4294901760
    %10685 = vmatmul.mubr.f32.gmra.mrb[0].mxu0 %v10684
    %v10686 = vpop.f32.mrb[0].mxu0
    %v10687 = vadd.f32 %v10353, %v10686
    %v10688 = vpop.f32.mrb[0].mxu0
    %10689 = vmatprep.mubr.f32.mxu0 0.0
    %v10690 = vand.u32 %v9292, 4294901760
    %v10691 = vsub.f32 %v9292, %v10690
    %v10692 = vand.u32 %v10691, 4294901760
    %10693 = vmatmul.mubr.f32.gmra.mrb[0].mxu0 %v10692
    %v10694 = vpop.f32.mrb[0].mxu0
    %v10695 = vadd.f32 %v10360, %v10694
    %v10696 = vpop.f32.mrb[0].mxu0
    %10697 = vmatprep.mubr.f32.mxu0 0.0
    %v10698 = vand.u32 %v9293, 4294901760
    %v10699 = vsub.f32 %v9293, %v10698
    %v10700 = vand.u32 %v10699, 4294901760
    %10701 = vmatmul.mubr.f32.gmra.mrb[0].mxu0 %v10700
    %v10702 = vpop.f32.mrb[0].mxu0
    %v10703 = vadd.f32 %v10367, %v10702
    %v10704 = vpop.f32.mrb[0].mxu0
    %10705 = vmatprep.mubr.f32.mxu0 0.0
    %v10706 = vand.u32 %v9294, 4294901760
    %v10707 = vsub.f32 %v9294, %v10706
    %v10708 = vand.u32 %v10707, 4294901760
    %10709 = vmatmul.mubr.f32.gmra.mrb[0].mxu0 %v10708
    %v10710 = vpop.f32.mrb[0].mxu0
    %v10711 = vadd.f32 %v10374, %v10710
    %v10712 = vpop.f32.mrb[0].mxu0
    %10713 = vdwg.mxu0
    %10714 = vmatprep.subr.mxu0 0.0
    %v10715 = vand.u32 %v9295, 4294901760
    %v10716 = vsub.f32 %v9295, %v10715
    %v10717 = vand.u32 %v10716, 4294901760
    %10718 = vmatpush1.msra.mxu0 %v10717
    %10719 = vmatprep.subr.mxu0 0.0
    %v10720 = vand.u32 %v9296, 4294901760
    %v10721 = vsub.f32 %v9296, %v10720
    %v10722 = vand.u32 %v10721, 4294901760
    %10723 = vmatpush1.msra.mxu0 %v10722
    %10724 = vmatprep.subr.mxu0 0.0
    %v10725 = vand.u32 %v9297, 4294901760
    %v10726 = vsub.f32 %v9297, %v10725
    %v10727 = vand.u32 %v10726, 4294901760
    %10728 = vmatpush1.msra.mxu0 %v10727
    %10729 = vmatprep.subr.mxu0 0.0
    %v10730 = vand.u32 %v9298, 4294901760
    %v10731 = vsub.f32 %v9298, %v10730
    %v10732 = vand.u32 %v10731, 4294901760
    %10733 = vmatpush1.msra.mxu0 %v10732
    %10734 = vmatprep.subr.mxu0 0.0
    %v10735 = vand.u32 %v9299, 4294901760
    %v10736 = vsub.f32 %v9299, %v10735
    %v10737 = vand.u32 %v10736, 4294901760
    %10738 = vmatpush1.msra.mxu0 %v10737
    %10739 = vmatprep.subr.mxu0 0.0
    %v10740 = vand.u32 %v9300, 4294901760
    %v10741 = vsub.f32 %v9300, %v10740
    %v10742 = vand.u32 %v10741, 4294901760
    %10743 = vmatpush1.msra.mxu0 %v10742
    %10744 = vmatprep.subr.mxu0 0.0
    %v10745 = vand.u32 %v9301, 4294901760
    %v10746 = vsub.f32 %v9301, %v10745
    %v10747 = vand.u32 %v10746, 4294901760
    %10748 = vmatpush1.msra.mxu0 %v10747
    %10749 = vmatprep.subr.mxu0 0.0
    %v10750 = vand.u32 %v9302, 4294901760
    %v10751 = vsub.f32 %v9302, %v10750
    %v10752 = vand.u32 %v10751, 4294901760
    %10753 = vmatpush1.msra.mxu0 %v10752
    %10754 = vmatprep.subr.mxu0 0.0
    %v10755 = vand.u32 %v9303, 4294901760
    %v10756 = vsub.f32 %v9303, %v10755
    %v10757 = vand.u32 %v10756, 4294901760
    %10758 = vmatpush1.msra.mxu0 %v10757
    %10759 = vmatprep.subr.mxu0 0.0
    %v10760 = vand.u32 %v9304, 4294901760
    %v10761 = vsub.f32 %v9304, %v10760
    %v10762 = vand.u32 %v10761, 4294901760
    %10763 = vmatpush1.msra.mxu0 %v10762
    %10764 = vmatprep.subr.mxu0 0.0
    %v10765 = vand.u32 %v9305, 4294901760
    %v10766 = vsub.f32 %v9305, %v10765
    %v10767 = vand.u32 %v10766, 4294901760
    %10768 = vmatpush1.msra.mxu0 %v10767
    %10769 = vmatprep.subr.mxu0 0.0
    %v10770 = vand.u32 %v9306, 4294901760
    %v10771 = vsub.f32 %v9306, %v10770
    %v10772 = vand.u32 %v10771, 4294901760
    %10773 = vmatpush1.msra.mxu0 %v10772
    %10774 = vmatprep.subr.mxu0 0.0
    %v10775 = vand.u32 %v9307, 4294901760
    %v10776 = vsub.f32 %v9307, %v10775
    %v10777 = vand.u32 %v10776, 4294901760
    %10778 = vmatpush1.msra.mxu0 %v10777
    %10779 = vmatprep.subr.mxu0 0.0
    %v10780 = vand.u32 %v9308, 4294901760
    %v10781 = vsub.f32 %v9308, %v10780
    %v10782 = vand.u32 %v10781, 4294901760
    %10783 = vmatpush1.msra.mxu0 %v10782
    %10784 = vmatprep.subr.mxu0 0.0
    %v10785 = vand.u32 %v9309, 4294901760
    %v10786 = vsub.f32 %v9309, %v10785
    %v10787 = vand.u32 %v10786, 4294901760
    %10788 = vmatpush1.msra.mxu0 %v10787
    %10789 = vmatprep.subr.mxu0 0.0
    %v10790 = vand.u32 %v9310, 4294901760
    %v10791 = vsub.f32 %v9310, %v10790
    %v10792 = vand.u32 %v10791, 4294901760
    %10793 = vmatpush1.msra.mxu0 %v10792
    %10794 = vmatprep.subr.mxu0 0.0
    %10795 = vmatpush1.msra.mxu0 0.0
    %10796 = vmatprep.subr.mxu0 0.0
    %10797 = vmatpush1.msra.mxu0 0.0
    %10798 = vmatprep.subr.mxu0 0.0
    %10799 = vmatpush1.msra.mxu0 0.0
    %10800 = vmatprep.subr.mxu0 0.0
    %10801 = vmatpush1.msra.mxu0 0.0
    %10802 = vmatprep.subr.mxu0 0.0
    %10803 = vmatpush1.msra.mxu0 0.0
    %10804 = vmatprep.subr.mxu0 0.0
    %10805 = vmatpush1.msra.mxu0 0.0
    %10806 = vmatprep.subr.mxu0 0.0
    %10807 = vmatpush1.msra.mxu0 0.0
    %10808 = vmatprep.subr.mxu0 0.0
    %10809 = vmatpush1.msra.mxu0 0.0
    %10810 = vmatprep.subr.mxu0 0.0
    %10811 = vmatpush1.msra.mxu0 0.0
    %10812 = vmatprep.subr.mxu0 0.0
    %10813 = vmatpush1.msra.mxu0 0.0
    %10814 = vmatprep.subr.mxu0 0.0
    %10815 = vmatpush1.msra.mxu0 0.0
    %10816 = vmatprep.subr.mxu0 0.0
    %10817 = vmatpush1.msra.mxu0 0.0
    %10818 = vmatprep.subr.mxu0 0.0
    %10819 = vmatpush1.msra.mxu0 0.0
    %10820 = vmatprep.subr.mxu0 0.0
    %10821 = vmatpush1.msra.mxu0 0.0
    %10822 = vmatprep.subr.mxu0 0.0
    %10823 = vmatpush1.msra.mxu0 0.0
    %10824 = vmatprep.subr.mxu0 0.0
    %10825 = vmatpush1.msra.mxu0 0.0
    %10826 = vmatprep.mubr.f32.mxu0 0.0
    %v10827 = vand.u32 %v9263, 4294901760
    %10828 = vmatmul.mubr.f32.gmra.mrb[0].mxu0 %v10827
    %v10829 = vpop.f32.mrb[0].mxu0
    %v10830 = vadd.f32 %v10463, %v10829
    %v10831 = vpop.f32.mrb[0].mxu0
    %10832 = vmatprep.mubr.f32.mxu0 0.0
    %v10833 = vand.u32 %v9264, 4294901760
    %10834 = vmatmul.mubr.f32.gmra.mrb[0].mxu0 %v10833
    %v10835 = vpop.f32.mrb[0].mxu0
    %v10836 = vadd.f32 %v10471, %v10835
    %v10837 = vpop.f32.mrb[0].mxu0
    %10838 = vmatprep.mubr.f32.mxu0 0.0
    %v10839 = vand.u32 %v9265, 4294901760
    %10840 = vmatmul.mubr.f32.gmra.mrb[0].mxu0 %v10839
    %v10841 = vpop.f32.mrb[0].mxu0
    %v10842 = vadd.f32 %v10479, %v10841
    %v10843 = vpop.f32.mrb[0].mxu0
    %10844 = vmatprep.mubr.f32.mxu0 0.0
    %v10845 = vand.u32 %v9266, 4294901760
    %10846 = vmatmul.mubr.f32.gmra.mrb[0].mxu0 %v10845
    %v10847 = vpop.f32.mrb[0].mxu0
    %v10848 = vadd.f32 %v10487, %v10847
    %v10849 = vpop.f32.mrb[0].mxu0
    %10850 = vmatprep.mubr.f32.mxu0 0.0
    %v10851 = vand.u32 %v9267, 4294901760
    %10852 = vmatmul.mubr.f32.gmra.mrb[0].mxu0 %v10851
    %v10853 = vpop.f32.mrb[0].mxu0
    %v10854 = vadd.f32 %v10495, %v10853
    %v10855 = vpop.f32.mrb[0].mxu0
    %10856 = vmatprep.mubr.f32.mxu0 0.0
    %v10857 = vand.u32 %v9268, 4294901760
    %10858 = vmatmul.mubr.f32.gmra.mrb[0].mxu0 %v10857
    %v10859 = vpop.f32.mrb[0].mxu0
    %v10860 = vadd.f32 %v10503, %v10859
    %v10861 = vpop.f32.mrb[0].mxu0
    %10862 = vmatprep.mubr.f32.mxu0 0.0
    %v10863 = vand.u32 %v9269, 4294901760
    %10864 = vmatmul.mubr.f32.gmra.mrb[0].mxu0 %v10863
    %v10865 = vpop.f32.mrb[0].mxu0
    %v10866 = vadd.f32 %v10511, %v10865
    %v10867 = vpop.f32.mrb[0].mxu0
    %10868 = vmatprep.mubr.f32.mxu0 0.0
    %v10869 = vand.u32 %v9270, 4294901760
    %10870 = vmatmul.mubr.f32.gmra.mrb[0].mxu0 %v10869
    %v10871 = vpop.f32.mrb[0].mxu0
    %v10872 = vadd.f32 %v10519, %v10871
    %v10873 = vpop.f32.mrb[0].mxu0
    %10874 = vmatprep.mubr.f32.mxu0 0.0
    %v10875 = vand.u32 %v9271, 4294901760
    %10876 = vmatmul.mubr.f32.gmra.mrb[0].mxu0 %v10875
    %v10877 = vpop.f32.mrb[0].mxu0
    %v10878 = vadd.f32 %v10527, %v10877
    %v10879 = vpop.f32.mrb[0].mxu0
    %10880 = vmatprep.mubr.f32.mxu0 0.0
    %v10881 = vand.u32 %v9272, 4294901760
    %10882 = vmatmul.mubr.f32.gmra.mrb[0].mxu0 %v10881
    %v10883 = vpop.f32.mrb[0].mxu0
    %v10884 = vadd.f32 %v10535, %v10883
    %v10885 = vpop.f32.mrb[0].mxu0
    %10886 = vmatprep.mubr.f32.mxu0 0.0
    %v10887 = vand.u32 %v9273, 4294901760
    %10888 = vmatmul.mubr.f32.gmra.mrb[0].mxu0 %v10887
    %v10889 = vpop.f32.mrb[0].mxu0
    %v10890 = vadd.f32 %v10543, %v10889
    %v10891 = vpop.f32.mrb[0].mxu0
    %10892 = vmatprep.mubr.f32.mxu0 0.0
    %v10893 = vand.u32 %v9274, 4294901760
    %10894 = vmatmul.mubr.f32.gmra.mrb[0].mxu0 %v10893
    %v10895 = vpop.f32.mrb[0].mxu0
    %v10896 = vadd.f32 %v10551, %v10895
    %v10897 = vpop.f32.mrb[0].mxu0
    %10898 = vmatprep.mubr.f32.mxu0 0.0
    %v10899 = vand.u32 %v9275, 4294901760
    %10900 = vmatmul.mubr.f32.gmra.mrb[0].mxu0 %v10899
    %v10901 = vpop.f32.mrb[0].mxu0
    %v10902 = vadd.f32 %v10559, %v10901
    %v10903 = vpop.f32.mrb[0].mxu0
    %10904 = vmatprep.mubr.f32.mxu0 0.0
    %v10905 = vand.u32 %v9276, 4294901760
    %10906 = vmatmul.mubr.f32.gmra.mrb[0].mxu0 %v10905
    %v10907 = vpop.f32.mrb[0].mxu0
    %v10908 = vadd.f32 %v10567, %v10907
    %v10909 = vpop.f32.mrb[0].mxu0
    %10910 = vmatprep.mubr.f32.mxu0 0.0
    %v10911 = vand.u32 %v9277, 4294901760
    %10912 = vmatmul.mubr.f32.gmra.mrb[0].mxu0 %v10911
    %v10913 = vpop.f32.mrb[0].mxu0
    %v10914 = vadd.f32 %v10575, %v10913
    %v10915 = vpop.f32.mrb[0].mxu0
    %10916 = vmatprep.mubr.f32.mxu0 0.0
    %v10917 = vand.u32 %v9278, 4294901760
    %10918 = vmatmul.mubr.f32.gmra.mrb[0].mxu0 %v10917
    %v10919 = vpop.f32.mrb[0].mxu0
    %v10920 = vadd.f32 %v10583, %v10919
    %v10921 = vpop.f32.mrb[0].mxu0
    %10922 = vmatprep.mubr.f32.mxu0 0.0
    %v10923 = vand.u32 %v9279, 4294901760
    %10924 = vmatmul.mubr.f32.gmra.mrb[0].mxu0 %v10923
    %v10925 = vpop.f32.mrb[0].mxu0
    %v10926 = vadd.f32 %v10591, %v10925
    %v10927 = vpop.f32.mrb[0].mxu0
    %10928 = vmatprep.mubr.f32.mxu0 0.0
    %v10929 = vand.u32 %v9280, 4294901760
    %10930 = vmatmul.mubr.f32.gmra.mrb[0].mxu0 %v10929
    %v10931 = vpop.f32.mrb[0].mxu0
    %v10932 = vadd.f32 %v10599, %v10931
    %v10933 = vpop.f32.mrb[0].mxu0
    %10934 = vmatprep.mubr.f32.mxu0 0.0
    %v10935 = vand.u32 %v9281, 4294901760
    %10936 = vmatmul.mubr.f32.gmra.mrb[0].mxu0 %v10935
    %v10937 = vpop.f32.mrb[0].mxu0
    %v10938 = vadd.f32 %v10607, %v10937
    %v10939 = vpop.f32.mrb[0].mxu0
    %10940 = vmatprep.mubr.f32.mxu0 0.0
    %v10941 = vand.u32 %v9282, 4294901760
    %10942 = vmatmul.mubr.f32.gmra.mrb[0].mxu0 %v10941
    %v10943 = vpop.f32.mrb[0].mxu0
    %v10944 = vadd.f32 %v10615, %v10943
    %v10945 = vpop.f32.mrb[0].mxu0
    %10946 = vmatprep.mubr.f32.mxu0 0.0
    %v10947 = vand.u32 %v9283, 4294901760
    %10948 = vmatmul.mubr.f32.gmra.mrb[0].mxu0 %v10947
    %v10949 = vpop.f32.mrb[0].mxu0
    %v10950 = vadd.f32 %v10623, %v10949
    %v10951 = vpop.f32.mrb[0].mxu0
    %10952 = vmatprep.mubr.f32.mxu0 0.0
    %v10953 = vand.u32 %v9284, 4294901760
    %10954 = vmatmul.mubr.f32.gmra.mrb[0].mxu0 %v10953
    %v10955 = vpop.f32.mrb[0].mxu0
    %v10956 = vadd.f32 %v10631, %v10955
    %v10957 = vpop.f32.mrb[0].mxu0
    %10958 = vmatprep.mubr.f32.mxu0 0.0
    %v10959 = vand.u32 %v9285, 4294901760
    %10960 = vmatmul.mubr.f32.gmra.mrb[0].mxu0 %v10959
    %v10961 = vpop.f32.mrb[0].mxu0
    %v10962 = vadd.f32 %v10639, %v10961
    %v10963 = vpop.f32.mrb[0].mxu0
    %10964 = vmatprep.mubr.f32.mxu0 0.0
    %v10965 = vand.u32 %v9286, 4294901760
    %10966 = vmatmul.mubr.f32.gmra.mrb[0].mxu0 %v10965
    %v10967 = vpop.f32.mrb[0].mxu0
    %v10968 = vadd.f32 %v10647, %v10967
    %v10969 = vpop.f32.mrb[0].mxu0
    %10970 = vmatprep.mubr.f32.mxu0 0.0
    %v10971 = vand.u32 %v9287, 4294901760
    %10972 = vmatmul.mubr.f32.gmra.mrb[0].mxu0 %v10971
    %v10973 = vpop.f32.mrb[0].mxu0
    %v10974 = vadd.f32 %v10655, %v10973
    %v10975 = vpop.f32.mrb[0].mxu0
    %10976 = vmatprep.mubr.f32.mxu0 0.0
    %v10977 = vand.u32 %v9288, 4294901760
    %10978 = vmatmul.mubr.f32.gmra.mrb[0].mxu0 %v10977
    %v10979 = vpop.f32.mrb[0].mxu0
    %v10980 = vadd.f32 %v10663, %v10979
    %v10981 = vpop.f32.mrb[0].mxu0
    %10982 = vmatprep.mubr.f32.mxu0 0.0
    %v10983 = vand.u32 %v9289, 4294901760
    %10984 = vmatmul.mubr.f32.gmra.mrb[0].mxu0 %v10983
    %v10985 = vpop.f32.mrb[0].mxu0
    %v10986 = vadd.f32 %v10671, %v10985
    %v10987 = vpop.f32.mrb[0].mxu0
    %10988 = vmatprep.mubr.f32.mxu0 0.0
    %v10989 = vand.u32 %v9290, 4294901760
    %10990 = vmatmul.mubr.f32.gmra.mrb[0].mxu0 %v10989
    %v10991 = vpop.f32.mrb[0].mxu0
    %v10992 = vadd.f32 %v10679, %v10991
    %v10993 = vpop.f32.mrb[0].mxu0
    %10994 = vmatprep.mubr.f32.mxu0 0.0
    %v10995 = vand.u32 %v9291, 4294901760
    %10996 = vmatmul.mubr.f32.gmra.mrb[0].mxu0 %v10995
    %v10997 = vpop.f32.mrb[0].mxu0
    %v10998 = vadd.f32 %v10687, %v10997
    %v10999 = vpop.f32.mrb[0].mxu0
    %11000 = vmatprep.mubr.f32.mxu0 0.0
    %v11001 = vand.u32 %v9292, 4294901760
    %11002 = vmatmul.mubr.f32.gmra.mrb[0].mxu0 %v11001
    %v11003 = vpop.f32.mrb[0].mxu0
    %v11004 = vadd.f32 %v10695, %v11003
    %v11005 = vpop.f32.mrb[0].mxu0
    %11006 = vmatprep.mubr.f32.mxu0 0.0
    %v11007 = vand.u32 %v9293, 4294901760
    %11008 = vmatmul.mubr.f32.gmra.mrb[0].mxu0 %v11007
    %v11009 = vpop.f32.mrb[0].mxu0
    %v11010 = vadd.f32 %v10703, %v11009
    %v11011 = vpop.f32.mrb[0].mxu0
    %11012 = vmatprep.mubr.f32.mxu0 0.0
    %v11013 = vand.u32 %v9294, 4294901760
    %11014 = vmatmul.mubr.f32.gmra.mrb[0].mxu0 %v11013
    %v11015 = vpop.f32.mrb[0].mxu0
    %v11016 = vadd.f32 %v10711, %v11015
    %v11017 = vpop.f32.mrb[0].mxu0
    %11018 = vdwg.mxu0
    %11019 = vmatprep.subr.mxu0 0.0
    %v11020 = vand.u32 %v9295, 4294901760
    %11021 = vmatpush1.msra.mxu0 %v11020
    %11022 = vmatprep.subr.mxu0 0.0
    %v11023 = vand.u32 %v9296, 4294901760
    %11024 = vmatpush1.msra.mxu0 %v11023
    %11025 = vmatprep.subr.mxu0 0.0
    %v11026 = vand.u32 %v9297, 4294901760
    %11027 = vmatpush1.msra.mxu0 %v11026
    %11028 = vmatprep.subr.mxu0 0.0
    %v11029 = vand.u32 %v9298, 4294901760
    %11030 = vmatpush1.msra.mxu0 %v11029
    %11031 = vmatprep.subr.mxu0 0.0
    %v11032 = vand.u32 %v9299, 4294901760
    %11033 = vmatpush1.msra.mxu0 %v11032
    %11034 = vmatprep.subr.mxu0 0.0
    %v11035 = vand.u32 %v9300, 4294901760
    %11036 = vmatpush1.msra.mxu0 %v11035
    %11037 = vmatprep.subr.mxu0 0.0
    %v11038 = vand.u32 %v9301, 4294901760
    %11039 = vmatpush1.msra.mxu0 %v11038
    %11040 = vmatprep.subr.mxu0 0.0
    %v11041 = vand.u32 %v9302, 4294901760
    %11042 = vmatpush1.msra.mxu0 %v11041
    %11043 = vmatprep.subr.mxu0 0.0
    %v11044 = vand.u32 %v9303, 4294901760
    %11045 = vmatpush1.msra.mxu0 %v11044
    %11046 = vmatprep.subr.mxu0 0.0
    %v11047 = vand.u32 %v9304, 4294901760
    %11048 = vmatpush1.msra.mxu0 %v11047
    %11049 = vmatprep.subr.mxu0 0.0
    %v11050 = vand.u32 %v9305, 4294901760
    %11051 = vmatpush1.msra.mxu0 %v11050
    %11052 = vmatprep.subr.mxu0 0.0
    %v11053 = vand.u32 %v9306, 4294901760
    %11054 = vmatpush1.msra.mxu0 %v11053
    %11055 = vmatprep.subr.mxu0 0.0
    %v11056 = vand.u32 %v9307, 4294901760
    %11057 = vmatpush1.msra.mxu0 %v11056
    %11058 = vmatprep.subr.mxu0 0.0
    %v11059 = vand.u32 %v9308, 4294901760
    %11060 = vmatpush1.msra.mxu0 %v11059
    %11061 = vmatprep.subr.mxu0 0.0
    %v11062 = vand.u32 %v9309, 4294901760
    %11063 = vmatpush1.msra.mxu0 %v11062
    %11064 = vmatprep.subr.mxu0 0.0
    %v11065 = vand.u32 %v9310, 4294901760
    %11066 = vmatpush1.msra.mxu0 %v11065
    %11067 = vmatprep.subr.mxu0 0.0
    %11068 = vmatpush1.msra.mxu0 0.0
    %11069 = vmatprep.subr.mxu0 0.0
    %11070 = vmatpush1.msra.mxu0 0.0
    %11071 = vmatprep.subr.mxu0 0.0
    %11072 = vmatpush1.msra.mxu0 0.0
    %11073 = vmatprep.subr.mxu0 0.0
    %11074 = vmatpush1.msra.mxu0 0.0
    %11075 = vmatprep.subr.mxu0 0.0
    %11076 = vmatpush1.msra.mxu0 0.0
    %11077 = vmatprep.subr.mxu0 0.0
    %11078 = vmatpush1.msra.mxu0 0.0
    %11079 = vmatprep.subr.mxu0 0.0
    %11080 = vmatpush1.msra.mxu0 0.0
    %11081 = vmatprep.subr.mxu0 0.0
    %11082 = vmatpush1.msra.mxu0 0.0
    %11083 = vmatprep.subr.mxu0 0.0
    %11084 = vmatpush1.msra.mxu0 0.0
    %11085 = vmatprep.subr.mxu0 0.0
    %11086 = vmatpush1.msra.mxu0 0.0
    %11087 = vmatprep.subr.mxu0 0.0
    %11088 = vmatpush1.msra.mxu0 0.0
    %11089 = vmatprep.subr.mxu0 0.0
    %11090 = vmatpush1.msra.mxu0 0.0
    %11091 = vmatprep.subr.mxu0 0.0
    %11092 = vmatpush1.msra.mxu0 0.0
    %11093 = vmatprep.subr.mxu0 0.0
    %11094 = vmatpush1.msra.mxu0 0.0
    %11095 = vmatprep.subr.mxu0 0.0
    %11096 = vmatpush1.msra.mxu0 0.0
    %11097 = vmatprep.subr.mxu0 0.0
    %11098 = vmatpush1.msra.mxu0 0.0
    %11099 = vmatprep.mubr.f32.mxu0 0.0
    %v11100 = vand.u32 %v9263, 4294901760
    %11101 = vmatmul.mubr.f32.gmra.mrb[0].mxu0 %v11100
    %v11102 = vpop.f32.mrb[0].mxu0
    %v11103 = vadd.f32 %v10830, %v11102
    %v11104 = vpop.f32.mrb[0].mxu0
    %11105 = vmatprep.mubr.f32.mxu0 0.0
    %v11106 = vand.u32 %v9264, 4294901760
    %11107 = vmatmul.mubr.f32.gmra.mrb[0].mxu0 %v11106
    %v11108 = vpop.f32.mrb[0].mxu0
    %v11109 = vadd.f32 %v10836, %v11108
    %v11110 = vpop.f32.mrb[0].mxu0
    %11111 = vmatprep.mubr.f32.mxu0 0.0
    %v11112 = vand.u32 %v9265, 4294901760
    %11113 = vmatmul.mubr.f32.gmra.mrb[0].mxu0 %v11112
    %v11114 = vpop.f32.mrb[0].mxu0
    %v11115 = vadd.f32 %v10842, %v11114
    %v11116 = vpop.f32.mrb[0].mxu0
    %11117 = vmatprep.mubr.f32.mxu0 0.0
    %v11118 = vand.u32 %v9266, 4294901760
    %11119 = vmatmul.mubr.f32.gmra.mrb[0].mxu0 %v11118
    %v11120 = vpop.f32.mrb[0].mxu0
    %v11121 = vadd.f32 %v10848, %v11120
    %v11122 = vpop.f32.mrb[0].mxu0
    %11123 = vmatprep.mubr.f32.mxu0 0.0
    %v11124 = vand.u32 %v9267, 4294901760
    %11125 = vmatmul.mubr.f32.gmra.mrb[0].mxu0 %v11124
    %v11126 = vpop.f32.mrb[0].mxu0
    %v11127 = vadd.f32 %v10854, %v11126
    %v11128 = vpop.f32.mrb[0].mxu0
    %11129 = vmatprep.mubr.f32.mxu0 0.0
    %v11130 = vand.u32 %v9268, 4294901760
    %11131 = vmatmul.mubr.f32.gmra.mrb[0].mxu0 %v11130
    %v11132 = vpop.f32.mrb[0].mxu0
    %v11133 = vadd.f32 %v10860, %v11132
    %v11134 = vpop.f32.mrb[0].mxu0
    %11135 = vmatprep.mubr.f32.mxu0 0.0
    %v11136 = vand.u32 %v9269, 4294901760
    %11137 = vmatmul.mubr.f32.gmra.mrb[0].mxu0 %v11136
    %v11138 = vpop.f32.mrb[0].mxu0
    %v11139 = vadd.f32 %v10866, %v11138
    %v11140 = vpop.f32.mrb[0].mxu0
    %11141 = vmatprep.mubr.f32.mxu0 0.0
    %v11142 = vand.u32 %v9270, 4294901760
    %11143 = vmatmul.mubr.f32.gmra.mrb[0].mxu0 %v11142
    %v11144 = vpop.f32.mrb[0].mxu0
    %v11145 = vadd.f32 %v10872, %v11144
    %v11146 = vpop.f32.mrb[0].mxu0
    %11147 = vmatprep.mubr.f32.mxu0 0.0
    %v11148 = vand.u32 %v9271, 4294901760
    %11149 = vmatmul.mubr.f32.gmra.mrb[0].mxu0 %v11148
    %v11150 = vpop.f32.mrb[0].mxu0
    %v11151 = vadd.f32 %v10878, %v11150
    %v11152 = vpop.f32.mrb[0].mxu0
    %11153 = vmatprep.mubr.f32.mxu0 0.0
    %v11154 = vand.u32 %v9272, 4294901760
    %11155 = vmatmul.mubr.f32.gmra.mrb[0].mxu0 %v11154
    %v11156 = vpop.f32.mrb[0].mxu0
    %v11157 = vadd.f32 %v10884, %v11156
    %v11158 = vpop.f32.mrb[0].mxu0
    %11159 = vmatprep.mubr.f32.mxu0 0.0
    %v11160 = vand.u32 %v9273, 4294901760
    %11161 = vmatmul.mubr.f32.gmra.mrb[0].mxu0 %v11160
    %v11162 = vpop.f32.mrb[0].mxu0
    %v11163 = vadd.f32 %v10890, %v11162
    %v11164 = vpop.f32.mrb[0].mxu0
    %11165 = vmatprep.mubr.f32.mxu0 0.0
    %v11166 = vand.u32 %v9274, 4294901760
    %11167 = vmatmul.mubr.f32.gmra.mrb[0].mxu0 %v11166
    %v11168 = vpop.f32.mrb[0].mxu0
    %v11169 = vadd.f32 %v10896, %v11168
    %v11170 = vpop.f32.mrb[0].mxu0
    %11171 = vmatprep.mubr.f32.mxu0 0.0
    %v11172 = vand.u32 %v9275, 4294901760
    %11173 = vmatmul.mubr.f32.gmra.mrb[0].mxu0 %v11172
    %v11174 = vpop.f32.mrb[0].mxu0
    %v11175 = vadd.f32 %v10902, %v11174
    %v11176 = vpop.f32.mrb[0].mxu0
    %11177 = vmatprep.mubr.f32.mxu0 0.0
    %v11178 = vand.u32 %v9276, 4294901760
    %11179 = vmatmul.mubr.f32.gmra.mrb[0].mxu0 %v11178
    %v11180 = vpop.f32.mrb[0].mxu0
    %v11181 = vadd.f32 %v10908, %v11180
    %v11182 = vpop.f32.mrb[0].mxu0
    %11183 = vmatprep.mubr.f32.mxu0 0.0
    %v11184 = vand.u32 %v9277, 4294901760
    %11185 = vmatmul.mubr.f32.gmra.mrb[0].mxu0 %v11184
    %v11186 = vpop.f32.mrb[0].mxu0
    %v11187 = vadd.f32 %v10914, %v11186
    %v11188 = vpop.f32.mrb[0].mxu0
    %11189 = vmatprep.mubr.f32.mxu0 0.0
    %v11190 = vand.u32 %v9278, 4294901760
    %11191 = vmatmul.mubr.f32.gmra.mrb[0].mxu0 %v11190
    %v11192 = vpop.f32.mrb[0].mxu0
    %v11193 = vadd.f32 %v10920, %v11192
    %v11194 = vpop.f32.mrb[0].mxu0
    %11195 = vmatprep.mubr.f32.mxu0 0.0
    %v11196 = vand.u32 %v9279, 4294901760
    %11197 = vmatmul.mubr.f32.gmra.mrb[0].mxu0 %v11196
    %v11198 = vpop.f32.mrb[0].mxu0
    %v11199 = vadd.f32 %v10926, %v11198
    %v11200 = vpop.f32.mrb[0].mxu0
    %11201 = vmatprep.mubr.f32.mxu0 0.0
    %v11202 = vand.u32 %v9280, 4294901760
    %11203 = vmatmul.mubr.f32.gmra.mrb[0].mxu0 %v11202
    %v11204 = vpop.f32.mrb[0].mxu0
    %v11205 = vadd.f32 %v10932, %v11204
    %v11206 = vpop.f32.mrb[0].mxu0
    %11207 = vmatprep.mubr.f32.mxu0 0.0
    %v11208 = vand.u32 %v9281, 4294901760
    %11209 = vmatmul.mubr.f32.gmra.mrb[0].mxu0 %v11208
    %v11210 = vpop.f32.mrb[0].mxu0
    %v11211 = vadd.f32 %v10938, %v11210
    %v11212 = vpop.f32.mrb[0].mxu0
    %11213 = vmatprep.mubr.f32.mxu0 0.0
    %v11214 = vand.u32 %v9282, 4294901760
    %11215 = vmatmul.mubr.f32.gmra.mrb[0].mxu0 %v11214
    %v11216 = vpop.f32.mrb[0].mxu0
    %v11217 = vadd.f32 %v10944, %v11216
    %v11218 = vpop.f32.mrb[0].mxu0
    %11219 = vmatprep.mubr.f32.mxu0 0.0
    %v11220 = vand.u32 %v9283, 4294901760
    %11221 = vmatmul.mubr.f32.gmra.mrb[0].mxu0 %v11220
    %v11222 = vpop.f32.mrb[0].mxu0
    %v11223 = vadd.f32 %v10950, %v11222
    %v11224 = vpop.f32.mrb[0].mxu0
    %11225 = vmatprep.mubr.f32.mxu0 0.0
    %v11226 = vand.u32 %v9284, 4294901760
    %11227 = vmatmul.mubr.f32.gmra.mrb[0].mxu0 %v11226
    %v11228 = vpop.f32.mrb[0].mxu0
    %v11229 = vadd.f32 %v10956, %v11228
    %v11230 = vpop.f32.mrb[0].mxu0
    %11231 = vmatprep.mubr.f32.mxu0 0.0
    %v11232 = vand.u32 %v9285, 4294901760
    %11233 = vmatmul.mubr.f32.gmra.mrb[0].mxu0 %v11232
    %v11234 = vpop.f32.mrb[0].mxu0
    %v11235 = vadd.f32 %v10962, %v11234
    %v11236 = vpop.f32.mrb[0].mxu0
    %11237 = vmatprep.mubr.f32.mxu0 0.0
    %v11238 = vand.u32 %v9286, 4294901760
    %11239 = vmatmul.mubr.f32.gmra.mrb[0].mxu0 %v11238
    %v11240 = vpop.f32.mrb[0].mxu0
    %v11241 = vadd.f32 %v10968, %v11240
    %v11242 = vpop.f32.mrb[0].mxu0
    %11243 = vmatprep.mubr.f32.mxu0 0.0
    %v11244 = vand.u32 %v9287, 4294901760
    %11245 = vmatmul.mubr.f32.gmra.mrb[0].mxu0 %v11244
    %v11246 = vpop.f32.mrb[0].mxu0
    %v11247 = vadd.f32 %v10974, %v11246
    %v11248 = vpop.f32.mrb[0].mxu0
    %11249 = vmatprep.mubr.f32.mxu0 0.0
    %v11250 = vand.u32 %v9288, 4294901760
    %11251 = vmatmul.mubr.f32.gmra.mrb[0].mxu0 %v11250
    %v11252 = vpop.f32.mrb[0].mxu0
    %v11253 = vadd.f32 %v10980, %v11252
    %v11254 = vpop.f32.mrb[0].mxu0
    %11255 = vmatprep.mubr.f32.mxu0 0.0
    %v11256 = vand.u32 %v9289, 4294901760
    %11257 = vmatmul.mubr.f32.gmra.mrb[0].mxu0 %v11256
    %v11258 = vpop.f32.mrb[0].mxu0
    %v11259 = vadd.f32 %v10986, %v11258
    %v11260 = vpop.f32.mrb[0].mxu0
    %11261 = vmatprep.mubr.f32.mxu0 0.0
    %v11262 = vand.u32 %v9290, 4294901760
    %11263 = vmatmul.mubr.f32.gmra.mrb[0].mxu0 %v11262
    %v11264 = vpop.f32.mrb[0].mxu0
    %v11265 = vadd.f32 %v10992, %v11264
    %v11266 = vpop.f32.mrb[0].mxu0
    %11267 = vmatprep.mubr.f32.mxu0 0.0
    %v11268 = vand.u32 %v9291, 4294901760
    %11269 = vmatmul.mubr.f32.gmra.mrb[0].mxu0 %v11268
    %v11270 = vpop.f32.mrb[0].mxu0
    %v11271 = vadd.f32 %v10998, %v11270
    %v11272 = vpop.f32.mrb[0].mxu0
    %11273 = vmatprep.mubr.f32.mxu0 0.0
    %v11274 = vand.u32 %v9292, 4294901760
    %11275 = vmatmul.mubr.f32.gmra.mrb[0].mxu0 %v11274
    %v11276 = vpop.f32.mrb[0].mxu0
    %v11277 = vadd.f32 %v11004, %v11276
    %v11278 = vpop.f32.mrb[0].mxu0
    %11279 = vmatprep.mubr.f32.mxu0 0.0
    %v11280 = vand.u32 %v9293, 4294901760
    %11281 = vmatmul.mubr.f32.gmra.mrb[0].mxu0 %v11280
    %v11282 = vpop.f32.mrb[0].mxu0
    %v11283 = vadd.f32 %v11010, %v11282
    %v11284 = vpop.f32.mrb[0].mxu0
    %11285 = vmatprep.mubr.f32.mxu0 0.0
    %v11286 = vand.u32 %v9294, 4294901760
    %11287 = vmatmul.mubr.f32.gmra.mrb[0].mxu0 %v11286
    %v11288 = vpop.f32.mrb[0].mxu0
    %v11289 = vadd.f32 %v11016, %v11288
    %v11290 = vpop.f32.mrb[0].mxu0
    %11291 = vdwg.mxu0
    %11292 = vst [vmem:[#allocation5] sm:$0xff] %v11103
    %11293 = vst [vmem:[#allocation5 + $0x8] sm:$0xff] %v11109
    %11294 = vst [vmem:[#allocation5 + $0x10] sm:$0xff] %v11115
    %11295 = vst [vmem:[#allocation5 + $0x18] sm:$0xff] %v11121
    %11296 = vst [vmem:[#allocation5 + $0x20] sm:$0xff] %v11127
    %11297 = vst [vmem:[#allocation5 + $0x28] sm:$0xff] %v11133
    %11298 = vst [vmem:[#allocation5 + $0x30] sm:$0xff] %v11139
    %11299 = vst [vmem:[#allocation5 + $0x38] sm:$0xff] %v11145
    %11300 = vst [vmem:[#allocation5 + $0x40] sm:$0xff] %v11151
    %11301 = vst [vmem:[#allocation5 + $0x48] sm:$0xff] %v11157
    %11302 = vst [vmem:[#allocation5 + $0x50] sm:$0xff] %v11163
    %11303 = vst [vmem:[#allocation5 + $0x58] sm:$0xff] %v11169
    %11304 = vst [vmem:[#allocation5 + $0x60] sm:$0xff] %v11175
    %11305 = vst [vmem:[#allocation5 + $0x68] sm:$0xff] %v11181
    %11306 = vst [vmem:[#allocation5 + $0x70] sm:$0xff] %v11187
    %11307 = vst [vmem:[#allocation5 + $0x78] sm:$0xff] %v11193
    %11308 = vst [vmem:[#allocation5 + $0x80] sm:$0xff] %v11199
    %11309 = vst [vmem:[#allocation5 + $0x88] sm:$0xff] %v11205
    %11310 = vst [vmem:[#allocation5 + $0x90] sm:$0xff] %v11211
    %11311 = vst [vmem:[#allocation5 + $0x98] sm:$0xff] %v11217
    %11312 = vst [vmem:[#allocation5 + $0xa0] sm:$0xff] %v11223
    %11313 = vst [vmem:[#allocation5 + $0xa8] sm:$0xff] %v11229
    %11314 = vst [vmem:[#allocation5 + $0xb0] sm:$0xff] %v11235
    %11315 = vst [vmem:[#allocation5 + $0xb8] sm:$0xff] %v11241
    %11316 = vst [vmem:[#allocation5 + $0xc0] sm:$0xff] %v11247
    %11317 = vst [vmem:[#allocation5 + $0xc8] sm:$0xff] %v11253
    %11318 = vst [vmem:[#allocation5 + $0xd0] sm:$0xff] %v11259
    %11319 = vst [vmem:[#allocation5 + $0xd8] sm:$0xff] %v11265
    %11320 = vst [vmem:[#allocation5 + $0xe0] sm:$0xff] %v11271
    %11321 = vst [vmem:[#allocation5 + $0xe8] sm:$0xff] %v11277
    %11322 = vst [vmem:[#allocation5 + $0xf0] sm:$0xff] %v11283
    %11323 = vst [vmem:[#allocation5 + $0xf8] sm:$0xff] %v11289
    // Predicated region
    $region38: #{_forward_fused.1} parent=1 // pred_check
      _
    $region39: #{_forward_fused.1} parent=1 // pred_check_branch
      %11325 = sbr.rel (0) target = $region41
    $region40: #{_forward_fused.1} parent=1 // pred_region
      %s11327 = ssub.s32 4096, 4096
      %11328 = vsyncadd [#allocation4], %s11327
      %s11329 = sshll.u32 [#allocation5], 4
      %s11330 = int_to_ptr.vmem [resolvable:$true] %s11329
      %11335 = dma.vmem_to_hbm [thread:$0]  %s11330, 4096, %s8, [#allocation4], 128, 128, 8
    $region41: #{_forward_fused.1} parent=1 // pred_fallthru
      _
    // Predicated region
    $region42: #{_forward_fused.1} parent=1 // pred_check
      _
    $region43: #{_forward_fused.1} parent=1 // pred_check_branch
      %11337 = sbr.rel (0) target = $region45
    $region44: #{_forward_fused.1} parent=1 // pred_region
      %11338 = dma.done [#allocation4], 4096
    $region45: #{_forward_fused.1} parent=1 // pred_fallthru
      _
    %11339 = vsyncpa [#allocation3], 1
    %11340 = vsyncpa [#allocation4], 1

</llo_original>
